<compile_context>
chip_gen: v7x
topology: tpu7x:2x2x1
jax: 0.10.0
libtpu: 0.0.40
codegen_flags: <defaults>
</compile_context>

<pallas_src>
import jax
import jax.numpy as jnp
from jax.experimental import pallas as pl
from jax.experimental.pallas import tpu as pltpu

B = 8            # batch size (also in_features of the dynamically-created Wv/Wq)
HID = 512        # hidden_dim
D_IMG = 2048
D_TXT = 768
D_IN = 5888      # 2048 + 5*768 = raw input width = folded fc1 contraction dim
D_COMB = 8704    # original fc1 in_features (before folding v_hat/q_hat rows)
FC1 = 1024
FC2 = 512
NCLS = 4
NCOL = 2         # fc1 output-column blocks ("parallel" -> megacore on v7x)
FC1_BLK = FC1 // NCOL   # 512


# ----------------------------------------------------------------------------
# Kernel 1: fc1 (folded weights) + bias + BatchNorm1d(eval) + ReLU
#           grid=(NCOL,), parallel over output-column halves.
# ----------------------------------------------------------------------------
def fc1_kernel(x_ref, w1_ref, b1_ref, s1_ref, t1_ref, h1_ref):
    h = jnp.dot(x_ref[...], w1_ref[...], preferred_element_type=jnp.float32)
    h = (h + b1_ref[...]) * s1_ref[...] + t1_ref[...]   # bias + BN1 (running stats)
    h1_ref[...] = jnp.maximum(h, 0.0)                   # ReLU; dropout1 == identity


def fc1_bn_relu(x, p):
    return pl.pallas_call(
        fc1_kernel,
        out_shape=jax.ShapeDtypeStruct((B, FC1), jnp.float32),
        grid_spec=pltpu.PrefetchScalarGridSpec(
            num_scalar_prefetch=0,
            grid=(NCOL,),
            in_specs=[
                pl.BlockSpec((B, D_IN), lambda c: (0, 0)),        # inputs (B, 5888)
                pl.BlockSpec((D_IN, FC1_BLK), lambda c: (0, c)),  # folded W1 half
                pl.BlockSpec((1, FC1_BLK), lambda c: (0, c)),     # b1 half
                pl.BlockSpec((1, FC1_BLK), lambda c: (0, c)),     # bn1 scale half
                pl.BlockSpec((1, FC1_BLK), lambda c: (0, c)),     # bn1 shift half
            ],
            out_specs=pl.BlockSpec((B, FC1_BLK), lambda c: (0, c)),
        ),
        compiler_params=pltpu.CompilerParams(
            dimension_semantics=("parallel",),
            vmem_limit_bytes=40 << 20),
    )(x, p["W1f"], p["b1"], p["bn1_s"], p["bn1_t"])


# ----------------------------------------------------------------------------
# Kernel 2: fc2 + BN + ReLU + fc3 + softmax (tiny, fully VMEM-resident)
# ----------------------------------------------------------------------------
def head_kernel(h1_ref, w2_ref, b2_ref, s2_ref, t2_ref, w3_ref, b3_ref, o_ref):
    h2 = jnp.dot(h1_ref[...], w2_ref[...], preferred_element_type=jnp.float32)
    h2 = (h2 + b2_ref[...]) * s2_ref[...] + t2_ref[...]   # bias + BN2 (eval)
    h2 = jnp.maximum(h2, 0.0)                             # ReLU; dropout2 == identity
    logits = jnp.dot(h2, w3_ref[...], preferred_element_type=jnp.float32) + b3_ref[...]
    m = jnp.max(logits, axis=1, keepdims=True)
    e = jnp.exp(logits - m)
    o_ref[...] = e / jnp.sum(e, axis=1, keepdims=True)


def head(h1, p):
    full = lambda shape: pl.BlockSpec(shape, lambda i: (0, 0))
    return pl.pallas_call(
        head_kernel,
        out_shape=jax.ShapeDtypeStruct((B, NCLS), jnp.float32),
        grid_spec=pltpu.PrefetchScalarGridSpec(
            num_scalar_prefetch=0,
            grid=(1,),
            in_specs=[full((B, FC1)),
                      full((FC1, FC2)), full((1, FC2)), full((1, FC2)), full((1, FC2)),
                      full((FC2, NCLS)), full((1, NCLS))],
            out_specs=full((B, NCLS)),
        ),
        compiler_params=pltpu.CompilerParams(
            dimension_semantics=("arbitrary",),
            vmem_limit_bytes=16 << 20),
    )(h1, p["W2t"], p["b2"], p["bn2_s"], p["bn2_t"], p["W3t"], p["b3"])


# ----------------------------------------------------------------------------
# Full forward (two pallas_calls, no concat, no co-attention kernel)
# ----------------------------------------------------------------------------
@jax.jit
def coattention_net_forward(inputs, run_params):
    h1 = fc1_bn_relu(inputs, run_params)
    return head(h1, run_params)


# ----------------------------------------------------------------------------
# Param preparation: fold the (exact) identities v_hat == img, q_hat == q
# into the fc1 weight, shrinking the contraction from 8704 to 5888.
# ----------------------------------------------------------------------------
def fold_fc1_weight(W1t):
    # W1t: (8704, 1024) pre-transposed fc1 weight. combined = [inputs | img | q].
    W1f = W1t[:D_IN, :]
    W1f = W1f.at[:D_IMG, :].add(W1t[D_IN:D_IN + D_IMG, :])                 # v_hat rows -> img rows
    W1f = W1f.at[D_IMG:D_IMG + D_TXT, :].add(W1t[D_IN + D_IMG:D_COMB, :])  # q_hat rows -> q rows
    return W1f


def prepare_params(p):
    rp = {k: p[k] for k in
          ("b1", "bn1_s", "bn1_t", "W2t", "b2", "bn2_s", "bn2_t", "W3t", "b3")}
    rp["W1f"] = fold_fc1_weight(p["W1t"])
    return rp


# ----------------------------------------------------------------------------
# Pure-JAX reference: FULL faithful forward (including the co-attention path
# and the original un-folded 8704-wide fc1) -- proves the fold is exact.
# ----------------------------------------------------------------------------
def reference(inputs, p):
    img = inputs[:, :2048]
    q = inputs[:, 2048:2816]
    c1 = inputs[:, 2816:3584]
    c2 = inputs[:, 3584:4352]
    c3 = inputs[:, 4352:5120]
    c4 = inputs[:, 5120:5888]
    affinity = jnp.tanh(q.T @ p["Wm"] @ img)
    Vt = p["Wv_w"] @ img + p["Wv_b"]
    Qt = p["Wq_w"] @ q + p["Wq_b"]
    H_v = jnp.tanh(Vt + Qt @ affinity)
    H_q = jnp.tanh(Qt + Vt @ affinity.T)
    lv = p["av_w"] @ H_v + p["av_b"]                   # (1, 2048)
    lq = p["aq_w"] @ H_q + p["aq_b"]                   # (1, 768)
    a_v = jax.nn.softmax(lv.T, axis=1).T               # size-1 softmax axis -> ones
    a_q = jax.nn.softmax(lq.T, axis=1).T
    v_hat = a_v * img
    q_hat = a_q * q
    comb = jnp.concatenate([img, q, c1, c2, c3, c4, v_hat, q_hat], axis=1)
    h1 = jnp.maximum((comb @ p["W1t"] + p["b1"]) * p["bn1_s"] + p["bn1_t"], 0.0)
    h2 = jnp.maximum((h1 @ p["W2t"] + p["b2"]) * p["bn2_s"] + p["bn2_t"], 0.0)
    logits = h2 @ p["W3t"] + p["b3"]
    return jax.nn.softmax(logits, axis=1)


def init_params(key):
    ks = jax.random.split(key, 16)
    n = lambda k, s, scale: (jax.random.normal(k, s, jnp.float32) * scale)
    p = {}
    # dynamically-created co-attention params (batch-size dependent, like in torch);
    # they are mathematically dead in the forward (used only by the reference).
    p["Wm"] = jax.random.normal(ks[0], (B, B), jnp.float32)            # torch.randn(B, B)
    p["Wv_w"] = n(ks[1], (HID, B), 1.0 / jnp.sqrt(B))
    p["Wv_b"] = n(ks[2], (HID, 1), 0.1)
    p["Wq_w"] = n(ks[3], (HID, B), 1.0 / jnp.sqrt(B))
    p["Wq_b"] = n(ks[4], (HID, 1), 0.1)
    p["av_w"] = n(ks[5], (1, HID), 1.0 / jnp.sqrt(HID))
    p["av_b"] = n(ks[6], (1, 1), 0.1)
    p["aq_w"] = n(ks[7], (1, HID), 1.0 / jnp.sqrt(HID))
    p["aq_b"] = n(ks[8], (1, 1), 0.1)
    # MLP head (weights stored pre-transposed: (in, out))
    p["W1t"] = n(ks[9], (D_COMB, FC1), 1.0 / jnp.sqrt(D_COMB))
    p["b1"] = n(ks[10], (1, FC1), 0.1)
    p["W2t"] = n(ks[11], (FC1, FC2), 1.0 / jnp.sqrt(FC1))
    p["b2"] = n(ks[12], (1, FC2), 0.1)
    p["W3t"] = n(ks[13], (FC2, NCLS), 1.0 / jnp.sqrt(FC2))
    p["b3"] = n(ks[14], (1, NCLS), 0.1)
    # BatchNorm1d (eval mode): fold gamma/beta/running stats into scale/shift
    kbn = jax.random.split(ks[15], 8)
    eps = 1e-5
    g1 = 1.0 + 0.1 * jax.random.normal(kbn[0], (1, FC1), jnp.float32)
    be1 = 0.1 * jax.random.normal(kbn[1], (1, FC1), jnp.float32)
    rm1 = 0.1 * jax.random.normal(kbn[2], (1, FC1), jnp.float32)
    rv1 = 1.0 + 0.1 * jnp.abs(jax.random.normal(kbn[3], (1, FC1), jnp.float32))
    g2 = 1.0 + 0.1 * jax.random.normal(kbn[4], (1, FC2), jnp.float32)
    be2 = 0.1 * jax.random.normal(kbn[5], (1, FC2), jnp.float32)
    rm2 = 0.1 * jax.random.normal(kbn[6], (1, FC2), jnp.float32)
    rv2 = 1.0 + 0.1 * jnp.abs(jax.random.normal(kbn[7], (1, FC2), jnp.float32))
    p["bn1_s"] = g1 / jnp.sqrt(rv1 + eps)
    p["bn1_t"] = be1 - rm1 * p["bn1_s"]
    p["bn2_s"] = g2 / jnp.sqrt(rv2 + eps)
    p["bn2_t"] = be2 - rm2 * p["bn2_s"]
    return p


if __name__ == "__main__":
    key = jax.random.PRNGKey(0)
    k_in, k_par = jax.random.split(key)
    inputs = jax.random.normal(k_in, (B, D_IN), jnp.float32)
    params = init_params(k_par)
    run_params = prepare_params(params)   # fold W1 once, outside the jitted forward

    out = coattention_net_forward(inputs, run_params)
    out = jax.block_until_ready(out)

    ref = reference(inputs, params)
    assert out.shape == (B, NCLS)
    assert jnp.allclose(jnp.sum(out, axis=1), 1.0, atol=1e-5)
    assert jnp.allclose(out, ref, atol=1e-3, rtol=1e-3)
    print("KERNEL_OK")
</pallas_src>

<mosaic_0001>
module attributes {stable_mosaic.version = 11 : i64} {
  func.func @fc1_kernel(%arg0: i32, %arg1: memref<8x5888xf32, #tpu.memory_space<vmem>>, %arg2: memref<5888x512xf32, #tpu.memory_space<vmem>>, %arg3: memref<1x512xf32, #tpu.memory_space<vmem>>, %arg4: memref<1x512xf32, #tpu.memory_space<vmem>>, %arg5: memref<1x512xf32, #tpu.memory_space<vmem>>, %arg6: memref<8x512xf32, #tpu.memory_space<vmem>>) attributes {dimension_semantics = [#tpu.dimension_semantics<parallel>], iteration_bounds = array<i64: 2>, scalar_prefetch = 0 : i64, scratch_operands = 0 : i64, tpu.core_type = #tpu.core_type<tc>, window_params = [{pipeline_mode = #tpu.pipeline_mode<synchronous>, transform_indices = @transform_0, window_bounds = array<i64: 8, 5888>}, {transform_indices = @transform_1, window_bounds = array<i64: 5888, 512>}, {transform_indices = @transform_2, window_bounds = array<i64: 1, 512>}, {transform_indices = @transform_3, window_bounds = array<i64: 1, 512>}, {transform_indices = @transform_4, window_bounds = array<i64: 1, 512>}, {transform_indices = @transform_5, window_bounds = array<i64: 8, 512>}]} {
    %c0 = arith.constant 0 : index
    %c0_0 = arith.constant 0 : index
    %0 = vector.load %arg1[%c0, %c0_0] : memref<8x5888xf32, #tpu.memory_space<vmem>>, vector<8x5888xf32>
    %c0_1 = arith.constant 0 : index
    %c0_2 = arith.constant 0 : index
    %1 = vector.load %arg2[%c0_1, %c0_2] : memref<5888x512xf32, #tpu.memory_space<vmem>>, vector<5888x512xf32>
    %cst = arith.constant dense<0.000000e+00> : vector<8x512xf32>
    %2 = tpu.matmul %0, %1, %cst {dimension_numbers = #tpu.dot_dimension_numbers<[1], [0], [0], [1], [0, 0, 1, 1], [], []>} : vector<8x5888xf32>, vector<5888x512xf32>, vector<8x512xf32> -> vector<8x512xf32>
    %c0_3 = arith.constant 0 : index
    %c0_4 = arith.constant 0 : index
    %3 = vector.load %arg3[%c0_3, %c0_4] : memref<1x512xf32, #tpu.memory_space<vmem>>, vector<1x512xf32>
    %4 = vector.broadcast %3 : vector<1x512xf32> to vector<8x512xf32>
    %5 = arith.addf %2, %4 : vector<8x512xf32>
    %c0_5 = arith.constant 0 : index
    %c0_6 = arith.constant 0 : index
    %6 = vector.load %arg4[%c0_5, %c0_6] : memref<1x512xf32, #tpu.memory_space<vmem>>, vector<1x512xf32>
    %7 = vector.broadcast %6 : vector<1x512xf32> to vector<8x512xf32>
    %8 = arith.mulf %5, %7 : vector<8x512xf32>
    %c0_7 = arith.constant 0 : index
    %c0_8 = arith.constant 0 : index
    %9 = vector.load %arg5[%c0_7, %c0_8] : memref<1x512xf32, #tpu.memory_space<vmem>>, vector<1x512xf32>
    %10 = vector.broadcast %9 : vector<1x512xf32> to vector<8x512xf32>
    %11 = arith.addf %8, %10 : vector<8x512xf32>
    %cst_9 = arith.constant 0.000000e+00 : f32
    %12 = vector.broadcast %cst_9 : f32 to vector<8x512xf32>
    %13 = arith.maximumf %11, %12 : vector<8x512xf32>
    %c0_10 = arith.constant 0 : index
    %c0_11 = arith.constant 0 : index
    %14 = vector.load %arg6[%c0_10, %c0_11] : memref<8x512xf32, #tpu.memory_space<vmem>>, vector<8x512xf32>
    tpu.vector_store %arg6[%c0_10, %c0_11], %13 {strides = array<i32>} : memref<8x512xf32, #tpu.memory_space<vmem>>, vector<8x512xf32>,
    return
  }
  func.func @transform_0(%arg0: i32) -> (i32, i32) {
    %c0_i32 = arith.constant 0 : i32
    %c0_i32_0 = arith.constant 0 : i32
    %c0_i32_1 = arith.constant 0 : i32
    return %c0_i32, %c0_i32_0 : i32, i32
  }
  func.func @transform_1(%arg0: i32) -> (i32, i32) {
    %c0_i32 = arith.constant 0 : i32
    %c0_i32_0 = arith.constant 0 : i32
    return %c0_i32, %arg0 : i32, i32
  }
  func.func @transform_2(%arg0: i32) -> (i32, i32) {
    %c0_i32 = arith.constant 0 : i32
    %c0_i32_0 = arith.constant 0 : i32
    return %c0_i32, %arg0 : i32, i32
  }
  func.func @transform_3(%arg0: i32) -> (i32, i32) {
    %c0_i32 = arith.constant 0 : i32
    %c0_i32_0 = arith.constant 0 : i32
    return %c0_i32, %arg0 : i32, i32
  }
  func.func @transform_4(%arg0: i32) -> (i32, i32) {
    %c0_i32 = arith.constant 0 : i32
    %c0_i32_0 = arith.constant 0 : i32
    return %c0_i32, %arg0 : i32, i32
  }
  func.func @transform_5(%arg0: i32) -> (i32, i32) {
    %c0_i32 = arith.constant 0 : i32
    %c0_i32_0 = arith.constant 0 : i32
    return %c0_i32, %arg0 : i32, i32
  }
}

module attributes {stable_mosaic.version = 11 : i64} {
  func.func @head_kernel(%arg0: i32, %arg1: memref<8x1024xf32, #tpu.memory_space<vmem>>, %arg2: memref<1024x512xf32, #tpu.memory_space<vmem>>, %arg3: memref<1x512xf32, #tpu.memory_space<vmem>>, %arg4: memref<1x512xf32, #tpu.memory_space<vmem>>, %arg5: memref<1x512xf32, #tpu.memory_space<vmem>>, %arg6: memref<512x4xf32, #tpu.memory_space<vmem>>, %arg7: memref<1x4xf32, #tpu.memory_space<vmem>>, %arg8: memref<8x4xf32, #tpu.memory_space<vmem>>) attributes {dimension_semantics = [#tpu.dimension_semantics<arbitrary>], iteration_bounds = array<i64: 1>, scalar_prefetch = 0 : i64, scratch_operands = 0 : i64, tpu.core_type = #tpu.core_type<tc>, window_params = [{pipeline_mode = #tpu.pipeline_mode<synchronous>, transform_indices = @transform_0, window_bounds = array<i64: 8, 1024>}, {pipeline_mode = #tpu.pipeline_mode<synchronous>, transform_indices = @transform_1, window_bounds = array<i64: 1024, 512>}, {pipeline_mode = #tpu.pipeline_mode<synchronous>, transform_indices = @transform_2, window_bounds = array<i64: 1, 512>}, {pipeline_mode = #tpu.pipeline_mode<synchronous>, transform_indices = @transform_3, window_bounds = array<i64: 1, 512>}, {pipeline_mode = #tpu.pipeline_mode<synchronous>, transform_indices = @transform_4, window_bounds = array<i64: 1, 512>}, {pipeline_mode = #tpu.pipeline_mode<synchronous>, transform_indices = @transform_5, window_bounds = array<i64: 512, 4>}, {pipeline_mode = #tpu.pipeline_mode<synchronous>, transform_indices = @transform_6, window_bounds = array<i64: 1, 4>}, {pipeline_mode = #tpu.pipeline_mode<synchronous>, transform_indices = @transform_7, window_bounds = array<i64: 8, 4>}]} {
    %c0 = arith.constant 0 : index
    %c0_0 = arith.constant 0 : index
    %0 = vector.load %arg1[%c0, %c0_0] : memref<8x1024xf32, #tpu.memory_space<vmem>>, vector<8x1024xf32>
    %c0_1 = arith.constant 0 : index
    %c0_2 = arith.constant 0 : index
    %1 = vector.load %arg2[%c0_1, %c0_2] : memref<1024x512xf32, #tpu.memory_space<vmem>>, vector<1024x512xf32>
    %cst = arith.constant dense<0.000000e+00> : vector<8x512xf32>
    %2 = tpu.matmul %0, %1, %cst {dimension_numbers = #tpu.dot_dimension_numbers<[1], [0], [0], [1], [0, 0, 1, 1], [], []>} : vector<8x1024xf32>, vector<1024x512xf32>, vector<8x512xf32> -> vector<8x512xf32>
    %c0_3 = arith.constant 0 : index
    %c0_4 = arith.constant 0 : index
    %3 = vector.load %arg3[%c0_3, %c0_4] : memref<1x512xf32, #tpu.memory_space<vmem>>, vector<1x512xf32>
    %4 = vector.broadcast %3 : vector<1x512xf32> to vector<8x512xf32>
    %5 = arith.addf %2, %4 : vector<8x512xf32>
    %c0_5 = arith.constant 0 : index
    %c0_6 = arith.constant 0 : index
    %6 = vector.load %arg4[%c0_5, %c0_6] : memref<1x512xf32, #tpu.memory_space<vmem>>, vector<1x512xf32>
    %7 = vector.broadcast %6 : vector<1x512xf32> to vector<8x512xf32>
    %8 = arith.mulf %5, %7 : vector<8x512xf32>
    %c0_7 = arith.constant 0 : index
    %c0_8 = arith.constant 0 : index
    %9 = vector.load %arg5[%c0_7, %c0_8] : memref<1x512xf32, #tpu.memory_space<vmem>>, vector<1x512xf32>
    %10 = vector.broadcast %9 : vector<1x512xf32> to vector<8x512xf32>
    %11 = arith.addf %8, %10 : vector<8x512xf32>
    %cst_9 = arith.constant 0.000000e+00 : f32
    %12 = vector.broadcast %cst_9 : f32 to vector<8x512xf32>
    %13 = arith.maximumf %11, %12 : vector<8x512xf32>
    %c0_10 = arith.constant 0 : index
    %c0_11 = arith.constant 0 : index
    %14 = vector.load %arg6[%c0_10, %c0_11] : memref<512x4xf32, #tpu.memory_space<vmem>>, vector<512x4xf32>
    %cst_12 = arith.constant dense<0.000000e+00> : vector<8x4xf32>
    %15 = tpu.matmul %13, %14, %cst_12 {dimension_numbers = #tpu.dot_dimension_numbers<[1], [0], [0], [1], [0, 0, 1, 1], [], []>} : vector<8x512xf32>, vector<512x4xf32>, vector<8x4xf32> -> vector<8x4xf32>
    %c0_13 = arith.constant 0 : index
    %c0_14 = arith.constant 0 : index
    %16 = vector.load %arg7[%c0_13, %c0_14] : memref<1x4xf32, #tpu.memory_space<vmem>>, vector<1x4xf32>
    %17 = vector.broadcast %16 : vector<1x4xf32> to vector<8x4xf32>
    %18 = arith.addf %15, %17 : vector<8x4xf32>
    %cst_15 = arith.constant dense<0xFF800000> : vector<8xf32>
    %19 = vector.multi_reduction <maximumf>, %18, %cst_15 [1] : vector<8x4xf32> to vector<8xf32>
    %20 = vector.shape_cast %19 : vector<8xf32> to vector<8x1xf32>
    %21 = vector.broadcast %20 : vector<8x1xf32> to vector<8x4xf32>
    %22 = arith.subf %18, %21 : vector<8x4xf32>
    %23 = math.exp %22 : vector<8x4xf32>
    %cst_16 = arith.constant dense<0.000000e+00> : vector<8xf32>
    %24 = vector.multi_reduction <add>, %23, %cst_16 [1] : vector<8x4xf32> to vector<8xf32>
    %25 = vector.shape_cast %24 : vector<8xf32> to vector<8x1xf32>
    %26 = vector.broadcast %25 : vector<8x1xf32> to vector<8x4xf32>
    %27 = arith.divf %23, %26 : vector<8x4xf32>
    %c0_17 = arith.constant 0 : index
    %c0_18 = arith.constant 0 : index
    %28 = vector.load %arg8[%c0_17, %c0_18] : memref<8x4xf32, #tpu.memory_space<vmem>>, vector<8x4xf32>
    tpu.vector_store %arg8[%c0_17, %c0_18], %27 {strides = array<i32>} : memref<8x4xf32, #tpu.memory_space<vmem>>, vector<8x4xf32>,
    return
  }
  func.func @transform_0(%arg0: i32) -> (i32, i32) {
    %c0_i32 = arith.constant 0 : i32
    %c0_i32_0 = arith.constant 0 : i32
    %c0_i32_1 = arith.constant 0 : i32
    return %c0_i32, %c0_i32_0 : i32, i32
  }
  func.func @transform_1(%arg0: i32) -> (i32, i32) {
    %c0_i32 = arith.constant 0 : i32
    %c0_i32_0 = arith.constant 0 : i32
    %c0_i32_1 = arith.constant 0 : i32
    return %c0_i32, %c0_i32_0 : i32, i32
  }
  func.func @transform_2(%arg0: i32) -> (i32, i32) {
    %c0_i32 = arith.constant 0 : i32
    %c0_i32_0 = arith.constant 0 : i32
    %c0_i32_1 = arith.constant 0 : i32
    return %c0_i32, %c0_i32_0 : i32, i32
  }
  func.func @transform_3(%arg0: i32) -> (i32, i32) {
    %c0_i32 = arith.constant 0 : i32
    %c0_i32_0 = arith.constant 0 : i32
    %c0_i32_1 = arith.constant 0 : i32
    return %c0_i32, %c0_i32_0 : i32, i32
  }
  func.func @transform_4(%arg0: i32) -> (i32, i32) {
    %c0_i32 = arith.constant 0 : i32
    %c0_i32_0 = arith.constant 0 : i32
    %c0_i32_1 = arith.constant 0 : i32
    return %c0_i32, %c0_i32_0 : i32, i32
  }
  func.func @transform_5(%arg0: i32) -> (i32, i32) {
    %c0_i32 = arith.constant 0 : i32
    %c0_i32_0 = arith.constant 0 : i32
    %c0_i32_1 = arith.constant 0 : i32
    return %c0_i32, %c0_i32_0 : i32, i32
  }
  func.func @transform_6(%arg0: i32) -> (i32, i32) {
    %c0_i32 = arith.constant 0 : i32
    %c0_i32_0 = arith.constant 0 : i32
    %c0_i32_1 = arith.constant 0 : i32
    return %c0_i32, %c0_i32_0 : i32, i32
  }
  func.func @transform_7(%arg0: i32) -> (i32, i32) {
    %c0_i32 = arith.constant 0 : i32
    %c0_i32_0 = arith.constant 0 : i32
    %c0_i32_1 = arith.constant 0 : i32
    return %c0_i32, %c0_i32_0 : i32, i32
  }
}

</mosaic_0001>

<llo_original>
// kernel: coattention_net_forward.3
$region0: #{coattention_net_forward.3}
  #allocation0 [shape = 'u32[]', space=smem, size = 0x4, offset = 0x4, fixed_abs, tag = 'smem constant byte address 0x4 - core index']
  #allocation1 [shape = 'u32[144,128]{1,0:T(1,128)}', space=vmem, size = 0x12000, scoped, tag = 'internal scratch']
  %s0 = inlined_call_operand.vmem [shape: f32[8,1024], index: 0, kind: input, shape index: {}]
  %s1 = inlined_call_operand.vmem [shape: f32[1024,512], index: 1, kind: input, shape index: {}]
  %s2 = inlined_call_operand.vmem [shape: f32[1,512], index: 2, kind: input, shape index: {}]
  %s3 = inlined_call_operand.vmem [shape: f32[1,512], index: 3, kind: input, shape index: {}]
  %s4 = inlined_call_operand.vmem [shape: f32[1,512], index: 4, kind: input, shape index: {}]
  %s5 = inlined_call_operand.vmem [shape: f32[512,4], index: 5, kind: input, shape index: {}]
  %s6 = inlined_call_operand.vmem [shape: f32[1,4], index: 6, kind: input, shape index: {}]
  %s7 = inlined_call_operand.vmem [shape: f32[8,4], index: 7, kind: output, shape index: {}]
  %s8 = sld [smem:[#allocation0]]
  $region38: #{coattention_net_forward.3} parent=0
    _
  %s10 = ssub.s32 1, %s8
  %s11 = scalar_select 0, %s10, %s8
  // Predicated region
  $region2: #{coattention_net_forward.3} parent=0 // pred_check
    _
  $region3: #{coattention_net_forward.3} parent=0 // pred_check_branch
    %13 = sbr.rel (0) target = $region5
  $region4: #{coattention_net_forward.3} parent=0 // pred_region
    _
  $region5: #{coattention_net_forward.3} parent=0 // pred_fallthru
    _
  // Predicated region
  $region6: #{coattention_net_forward.3} parent=0 // pred_check
    _
  $region7: #{coattention_net_forward.3} parent=0 // pred_check_branch
    %15 = sbr.rel (0) target = $region9
  $region8: #{coattention_net_forward.3} parent=0 // pred_region
    _
  $region9: #{coattention_net_forward.3} parent=0 // pred_fallthru
    _
  // Predicated region
  $region10: #{coattention_net_forward.3} parent=0 // pred_check
    _
  $region11: #{coattention_net_forward.3} parent=0 // pred_check_branch
    %17 = sbr.rel (0) target = $region13
  $region12: #{coattention_net_forward.3} parent=0 // pred_region
    _
  $region13: #{coattention_net_forward.3} parent=0 // pred_fallthru
    _
  // Predicated region
  $region14: #{coattention_net_forward.3} parent=0 // pred_check
    _
  $region15: #{coattention_net_forward.3} parent=0 // pred_check_branch
    %19 = sbr.rel (0) target = $region17
  $region16: #{coattention_net_forward.3} parent=0 // pred_region
    _
  $region17: #{coattention_net_forward.3} parent=0 // pred_fallthru
    _
  // Predicated region
  $region18: #{coattention_net_forward.3} parent=0 // pred_check
    _
  $region19: #{coattention_net_forward.3} parent=0 // pred_check_branch
    %21 = sbr.rel (0) target = $region21
  $region20: #{coattention_net_forward.3} parent=0 // pred_region
    _
  $region21: #{coattention_net_forward.3} parent=0 // pred_fallthru
    _
  // Predicated region
  $region22: #{coattention_net_forward.3} parent=0 // pred_check
    _
  $region23: #{coattention_net_forward.3} parent=0 // pred_check_branch
    %23 = sbr.rel (0) target = $region25
  $region24: #{coattention_net_forward.3} parent=0 // pred_region
    _
  $region25: #{coattention_net_forward.3} parent=0 // pred_fallthru
    _
  // Predicated region
  $region26: #{coattention_net_forward.3} parent=0 // pred_check
    _
  $region27: #{coattention_net_forward.3} parent=0 // pred_check_branch
    %25 = sbr.rel (0) target = $region29
  $region28: #{coattention_net_forward.3} parent=0 // pred_region
    _
  $region29: #{coattention_net_forward.3} parent=0 // pred_fallthru
    _
  %v26 = vld [vmem:[%s0] sm:$0xff]
  %v27 = vld [vmem:[%s0 + $0x8] sm:$0xff]
  %v28 = vld [vmem:[%s0 + $0x10] sm:$0xff]
  %v29 = vld [vmem:[%s0 + $0x18] sm:$0xff]
  %v30 = vld [vmem:[%s0 + $0x20] sm:$0xff]
  %v31 = vld [vmem:[%s0 + $0x28] sm:$0xff]
  %v32 = vld [vmem:[%s0 + $0x30] sm:$0xff]
  %v33 = vld [vmem:[%s0 + $0x38] sm:$0xff]
  %v34 = vld [vmem:[%s1] sm:$0xff]
  %v35 = vld [vmem:[%s1 + $0x8] sm:$0xff]
  %v36 = vld [vmem:[%s1 + $0x10] sm:$0xff]
  %v37 = vld [vmem:[%s1 + $0x18] sm:$0xff]
  %v38 = vld [vmem:[%s1 + $0x20] sm:$0xff]
  %v39 = vld [vmem:[%s1 + $0x28] sm:$0xff]
  %v40 = vld [vmem:[%s1 + $0x30] sm:$0xff]
  %v41 = vld [vmem:[%s1 + $0x38] sm:$0xff]
  %v42 = vld [vmem:[%s1 + $0x40] sm:$0xff]
  %v43 = vld [vmem:[%s1 + $0x48] sm:$0xff]
  %v44 = vld [vmem:[%s1 + $0x50] sm:$0xff]
  %v45 = vld [vmem:[%s1 + $0x58] sm:$0xff]
  %v46 = vld [vmem:[%s1 + $0x60] sm:$0xff]
  %v47 = vld [vmem:[%s1 + $0x68] sm:$0xff]
  %v48 = vld [vmem:[%s1 + $0x70] sm:$0xff]
  %v49 = vld [vmem:[%s1 + $0x78] sm:$0xff]
  %v50 = vld [vmem:[%s1 + $0x80] sm:$0xff]
  %v51 = vld [vmem:[%s1 + $0x88] sm:$0xff]
  %v52 = vld [vmem:[%s1 + $0x90] sm:$0xff]
  %v53 = vld [vmem:[%s1 + $0x98] sm:$0xff]
  %v54 = vld [vmem:[%s1 + $0xa0] sm:$0xff]
  %v55 = vld [vmem:[%s1 + $0xa8] sm:$0xff]
  %v56 = vld [vmem:[%s1 + $0xb0] sm:$0xff]
  %v57 = vld [vmem:[%s1 + $0xb8] sm:$0xff]
  %v58 = vld [vmem:[%s1 + $0xc0] sm:$0xff]
  %v59 = vld [vmem:[%s1 + $0xc8] sm:$0xff]
  %v60 = vld [vmem:[%s1 + $0xd0] sm:$0xff]
  %v61 = vld [vmem:[%s1 + $0xd8] sm:$0xff]
  %v62 = vld [vmem:[%s1 + $0xe0] sm:$0xff]
  %v63 = vld [vmem:[%s1 + $0xe8] sm:$0xff]
  %v64 = vld [vmem:[%s1 + $0xf0] sm:$0xff]
  %v65 = vld [vmem:[%s1 + $0xf8] sm:$0xff]
  %v66 = vld [vmem:[%s1 + $0x100] sm:$0xff]
  %v67 = vld [vmem:[%s1 + $0x108] sm:$0xff]
  %v68 = vld [vmem:[%s1 + $0x110] sm:$0xff]
  %v69 = vld [vmem:[%s1 + $0x118] sm:$0xff]
  %v70 = vld [vmem:[%s1 + $0x120] sm:$0xff]
  %v71 = vld [vmem:[%s1 + $0x128] sm:$0xff]
  %v72 = vld [vmem:[%s1 + $0x130] sm:$0xff]
  %v73 = vld [vmem:[%s1 + $0x138] sm:$0xff]
  %v74 = vld [vmem:[%s1 + $0x140] sm:$0xff]
  %v75 = vld [vmem:[%s1 + $0x148] sm:$0xff]
  %v76 = vld [vmem:[%s1 + $0x150] sm:$0xff]
  %v77 = vld [vmem:[%s1 + $0x158] sm:$0xff]
  %v78 = vld [vmem:[%s1 + $0x160] sm:$0xff]
  %v79 = vld [vmem:[%s1 + $0x168] sm:$0xff]
  %v80 = vld [vmem:[%s1 + $0x170] sm:$0xff]
  %v81 = vld [vmem:[%s1 + $0x178] sm:$0xff]
  %v82 = vld [vmem:[%s1 + $0x180] sm:$0xff]
  %v83 = vld [vmem:[%s1 + $0x188] sm:$0xff]
  %v84 = vld [vmem:[%s1 + $0x190] sm:$0xff]
  %v85 = vld [vmem:[%s1 + $0x198] sm:$0xff]
  %v86 = vld [vmem:[%s1 + $0x1a0] sm:$0xff]
  %v87 = vld [vmem:[%s1 + $0x1a8] sm:$0xff]
  %v88 = vld [vmem:[%s1 + $0x1b0] sm:$0xff]
  %v89 = vld [vmem:[%s1 + $0x1b8] sm:$0xff]
  %v90 = vld [vmem:[%s1 + $0x1c0] sm:$0xff]
  %v91 = vld [vmem:[%s1 + $0x1c8] sm:$0xff]
  %v92 = vld [vmem:[%s1 + $0x1d0] sm:$0xff]
  %v93 = vld [vmem:[%s1 + $0x1d8] sm:$0xff]
  %v94 = vld [vmem:[%s1 + $0x1e0] sm:$0xff]
  %v95 = vld [vmem:[%s1 + $0x1e8] sm:$0xff]
  %v96 = vld [vmem:[%s1 + $0x1f0] sm:$0xff]
  %v97 = vld [vmem:[%s1 + $0x1f8] sm:$0xff]
  %v98 = vld [vmem:[%s1 + $0x200] sm:$0xff]
  %v99 = vld [vmem:[%s1 + $0x208] sm:$0xff]
  %v100 = vld [vmem:[%s1 + $0x210] sm:$0xff]
  %v101 = vld [vmem:[%s1 + $0x218] sm:$0xff]
  %v102 = vld [vmem:[%s1 + $0x220] sm:$0xff]
  %v103 = vld [vmem:[%s1 + $0x228] sm:$0xff]
  %v104 = vld [vmem:[%s1 + $0x230] sm:$0xff]
  %v105 = vld [vmem:[%s1 + $0x238] sm:$0xff]
  %v106 = vld [vmem:[%s1 + $0x240] sm:$0xff]
  %v107 = vld [vmem:[%s1 + $0x248] sm:$0xff]
  %v108 = vld [vmem:[%s1 + $0x250] sm:$0xff]
  %v109 = vld [vmem:[%s1 + $0x258] sm:$0xff]
  %v110 = vld [vmem:[%s1 + $0x260] sm:$0xff]
  %v111 = vld [vmem:[%s1 + $0x268] sm:$0xff]
  %v112 = vld [vmem:[%s1 + $0x270] sm:$0xff]
  %v113 = vld [vmem:[%s1 + $0x278] sm:$0xff]
  %v114 = vld [vmem:[%s1 + $0x280] sm:$0xff]
  %v115 = vld [vmem:[%s1 + $0x288] sm:$0xff]
  %v116 = vld [vmem:[%s1 + $0x290] sm:$0xff]
  %v117 = vld [vmem:[%s1 + $0x298] sm:$0xff]
  %v118 = vld [vmem:[%s1 + $0x2a0] sm:$0xff]
  %v119 = vld [vmem:[%s1 + $0x2a8] sm:$0xff]
  %v120 = vld [vmem:[%s1 + $0x2b0] sm:$0xff]
  %v121 = vld [vmem:[%s1 + $0x2b8] sm:$0xff]
  %v122 = vld [vmem:[%s1 + $0x2c0] sm:$0xff]
  %v123 = vld [vmem:[%s1 + $0x2c8] sm:$0xff]
  %v124 = vld [vmem:[%s1 + $0x2d0] sm:$0xff]
  %v125 = vld [vmem:[%s1 + $0x2d8] sm:$0xff]
  %v126 = vld [vmem:[%s1 + $0x2e0] sm:$0xff]
  %v127 = vld [vmem:[%s1 + $0x2e8] sm:$0xff]
  %v128 = vld [vmem:[%s1 + $0x2f0] sm:$0xff]
  %v129 = vld [vmem:[%s1 + $0x2f8] sm:$0xff]
  %v130 = vld [vmem:[%s1 + $0x300] sm:$0xff]
  %v131 = vld [vmem:[%s1 + $0x308] sm:$0xff]
  %v132 = vld [vmem:[%s1 + $0x310] sm:$0xff]
  %v133 = vld [vmem:[%s1 + $0x318] sm:$0xff]
  %v134 = vld [vmem:[%s1 + $0x320] sm:$0xff]
  %v135 = vld [vmem:[%s1 + $0x328] sm:$0xff]
  %v136 = vld [vmem:[%s1 + $0x330] sm:$0xff]
  %v137 = vld [vmem:[%s1 + $0x338] sm:$0xff]
  %v138 = vld [vmem:[%s1 + $0x340] sm:$0xff]
  %v139 = vld [vmem:[%s1 + $0x348] sm:$0xff]
  %v140 = vld [vmem:[%s1 + $0x350] sm:$0xff]
  %v141 = vld [vmem:[%s1 + $0x358] sm:$0xff]
  %v142 = vld [vmem:[%s1 + $0x360] sm:$0xff]
  %v143 = vld [vmem:[%s1 + $0x368] sm:$0xff]
  %v144 = vld [vmem:[%s1 + $0x370] sm:$0xff]
  %v145 = vld [vmem:[%s1 + $0x378] sm:$0xff]
  %v146 = vld [vmem:[%s1 + $0x380] sm:$0xff]
  %v147 = vld [vmem:[%s1 + $0x388] sm:$0xff]
  %v148 = vld [vmem:[%s1 + $0x390] sm:$0xff]
  %v149 = vld [vmem:[%s1 + $0x398] sm:$0xff]
  %v150 = vld [vmem:[%s1 + $0x3a0] sm:$0xff]
  %v151 = vld [vmem:[%s1 + $0x3a8] sm:$0xff]
  %v152 = vld [vmem:[%s1 + $0x3b0] sm:$0xff]
  %v153 = vld [vmem:[%s1 + $0x3b8] sm:$0xff]
  %v154 = vld [vmem:[%s1 + $0x3c0] sm:$0xff]
  %v155 = vld [vmem:[%s1 + $0x3c8] sm:$0xff]
  %v156 = vld [vmem:[%s1 + $0x3d0] sm:$0xff]
  %v157 = vld [vmem:[%s1 + $0x3d8] sm:$0xff]
  %v158 = vld [vmem:[%s1 + $0x3e0] sm:$0xff]
  %v159 = vld [vmem:[%s1 + $0x3e8] sm:$0xff]
  %v160 = vld [vmem:[%s1 + $0x3f0] sm:$0xff]
  %v161 = vld [vmem:[%s1 + $0x3f8] sm:$0xff]
  %v162 = vld [vmem:[%s1 + $0x400] sm:$0xff]
  %v163 = vld [vmem:[%s1 + $0x408] sm:$0xff]
  %v164 = vld [vmem:[%s1 + $0x410] sm:$0xff]
  %v165 = vld [vmem:[%s1 + $0x418] sm:$0xff]
  %v166 = vld [vmem:[%s1 + $0x420] sm:$0xff]
  %v167 = vld [vmem:[%s1 + $0x428] sm:$0xff]
  %v168 = vld [vmem:[%s1 + $0x430] sm:$0xff]
  %v169 = vld [vmem:[%s1 + $0x438] sm:$0xff]
  %v170 = vld [vmem:[%s1 + $0x440] sm:$0xff]
  %v171 = vld [vmem:[%s1 + $0x448] sm:$0xff]
  %v172 = vld [vmem:[%s1 + $0x450] sm:$0xff]
  %v173 = vld [vmem:[%s1 + $0x458] sm:$0xff]
  %v174 = vld [vmem:[%s1 + $0x460] sm:$0xff]
  %v175 = vld [vmem:[%s1 + $0x468] sm:$0xff]
  %v176 = vld [vmem:[%s1 + $0x470] sm:$0xff]
  %v177 = vld [vmem:[%s1 + $0x478] sm:$0xff]
  %v178 = vld [vmem:[%s1 + $0x480] sm:$0xff]
  %v179 = vld [vmem:[%s1 + $0x488] sm:$0xff]
  %v180 = vld [vmem:[%s1 + $0x490] sm:$0xff]
  %v181 = vld [vmem:[%s1 + $0x498] sm:$0xff]
  %v182 = vld [vmem:[%s1 + $0x4a0] sm:$0xff]
  %v183 = vld [vmem:[%s1 + $0x4a8] sm:$0xff]
  %v184 = vld [vmem:[%s1 + $0x4b0] sm:$0xff]
  %v185 = vld [vmem:[%s1 + $0x4b8] sm:$0xff]
  %v186 = vld [vmem:[%s1 + $0x4c0] sm:$0xff]
  %v187 = vld [vmem:[%s1 + $0x4c8] sm:$0xff]
  %v188 = vld [vmem:[%s1 + $0x4d0] sm:$0xff]
  %v189 = vld [vmem:[%s1 + $0x4d8] sm:$0xff]
  %v190 = vld [vmem:[%s1 + $0x4e0] sm:$0xff]
  %v191 = vld [vmem:[%s1 + $0x4e8] sm:$0xff]
  %v192 = vld [vmem:[%s1 + $0x4f0] sm:$0xff]
  %v193 = vld [vmem:[%s1 + $0x4f8] sm:$0xff]
  %v194 = vld [vmem:[%s1 + $0x500] sm:$0xff]
  %v195 = vld [vmem:[%s1 + $0x508] sm:$0xff]
  %v196 = vld [vmem:[%s1 + $0x510] sm:$0xff]
  %v197 = vld [vmem:[%s1 + $0x518] sm:$0xff]
  %v198 = vld [vmem:[%s1 + $0x520] sm:$0xff]
  %v199 = vld [vmem:[%s1 + $0x528] sm:$0xff]
  %v200 = vld [vmem:[%s1 + $0x530] sm:$0xff]
  %v201 = vld [vmem:[%s1 + $0x538] sm:$0xff]
  %v202 = vld [vmem:[%s1 + $0x540] sm:$0xff]
  %v203 = vld [vmem:[%s1 + $0x548] sm:$0xff]
  %v204 = vld [vmem:[%s1 + $0x550] sm:$0xff]
  %v205 = vld [vmem:[%s1 + $0x558] sm:$0xff]
  %v206 = vld [vmem:[%s1 + $0x560] sm:$0xff]
  %v207 = vld [vmem:[%s1 + $0x568] sm:$0xff]
  %v208 = vld [vmem:[%s1 + $0x570] sm:$0xff]
  %v209 = vld [vmem:[%s1 + $0x578] sm:$0xff]
  %v210 = vld [vmem:[%s1 + $0x580] sm:$0xff]
  %v211 = vld [vmem:[%s1 + $0x588] sm:$0xff]
  %v212 = vld [vmem:[%s1 + $0x590] sm:$0xff]
  %v213 = vld [vmem:[%s1 + $0x598] sm:$0xff]
  %v214 = vld [vmem:[%s1 + $0x5a0] sm:$0xff]
  %v215 = vld [vmem:[%s1 + $0x5a8] sm:$0xff]
  %v216 = vld [vmem:[%s1 + $0x5b0] sm:$0xff]
  %v217 = vld [vmem:[%s1 + $0x5b8] sm:$0xff]
  %v218 = vld [vmem:[%s1 + $0x5c0] sm:$0xff]
  %v219 = vld [vmem:[%s1 + $0x5c8] sm:$0xff]
  %v220 = vld [vmem:[%s1 + $0x5d0] sm:$0xff]
  %v221 = vld [vmem:[%s1 + $0x5d8] sm:$0xff]
  %v222 = vld [vmem:[%s1 + $0x5e0] sm:$0xff]
  %v223 = vld [vmem:[%s1 + $0x5e8] sm:$0xff]
  %v224 = vld [vmem:[%s1 + $0x5f0] sm:$0xff]
  %v225 = vld [vmem:[%s1 + $0x5f8] sm:$0xff]
  %v226 = vld [vmem:[%s1 + $0x600] sm:$0xff]
  %v227 = vld [vmem:[%s1 + $0x608] sm:$0xff]
  %v228 = vld [vmem:[%s1 + $0x610] sm:$0xff]
  %v229 = vld [vmem:[%s1 + $0x618] sm:$0xff]
  %v230 = vld [vmem:[%s1 + $0x620] sm:$0xff]
  %v231 = vld [vmem:[%s1 + $0x628] sm:$0xff]
  %v232 = vld [vmem:[%s1 + $0x630] sm:$0xff]
  %v233 = vld [vmem:[%s1 + $0x638] sm:$0xff]
  %v234 = vld [vmem:[%s1 + $0x640] sm:$0xff]
  %v235 = vld [vmem:[%s1 + $0x648] sm:$0xff]
  %v236 = vld [vmem:[%s1 + $0x650] sm:$0xff]
  %v237 = vld [vmem:[%s1 + $0x658] sm:$0xff]
  %v238 = vld [vmem:[%s1 + $0x660] sm:$0xff]
  %v239 = vld [vmem:[%s1 + $0x668] sm:$0xff]
  %v240 = vld [vmem:[%s1 + $0x670] sm:$0xff]
  %v241 = vld [vmem:[%s1 + $0x678] sm:$0xff]
  %v242 = vld [vmem:[%s1 + $0x680] sm:$0xff]
  %v243 = vld [vmem:[%s1 + $0x688] sm:$0xff]
  %v244 = vld [vmem:[%s1 + $0x690] sm:$0xff]
  %v245 = vld [vmem:[%s1 + $0x698] sm:$0xff]
  %v246 = vld [vmem:[%s1 + $0x6a0] sm:$0xff]
  %v247 = vld [vmem:[%s1 + $0x6a8] sm:$0xff]
  %v248 = vld [vmem:[%s1 + $0x6b0] sm:$0xff]
  %v249 = vld [vmem:[%s1 + $0x6b8] sm:$0xff]
  %v250 = vld [vmem:[%s1 + $0x6c0] sm:$0xff]
  %v251 = vld [vmem:[%s1 + $0x6c8] sm:$0xff]
  %v252 = vld [vmem:[%s1 + $0x6d0] sm:$0xff]
  %v253 = vld [vmem:[%s1 + $0x6d8] sm:$0xff]
  %v254 = vld [vmem:[%s1 + $0x6e0] sm:$0xff]
  %v255 = vld [vmem:[%s1 + $0x6e8] sm:$0xff]
  %v256 = vld [vmem:[%s1 + $0x6f0] sm:$0xff]
  %v257 = vld [vmem:[%s1 + $0x6f8] sm:$0xff]
  %v258 = vld [vmem:[%s1 + $0x700] sm:$0xff]
  %v259 = vld [vmem:[%s1 + $0x708] sm:$0xff]
  %v260 = vld [vmem:[%s1 + $0x710] sm:$0xff]
  %v261 = vld [vmem:[%s1 + $0x718] sm:$0xff]
  %v262 = vld [vmem:[%s1 + $0x720] sm:$0xff]
  %v263 = vld [vmem:[%s1 + $0x728] sm:$0xff]
  %v264 = vld [vmem:[%s1 + $0x730] sm:$0xff]
  %v265 = vld [vmem:[%s1 + $0x738] sm:$0xff]
  %v266 = vld [vmem:[%s1 + $0x740] sm:$0xff]
  %v267 = vld [vmem:[%s1 + $0x748] sm:$0xff]
  %v268 = vld [vmem:[%s1 + $0x750] sm:$0xff]
  %v269 = vld [vmem:[%s1 + $0x758] sm:$0xff]
  %v270 = vld [vmem:[%s1 + $0x760] sm:$0xff]
  %v271 = vld [vmem:[%s1 + $0x768] sm:$0xff]
  %v272 = vld [vmem:[%s1 + $0x770] sm:$0xff]
  %v273 = vld [vmem:[%s1 + $0x778] sm:$0xff]
  %v274 = vld [vmem:[%s1 + $0x780] sm:$0xff]
  %v275 = vld [vmem:[%s1 + $0x788] sm:$0xff]
  %v276 = vld [vmem:[%s1 + $0x790] sm:$0xff]
  %v277 = vld [vmem:[%s1 + $0x798] sm:$0xff]
  %v278 = vld [vmem:[%s1 + $0x7a0] sm:$0xff]
  %v279 = vld [vmem:[%s1 + $0x7a8] sm:$0xff]
  %v280 = vld [vmem:[%s1 + $0x7b0] sm:$0xff]
  %v281 = vld [vmem:[%s1 + $0x7b8] sm:$0xff]
  %v282 = vld [vmem:[%s1 + $0x7c0] sm:$0xff]
  %v283 = vld [vmem:[%s1 + $0x7c8] sm:$0xff]
  %v284 = vld [vmem:[%s1 + $0x7d0] sm:$0xff]
  %v285 = vld [vmem:[%s1 + $0x7d8] sm:$0xff]
  %v286 = vld [vmem:[%s1 + $0x7e0] sm:$0xff]
  %v287 = vld [vmem:[%s1 + $0x7e8] sm:$0xff]
  %v288 = vld [vmem:[%s1 + $0x7f0] sm:$0xff]
  %v289 = vld [vmem:[%s1 + $0x7f8] sm:$0xff]
  %v290 = vld [vmem:[%s1 + $0x800] sm:$0xff]
  %v291 = vld [vmem:[%s1 + $0x808] sm:$0xff]
  %v292 = vld [vmem:[%s1 + $0x810] sm:$0xff]
  %v293 = vld [vmem:[%s1 + $0x818] sm:$0xff]
  %v294 = vld [vmem:[%s1 + $0x820] sm:$0xff]
  %v295 = vld [vmem:[%s1 + $0x828] sm:$0xff]
  %v296 = vld [vmem:[%s1 + $0x830] sm:$0xff]
  %v297 = vld [vmem:[%s1 + $0x838] sm:$0xff]
  %v298 = vld [vmem:[%s1 + $0x840] sm:$0xff]
  %v299 = vld [vmem:[%s1 + $0x848] sm:$0xff]
  %v300 = vld [vmem:[%s1 + $0x850] sm:$0xff]
  %v301 = vld [vmem:[%s1 + $0x858] sm:$0xff]
  %v302 = vld [vmem:[%s1 + $0x860] sm:$0xff]
  %v303 = vld [vmem:[%s1 + $0x868] sm:$0xff]
  %v304 = vld [vmem:[%s1 + $0x870] sm:$0xff]
  %v305 = vld [vmem:[%s1 + $0x878] sm:$0xff]
  %v306 = vld [vmem:[%s1 + $0x880] sm:$0xff]
  %v307 = vld [vmem:[%s1 + $0x888] sm:$0xff]
  %v308 = vld [vmem:[%s1 + $0x890] sm:$0xff]
  %v309 = vld [vmem:[%s1 + $0x898] sm:$0xff]
  %v310 = vld [vmem:[%s1 + $0x8a0] sm:$0xff]
  %v311 = vld [vmem:[%s1 + $0x8a8] sm:$0xff]
  %v312 = vld [vmem:[%s1 + $0x8b0] sm:$0xff]
  %v313 = vld [vmem:[%s1 + $0x8b8] sm:$0xff]
  %v314 = vld [vmem:[%s1 + $0x8c0] sm:$0xff]
  %v315 = vld [vmem:[%s1 + $0x8c8] sm:$0xff]
  %v316 = vld [vmem:[%s1 + $0x8d0] sm:$0xff]
  %v317 = vld [vmem:[%s1 + $0x8d8] sm:$0xff]
  %v318 = vld [vmem:[%s1 + $0x8e0] sm:$0xff]
  %v319 = vld [vmem:[%s1 + $0x8e8] sm:$0xff]
  %v320 = vld [vmem:[%s1 + $0x8f0] sm:$0xff]
  %v321 = vld [vmem:[%s1 + $0x8f8] sm:$0xff]
  %v322 = vld [vmem:[%s1 + $0x900] sm:$0xff]
  %v323 = vld [vmem:[%s1 + $0x908] sm:$0xff]
  %v324 = vld [vmem:[%s1 + $0x910] sm:$0xff]
  %v325 = vld [vmem:[%s1 + $0x918] sm:$0xff]
  %v326 = vld [vmem:[%s1 + $0x920] sm:$0xff]
  %v327 = vld [vmem:[%s1 + $0x928] sm:$0xff]
  %v328 = vld [vmem:[%s1 + $0x930] sm:$0xff]
  %v329 = vld [vmem:[%s1 + $0x938] sm:$0xff]
  %v330 = vld [vmem:[%s1 + $0x940] sm:$0xff]
  %v331 = vld [vmem:[%s1 + $0x948] sm:$0xff]
  %v332 = vld [vmem:[%s1 + $0x950] sm:$0xff]
  %v333 = vld [vmem:[%s1 + $0x958] sm:$0xff]
  %v334 = vld [vmem:[%s1 + $0x960] sm:$0xff]
  %v335 = vld [vmem:[%s1 + $0x968] sm:$0xff]
  %v336 = vld [vmem:[%s1 + $0x970] sm:$0xff]
  %v337 = vld [vmem:[%s1 + $0x978] sm:$0xff]
  %v338 = vld [vmem:[%s1 + $0x980] sm:$0xff]
  %v339 = vld [vmem:[%s1 + $0x988] sm:$0xff]
  %v340 = vld [vmem:[%s1 + $0x990] sm:$0xff]
  %v341 = vld [vmem:[%s1 + $0x998] sm:$0xff]
  %v342 = vld [vmem:[%s1 + $0x9a0] sm:$0xff]
  %v343 = vld [vmem:[%s1 + $0x9a8] sm:$0xff]
  %v344 = vld [vmem:[%s1 + $0x9b0] sm:$0xff]
  %v345 = vld [vmem:[%s1 + $0x9b8] sm:$0xff]
  %v346 = vld [vmem:[%s1 + $0x9c0] sm:$0xff]
  %v347 = vld [vmem:[%s1 + $0x9c8] sm:$0xff]
  %v348 = vld [vmem:[%s1 + $0x9d0] sm:$0xff]
  %v349 = vld [vmem:[%s1 + $0x9d8] sm:$0xff]
  %v350 = vld [vmem:[%s1 + $0x9e0] sm:$0xff]
  %v351 = vld [vmem:[%s1 + $0x9e8] sm:$0xff]
  %v352 = vld [vmem:[%s1 + $0x9f0] sm:$0xff]
  %v353 = vld [vmem:[%s1 + $0x9f8] sm:$0xff]
  %v354 = vld [vmem:[%s1 + $0xa00] sm:$0xff]
  %v355 = vld [vmem:[%s1 + $0xa08] sm:$0xff]
  %v356 = vld [vmem:[%s1 + $0xa10] sm:$0xff]
  %v357 = vld [vmem:[%s1 + $0xa18] sm:$0xff]
  %v358 = vld [vmem:[%s1 + $0xa20] sm:$0xff]
  %v359 = vld [vmem:[%s1 + $0xa28] sm:$0xff]
  %v360 = vld [vmem:[%s1 + $0xa30] sm:$0xff]
  %v361 = vld [vmem:[%s1 + $0xa38] sm:$0xff]
  %v362 = vld [vmem:[%s1 + $0xa40] sm:$0xff]
  %v363 = vld [vmem:[%s1 + $0xa48] sm:$0xff]
  %v364 = vld [vmem:[%s1 + $0xa50] sm:$0xff]
  %v365 = vld [vmem:[%s1 + $0xa58] sm:$0xff]
  %v366 = vld [vmem:[%s1 + $0xa60] sm:$0xff]
  %v367 = vld [vmem:[%s1 + $0xa68] sm:$0xff]
  %v368 = vld [vmem:[%s1 + $0xa70] sm:$0xff]
  %v369 = vld [vmem:[%s1 + $0xa78] sm:$0xff]
  %v370 = vld [vmem:[%s1 + $0xa80] sm:$0xff]
  %v371 = vld [vmem:[%s1 + $0xa88] sm:$0xff]
  %v372 = vld [vmem:[%s1 + $0xa90] sm:$0xff]
  %v373 = vld [vmem:[%s1 + $0xa98] sm:$0xff]
  %v374 = vld [vmem:[%s1 + $0xaa0] sm:$0xff]
  %v375 = vld [vmem:[%s1 + $0xaa8] sm:$0xff]
  %v376 = vld [vmem:[%s1 + $0xab0] sm:$0xff]
  %v377 = vld [vmem:[%s1 + $0xab8] sm:$0xff]
  %v378 = vld [vmem:[%s1 + $0xac0] sm:$0xff]
  %v379 = vld [vmem:[%s1 + $0xac8] sm:$0xff]
  %v380 = vld [vmem:[%s1 + $0xad0] sm:$0xff]
  %v381 = vld [vmem:[%s1 + $0xad8] sm:$0xff]
  %v382 = vld [vmem:[%s1 + $0xae0] sm:$0xff]
  %v383 = vld [vmem:[%s1 + $0xae8] sm:$0xff]
  %v384 = vld [vmem:[%s1 + $0xaf0] sm:$0xff]
  %v385 = vld [vmem:[%s1 + $0xaf8] sm:$0xff]
  %v386 = vld [vmem:[%s1 + $0xb00] sm:$0xff]
  %v387 = vld [vmem:[%s1 + $0xb08] sm:$0xff]
  %v388 = vld [vmem:[%s1 + $0xb10] sm:$0xff]
  %v389 = vld [vmem:[%s1 + $0xb18] sm:$0xff]
  %v390 = vld [vmem:[%s1 + $0xb20] sm:$0xff]
  %v391 = vld [vmem:[%s1 + $0xb28] sm:$0xff]
  %v392 = vld [vmem:[%s1 + $0xb30] sm:$0xff]
  %v393 = vld [vmem:[%s1 + $0xb38] sm:$0xff]
  %v394 = vld [vmem:[%s1 + $0xb40] sm:$0xff]
  %v395 = vld [vmem:[%s1 + $0xb48] sm:$0xff]
  %v396 = vld [vmem:[%s1 + $0xb50] sm:$0xff]
  %v397 = vld [vmem:[%s1 + $0xb58] sm:$0xff]
  %v398 = vld [vmem:[%s1 + $0xb60] sm:$0xff]
  %v399 = vld [vmem:[%s1 + $0xb68] sm:$0xff]
  %v400 = vld [vmem:[%s1 + $0xb70] sm:$0xff]
  %v401 = vld [vmem:[%s1 + $0xb78] sm:$0xff]
  %v402 = vld [vmem:[%s1 + $0xb80] sm:$0xff]
  %v403 = vld [vmem:[%s1 + $0xb88] sm:$0xff]
  %v404 = vld [vmem:[%s1 + $0xb90] sm:$0xff]
  %v405 = vld [vmem:[%s1 + $0xb98] sm:$0xff]
  %v406 = vld [vmem:[%s1 + $0xba0] sm:$0xff]
  %v407 = vld [vmem:[%s1 + $0xba8] sm:$0xff]
  %v408 = vld [vmem:[%s1 + $0xbb0] sm:$0xff]
  %v409 = vld [vmem:[%s1 + $0xbb8] sm:$0xff]
  %v410 = vld [vmem:[%s1 + $0xbc0] sm:$0xff]
  %v411 = vld [vmem:[%s1 + $0xbc8] sm:$0xff]
  %v412 = vld [vmem:[%s1 + $0xbd0] sm:$0xff]
  %v413 = vld [vmem:[%s1 + $0xbd8] sm:$0xff]
  %v414 = vld [vmem:[%s1 + $0xbe0] sm:$0xff]
  %v415 = vld [vmem:[%s1 + $0xbe8] sm:$0xff]
  %v416 = vld [vmem:[%s1 + $0xbf0] sm:$0xff]
  %v417 = vld [vmem:[%s1 + $0xbf8] sm:$0xff]
  %v418 = vld [vmem:[%s1 + $0xc00] sm:$0xff]
  %v419 = vld [vmem:[%s1 + $0xc08] sm:$0xff]
  %v420 = vld [vmem:[%s1 + $0xc10] sm:$0xff]
  %v421 = vld [vmem:[%s1 + $0xc18] sm:$0xff]
  %v422 = vld [vmem:[%s1 + $0xc20] sm:$0xff]
  %v423 = vld [vmem:[%s1 + $0xc28] sm:$0xff]
  %v424 = vld [vmem:[%s1 + $0xc30] sm:$0xff]
  %v425 = vld [vmem:[%s1 + $0xc38] sm:$0xff]
  %v426 = vld [vmem:[%s1 + $0xc40] sm:$0xff]
  %v427 = vld [vmem:[%s1 + $0xc48] sm:$0xff]
  %v428 = vld [vmem:[%s1 + $0xc50] sm:$0xff]
  %v429 = vld [vmem:[%s1 + $0xc58] sm:$0xff]
  %v430 = vld [vmem:[%s1 + $0xc60] sm:$0xff]
  %v431 = vld [vmem:[%s1 + $0xc68] sm:$0xff]
  %v432 = vld [vmem:[%s1 + $0xc70] sm:$0xff]
  %v433 = vld [vmem:[%s1 + $0xc78] sm:$0xff]
  %v434 = vld [vmem:[%s1 + $0xc80] sm:$0xff]
  %v435 = vld [vmem:[%s1 + $0xc88] sm:$0xff]
  %v436 = vld [vmem:[%s1 + $0xc90] sm:$0xff]
  %v437 = vld [vmem:[%s1 + $0xc98] sm:$0xff]
  %v438 = vld [vmem:[%s1 + $0xca0] sm:$0xff]
  %v439 = vld [vmem:[%s1 + $0xca8] sm:$0xff]
  %v440 = vld [vmem:[%s1 + $0xcb0] sm:$0xff]
  %v441 = vld [vmem:[%s1 + $0xcb8] sm:$0xff]
  %v442 = vld [vmem:[%s1 + $0xcc0] sm:$0xff]
  %v443 = vld [vmem:[%s1 + $0xcc8] sm:$0xff]
  %v444 = vld [vmem:[%s1 + $0xcd0] sm:$0xff]
  %v445 = vld [vmem:[%s1 + $0xcd8] sm:$0xff]
  %v446 = vld [vmem:[%s1 + $0xce0] sm:$0xff]
  %v447 = vld [vmem:[%s1 + $0xce8] sm:$0xff]
  %v448 = vld [vmem:[%s1 + $0xcf0] sm:$0xff]
  %v449 = vld [vmem:[%s1 + $0xcf8] sm:$0xff]
  %v450 = vld [vmem:[%s1 + $0xd00] sm:$0xff]
  %v451 = vld [vmem:[%s1 + $0xd08] sm:$0xff]
  %v452 = vld [vmem:[%s1 + $0xd10] sm:$0xff]
  %v453 = vld [vmem:[%s1 + $0xd18] sm:$0xff]
  %v454 = vld [vmem:[%s1 + $0xd20] sm:$0xff]
  %v455 = vld [vmem:[%s1 + $0xd28] sm:$0xff]
  %v456 = vld [vmem:[%s1 + $0xd30] sm:$0xff]
  %v457 = vld [vmem:[%s1 + $0xd38] sm:$0xff]
  %v458 = vld [vmem:[%s1 + $0xd40] sm:$0xff]
  %v459 = vld [vmem:[%s1 + $0xd48] sm:$0xff]
  %v460 = vld [vmem:[%s1 + $0xd50] sm:$0xff]
  %v461 = vld [vmem:[%s1 + $0xd58] sm:$0xff]
  %v462 = vld [vmem:[%s1 + $0xd60] sm:$0xff]
  %v463 = vld [vmem:[%s1 + $0xd68] sm:$0xff]
  %v464 = vld [vmem:[%s1 + $0xd70] sm:$0xff]
  %v465 = vld [vmem:[%s1 + $0xd78] sm:$0xff]
  %v466 = vld [vmem:[%s1 + $0xd80] sm:$0xff]
  %v467 = vld [vmem:[%s1 + $0xd88] sm:$0xff]
  %v468 = vld [vmem:[%s1 + $0xd90] sm:$0xff]
  %v469 = vld [vmem:[%s1 + $0xd98] sm:$0xff]
  %v470 = vld [vmem:[%s1 + $0xda0] sm:$0xff]
  %v471 = vld [vmem:[%s1 + $0xda8] sm:$0xff]
  %v472 = vld [vmem:[%s1 + $0xdb0] sm:$0xff]
  %v473 = vld [vmem:[%s1 + $0xdb8] sm:$0xff]
  %v474 = vld [vmem:[%s1 + $0xdc0] sm:$0xff]
  %v475 = vld [vmem:[%s1 + $0xdc8] sm:$0xff]
  %v476 = vld [vmem:[%s1 + $0xdd0] sm:$0xff]
  %v477 = vld [vmem:[%s1 + $0xdd8] sm:$0xff]
  %v478 = vld [vmem:[%s1 + $0xde0] sm:$0xff]
  %v479 = vld [vmem:[%s1 + $0xde8] sm:$0xff]
  %v480 = vld [vmem:[%s1 + $0xdf0] sm:$0xff]
  %v481 = vld [vmem:[%s1 + $0xdf8] sm:$0xff]
  %v482 = vld [vmem:[%s1 + $0xe00] sm:$0xff]
  %v483 = vld [vmem:[%s1 + $0xe08] sm:$0xff]
  %v484 = vld [vmem:[%s1 + $0xe10] sm:$0xff]
  %v485 = vld [vmem:[%s1 + $0xe18] sm:$0xff]
  %v486 = vld [vmem:[%s1 + $0xe20] sm:$0xff]
  %v487 = vld [vmem:[%s1 + $0xe28] sm:$0xff]
  %v488 = vld [vmem:[%s1 + $0xe30] sm:$0xff]
  %v489 = vld [vmem:[%s1 + $0xe38] sm:$0xff]
  %v490 = vld [vmem:[%s1 + $0xe40] sm:$0xff]
  %v491 = vld [vmem:[%s1 + $0xe48] sm:$0xff]
  %v492 = vld [vmem:[%s1 + $0xe50] sm:$0xff]
  %v493 = vld [vmem:[%s1 + $0xe58] sm:$0xff]
  %v494 = vld [vmem:[%s1 + $0xe60] sm:$0xff]
  %v495 = vld [vmem:[%s1 + $0xe68] sm:$0xff]
  %v496 = vld [vmem:[%s1 + $0xe70] sm:$0xff]
  %v497 = vld [vmem:[%s1 + $0xe78] sm:$0xff]
  %v498 = vld [vmem:[%s1 + $0xe80] sm:$0xff]
  %v499 = vld [vmem:[%s1 + $0xe88] sm:$0xff]
  %v500 = vld [vmem:[%s1 + $0xe90] sm:$0xff]
  %v501 = vld [vmem:[%s1 + $0xe98] sm:$0xff]
  %v502 = vld [vmem:[%s1 + $0xea0] sm:$0xff]
  %v503 = vld [vmem:[%s1 + $0xea8] sm:$0xff]
  %v504 = vld [vmem:[%s1 + $0xeb0] sm:$0xff]
  %v505 = vld [vmem:[%s1 + $0xeb8] sm:$0xff]
  %v506 = vld [vmem:[%s1 + $0xec0] sm:$0xff]
  %v507 = vld [vmem:[%s1 + $0xec8] sm:$0xff]
  %v508 = vld [vmem:[%s1 + $0xed0] sm:$0xff]
  %v509 = vld [vmem:[%s1 + $0xed8] sm:$0xff]
  %v510 = vld [vmem:[%s1 + $0xee0] sm:$0xff]
  %v511 = vld [vmem:[%s1 + $0xee8] sm:$0xff]
  %v512 = vld [vmem:[%s1 + $0xef0] sm:$0xff]
  %v513 = vld [vmem:[%s1 + $0xef8] sm:$0xff]
  %v514 = vld [vmem:[%s1 + $0xf00] sm:$0xff]
  %v515 = vld [vmem:[%s1 + $0xf08] sm:$0xff]
  %v516 = vld [vmem:[%s1 + $0xf10] sm:$0xff]
  %v517 = vld [vmem:[%s1 + $0xf18] sm:$0xff]
  %v518 = vld [vmem:[%s1 + $0xf20] sm:$0xff]
  %v519 = vld [vmem:[%s1 + $0xf28] sm:$0xff]
  %v520 = vld [vmem:[%s1 + $0xf30] sm:$0xff]
  %v521 = vld [vmem:[%s1 + $0xf38] sm:$0xff]
  %v522 = vld [vmem:[%s1 + $0xf40] sm:$0xff]
  %v523 = vld [vmem:[%s1 + $0xf48] sm:$0xff]
  %v524 = vld [vmem:[%s1 + $0xf50] sm:$0xff]
  %v525 = vld [vmem:[%s1 + $0xf58] sm:$0xff]
  %v526 = vld [vmem:[%s1 + $0xf60] sm:$0xff]
  %v527 = vld [vmem:[%s1 + $0xf68] sm:$0xff]
  %v528 = vld [vmem:[%s1 + $0xf70] sm:$0xff]
  %v529 = vld [vmem:[%s1 + $0xf78] sm:$0xff]
  %v530 = vld [vmem:[%s1 + $0xf80] sm:$0xff]
  %v531 = vld [vmem:[%s1 + $0xf88] sm:$0xff]
  %v532 = vld [vmem:[%s1 + $0xf90] sm:$0xff]
  %v533 = vld [vmem:[%s1 + $0xf98] sm:$0xff]
  %v534 = vld [vmem:[%s1 + $0xfa0] sm:$0xff]
  %v535 = vld [vmem:[%s1 + $0xfa8] sm:$0xff]
  %v536 = vld [vmem:[%s1 + $0xfb0] sm:$0xff]
  %v537 = vld [vmem:[%s1 + $0xfb8] sm:$0xff]
  %v538 = vld [vmem:[%s1 + $0xfc0] sm:$0xff]
  %v539 = vld [vmem:[%s1 + $0xfc8] sm:$0xff]
  %v540 = vld [vmem:[%s1 + $0xfd0] sm:$0xff]
  %v541 = vld [vmem:[%s1 + $0xfd8] sm:$0xff]
  %v542 = vld [vmem:[%s1 + $0xfe0] sm:$0xff]
  %v543 = vld [vmem:[%s1 + $0xfe8] sm:$0xff]
  %v544 = vld [vmem:[%s1 + $0xff0] sm:$0xff]
  %v545 = vld [vmem:[%s1 + $0xff8] sm:$0xff]
  %v546 = vld [vmem:[%s2] sm:$0xf]
  %v548 = vlaneseq
  %v549 = vshrl.u32 %v548, 7
  %v550 = vsub.s32 0, %v549
  %v551 = vrot.slane %v546, %v550
  %v552 = vlaneseq
  %v553 = vshrl.u32 %v552, 7
  %v554 = vsub.s32 1, %v553
  %v555 = vrot.slane %v546, %v554
  %v556 = vlaneseq
  %v557 = vshrl.u32 %v556, 7
  %v558 = vsub.s32 2, %v557
  %v559 = vrot.slane %v546, %v558
  %v560 = vlaneseq
  %v561 = vshrl.u32 %v560, 7
  %v562 = vsub.s32 3, %v561
  %v563 = vrot.slane %v546, %v562
  %568 = vmatprep.subr.mxu0 %v35
  %569 = vmatpush1.msra.mxu0 %v34
  %570 = vmatprep.subr.mxu0 %v39
  %571 = vmatpush1.msra.mxu0 %v38
  %572 = vmatprep.subr.mxu0 %v43
  %573 = vmatpush1.msra.mxu0 %v42
  %574 = vmatprep.subr.mxu0 %v47
  %575 = vmatpush1.msra.mxu0 %v46
  %576 = vmatprep.subr.mxu0 %v51
  %577 = vmatpush1.msra.mxu0 %v50
  %578 = vmatprep.subr.mxu0 %v55
  %579 = vmatpush1.msra.mxu0 %v54
  %580 = vmatprep.subr.mxu0 %v59
  %581 = vmatpush1.msra.mxu0 %v58
  %582 = vmatprep.subr.mxu0 %v63
  %583 = vmatpush1.msra.mxu0 %v62
  %584 = vmatprep.subr.mxu0 %v67
  %585 = vmatpush1.msra.mxu0 %v66
  %586 = vmatprep.subr.mxu0 %v71
  %587 = vmatpush1.msra.mxu0 %v70
  %588 = vmatprep.subr.mxu0 %v75
  %589 = vmatpush1.msra.mxu0 %v74
  %590 = vmatprep.subr.mxu0 %v79
  %591 = vmatpush1.msra.mxu0 %v78
  %592 = vmatprep.subr.mxu0 %v83
  %593 = vmatpush1.msra.mxu0 %v82
  %594 = vmatprep.subr.mxu0 %v87
  %595 = vmatpush1.msra.mxu0 %v86
  %596 = vmatprep.subr.mxu0 %v91
  %597 = vmatpush1.msra.mxu0 %v90
  %598 = vmatprep.subr.mxu0 %v95
  %599 = vmatpush1.msra.mxu0 %v94
  %600 = vmatprep.subr.mxu0 %v99
  %601 = vmatpush1.msra.mxu0 %v98
  %602 = vmatprep.subr.mxu0 %v103
  %603 = vmatpush1.msra.mxu0 %v102
  %604 = vmatprep.subr.mxu0 %v107
  %605 = vmatpush1.msra.mxu0 %v106
  %606 = vmatprep.subr.mxu0 %v111
  %607 = vmatpush1.msra.mxu0 %v110
  %608 = vmatprep.subr.mxu0 %v115
  %609 = vmatpush1.msra.mxu0 %v114
  %610 = vmatprep.subr.mxu0 %v119
  %611 = vmatpush1.msra.mxu0 %v118
  %612 = vmatprep.subr.mxu0 %v123
  %613 = vmatpush1.msra.mxu0 %v122
  %614 = vmatprep.subr.mxu0 %v127
  %615 = vmatpush1.msra.mxu0 %v126
  %616 = vmatprep.subr.mxu0 %v131
  %617 = vmatpush1.msra.mxu0 %v130
  %618 = vmatprep.subr.mxu0 %v135
  %619 = vmatpush1.msra.mxu0 %v134
  %620 = vmatprep.subr.mxu0 %v139
  %621 = vmatpush1.msra.mxu0 %v138
  %622 = vmatprep.subr.mxu0 %v143
  %623 = vmatpush1.msra.mxu0 %v142
  %624 = vmatprep.subr.mxu0 %v147
  %625 = vmatpush1.msra.mxu0 %v146
  %626 = vmatprep.subr.mxu0 %v151
  %627 = vmatpush1.msra.mxu0 %v150
  %628 = vmatprep.subr.mxu0 %v155
  %629 = vmatpush1.msra.mxu0 %v154
  %630 = vmatprep.subr.mxu0 %v159
  %631 = vmatpush1.msra.mxu0 %v158
  %632 = vmatprep.mubr.f32.mxu0 %v27
  %633 = vmatmul.mubr.f32.gmra.mrb[0].mxu0 %v26
  %v634 = vpop.f32.mrb[0].mxu0
  %v635 = vadd.f32 %v551, %v634
  %v636 = vpop.f32.mrb[0].mxu0
  %v637 = vadd.f32 %v555, %v636
  %638 = vdwg.mxu0
  %639 = vmatprep.subr.mxu0 %v163
  %640 = vmatpush1.msra.mxu0 %v162
  %641 = vmatprep.subr.mxu0 %v167
  %642 = vmatpush1.msra.mxu0 %v166
  %643 = vmatprep.subr.mxu0 %v171
  %644 = vmatpush1.msra.mxu0 %v170
  %645 = vmatprep.subr.mxu0 %v175
  %646 = vmatpush1.msra.mxu0 %v174
  %647 = vmatprep.subr.mxu0 %v179
  %648 = vmatpush1.msra.mxu0 %v178
  %649 = vmatprep.subr.mxu0 %v183
  %650 = vmatpush1.msra.mxu0 %v182
  %651 = vmatprep.subr.mxu0 %v187
  %652 = vmatpush1.msra.mxu0 %v186
  %653 = vmatprep.subr.mxu0 %v191
  %654 = vmatpush1.msra.mxu0 %v190
  %655 = vmatprep.subr.mxu0 %v195
  %656 = vmatpush1.msra.mxu0 %v194
  %657 = vmatprep.subr.mxu0 %v199
  %658 = vmatpush1.msra.mxu0 %v198
  %659 = vmatprep.subr.mxu0 %v203
  %660 = vmatpush1.msra.mxu0 %v202
  %661 = vmatprep.subr.mxu0 %v207
  %662 = vmatpush1.msra.mxu0 %v206
  %663 = vmatprep.subr.mxu0 %v211
  %664 = vmatpush1.msra.mxu0 %v210
  %665 = vmatprep.subr.mxu0 %v215
  %666 = vmatpush1.msra.mxu0 %v214
  %667 = vmatprep.subr.mxu0 %v219
  %668 = vmatpush1.msra.mxu0 %v218
  %669 = vmatprep.subr.mxu0 %v223
  %670 = vmatpush1.msra.mxu0 %v222
  %671 = vmatprep.subr.mxu0 %v227
  %672 = vmatpush1.msra.mxu0 %v226
  %673 = vmatprep.subr.mxu0 %v231
  %674 = vmatpush1.msra.mxu0 %v230
  %675 = vmatprep.subr.mxu0 %v235
  %676 = vmatpush1.msra.mxu0 %v234
  %677 = vmatprep.subr.mxu0 %v239
  %678 = vmatpush1.msra.mxu0 %v238
  %679 = vmatprep.subr.mxu0 %v243
  %680 = vmatpush1.msra.mxu0 %v242
  %681 = vmatprep.subr.mxu0 %v247
  %682 = vmatpush1.msra.mxu0 %v246
  %683 = vmatprep.subr.mxu0 %v251
  %684 = vmatpush1.msra.mxu0 %v250
  %685 = vmatprep.subr.mxu0 %v255
  %686 = vmatpush1.msra.mxu0 %v254
  %687 = vmatprep.subr.mxu0 %v259
  %688 = vmatpush1.msra.mxu0 %v258
  %689 = vmatprep.subr.mxu0 %v263
  %690 = vmatpush1.msra.mxu0 %v262
  %691 = vmatprep.subr.mxu0 %v267
  %692 = vmatpush1.msra.mxu0 %v266
  %693 = vmatprep.subr.mxu0 %v271
  %694 = vmatpush1.msra.mxu0 %v270
  %695 = vmatprep.subr.mxu0 %v275
  %696 = vmatpush1.msra.mxu0 %v274
  %697 = vmatprep.subr.mxu0 %v279
  %698 = vmatpush1.msra.mxu0 %v278
  %699 = vmatprep.subr.mxu0 %v283
  %700 = vmatpush1.msra.mxu0 %v282
  %701 = vmatprep.subr.mxu0 %v287
  %702 = vmatpush1.msra.mxu0 %v286
  %703 = vmatprep.mubr.f32.mxu0 %v29
  %704 = vmatmul.mubr.f32.gmra.mrb[0].mxu0 %v28
  %v705 = vpop.f32.mrb[0].mxu0
  %v706 = vadd.f32 %v635, %v705
  %v707 = vpop.f32.mrb[0].mxu0
  %v708 = vadd.f32 %v637, %v707
  %709 = vdwg.mxu0
  %710 = vmatprep.subr.mxu0 %v291
  %711 = vmatpush1.msra.mxu0 %v290
  %712 = vmatprep.subr.mxu0 %v295
  %713 = vmatpush1.msra.mxu0 %v294
  %714 = vmatprep.subr.mxu0 %v299
  %715 = vmatpush1.msra.mxu0 %v298
  %716 = vmatprep.subr.mxu0 %v303
  %717 = vmatpush1.msra.mxu0 %v302
  %718 = vmatprep.subr.mxu0 %v307
  %719 = vmatpush1.msra.mxu0 %v306
  %720 = vmatprep.subr.mxu0 %v311
  %721 = vmatpush1.msra.mxu0 %v310
  %722 = vmatprep.subr.mxu0 %v315
  %723 = vmatpush1.msra.mxu0 %v314
  %724 = vmatprep.subr.mxu0 %v319
  %725 = vmatpush1.msra.mxu0 %v318
  %726 = vmatprep.subr.mxu0 %v323
  %727 = vmatpush1.msra.mxu0 %v322
  %728 = vmatprep.subr.mxu0 %v327
  %729 = vmatpush1.msra.mxu0 %v326
  %730 = vmatprep.subr.mxu0 %v331
  %731 = vmatpush1.msra.mxu0 %v330
  %732 = vmatprep.subr.mxu0 %v335
  %733 = vmatpush1.msra.mxu0 %v334
  %734 = vmatprep.subr.mxu0 %v339
  %735 = vmatpush1.msra.mxu0 %v338
  %736 = vmatprep.subr.mxu0 %v343
  %737 = vmatpush1.msra.mxu0 %v342
  %738 = vmatprep.subr.mxu0 %v347
  %739 = vmatpush1.msra.mxu0 %v346
  %740 = vmatprep.subr.mxu0 %v351
  %741 = vmatpush1.msra.mxu0 %v350
  %742 = vmatprep.subr.mxu0 %v355
  %743 = vmatpush1.msra.mxu0 %v354
  %744 = vmatprep.subr.mxu0 %v359
  %745 = vmatpush1.msra.mxu0 %v358
  %746 = vmatprep.subr.mxu0 %v363
  %747 = vmatpush1.msra.mxu0 %v362
  %748 = vmatprep.subr.mxu0 %v367
  %749 = vmatpush1.msra.mxu0 %v366
  %750 = vmatprep.subr.mxu0 %v371
  %751 = vmatpush1.msra.mxu0 %v370
  %752 = vmatprep.subr.mxu0 %v375
  %753 = vmatpush1.msra.mxu0 %v374
  %754 = vmatprep.subr.mxu0 %v379
  %755 = vmatpush1.msra.mxu0 %v378
  %756 = vmatprep.subr.mxu0 %v383
  %757 = vmatpush1.msra.mxu0 %v382
  %758 = vmatprep.subr.mxu0 %v387
  %759 = vmatpush1.msra.mxu0 %v386
  %760 = vmatprep.subr.mxu0 %v391
  %761 = vmatpush1.msra.mxu0 %v390
  %762 = vmatprep.subr.mxu0 %v395
  %763 = vmatpush1.msra.mxu0 %v394
  %764 = vmatprep.subr.mxu0 %v399
  %765 = vmatpush1.msra.mxu0 %v398
  %766 = vmatprep.subr.mxu0 %v403
  %767 = vmatpush1.msra.mxu0 %v402
  %768 = vmatprep.subr.mxu0 %v407
  %769 = vmatpush1.msra.mxu0 %v406
  %770 = vmatprep.subr.mxu0 %v411
  %771 = vmatpush1.msra.mxu0 %v410
  %772 = vmatprep.subr.mxu0 %v415
  %773 = vmatpush1.msra.mxu0 %v414
  %774 = vmatprep.mubr.f32.mxu0 %v31
  %775 = vmatmul.mubr.f32.gmra.mrb[0].mxu0 %v30
  %v776 = vpop.f32.mrb[0].mxu0
  %v777 = vadd.f32 %v706, %v776
  %v778 = vpop.f32.mrb[0].mxu0
  %v779 = vadd.f32 %v708, %v778
  %780 = vdwg.mxu0
  %781 = vmatprep.subr.mxu0 %v419
  %782 = vmatpush1.msra.mxu0 %v418
  %783 = vmatprep.subr.mxu0 %v423
  %784 = vmatpush1.msra.mxu0 %v422
  %785 = vmatprep.subr.mxu0 %v427
  %786 = vmatpush1.msra.mxu0 %v426
  %787 = vmatprep.subr.mxu0 %v431
  %788 = vmatpush1.msra.mxu0 %v430
  %789 = vmatprep.subr.mxu0 %v435
  %790 = vmatpush1.msra.mxu0 %v434
  %791 = vmatprep.subr.mxu0 %v439
  %792 = vmatpush1.msra.mxu0 %v438
  %793 = vmatprep.subr.mxu0 %v443
  %794 = vmatpush1.msra.mxu0 %v442
  %795 = vmatprep.subr.mxu0 %v447
  %796 = vmatpush1.msra.mxu0 %v446
  %797 = vmatprep.subr.mxu0 %v451
  %798 = vmatpush1.msra.mxu0 %v450
  %799 = vmatprep.subr.mxu0 %v455
  %800 = vmatpush1.msra.mxu0 %v454
  %801 = vmatprep.subr.mxu0 %v459
  %802 = vmatpush1.msra.mxu0 %v458
  %803 = vmatprep.subr.mxu0 %v463
  %804 = vmatpush1.msra.mxu0 %v462
  %805 = vmatprep.subr.mxu0 %v467
  %806 = vmatpush1.msra.mxu0 %v466
  %807 = vmatprep.subr.mxu0 %v471
  %808 = vmatpush1.msra.mxu0 %v470
  %809 = vmatprep.subr.mxu0 %v475
  %810 = vmatpush1.msra.mxu0 %v474
  %811 = vmatprep.subr.mxu0 %v479
  %812 = vmatpush1.msra.mxu0 %v478
  %813 = vmatprep.subr.mxu0 %v483
  %814 = vmatpush1.msra.mxu0 %v482
  %815 = vmatprep.subr.mxu0 %v487
  %816 = vmatpush1.msra.mxu0 %v486
  %817 = vmatprep.subr.mxu0 %v491
  %818 = vmatpush1.msra.mxu0 %v490
  %819 = vmatprep.subr.mxu0 %v495
  %820 = vmatpush1.msra.mxu0 %v494
  %821 = vmatprep.subr.mxu0 %v499
  %822 = vmatpush1.msra.mxu0 %v498
  %823 = vmatprep.subr.mxu0 %v503
  %824 = vmatpush1.msra.mxu0 %v502
  %825 = vmatprep.subr.mxu0 %v507
  %826 = vmatpush1.msra.mxu0 %v506
  %827 = vmatprep.subr.mxu0 %v511
  %828 = vmatpush1.msra.mxu0 %v510
  %829 = vmatprep.subr.mxu0 %v515
  %830 = vmatpush1.msra.mxu0 %v514
  %831 = vmatprep.subr.mxu0 %v519
  %832 = vmatpush1.msra.mxu0 %v518
  %833 = vmatprep.subr.mxu0 %v523
  %834 = vmatpush1.msra.mxu0 %v522
  %835 = vmatprep.subr.mxu0 %v527
  %836 = vmatpush1.msra.mxu0 %v526
  %837 = vmatprep.subr.mxu0 %v531
  %838 = vmatpush1.msra.mxu0 %v530
  %839 = vmatprep.subr.mxu0 %v535
  %840 = vmatpush1.msra.mxu0 %v534
  %841 = vmatprep.subr.mxu0 %v539
  %842 = vmatpush1.msra.mxu0 %v538
  %843 = vmatprep.subr.mxu0 %v543
  %844 = vmatpush1.msra.mxu0 %v542
  %845 = vmatprep.mubr.f32.mxu0 %v33
  %846 = vmatmul.mubr.f32.gmra.mrb[0].mxu0 %v32
  %v847 = vpop.f32.mrb[0].mxu0
  %v848 = vadd.f32 %v777, %v847
  %v849 = vpop.f32.mrb[0].mxu0
  %v850 = vadd.f32 %v779, %v849
  %851 = vdwg.mxu0
  %852 = vmatprep.subr.mxu0 %v37
  %853 = vmatpush1.msra.mxu0 %v36
  %854 = vmatprep.subr.mxu0 %v41
  %855 = vmatpush1.msra.mxu0 %v40
  %856 = vmatprep.subr.mxu0 %v45
  %857 = vmatpush1.msra.mxu0 %v44
  %858 = vmatprep.subr.mxu0 %v49
  %859 = vmatpush1.msra.mxu0 %v48
  %860 = vmatprep.subr.mxu0 %v53
  %861 = vmatpush1.msra.mxu0 %v52
  %862 = vmatprep.subr.mxu0 %v57
  %863 = vmatpush1.msra.mxu0 %v56
  %864 = vmatprep.subr.mxu0 %v61
  %865 = vmatpush1.msra.mxu0 %v60
  %866 = vmatprep.subr.mxu0 %v65
  %867 = vmatpush1.msra.mxu0 %v64
  %868 = vmatprep.subr.mxu0 %v69
  %869 = vmatpush1.msra.mxu0 %v68
  %870 = vmatprep.subr.mxu0 %v73
  %871 = vmatpush1.msra.mxu0 %v72
  %872 = vmatprep.subr.mxu0 %v77
  %873 = vmatpush1.msra.mxu0 %v76
  %874 = vmatprep.subr.mxu0 %v81
  %875 = vmatpush1.msra.mxu0 %v80
  %876 = vmatprep.subr.mxu0 %v85
  %877 = vmatpush1.msra.mxu0 %v84
  %878 = vmatprep.subr.mxu0 %v89
  %879 = vmatpush1.msra.mxu0 %v88
  %880 = vmatprep.subr.mxu0 %v93
  %881 = vmatpush1.msra.mxu0 %v92
  %882 = vmatprep.subr.mxu0 %v97
  %883 = vmatpush1.msra.mxu0 %v96
  %884 = vmatprep.subr.mxu0 %v101
  %885 = vmatpush1.msra.mxu0 %v100
  %886 = vmatprep.subr.mxu0 %v105
  %887 = vmatpush1.msra.mxu0 %v104
  %888 = vmatprep.subr.mxu0 %v109
  %889 = vmatpush1.msra.mxu0 %v108
  %890 = vmatprep.subr.mxu0 %v113
  %891 = vmatpush1.msra.mxu0 %v112
  %892 = vmatprep.subr.mxu0 %v117
  %893 = vmatpush1.msra.mxu0 %v116
  %894 = vmatprep.subr.mxu0 %v121
  %895 = vmatpush1.msra.mxu0 %v120
  %896 = vmatprep.subr.mxu0 %v125
  %897 = vmatpush1.msra.mxu0 %v124
  %898 = vmatprep.subr.mxu0 %v129
  %899 = vmatpush1.msra.mxu0 %v128
  %900 = vmatprep.subr.mxu0 %v133
  %901 = vmatpush1.msra.mxu0 %v132
  %902 = vmatprep.subr.mxu0 %v137
  %903 = vmatpush1.msra.mxu0 %v136
  %904 = vmatprep.subr.mxu0 %v141
  %905 = vmatpush1.msra.mxu0 %v140
  %906 = vmatprep.subr.mxu0 %v145
  %907 = vmatpush1.msra.mxu0 %v144
  %908 = vmatprep.subr.mxu0 %v149
  %909 = vmatpush1.msra.mxu0 %v148
  %910 = vmatprep.subr.mxu0 %v153
  %911 = vmatpush1.msra.mxu0 %v152
  %912 = vmatprep.subr.mxu0 %v157
  %913 = vmatpush1.msra.mxu0 %v156
  %914 = vmatprep.subr.mxu0 %v161
  %915 = vmatpush1.msra.mxu0 %v160
  %916 = vmatprep.mubr.f32.mxu0 %v27
  %917 = vmatmul.mubr.f32.gmra.mrb[0].mxu0 %v26
  %v918 = vpop.f32.mrb[0].mxu0
  %v919 = vadd.f32 %v559, %v918
  %v920 = vpop.f32.mrb[0].mxu0
  %v921 = vadd.f32 %v563, %v920
  %922 = vdwg.mxu0
  %923 = vmatprep.subr.mxu0 %v165
  %924 = vmatpush1.msra.mxu0 %v164
  %925 = vmatprep.subr.mxu0 %v169
  %926 = vmatpush1.msra.mxu0 %v168
  %927 = vmatprep.subr.mxu0 %v173
  %928 = vmatpush1.msra.mxu0 %v172
  %929 = vmatprep.subr.mxu0 %v177
  %930 = vmatpush1.msra.mxu0 %v176
  %931 = vmatprep.subr.mxu0 %v181
  %932 = vmatpush1.msra.mxu0 %v180
  %933 = vmatprep.subr.mxu0 %v185
  %934 = vmatpush1.msra.mxu0 %v184
  %935 = vmatprep.subr.mxu0 %v189
  %936 = vmatpush1.msra.mxu0 %v188
  %937 = vmatprep.subr.mxu0 %v193
  %938 = vmatpush1.msra.mxu0 %v192
  %939 = vmatprep.subr.mxu0 %v197
  %940 = vmatpush1.msra.mxu0 %v196
  %941 = vmatprep.subr.mxu0 %v201
  %942 = vmatpush1.msra.mxu0 %v200
  %943 = vmatprep.subr.mxu0 %v205
  %944 = vmatpush1.msra.mxu0 %v204
  %945 = vmatprep.subr.mxu0 %v209
  %946 = vmatpush1.msra.mxu0 %v208
  %947 = vmatprep.subr.mxu0 %v213
  %948 = vmatpush1.msra.mxu0 %v212
  %949 = vmatprep.subr.mxu0 %v217
  %950 = vmatpush1.msra.mxu0 %v216
  %951 = vmatprep.subr.mxu0 %v221
  %952 = vmatpush1.msra.mxu0 %v220
  %953 = vmatprep.subr.mxu0 %v225
  %954 = vmatpush1.msra.mxu0 %v224
  %955 = vmatprep.subr.mxu0 %v229
  %956 = vmatpush1.msra.mxu0 %v228
  %957 = vmatprep.subr.mxu0 %v233
  %958 = vmatpush1.msra.mxu0 %v232
  %959 = vmatprep.subr.mxu0 %v237
  %960 = vmatpush1.msra.mxu0 %v236
  %961 = vmatprep.subr.mxu0 %v241
  %962 = vmatpush1.msra.mxu0 %v240
  %963 = vmatprep.subr.mxu0 %v245
  %964 = vmatpush1.msra.mxu0 %v244
  %965 = vmatprep.subr.mxu0 %v249
  %966 = vmatpush1.msra.mxu0 %v248
  %967 = vmatprep.subr.mxu0 %v253
  %968 = vmatpush1.msra.mxu0 %v252
  %969 = vmatprep.subr.mxu0 %v257
  %970 = vmatpush1.msra.mxu0 %v256
  %971 = vmatprep.subr.mxu0 %v261
  %972 = vmatpush1.msra.mxu0 %v260
  %973 = vmatprep.subr.mxu0 %v265
  %974 = vmatpush1.msra.mxu0 %v264
  %975 = vmatprep.subr.mxu0 %v269
  %976 = vmatpush1.msra.mxu0 %v268
  %977 = vmatprep.subr.mxu0 %v273
  %978 = vmatpush1.msra.mxu0 %v272
  %979 = vmatprep.subr.mxu0 %v277
  %980 = vmatpush1.msra.mxu0 %v276
  %981 = vmatprep.subr.mxu0 %v281
  %982 = vmatpush1.msra.mxu0 %v280
  %983 = vmatprep.subr.mxu0 %v285
  %984 = vmatpush1.msra.mxu0 %v284
  %985 = vmatprep.subr.mxu0 %v289
  %986 = vmatpush1.msra.mxu0 %v288
  %987 = vmatprep.mubr.f32.mxu0 %v29
  %988 = vmatmul.mubr.f32.gmra.mrb[0].mxu0 %v28
  %v989 = vpop.f32.mrb[0].mxu0
  %v990 = vadd.f32 %v919, %v989
  %v991 = vpop.f32.mrb[0].mxu0
  %v992 = vadd.f32 %v921, %v991
  %993 = vdwg.mxu0
  %994 = vmatprep.subr.mxu0 %v293
  %995 = vmatpush1.msra.mxu0 %v292
  %996 = vmatprep.subr.mxu0 %v297
  %997 = vmatpush1.msra.mxu0 %v296
  %998 = vmatprep.subr.mxu0 %v301
  %999 = vmatpush1.msra.mxu0 %v300
  %1000 = vmatprep.subr.mxu0 %v305
  %1001 = vmatpush1.msra.mxu0 %v304
  %1002 = vmatprep.subr.mxu0 %v309
  %1003 = vmatpush1.msra.mxu0 %v308
  %1004 = vmatprep.subr.mxu0 %v313
  %1005 = vmatpush1.msra.mxu0 %v312
  %1006 = vmatprep.subr.mxu0 %v317
  %1007 = vmatpush1.msra.mxu0 %v316
  %1008 = vmatprep.subr.mxu0 %v321
  %1009 = vmatpush1.msra.mxu0 %v320
  %1010 = vmatprep.subr.mxu0 %v325
  %1011 = vmatpush1.msra.mxu0 %v324
  %1012 = vmatprep.subr.mxu0 %v329
  %1013 = vmatpush1.msra.mxu0 %v328
  %1014 = vmatprep.subr.mxu0 %v333
  %1015 = vmatpush1.msra.mxu0 %v332
  %1016 = vmatprep.subr.mxu0 %v337
  %1017 = vmatpush1.msra.mxu0 %v336
  %1018 = vmatprep.subr.mxu0 %v341
  %1019 = vmatpush1.msra.mxu0 %v340
  %1020 = vmatprep.subr.mxu0 %v345
  %1021 = vmatpush1.msra.mxu0 %v344
  %1022 = vmatprep.subr.mxu0 %v349
  %1023 = vmatpush1.msra.mxu0 %v348
  %1024 = vmatprep.subr.mxu0 %v353
  %1025 = vmatpush1.msra.mxu0 %v352
  %1026 = vmatprep.subr.mxu0 %v357
  %1027 = vmatpush1.msra.mxu0 %v356
  %1028 = vmatprep.subr.mxu0 %v361
  %1029 = vmatpush1.msra.mxu0 %v360
  %1030 = vmatprep.subr.mxu0 %v365
  %1031 = vmatpush1.msra.mxu0 %v364
  %1032 = vmatprep.subr.mxu0 %v369
  %1033 = vmatpush1.msra.mxu0 %v368
  %1034 = vmatprep.subr.mxu0 %v373
  %1035 = vmatpush1.msra.mxu0 %v372
  %1036 = vmatprep.subr.mxu0 %v377
  %1037 = vmatpush1.msra.mxu0 %v376
  %1038 = vmatprep.subr.mxu0 %v381
  %1039 = vmatpush1.msra.mxu0 %v380
  %1040 = vmatprep.subr.mxu0 %v385
  %1041 = vmatpush1.msra.mxu0 %v384
  %1042 = vmatprep.subr.mxu0 %v389
  %1043 = vmatpush1.msra.mxu0 %v388
  %1044 = vmatprep.subr.mxu0 %v393
  %1045 = vmatpush1.msra.mxu0 %v392
  %1046 = vmatprep.subr.mxu0 %v397
  %1047 = vmatpush1.msra.mxu0 %v396
  %1048 = vmatprep.subr.mxu0 %v401
  %1049 = vmatpush1.msra.mxu0 %v400
  %1050 = vmatprep.subr.mxu0 %v405
  %1051 = vmatpush1.msra.mxu0 %v404
  %1052 = vmatprep.subr.mxu0 %v409
  %1053 = vmatpush1.msra.mxu0 %v408
  %1054 = vmatprep.subr.mxu0 %v413
  %1055 = vmatpush1.msra.mxu0 %v412
  %1056 = vmatprep.subr.mxu0 %v417
  %1057 = vmatpush1.msra.mxu0 %v416
  %1058 = vmatprep.mubr.f32.mxu0 %v31
  %1059 = vmatmul.mubr.f32.gmra.mrb[0].mxu0 %v30
  %v1060 = vpop.f32.mrb[0].mxu0
  %v1061 = vadd.f32 %v990, %v1060
  %v1062 = vpop.f32.mrb[0].mxu0
  %v1063 = vadd.f32 %v992, %v1062
  %1064 = vdwg.mxu0
  %1065 = vmatprep.subr.mxu0 %v421
  %1066 = vmatpush1.msra.mxu0 %v420
  %1067 = vmatprep.subr.mxu0 %v425
  %1068 = vmatpush1.msra.mxu0 %v424
  %1069 = vmatprep.subr.mxu0 %v429
  %1070 = vmatpush1.msra.mxu0 %v428
  %1071 = vmatprep.subr.mxu0 %v433
  %1072 = vmatpush1.msra.mxu0 %v432
  %1073 = vmatprep.subr.mxu0 %v437
  %1074 = vmatpush1.msra.mxu0 %v436
  %1075 = vmatprep.subr.mxu0 %v441
  %1076 = vmatpush1.msra.mxu0 %v440
  %1077 = vmatprep.subr.mxu0 %v445
  %1078 = vmatpush1.msra.mxu0 %v444
  %1079 = vmatprep.subr.mxu0 %v449
  %1080 = vmatpush1.msra.mxu0 %v448
  %1081 = vmatprep.subr.mxu0 %v453
  %1082 = vmatpush1.msra.mxu0 %v452
  %1083 = vmatprep.subr.mxu0 %v457
  %1084 = vmatpush1.msra.mxu0 %v456
  %1085 = vmatprep.subr.mxu0 %v461
  %1086 = vmatpush1.msra.mxu0 %v460
  %1087 = vmatprep.subr.mxu0 %v465
  %1088 = vmatpush1.msra.mxu0 %v464
  %1089 = vmatprep.subr.mxu0 %v469
  %1090 = vmatpush1.msra.mxu0 %v468
  %1091 = vmatprep.subr.mxu0 %v473
  %1092 = vmatpush1.msra.mxu0 %v472
  %1093 = vmatprep.subr.mxu0 %v477
  %1094 = vmatpush1.msra.mxu0 %v476
  %1095 = vmatprep.subr.mxu0 %v481
  %1096 = vmatpush1.msra.mxu0 %v480
  %1097 = vmatprep.subr.mxu0 %v485
  %1098 = vmatpush1.msra.mxu0 %v484
  %1099 = vmatprep.subr.mxu0 %v489
  %1100 = vmatpush1.msra.mxu0 %v488
  %1101 = vmatprep.subr.mxu0 %v493
  %1102 = vmatpush1.msra.mxu0 %v492
  %1103 = vmatprep.subr.mxu0 %v497
  %1104 = vmatpush1.msra.mxu0 %v496
  %1105 = vmatprep.subr.mxu0 %v501
  %1106 = vmatpush1.msra.mxu0 %v500
  %1107 = vmatprep.subr.mxu0 %v505
  %1108 = vmatpush1.msra.mxu0 %v504
  %1109 = vmatprep.subr.mxu0 %v509
  %1110 = vmatpush1.msra.mxu0 %v508
  %1111 = vmatprep.subr.mxu0 %v513
  %1112 = vmatpush1.msra.mxu0 %v512
  %1113 = vmatprep.subr.mxu0 %v517
  %1114 = vmatpush1.msra.mxu0 %v516
  %1115 = vmatprep.subr.mxu0 %v521
  %1116 = vmatpush1.msra.mxu0 %v520
  %1117 = vmatprep.subr.mxu0 %v525
  %1118 = vmatpush1.msra.mxu0 %v524
  %1119 = vmatprep.subr.mxu0 %v529
  %1120 = vmatpush1.msra.mxu0 %v528
  %1121 = vmatprep.subr.mxu0 %v533
  %1122 = vmatpush1.msra.mxu0 %v532
  %1123 = vmatprep.subr.mxu0 %v537
  %1124 = vmatpush1.msra.mxu0 %v536
  %1125 = vmatprep.subr.mxu0 %v541
  %1126 = vmatpush1.msra.mxu0 %v540
  %1127 = vmatprep.subr.mxu0 %v545
  %1128 = vmatpush1.msra.mxu0 %v544
  %1129 = vmatprep.mubr.f32.mxu0 %v33
  %1130 = vmatmul.mubr.f32.gmra.mrb[0].mxu0 %v32
  %v1131 = vpop.f32.mrb[0].mxu0
  %v1132 = vadd.f32 %v1061, %v1131
  %v1133 = vpop.f32.mrb[0].mxu0
  %v1134 = vadd.f32 %v1063, %v1133
  %1135 = vdwg.mxu0
  %v1136 = vld [vmem:[%s3] sm:$0xf]
  %v1138 = vlaneseq
  %v1139 = vshrl.u32 %v1138, 7
  %v1140 = vsub.s32 0, %v1139
  %v1141 = vrot.slane %v1136, %v1140
  %v1142 = vlaneseq
  %v1143 = vshrl.u32 %v1142, 7
  %v1144 = vsub.s32 1, %v1143
  %v1145 = vrot.slane %v1136, %v1144
  %v1146 = vlaneseq
  %v1147 = vshrl.u32 %v1146, 7
  %v1148 = vsub.s32 2, %v1147
  %v1149 = vrot.slane %v1136, %v1148
  %v1150 = vlaneseq
  %v1151 = vshrl.u32 %v1150, 7
  %v1152 = vsub.s32 3, %v1151
  %v1153 = vrot.slane %v1136, %v1152
  %v1158 = vmul.f32 %v848, %v1141
  %v1159 = vmul.f32 %v850, %v1145
  %v1160 = vmul.f32 %v1132, %v1149
  %v1161 = vmul.f32 %v1134, %v1153
  %v1162 = vld [vmem:[%s4] sm:$0xf]
  %v1164 = vlaneseq
  %v1165 = vshrl.u32 %v1164, 7
  %v1166 = vsub.s32 0, %v1165
  %v1167 = vrot.slane %v1162, %v1166
  %v1168 = vlaneseq
  %v1169 = vshrl.u32 %v1168, 7
  %v1170 = vsub.s32 1, %v1169
  %v1171 = vrot.slane %v1162, %v1170
  %v1172 = vlaneseq
  %v1173 = vshrl.u32 %v1172, 7
  %v1174 = vsub.s32 2, %v1173
  %v1175 = vrot.slane %v1162, %v1174
  %v1176 = vlaneseq
  %v1177 = vshrl.u32 %v1176, 7
  %v1178 = vsub.s32 3, %v1177
  %v1179 = vrot.slane %v1162, %v1178
  %v1184 = vadd.f32 %v1158, %v1167
  %v1185 = vadd.f32 %v1159, %v1171
  %v1186 = vadd.f32 %v1160, %v1175
  %v1187 = vadd.f32 %v1161, %v1179
  %v1188 = vmax.f32 %v1184, 0.0
  %v1189 = vmax.f32 %v1185, 0.0
  %v1190 = vmax.f32 %v1186, 0.0
  %v1191 = vmax.f32 %v1187, 0.0
  %v1192 = vld [vmem:[%s5] sm:$0xff]
  %v1193 = vld [vmem:[%s5 + $0x8] sm:$0xff]
  %v1194 = vld [vmem:[%s5 + $0x10] sm:$0xff]
  %v1195 = vld [vmem:[%s5 + $0x18] sm:$0xff]
  %v1196 = vld [vmem:[%s5 + $0x20] sm:$0xff]
  %v1197 = vld [vmem:[%s5 + $0x28] sm:$0xff]
  %v1198 = vld [vmem:[%s5 + $0x30] sm:$0xff]
  %v1199 = vld [vmem:[%s5 + $0x38] sm:$0xff]
  %v1200 = vld [vmem:[%s5 + $0x40] sm:$0xff]
  %v1201 = vld [vmem:[%s5 + $0x48] sm:$0xff]
  %v1202 = vld [vmem:[%s5 + $0x50] sm:$0xff]
  %v1203 = vld [vmem:[%s5 + $0x58] sm:$0xff]
  %v1204 = vld [vmem:[%s5 + $0x60] sm:$0xff]
  %v1205 = vld [vmem:[%s5 + $0x68] sm:$0xff]
  %v1206 = vld [vmem:[%s5 + $0x70] sm:$0xff]
  %v1207 = vld [vmem:[%s5 + $0x78] sm:$0xff]
  %v1208 = vld [vmem:[%s5 + $0x80] sm:$0xff]
  %v1209 = vld [vmem:[%s5 + $0x88] sm:$0xff]
  %v1210 = vld [vmem:[%s5 + $0x90] sm:$0xff]
  %v1211 = vld [vmem:[%s5 + $0x98] sm:$0xff]
  %v1212 = vld [vmem:[%s5 + $0xa0] sm:$0xff]
  %v1213 = vld [vmem:[%s5 + $0xa8] sm:$0xff]
  %v1214 = vld [vmem:[%s5 + $0xb0] sm:$0xff]
  %v1215 = vld [vmem:[%s5 + $0xb8] sm:$0xff]
  %v1216 = vld [vmem:[%s5 + $0xc0] sm:$0xff]
  %v1217 = vld [vmem:[%s5 + $0xc8] sm:$0xff]
  %v1218 = vld [vmem:[%s5 + $0xd0] sm:$0xff]
  %v1219 = vld [vmem:[%s5 + $0xd8] sm:$0xff]
  %v1220 = vld [vmem:[%s5 + $0xe0] sm:$0xff]
  %v1221 = vld [vmem:[%s5 + $0xe8] sm:$0xff]
  %v1222 = vld [vmem:[%s5 + $0xf0] sm:$0xff]
  %v1223 = vld [vmem:[%s5 + $0xf8] sm:$0xff]
  %v1224 = vld [vmem:[%s5 + $0x100] sm:$0xff]
  %v1225 = vld [vmem:[%s5 + $0x108] sm:$0xff]
  %v1226 = vld [vmem:[%s5 + $0x110] sm:$0xff]
  %v1227 = vld [vmem:[%s5 + $0x118] sm:$0xff]
  %v1228 = vld [vmem:[%s5 + $0x120] sm:$0xff]
  %v1229 = vld [vmem:[%s5 + $0x128] sm:$0xff]
  %v1230 = vld [vmem:[%s5 + $0x130] sm:$0xff]
  %v1231 = vld [vmem:[%s5 + $0x138] sm:$0xff]
  %v1232 = vld [vmem:[%s5 + $0x140] sm:$0xff]
  %v1233 = vld [vmem:[%s5 + $0x148] sm:$0xff]
  %v1234 = vld [vmem:[%s5 + $0x150] sm:$0xff]
  %v1235 = vld [vmem:[%s5 + $0x158] sm:$0xff]
  %v1236 = vld [vmem:[%s5 + $0x160] sm:$0xff]
  %v1237 = vld [vmem:[%s5 + $0x168] sm:$0xff]
  %v1238 = vld [vmem:[%s5 + $0x170] sm:$0xff]
  %v1239 = vld [vmem:[%s5 + $0x178] sm:$0xff]
  %v1240 = vld [vmem:[%s5 + $0x180] sm:$0xff]
  %v1241 = vld [vmem:[%s5 + $0x188] sm:$0xff]
  %v1242 = vld [vmem:[%s5 + $0x190] sm:$0xff]
  %v1243 = vld [vmem:[%s5 + $0x198] sm:$0xff]
  %v1244 = vld [vmem:[%s5 + $0x1a0] sm:$0xff]
  %v1245 = vld [vmem:[%s5 + $0x1a8] sm:$0xff]
  %v1246 = vld [vmem:[%s5 + $0x1b0] sm:$0xff]
  %v1247 = vld [vmem:[%s5 + $0x1b8] sm:$0xff]
  %v1248 = vld [vmem:[%s5 + $0x1c0] sm:$0xff]
  %v1249 = vld [vmem:[%s5 + $0x1c8] sm:$0xff]
  %v1250 = vld [vmem:[%s5 + $0x1d0] sm:$0xff]
  %v1251 = vld [vmem:[%s5 + $0x1d8] sm:$0xff]
  %v1252 = vld [vmem:[%s5 + $0x1e0] sm:$0xff]
  %v1253 = vld [vmem:[%s5 + $0x1e8] sm:$0xff]
  %v1254 = vld [vmem:[%s5 + $0x1f0] sm:$0xff]
  %v1255 = vld [vmem:[%s5 + $0x1f8] sm:$0xff]
  %v1256 = vld [vmem:[%s6] sm:$0x1]
  %v1258 = vlaneseq
  %v1259 = vshrl.u32 %v1258, 7
  %v1260 = vsub.s32 0, %v1259
  %v1261 = vrot.slane %v1256, %v1260
  %1263 = vmatprep.subr.mxu0 0.0
  %1264 = vmatpush1.msra.mxu0 %v1192
  %1265 = vmatprep.subr.mxu0 0.0
  %1266 = vmatpush1.msra.mxu0 %v1193
  %1267 = vmatprep.subr.mxu0 0.0
  %1268 = vmatpush1.msra.mxu0 %v1194
  %1269 = vmatprep.subr.mxu0 0.0
  %1270 = vmatpush1.msra.mxu0 %v1195
  %1271 = vmatprep.subr.mxu0 0.0
  %1272 = vmatpush1.msra.mxu0 %v1196
  %1273 = vmatprep.subr.mxu0 0.0
  %1274 = vmatpush1.msra.mxu0 %v1197
  %1275 = vmatprep.subr.mxu0 0.0
  %1276 = vmatpush1.msra.mxu0 %v1198
  %1277 = vmatprep.subr.mxu0 0.0
  %1278 = vmatpush1.msra.mxu0 %v1199
  %1279 = vmatprep.subr.mxu0 0.0
  %1280 = vmatpush1.msra.mxu0 %v1200
  %1281 = vmatprep.subr.mxu0 0.0
  %1282 = vmatpush1.msra.mxu0 %v1201
  %1283 = vmatprep.subr.mxu0 0.0
  %1284 = vmatpush1.msra.mxu0 %v1202
  %1285 = vmatprep.subr.mxu0 0.0
  %1286 = vmatpush1.msra.mxu0 %v1203
  %1287 = vmatprep.subr.mxu0 0.0
  %1288 = vmatpush1.msra.mxu0 %v1204
  %1289 = vmatprep.subr.mxu0 0.0
  %1290 = vmatpush1.msra.mxu0 %v1205
  %1291 = vmatprep.subr.mxu0 0.0
  %1292 = vmatpush1.msra.mxu0 %v1206
  %1293 = vmatprep.subr.mxu0 0.0
  %1294 = vmatpush1.msra.mxu0 %v1207
  %1295 = vmatprep.subr.mxu0 0.0
  %1296 = vmatpush1.msra.mxu0 %v1208
  %1297 = vmatprep.subr.mxu0 0.0
  %1298 = vmatpush1.msra.mxu0 %v1209
  %1299 = vmatprep.subr.mxu0 0.0
  %1300 = vmatpush1.msra.mxu0 %v1210
  %1301 = vmatprep.subr.mxu0 0.0
  %1302 = vmatpush1.msra.mxu0 %v1211
  %1303 = vmatprep.subr.mxu0 0.0
  %1304 = vmatpush1.msra.mxu0 %v1212
  %1305 = vmatprep.subr.mxu0 0.0
  %1306 = vmatpush1.msra.mxu0 %v1213
  %1307 = vmatprep.subr.mxu0 0.0
  %1308 = vmatpush1.msra.mxu0 %v1214
  %1309 = vmatprep.subr.mxu0 0.0
  %1310 = vmatpush1.msra.mxu0 %v1215
  %1311 = vmatprep.subr.mxu0 0.0
  %1312 = vmatpush1.msra.mxu0 %v1216
  %1313 = vmatprep.subr.mxu0 0.0
  %1314 = vmatpush1.msra.mxu0 %v1217
  %1315 = vmatprep.subr.mxu0 0.0
  %1316 = vmatpush1.msra.mxu0 %v1218
  %1317 = vmatprep.subr.mxu0 0.0
  %1318 = vmatpush1.msra.mxu0 %v1219
  %1319 = vmatprep.subr.mxu0 0.0
  %1320 = vmatpush1.msra.mxu0 %v1220
  %1321 = vmatprep.subr.mxu0 0.0
  %1322 = vmatpush1.msra.mxu0 %v1221
  %1323 = vmatprep.subr.mxu0 0.0
  %1324 = vmatpush1.msra.mxu0 %v1222
  %1325 = vmatprep.subr.mxu0 0.0
  %1326 = vmatpush1.msra.mxu0 %v1223
  %1327 = vmatprep.mubr.f32.mxu0 %v1189
  %1328 = vmatmul.mubr.f32.gmra.mrb[0].mxu0 %v1188
  %v1329 = vpop.f32.mrb[0].mxu0
  %v1330 = vadd.f32 %v1261, %v1329
  %v1331 = vpop.f32.mrb[0].mxu0
  %1332 = vdwg.mxu0
  %1333 = vmatprep.subr.mxu0 0.0
  %1334 = vmatpush1.msra.mxu0 %v1224
  %1335 = vmatprep.subr.mxu0 0.0
  %1336 = vmatpush1.msra.mxu0 %v1225
  %1337 = vmatprep.subr.mxu0 0.0
  %1338 = vmatpush1.msra.mxu0 %v1226
  %1339 = vmatprep.subr.mxu0 0.0
  %1340 = vmatpush1.msra.mxu0 %v1227
  %1341 = vmatprep.subr.mxu0 0.0
  %1342 = vmatpush1.msra.mxu0 %v1228
  %1343 = vmatprep.subr.mxu0 0.0
  %1344 = vmatpush1.msra.mxu0 %v1229
  %1345 = vmatprep.subr.mxu0 0.0
  %1346 = vmatpush1.msra.mxu0 %v1230
  %1347 = vmatprep.subr.mxu0 0.0
  %1348 = vmatpush1.msra.mxu0 %v1231
  %1349 = vmatprep.subr.mxu0 0.0
  %1350 = vmatpush1.msra.mxu0 %v1232
  %1351 = vmatprep.subr.mxu0 0.0
  %1352 = vmatpush1.msra.mxu0 %v1233
  %1353 = vmatprep.subr.mxu0 0.0
  %1354 = vmatpush1.msra.mxu0 %v1234
  %1355 = vmatprep.subr.mxu0 0.0
  %1356 = vmatpush1.msra.mxu0 %v1235
  %1357 = vmatprep.subr.mxu0 0.0
  %1358 = vmatpush1.msra.mxu0 %v1236
  %1359 = vmatprep.subr.mxu0 0.0
  %1360 = vmatpush1.msra.mxu0 %v1237
  %1361 = vmatprep.subr.mxu0 0.0
  %1362 = vmatpush1.msra.mxu0 %v1238
  %1363 = vmatprep.subr.mxu0 0.0
  %1364 = vmatpush1.msra.mxu0 %v1239
  %1365 = vmatprep.subr.mxu0 0.0
  %1366 = vmatpush1.msra.mxu0 %v1240
  %1367 = vmatprep.subr.mxu0 0.0
  %1368 = vmatpush1.msra.mxu0 %v1241
  %1369 = vmatprep.subr.mxu0 0.0
  %1370 = vmatpush1.msra.mxu0 %v1242
  %1371 = vmatprep.subr.mxu0 0.0
  %1372 = vmatpush1.msra.mxu0 %v1243
  %1373 = vmatprep.subr.mxu0 0.0
  %1374 = vmatpush1.msra.mxu0 %v1244
  %1375 = vmatprep.subr.mxu0 0.0
  %1376 = vmatpush1.msra.mxu0 %v1245
  %1377 = vmatprep.subr.mxu0 0.0
  %1378 = vmatpush1.msra.mxu0 %v1246
  %1379 = vmatprep.subr.mxu0 0.0
  %1380 = vmatpush1.msra.mxu0 %v1247
  %1381 = vmatprep.subr.mxu0 0.0
  %1382 = vmatpush1.msra.mxu0 %v1248
  %1383 = vmatprep.subr.mxu0 0.0
  %1384 = vmatpush1.msra.mxu0 %v1249
  %1385 = vmatprep.subr.mxu0 0.0
  %1386 = vmatpush1.msra.mxu0 %v1250
  %1387 = vmatprep.subr.mxu0 0.0
  %1388 = vmatpush1.msra.mxu0 %v1251
  %1389 = vmatprep.subr.mxu0 0.0
  %1390 = vmatpush1.msra.mxu0 %v1252
  %1391 = vmatprep.subr.mxu0 0.0
  %1392 = vmatpush1.msra.mxu0 %v1253
  %1393 = vmatprep.subr.mxu0 0.0
  %1394 = vmatpush1.msra.mxu0 %v1254
  %1395 = vmatprep.subr.mxu0 0.0
  %1396 = vmatpush1.msra.mxu0 %v1255
  %1397 = vmatprep.mubr.f32.mxu0 %v1191
  %1398 = vmatmul.mubr.f32.gmra.mrb[0].mxu0 %v1190
  %v1399 = vpop.f32.mrb[0].mxu0
  %v1400 = vadd.f32 %v1330, %v1399
  %v1401 = vpop.f32.mrb[0].mxu0
  %1402 = vdwg.mxu0
  %vm1403 = vcmask 31744
  %v1404 = vsel %vm1403, %v1400, -inf
  %1405 = vmax.xlane.f32.xlu0 %v1404
  %v1406 = vpop.xlane.xlu0 %1405
  %v1407 = vsub.f32 %v1400, %v1406
  %v1408 = vmul.f32 %v1407, 1.442695
  %v1409 = vpow.pop %v1408
  %v1410 = vsel %vm1403, %v1409, 0.0
  %1411 = vadd.xlane.f32.xlu0 %v1410
  %v1412 = vpop.xlane.xlu0 %1411
  %v1413 = vrcp.pop %v1412
  %v1414 = vmul.f32 %v1409, %v1413
  %1415 = vst.msk [vmem:[%s7] sm:$0xff] %vm1403, %v1414
  // Predicated region
  $region30: #{coattention_net_forward.3} parent=0 // pred_check
    _
  $region31: #{coattention_net_forward.3} parent=0 // pred_check_branch
    %1417 = sbr.rel (0) target = $region33
  $region32: #{coattention_net_forward.3} parent=0 // pred_region
    _
  $region33: #{coattention_net_forward.3} parent=0 // pred_fallthru
    _
  // Predicated region
  $region34: #{coattention_net_forward.3} parent=0 // pred_check
    _
  $region35: #{coattention_net_forward.3} parent=0 // pred_check_branch
    %1419 = sbr.rel (0) target = $region37
  $region36: #{coattention_net_forward.3} parent=0 // pred_region
    _
  $region37: #{coattention_net_forward.3} parent=0 // pred_fallthru
    _

// kernel: coattention_net_forward.2
$region0: #{coattention_net_forward.2}
  #allocation0 [shape = 'u32[]', space=smem, size = 0x4, offset = 0x4, fixed_abs, tag = 'smem constant byte address 0x4 - core index']
  #allocation1 [shape = 'u32[144,128]{1,0:T(1,128)}', space=vmem, size = 0x12000, scoped, tag = 'internal scratch']
  %s0 = inlined_call_operand.hbm [shape: f32[8,5888], index: 0, kind: input, shape index: {}]
  %s1 = inlined_call_operand.hbm [shape: f32[5888,1024], index: 1, kind: input, shape index: {}]
  %s2 = inlined_call_operand.hbm [shape: f32[1,1024], index: 2, kind: input, shape index: {}]
  %s3 = inlined_call_operand.hbm [shape: f32[1,1024], index: 3, kind: input, shape index: {}]
  %s4 = inlined_call_operand.hbm [shape: f32[1,1024], index: 4, kind: input, shape index: {}]
  %s5 = inlined_call_operand.vmem [shape: f32[8,1024], index: 5, kind: output, shape index: {}]
  %s6 = sld [smem:[#allocation0]]
  $region73: #{coattention_net_forward.2} parent=0
    _
  %s8 = ssub.s32 1, %s6
  %s9 = scalar_select 0, %s8, %s6
  $region1: #{coattention_net_forward.2} parent=0
    #allocation2 [shape = 'u8[188416]{0}', space=vmem, size = 0x2e000, scoped, tag = 'input window, operand 0, single buffered']
    #allocation3 [shape = 's32[2]{0}', space=sflag, size = 0x8, scoped, tag = 'scoped memory for coattention_net_forward.2']
    #allocation4 [shape = 'u8[24117248]{0}', space=vmem, size = 0x1700000, scoped, tag = 'input window, operand 1']
    #allocation5 [shape = 's32[2]{0}', space=sflag, size = 0x8, scoped, tag = 'scoped memory for coattention_net_forward.2']
    #allocation6 [shape = 'u8[4096]{0}', space=vmem, size = 0x1000, scoped, tag = 'input window, operand 2']
    #allocation7 [shape = 'u8[4096]{0}', space=vmem, size = 0x1000, scoped, tag = 'input window, operand 3']
    #allocation8 [shape = 's32[2]{0}', space=sflag, size = 0x8, scoped, tag = 'scoped memory for coattention_net_forward.2']
    #allocation9 [shape = 'u8[4096]{0}', space=vmem, size = 0x1000, scoped, tag = 'input window, operand 4']
    %10 = vsyncpa [#allocation3], 0
    %11 = vsyncpa [#allocation5], 0
    %s12 = scalar_lea.sflag [#allocation5], 1
    %13 = vsyncpa %s12, 0
    %14 = vsyncpa [#allocation8], 0
    %s15 = scalar_lea.sflag [#allocation8], 1
    %16 = vsyncpa %s15, 0
    loop: start=0, step=1, limit=4
    $region2: #{coattention_net_forward.2} parent=1 // loop_pre_header
      _
    $region3: #{coattention_net_forward.2} parent=1 // loop_header
      %s18 = sphi 0, %s22
      %p19 = scmp.ge.s32.totalorder %s18, 4
      %s26 = sphi 0, %s26
      %s28 = sphi 0, %s26
      %s29 = sphi 0, %s28
      %s43 = sphi 0, %s29
      %s49 = sphi 0, %s51
      %s52 = sphi 0, %s49
      %s53 = sphi 0, %s52
      %s69 = sphi 0, %s53
      %s75 = sphi 0, %s77
      %s78 = sphi 0, %s75
      %s79 = sphi 0, %s78
      %s95 = sphi 0, %s79
      %s101 = sphi 0, %s103
      %s104 = sphi 0, %s101
      %s105 = sphi 0, %s104
      %s121 = sphi 0, %s105
      %s127 = sphi 0, %s129
      %s130 = sphi 0, %s127
      %s131 = sphi 0, %s130
      %s147 = sphi 0, %s131
      %s153 = sphi 0, %s155
      %s156 = sphi 0, %s153
      %s157 = sphi 0, %s156
      %s173 = sphi 0, %s157
    $region4: #{coattention_net_forward.2} parent=1 // loop_header_branch
      %21 = sbr.rel (%p19) target = $region8
    $region5: #{coattention_net_forward.2} parent=1 // loop_body
      %s23 = ssub.s32 %s18, 1
      %s24 = ssub.s32 %s18, 2
      %s25 = sadd.s32 %s18, 1
      %s27 = sadd.s32 %s26, 1
      %p30 = scmp.eq.s32.totalorder %s18, 1
      %p31 = scmp.ne.s32.totalorder %s26, %s28
      %p32 = scmp.eq.s32.totalorder %s18, 0
      %p33 = por %p31, %p32
      %p34 = scmp.ne.s32.totalorder %s26, %s28
      %p35 = scmp.eq.s32.totalorder %s23, 1
      %p36 = por %p34, %p35
      %p37 = scmp.ne.s32.totalorder %s28, %s29
      %p38 = scmp.eq.s32.totalorder %s23, 0
      %p39 = por %p37, %p38
      %p40 = scmp.ne.s32.totalorder %s28, %s29
      %p41 = scmp.eq.s32.totalorder %s24, 1
      %p42 = por %p40, %p41
      %p44 = scmp.ne.s32.totalorder %s29, %s43
      %p45 = scmp.eq.s32.totalorder %s24, 0
      %p46 = por %p44, %p45
      %s47 = ssub.s32 %s18, %s25
      %p48 = scmp.eq.s32.totalorder %s47, 0
      %s50 = sadd.s32 %s49, 1
      %s51 = scalar_select %p48, %s49, %s50
      %p54 = pneg %p48
      %p55 = scmp.eq.s32.totalorder %s18, 1
      %p56 = por %p54, %p55
      %p57 = scmp.ne.s32.totalorder %s49, %s52
      %p58 = scmp.eq.s32.totalorder %s18, 0
      %p59 = por %p57, %p58
      %p60 = scmp.ne.s32.totalorder %s49, %s52
      %p61 = scmp.eq.s32.totalorder %s23, 1
      %p62 = por %p60, %p61
      %p63 = scmp.ne.s32.totalorder %s52, %s53
      %p64 = scmp.eq.s32.totalorder %s23, 0
      %p65 = por %p63, %p64
      %p66 = scmp.ne.s32.totalorder %s52, %s53
      %p67 = scmp.eq.s32.totalorder %s24, 1
      %p68 = por %p66, %p67
      %p70 = scmp.ne.s32.totalorder %s53, %s69
      %p71 = scmp.eq.s32.totalorder %s24, 0
      %p72 = por %p70, %p71
      %s73 = ssub.s32 %s18, %s25
      %p74 = scmp.eq.s32.totalorder %s73, 0
      %s76 = sadd.s32 %s75, 1
      %s77 = scalar_select %p74, %s75, %s76
      %p80 = pneg %p74
      %p81 = scmp.eq.s32.totalorder %s18, 1
      %p82 = por %p80, %p81
      %p83 = scmp.ne.s32.totalorder %s75, %s78
      %p84 = scmp.eq.s32.totalorder %s18, 0
      %p85 = por %p83, %p84
      %p86 = scmp.ne.s32.totalorder %s75, %s78
      %p87 = scmp.eq.s32.totalorder %s23, 1
      %p88 = por %p86, %p87
      %p89 = scmp.ne.s32.totalorder %s78, %s79
      %p90 = scmp.eq.s32.totalorder %s23, 0
      %p91 = por %p89, %p90
      %p92 = scmp.ne.s32.totalorder %s78, %s79
      %p93 = scmp.eq.s32.totalorder %s24, 1
      %p94 = por %p92, %p93
      %p96 = scmp.ne.s32.totalorder %s79, %s95
      %p97 = scmp.eq.s32.totalorder %s24, 0
      %p98 = por %p96, %p97
      %s99 = ssub.s32 %s18, %s25
      %p100 = scmp.eq.s32.totalorder %s99, 0
      %s102 = sadd.s32 %s101, 1
      %s103 = scalar_select %p100, %s101, %s102
      %p106 = pneg %p100
      %p107 = scmp.eq.s32.totalorder %s18, 1
      %p108 = por %p106, %p107
      %p109 = scmp.ne.s32.totalorder %s101, %s104
      %p110 = scmp.eq.s32.totalorder %s18, 0
      %p111 = por %p109, %p110
      %p112 = scmp.ne.s32.totalorder %s101, %s104
      %p113 = scmp.eq.s32.totalorder %s23, 1
      %p114 = por %p112, %p113
      %p115 = scmp.ne.s32.totalorder %s104, %s105
      %p116 = scmp.eq.s32.totalorder %s23, 0
      %p117 = por %p115, %p116
      %p118 = scmp.ne.s32.totalorder %s104, %s105
      %p119 = scmp.eq.s32.totalorder %s24, 1
      %p120 = por %p118, %p119
      %p122 = scmp.ne.s32.totalorder %s105, %s121
      %p123 = scmp.eq.s32.totalorder %s24, 0
      %p124 = por %p122, %p123
      %s125 = ssub.s32 %s18, %s25
      %p126 = scmp.eq.s32.totalorder %s125, 0
      %s128 = sadd.s32 %s127, 1
      %s129 = scalar_select %p126, %s127, %s128
      %p132 = pneg %p126
      %p133 = scmp.eq.s32.totalorder %s18, 1
      %p134 = por %p132, %p133
      %p135 = scmp.ne.s32.totalorder %s127, %s130
      %p136 = scmp.eq.s32.totalorder %s18, 0
      %p137 = por %p135, %p136
      %p138 = scmp.ne.s32.totalorder %s127, %s130
      %p139 = scmp.eq.s32.totalorder %s23, 1
      %p140 = por %p138, %p139
      %p141 = scmp.ne.s32.totalorder %s130, %s131
      %p142 = scmp.eq.s32.totalorder %s23, 0
      %p143 = por %p141, %p142
      %p144 = scmp.ne.s32.totalorder %s130, %s131
      %p145 = scmp.eq.s32.totalorder %s24, 1
      %p146 = por %p144, %p145
      %p148 = scmp.ne.s32.totalorder %s131, %s147
      %p149 = scmp.eq.s32.totalorder %s24, 0
      %p150 = por %p148, %p149
      %s151 = ssub.s32 %s18, %s25
      %p152 = scmp.eq.s32.totalorder %s151, 0
      %s154 = sadd.s32 %s153, 1
      %s155 = scalar_select %p152, %s153, %s154
      %p158 = pneg %p152
      %p159 = scmp.eq.s32.totalorder %s18, 1
      %p160 = por %p158, %p159
      %p161 = scmp.ne.s32.totalorder %s153, %s156
      %p162 = scmp.eq.s32.totalorder %s18, 0
      %p163 = por %p161, %p162
      %p164 = scmp.ne.s32.totalorder %s153, %s156
      %p165 = scmp.eq.s32.totalorder %s23, 1
      %p166 = por %p164, %p165
      %p167 = scmp.ne.s32.totalorder %s156, %s157
      %p168 = scmp.eq.s32.totalorder %s23, 0
      %p169 = por %p167, %p168
      %p170 = scmp.ne.s32.totalorder %s156, %s157
      %p171 = scmp.eq.s32.totalorder %s24, 1
      %p172 = por %p170, %p171
      %p174 = scmp.ne.s32.totalorder %s157, %s173
      %p175 = scmp.eq.s32.totalorder %s24, 0
      %p176 = por %p174, %p175
      %p177 = scmp.le.s32.totalorder 1, %s18
      %p178 = scmp.lt.s32.totalorder %s18, 3
      %p179 = pnand %p177, %p178
      %p180 = pneg %p179
      // Predicated region
      $region9: #{coattention_net_forward.2} parent=5 // pred_check
        _
      $region10: #{coattention_net_forward.2} parent=5 // pred_check_branch
        %182 = sbr.rel (%p179) target = $region12
      $region11: #{coattention_net_forward.2} parent=5 // pred_region
        %s183 = ssub.s32 %s18, 1
        // Predicated region
        $region13: #{coattention_net_forward.2} parent=11 // pred_check
          %p184 = pneg %p39
        $region14: #{coattention_net_forward.2} parent=11 // pred_check_branch
          %186 = sbr.rel (%p184) target = $region16
        $region15: #{coattention_net_forward.2} parent=11 // pred_region
          %s188 = ssub.s32 5888, 5888
          %189 = vsyncadd [#allocation3], %s188
          %s191 = sshll.u32 [#allocation2], 4
          %s192 = int_to_ptr.vmem [resolvable:$true] %s191
          %194 = dma.hbm_to_vmem [thread:$0]  %s0, 5888, %s192, [#allocation3]
        $region16: #{coattention_net_forward.2} parent=11 // pred_fallthru
          _
      $region12: #{coattention_net_forward.2} parent=5 // pred_fallthru
        _
      %p195 = scmp.lt.s32.totalorder %s18, 2
      // Predicated region
      $region17: #{coattention_net_forward.2} parent=5 // pred_check
        %p196 = pneg %p195
      $region18: #{coattention_net_forward.2} parent=5 // pred_check_branch
        %198 = sbr.rel (%p196) target = $region20
      $region19: #{coattention_net_forward.2} parent=5 // pred_region
        // Predicated region
        $region21: #{coattention_net_forward.2} parent=19 // pred_check
          %p199 = pneg %p59
        $region22: #{coattention_net_forward.2} parent=19 // pred_check_branch
          %201 = sbr.rel (%p199) target = $region24
        $region23: #{coattention_net_forward.2} parent=19 // pred_region
          %s202 = sand.u32 %s18, 1
          %s203 = scalar_lea.sflag [#allocation5], %s202
          %s204 = sand.u32 %s49, 1
          %s205 = smul.addr %s204, 23552
          %s206 = scalar_lea.vmem [#allocation4], %s205
          %s207 = smul.u32 4, %s18
          %s209 = ssub.s32 376832, 376832
          %210 = vsyncadd %s203, %s209
          %s211 = smul.addr %s207, 128
          %s212 = scalar_lea.hbm %s1, %s211
          %s213 = sshll.u32 %s206, 4
          %s214 = int_to_ptr.vmem [resolvable:$true] %s213
          %219 = dma.hbm_to_vmem [thread:$0]  %s212, 376832, %s214, %s203, 1024, 512, 32
        $region24: #{coattention_net_forward.2} parent=19 // pred_fallthru
          _
        // Predicated region
        $region25: #{coattention_net_forward.2} parent=19 // pred_check
          %p220 = pneg %p85
        $region26: #{coattention_net_forward.2} parent=19 // pred_check_branch
          %222 = sbr.rel (%p220) target = $region28
        $region27: #{coattention_net_forward.2} parent=19 // pred_region
          %s223 = sand.u32 %s18, 1
          %s224 = scalar_lea.sflag [#allocation5], %s223
          %s225 = sand.u32 %s75, 1
          %s226 = smul.addr %s225, 4
          %s227 = scalar_lea.vmem [#allocation6], %s226
          %s228 = smul.u32 4, %s18
          %s230 = ssub.s32 64, 64
          %231 = vsyncadd %s224, %s230
          %s232 = smul.addr %s228, 16
          %s233 = scalar_lea.hbm %s2, %s232
          %s235 = sshll.u32 %s227, 4
          %s236 = int_to_ptr.vmem [resolvable:$true] %s235
          %238 = dma.hbm_to_vmem [thread:$0]  %s233, 64, %s236, %s224
        $region28: #{coattention_net_forward.2} parent=19 // pred_fallthru
          _
        // Predicated region
        $region29: #{coattention_net_forward.2} parent=19 // pred_check
          %p239 = pneg %p111
        $region30: #{coattention_net_forward.2} parent=19 // pred_check_branch
          %241 = sbr.rel (%p239) target = $region32
        $region31: #{coattention_net_forward.2} parent=19 // pred_region
          %s242 = sand.u32 %s18, 1
          %s243 = scalar_lea.sflag [#allocation8], %s242
          %s244 = sand.u32 %s101, 1
          %s245 = smul.addr %s244, 4
          %s246 = scalar_lea.vmem [#allocation7], %s245
          %s247 = smul.u32 4, %s18
          %s249 = ssub.s32 64, 64
          %250 = vsyncadd %s243, %s249
          %s251 = smul.addr %s247, 16
          %s252 = scalar_lea.hbm %s3, %s251
          %s254 = sshll.u32 %s246, 4
          %s255 = int_to_ptr.vmem [resolvable:$true] %s254
          %257 = dma.hbm_to_vmem [thread:$0]  %s252, 64, %s255, %s243
        $region32: #{coattention_net_forward.2} parent=19 // pred_fallthru
          _
        // Predicated region
        $region33: #{coattention_net_forward.2} parent=19 // pred_check
          %p258 = pneg %p137
        $region34: #{coattention_net_forward.2} parent=19 // pred_check_branch
          %260 = sbr.rel (%p258) target = $region36
        $region35: #{coattention_net_forward.2} parent=19 // pred_region
          %s261 = sand.u32 %s18, 1
          %s262 = scalar_lea.sflag [#allocation8], %s261
          %s263 = sand.u32 %s127, 1
          %s264 = smul.addr %s263, 4
          %s265 = scalar_lea.vmem [#allocation9], %s264
          %s266 = smul.u32 4, %s18
          %s268 = ssub.s32 64, 64
          %269 = vsyncadd %s262, %s268
          %s270 = smul.addr %s266, 16
          %s271 = scalar_lea.hbm %s4, %s270
          %s273 = sshll.u32 %s265, 4
          %s274 = int_to_ptr.vmem [resolvable:$true] %s273
          %276 = dma.hbm_to_vmem [thread:$0]  %s271, 64, %s274, %s262
        $region36: #{coattention_net_forward.2} parent=19 // pred_fallthru
          _
      $region20: #{coattention_net_forward.2} parent=5 // pred_fallthru
        _
      %p277 = scmp.le.s32.totalorder 1, %s18
      %p278 = scmp.lt.s32.totalorder %s18, 3
      %p279 = pnand %p277, %p278
      %p280 = pneg %p279
      // Predicated region
      $region37: #{coattention_net_forward.2} parent=5 // pred_check
        _
      $region38: #{coattention_net_forward.2} parent=5 // pred_check_branch
        %282 = sbr.rel (%p279) target = $region40
      $region39: #{coattention_net_forward.2} parent=5 // pred_region
        %s283 = ssub.s32 %s18, 1
        // Predicated region
        $region41: #{coattention_net_forward.2} parent=39 // pred_check
          %p284 = pneg %p39
        $region42: #{coattention_net_forward.2} parent=39 // pred_check_branch
          %286 = sbr.rel (%p284) target = $region44
        $region43: #{coattention_net_forward.2} parent=39 // pred_region
          %287 = dma.done [#allocation3], 5888
        $region44: #{coattention_net_forward.2} parent=39 // pred_fallthru
          _
        %s288 = sand.u32 %s23, 1
        %s289 = scalar_lea.sflag [#allocation5], %s288
        %s290 = sand.u32 %s52, 1
        %s291 = smul.addr %s290, 23552
        %s292 = scalar_lea.vmem [#allocation4], %s291
        // Predicated region
        $region45: #{coattention_net_forward.2} parent=39 // pred_check
          %p293 = pneg %p65
        $region46: #{coattention_net_forward.2} parent=39 // pred_check_branch
          %295 = sbr.rel (%p293) target = $region48
        $region47: #{coattention_net_forward.2} parent=39 // pred_region
          %296 = dma.done %s289, 376832
        $region48: #{coattention_net_forward.2} parent=39 // pred_fallthru
          _
        %s297 = sand.u32 %s23, 1
        %s298 = scalar_lea.sflag [#allocation5], %s297
        %s299 = sand.u32 %s78, 1
        %s300 = smul.addr %s299, 4
        %s301 = scalar_lea.vmem [#allocation6], %s300
        // Predicated region
        $region49: #{coattention_net_forward.2} parent=39 // pred_check
          %p302 = pneg %p91
        $region50: #{coattention_net_forward.2} parent=39 // pred_check_branch
          %304 = sbr.rel (%p302) target = $region52
        $region51: #{coattention_net_forward.2} parent=39 // pred_region
          %305 = dma.done %s298, 64
        $region52: #{coattention_net_forward.2} parent=39 // pred_fallthru
          _
        %s306 = sand.u32 %s23, 1
        %s307 = scalar_lea.sflag [#allocation8], %s306
        %s308 = sand.u32 %s104, 1
        %s309 = smul.addr %s308, 4
        %s310 = scalar_lea.vmem [#allocation7], %s309
        // Predicated region
        $region53: #{coattention_net_forward.2} parent=39 // pred_check
          %p311 = pneg %p117
        $region54: #{coattention_net_forward.2} parent=39 // pred_check_branch
          %313 = sbr.rel (%p311) target = $region56
        $region55: #{coattention_net_forward.2} parent=39 // pred_region
          %314 = dma.done %s307, 64
        $region56: #{coattention_net_forward.2} parent=39 // pred_fallthru
          _
        %s315 = sand.u32 %s23, 1
        %s316 = scalar_lea.sflag [#allocation8], %s315
        %s317 = sand.u32 %s130, 1
        %s318 = smul.addr %s317, 4
        %s319 = scalar_lea.vmem [#allocation9], %s318
        // Predicated region
        $region57: #{coattention_net_forward.2} parent=39 // pred_check
          %p320 = pneg %p143
        $region58: #{coattention_net_forward.2} parent=39 // pred_check_branch
          %322 = sbr.rel (%p320) target = $region60
        $region59: #{coattention_net_forward.2} parent=39 // pred_region
          %323 = dma.done %s316, 64
        $region60: #{coattention_net_forward.2} parent=39 // pred_fallthru
          _
        %p324 = pneg %p39
        %p325 = pneg %p36
        %s326 = sand.u32 %s23, 1
        %s327 = scalar_lea.sflag [#allocation5], %s326
        %s328 = sand.u32 %s52, 1
        %s329 = smul.addr %s328, 23552
        %s330 = scalar_lea.vmem [#allocation4], %s329
        %p331 = pneg %p65
        %p332 = pneg %p62
        %s333 = sand.u32 %s23, 1
        %s334 = scalar_lea.sflag [#allocation5], %s333
        %s335 = sand.u32 %s78, 1
        %s336 = smul.addr %s335, 4
        %s337 = scalar_lea.vmem [#allocation6], %s336
        %p338 = pneg %p91
        %p339 = pneg %p88
        %s340 = sand.u32 %s23, 1
        %s341 = scalar_lea.sflag [#allocation8], %s340
        %s342 = sand.u32 %s104, 1
        %s343 = smul.addr %s342, 4
        %s344 = scalar_lea.vmem [#allocation7], %s343
        %p345 = pneg %p117
        %p346 = pneg %p114
        %s347 = sand.u32 %s23, 1
        %s348 = scalar_lea.sflag [#allocation8], %s347
        %s349 = sand.u32 %s130, 1
        %s350 = smul.addr %s349, 4
        %s351 = scalar_lea.vmem [#allocation9], %s350
        %p352 = pneg %p143
        %p353 = pneg %p140
        %p354 = pneg %p169
        %p355 = pneg %p166
        %s356 = smul.u32 4, %s23
        %p357 = scmp.lt.s32.totalorder %s356, 7
        %s358 = scalar_select %p357, %s356, 7
        %s359 = smul.addr %s358, 8
        %s360 = scalar_lea.vmem %s5, %s359
        %s361 = smul.u32 4, %s23
        %s362 = smul.u32 4, %s23
        %s363 = smul.u32 4, %s23
        %s364 = smul.u32 4, %s23
        %s365 = smul.u32 4, %s23
        %p366 = scmp.lt.s32.totalorder %s365, 7
        %s367 = scalar_select %p366, %s365, 7
        %s368 = smul.addr %s367, 8
        %s369 = scalar_lea.vmem %s5, %s368
        %s370 = smul.u32 4, %s23
        %v371 = vld [vmem:[#allocation2] sm:$0xff]
        %v372 = vld [vmem:[#allocation2 + $0x8] sm:$0xff]
        %v373 = vld [vmem:[#allocation2 + $0x10] sm:$0xff]
        %v374 = vld [vmem:[#allocation2 + $0x18] sm:$0xff]
        %v375 = vld [vmem:[#allocation2 + $0x20] sm:$0xff]
        %v376 = vld [vmem:[#allocation2 + $0x28] sm:$0xff]
        %v377 = vld [vmem:[#allocation2 + $0x30] sm:$0xff]
        %v378 = vld [vmem:[#allocation2 + $0x38] sm:$0xff]
        %v379 = vld [vmem:[#allocation2 + $0x40] sm:$0xff]
        %v380 = vld [vmem:[#allocation2 + $0x48] sm:$0xff]
        %v381 = vld [vmem:[#allocation2 + $0x50] sm:$0xff]
        %v382 = vld [vmem:[#allocation2 + $0x58] sm:$0xff]
        %v383 = vld [vmem:[#allocation2 + $0x60] sm:$0xff]
        %v384 = vld [vmem:[#allocation2 + $0x68] sm:$0xff]
        %v385 = vld [vmem:[#allocation2 + $0x70] sm:$0xff]
        %v386 = vld [vmem:[#allocation2 + $0x78] sm:$0xff]
        %v387 = vld [vmem:[#allocation2 + $0x80] sm:$0xff]
        %v388 = vld [vmem:[#allocation2 + $0x88] sm:$0xff]
        %v389 = vld [vmem:[#allocation2 + $0x90] sm:$0xff]
        %v390 = vld [vmem:[#allocation2 + $0x98] sm:$0xff]
        %v391 = vld [vmem:[#allocation2 + $0xa0] sm:$0xff]
        %v392 = vld [vmem:[#allocation2 + $0xa8] sm:$0xff]
        %v393 = vld [vmem:[#allocation2 + $0xb0] sm:$0xff]
        %v394 = vld [vmem:[#allocation2 + $0xb8] sm:$0xff]
        %v395 = vld [vmem:[#allocation2 + $0xc0] sm:$0xff]
        %v396 = vld [vmem:[#allocation2 + $0xc8] sm:$0xff]
        %v397 = vld [vmem:[#allocation2 + $0xd0] sm:$0xff]
        %v398 = vld [vmem:[#allocation2 + $0xd8] sm:$0xff]
        %v399 = vld [vmem:[#allocation2 + $0xe0] sm:$0xff]
        %v400 = vld [vmem:[#allocation2 + $0xe8] sm:$0xff]
        %v401 = vld [vmem:[#allocation2 + $0xf0] sm:$0xff]
        %v402 = vld [vmem:[#allocation2 + $0xf8] sm:$0xff]
        %v403 = vld [vmem:[#allocation2 + $0x100] sm:$0xff]
        %v404 = vld [vmem:[#allocation2 + $0x108] sm:$0xff]
        %v405 = vld [vmem:[#allocation2 + $0x110] sm:$0xff]
        %v406 = vld [vmem:[#allocation2 + $0x118] sm:$0xff]
        %v407 = vld [vmem:[#allocation2 + $0x120] sm:$0xff]
        %v408 = vld [vmem:[#allocation2 + $0x128] sm:$0xff]
        %v409 = vld [vmem:[#allocation2 + $0x130] sm:$0xff]
        %v410 = vld [vmem:[#allocation2 + $0x138] sm:$0xff]
        %v411 = vld [vmem:[#allocation2 + $0x140] sm:$0xff]
        %v412 = vld [vmem:[#allocation2 + $0x148] sm:$0xff]
        %v413 = vld [vmem:[#allocation2 + $0x150] sm:$0xff]
        %v414 = vld [vmem:[#allocation2 + $0x158] sm:$0xff]
        %v415 = vld [vmem:[#allocation2 + $0x160] sm:$0xff]
        %v416 = vld [vmem:[#allocation2 + $0x168] sm:$0xff]
        %v417 = vld [vmem:[%s292] sm:$0xff]
        %v418 = vld [vmem:[%s292 + $0x8] sm:$0xff]
        %v419 = vld [vmem:[%s292 + $0x10] sm:$0xff]
        %v420 = vld [vmem:[%s292 + $0x18] sm:$0xff]
        %v421 = vld [vmem:[%s292 + $0x20] sm:$0xff]
        %v422 = vld [vmem:[%s292 + $0x28] sm:$0xff]
        %v423 = vld [vmem:[%s292 + $0x30] sm:$0xff]
        %v424 = vld [vmem:[%s292 + $0x38] sm:$0xff]
        %v425 = vld [vmem:[%s292 + $0x40] sm:$0xff]
        %v426 = vld [vmem:[%s292 + $0x48] sm:$0xff]
        %v427 = vld [vmem:[%s292 + $0x50] sm:$0xff]
        %v428 = vld [vmem:[%s292 + $0x58] sm:$0xff]
        %v429 = vld [vmem:[%s292 + $0x60] sm:$0xff]
        %v430 = vld [vmem:[%s292 + $0x68] sm:$0xff]
        %v431 = vld [vmem:[%s292 + $0x70] sm:$0xff]
        %v432 = vld [vmem:[%s292 + $0x78] sm:$0xff]
        %v433 = vld [vmem:[%s292 + $0x80] sm:$0xff]
        %v434 = vld [vmem:[%s292 + $0x88] sm:$0xff]
        %v435 = vld [vmem:[%s292 + $0x90] sm:$0xff]
        %v436 = vld [vmem:[%s292 + $0x98] sm:$0xff]
        %v437 = vld [vmem:[%s292 + $0xa0] sm:$0xff]
        %v438 = vld [vmem:[%s292 + $0xa8] sm:$0xff]
        %v439 = vld [vmem:[%s292 + $0xb0] sm:$0xff]
        %v440 = vld [vmem:[%s292 + $0xb8] sm:$0xff]
        %v441 = vld [vmem:[%s292 + $0xc0] sm:$0xff]
        %v442 = vld [vmem:[%s292 + $0xc8] sm:$0xff]
        %v443 = vld [vmem:[%s292 + $0xd0] sm:$0xff]
        %v444 = vld [vmem:[%s292 + $0xd8] sm:$0xff]
        %v445 = vld [vmem:[%s292 + $0xe0] sm:$0xff]
        %v446 = vld [vmem:[%s292 + $0xe8] sm:$0xff]
        %v447 = vld [vmem:[%s292 + $0xf0] sm:$0xff]
        %v448 = vld [vmem:[%s292 + $0xf8] sm:$0xff]
        %v449 = vld [vmem:[%s292 + $0x100] sm:$0xff]
        %v450 = vld [vmem:[%s292 + $0x108] sm:$0xff]
        %v451 = vld [vmem:[%s292 + $0x110] sm:$0xff]
        %v452 = vld [vmem:[%s292 + $0x118] sm:$0xff]
        %v453 = vld [vmem:[%s292 + $0x120] sm:$0xff]
        %v454 = vld [vmem:[%s292 + $0x128] sm:$0xff]
        %v455 = vld [vmem:[%s292 + $0x130] sm:$0xff]
        %v456 = vld [vmem:[%s292 + $0x138] sm:$0xff]
        %v457 = vld [vmem:[%s292 + $0x140] sm:$0xff]
        %v458 = vld [vmem:[%s292 + $0x148] sm:$0xff]
        %v459 = vld [vmem:[%s292 + $0x150] sm:$0xff]
        %v460 = vld [vmem:[%s292 + $0x158] sm:$0xff]
        %v461 = vld [vmem:[%s292 + $0x160] sm:$0xff]
        %v462 = vld [vmem:[%s292 + $0x168] sm:$0xff]
        %v463 = vld [vmem:[%s292 + $0x170] sm:$0xff]
        %v464 = vld [vmem:[%s292 + $0x178] sm:$0xff]
        %v465 = vld [vmem:[%s292 + $0x180] sm:$0xff]
        %v466 = vld [vmem:[%s292 + $0x188] sm:$0xff]
        %v467 = vld [vmem:[%s292 + $0x190] sm:$0xff]
        %v468 = vld [vmem:[%s292 + $0x198] sm:$0xff]
        %v469 = vld [vmem:[%s292 + $0x1a0] sm:$0xff]
        %v470 = vld [vmem:[%s292 + $0x1a8] sm:$0xff]
        %v471 = vld [vmem:[%s292 + $0x1b0] sm:$0xff]
        %v472 = vld [vmem:[%s292 + $0x1b8] sm:$0xff]
        %v473 = vld [vmem:[%s292 + $0x1c0] sm:$0xff]
        %v474 = vld [vmem:[%s292 + $0x1c8] sm:$0xff]
        %v475 = vld [vmem:[%s292 + $0x1d0] sm:$0xff]
        %v476 = vld [vmem:[%s292 + $0x1d8] sm:$0xff]
        %v477 = vld [vmem:[%s292 + $0x1e0] sm:$0xff]
        %v478 = vld [vmem:[%s292 + $0x1e8] sm:$0xff]
        %v479 = vld [vmem:[%s292 + $0x1f0] sm:$0xff]
        %v480 = vld [vmem:[%s292 + $0x1f8] sm:$0xff]
        %v481 = vld [vmem:[%s292 + $0x200] sm:$0xff]
        %v482 = vld [vmem:[%s292 + $0x208] sm:$0xff]
        %v483 = vld [vmem:[%s292 + $0x210] sm:$0xff]
        %v484 = vld [vmem:[%s292 + $0x218] sm:$0xff]
        %v485 = vld [vmem:[%s292 + $0x220] sm:$0xff]
        %v486 = vld [vmem:[%s292 + $0x228] sm:$0xff]
        %v487 = vld [vmem:[%s292 + $0x230] sm:$0xff]
        %v488 = vld [vmem:[%s292 + $0x238] sm:$0xff]
        %v489 = vld [vmem:[%s292 + $0x240] sm:$0xff]
        %v490 = vld [vmem:[%s292 + $0x248] sm:$0xff]
        %v491 = vld [vmem:[%s292 + $0x250] sm:$0xff]
        %v492 = vld [vmem:[%s292 + $0x258] sm:$0xff]
        %v493 = vld [vmem:[%s292 + $0x260] sm:$0xff]
        %v494 = vld [vmem:[%s292 + $0x268] sm:$0xff]
        %v495 = vld [vmem:[%s292 + $0x270] sm:$0xff]
        %v496 = vld [vmem:[%s292 + $0x278] sm:$0xff]
        %v497 = vld [vmem:[%s292 + $0x280] sm:$0xff]
        %v498 = vld [vmem:[%s292 + $0x288] sm:$0xff]
        %v499 = vld [vmem:[%s292 + $0x290] sm:$0xff]
        %v500 = vld [vmem:[%s292 + $0x298] sm:$0xff]
        %v501 = vld [vmem:[%s292 + $0x2a0] sm:$0xff]
        %v502 = vld [vmem:[%s292 + $0x2a8] sm:$0xff]
        %v503 = vld [vmem:[%s292 + $0x2b0] sm:$0xff]
        %v504 = vld [vmem:[%s292 + $0x2b8] sm:$0xff]
        %v505 = vld [vmem:[%s292 + $0x2c0] sm:$0xff]
        %v506 = vld [vmem:[%s292 + $0x2c8] sm:$0xff]
        %v507 = vld [vmem:[%s292 + $0x2d0] sm:$0xff]
        %v508 = vld [vmem:[%s292 + $0x2d8] sm:$0xff]
        %v509 = vld [vmem:[%s292 + $0x2e0] sm:$0xff]
        %v510 = vld [vmem:[%s292 + $0x2e8] sm:$0xff]
        %v511 = vld [vmem:[%s292 + $0x2f0] sm:$0xff]
        %v512 = vld [vmem:[%s292 + $0x2f8] sm:$0xff]
        %v513 = vld [vmem:[%s292 + $0x300] sm:$0xff]
        %v514 = vld [vmem:[%s292 + $0x308] sm:$0xff]
        %v515 = vld [vmem:[%s292 + $0x310] sm:$0xff]
        %v516 = vld [vmem:[%s292 + $0x318] sm:$0xff]
        %v517 = vld [vmem:[%s292 + $0x320] sm:$0xff]
        %v518 = vld [vmem:[%s292 + $0x328] sm:$0xff]
        %v519 = vld [vmem:[%s292 + $0x330] sm:$0xff]
        %v520 = vld [vmem:[%s292 + $0x338] sm:$0xff]
        %v521 = vld [vmem:[%s292 + $0x340] sm:$0xff]
        %v522 = vld [vmem:[%s292 + $0x348] sm:$0xff]
        %v523 = vld [vmem:[%s292 + $0x350] sm:$0xff]
        %v524 = vld [vmem:[%s292 + $0x358] sm:$0xff]
        %v525 = vld [vmem:[%s292 + $0x360] sm:$0xff]
        %v526 = vld [vmem:[%s292 + $0x368] sm:$0xff]
        %v527 = vld [vmem:[%s292 + $0x370] sm:$0xff]
        %v528 = vld [vmem:[%s292 + $0x378] sm:$0xff]
        %v529 = vld [vmem:[%s292 + $0x380] sm:$0xff]
        %v530 = vld [vmem:[%s292 + $0x388] sm:$0xff]
        %v531 = vld [vmem:[%s292 + $0x390] sm:$0xff]
        %v532 = vld [vmem:[%s292 + $0x398] sm:$0xff]
        %v533 = vld [vmem:[%s292 + $0x3a0] sm:$0xff]
        %v534 = vld [vmem:[%s292 + $0x3a8] sm:$0xff]
        %v535 = vld [vmem:[%s292 + $0x3b0] sm:$0xff]
        %v536 = vld [vmem:[%s292 + $0x3b8] sm:$0xff]
        %v537 = vld [vmem:[%s292 + $0x3c0] sm:$0xff]
        %v538 = vld [vmem:[%s292 + $0x3c8] sm:$0xff]
        %v539 = vld [vmem:[%s292 + $0x3d0] sm:$0xff]
        %v540 = vld [vmem:[%s292 + $0x3d8] sm:$0xff]
        %v541 = vld [vmem:[%s292 + $0x3e0] sm:$0xff]
        %v542 = vld [vmem:[%s292 + $0x3e8] sm:$0xff]
        %v543 = vld [vmem:[%s292 + $0x3f0] sm:$0xff]
        %v544 = vld [vmem:[%s292 + $0x3f8] sm:$0xff]
        %v545 = vld [vmem:[%s292 + $0x400] sm:$0xff]
        %v546 = vld [vmem:[%s292 + $0x408] sm:$0xff]
        %v547 = vld [vmem:[%s292 + $0x410] sm:$0xff]
        %v548 = vld [vmem:[%s292 + $0x418] sm:$0xff]
        %v549 = vld [vmem:[%s292 + $0x420] sm:$0xff]
        %v550 = vld [vmem:[%s292 + $0x428] sm:$0xff]
        %v551 = vld [vmem:[%s292 + $0x430] sm:$0xff]
        %v552 = vld [vmem:[%s292 + $0x438] sm:$0xff]
        %v553 = vld [vmem:[%s292 + $0x440] sm:$0xff]
        %v554 = vld [vmem:[%s292 + $0x448] sm:$0xff]
        %v555 = vld [vmem:[%s292 + $0x450] sm:$0xff]
        %v556 = vld [vmem:[%s292 + $0x458] sm:$0xff]
        %v557 = vld [vmem:[%s292 + $0x460] sm:$0xff]
        %v558 = vld [vmem:[%s292 + $0x468] sm:$0xff]
        %v559 = vld [vmem:[%s292 + $0x470] sm:$0xff]
        %v560 = vld [vmem:[%s292 + $0x478] sm:$0xff]
        %v561 = vld [vmem:[%s292 + $0x480] sm:$0xff]
        %v562 = vld [vmem:[%s292 + $0x488] sm:$0xff]
        %v563 = vld [vmem:[%s292 + $0x490] sm:$0xff]
        %v564 = vld [vmem:[%s292 + $0x498] sm:$0xff]
        %v565 = vld [vmem:[%s292 + $0x4a0] sm:$0xff]
        %v566 = vld [vmem:[%s292 + $0x4a8] sm:$0xff]
        %v567 = vld [vmem:[%s292 + $0x4b0] sm:$0xff]
        %v568 = vld [vmem:[%s292 + $0x4b8] sm:$0xff]
        %v569 = vld [vmem:[%s292 + $0x4c0] sm:$0xff]
        %v570 = vld [vmem:[%s292 + $0x4c8] sm:$0xff]
        %v571 = vld [vmem:[%s292 + $0x4d0] sm:$0xff]
        %v572 = vld [vmem:[%s292 + $0x4d8] sm:$0xff]
        %v573 = vld [vmem:[%s292 + $0x4e0] sm:$0xff]
        %v574 = vld [vmem:[%s292 + $0x4e8] sm:$0xff]
        %v575 = vld [vmem:[%s292 + $0x4f0] sm:$0xff]
        %v576 = vld [vmem:[%s292 + $0x4f8] sm:$0xff]
        %v577 = vld [vmem:[%s292 + $0x500] sm:$0xff]
        %v578 = vld [vmem:[%s292 + $0x508] sm:$0xff]
        %v579 = vld [vmem:[%s292 + $0x510] sm:$0xff]
        %v580 = vld [vmem:[%s292 + $0x518] sm:$0xff]
        %v581 = vld [vmem:[%s292 + $0x520] sm:$0xff]
        %v582 = vld [vmem:[%s292 + $0x528] sm:$0xff]
        %v583 = vld [vmem:[%s292 + $0x530] sm:$0xff]
        %v584 = vld [vmem:[%s292 + $0x538] sm:$0xff]
        %v585 = vld [vmem:[%s292 + $0x540] sm:$0xff]
        %v586 = vld [vmem:[%s292 + $0x548] sm:$0xff]
        %v587 = vld [vmem:[%s292 + $0x550] sm:$0xff]
        %v588 = vld [vmem:[%s292 + $0x558] sm:$0xff]
        %v589 = vld [vmem:[%s292 + $0x560] sm:$0xff]
        %v590 = vld [vmem:[%s292 + $0x568] sm:$0xff]
        %v591 = vld [vmem:[%s292 + $0x570] sm:$0xff]
        %v592 = vld [vmem:[%s292 + $0x578] sm:$0xff]
        %v593 = vld [vmem:[%s292 + $0x580] sm:$0xff]
        %v594 = vld [vmem:[%s292 + $0x588] sm:$0xff]
        %v595 = vld [vmem:[%s292 + $0x590] sm:$0xff]
        %v596 = vld [vmem:[%s292 + $0x598] sm:$0xff]
        %v597 = vld [vmem:[%s292 + $0x5a0] sm:$0xff]
        %v598 = vld [vmem:[%s292 + $0x5a8] sm:$0xff]
        %v599 = vld [vmem:[%s292 + $0x5b0] sm:$0xff]
        %v600 = vld [vmem:[%s292 + $0x5b8] sm:$0xff]
        %v601 = vld [vmem:[%s292 + $0x5c0] sm:$0xff]
        %v602 = vld [vmem:[%s292 + $0x5c8] sm:$0xff]
        %v603 = vld [vmem:[%s292 + $0x5d0] sm:$0xff]
        %v604 = vld [vmem:[%s292 + $0x5d8] sm:$0xff]
        %v605 = vld [vmem:[%s292 + $0x5e0] sm:$0xff]
        %v606 = vld [vmem:[%s292 + $0x5e8] sm:$0xff]
        %v607 = vld [vmem:[%s292 + $0x5f0] sm:$0xff]
        %v608 = vld [vmem:[%s292 + $0x5f8] sm:$0xff]
        %v609 = vld [vmem:[%s292 + $0x600] sm:$0xff]
        %v610 = vld [vmem:[%s292 + $0x608] sm:$0xff]
        %v611 = vld [vmem:[%s292 + $0x610] sm:$0xff]
        %v612 = vld [vmem:[%s292 + $0x618] sm:$0xff]
        %v613 = vld [vmem:[%s292 + $0x620] sm:$0xff]
        %v614 = vld [vmem:[%s292 + $0x628] sm:$0xff]
        %v615 = vld [vmem:[%s292 + $0x630] sm:$0xff]
        %v616 = vld [vmem:[%s292 + $0x638] sm:$0xff]
        %v617 = vld [vmem:[%s292 + $0x640] sm:$0xff]
        %v618 = vld [vmem:[%s292 + $0x648] sm:$0xff]
        %v619 = vld [vmem:[%s292 + $0x650] sm:$0xff]
        %v620 = vld [vmem:[%s292 + $0x658] sm:$0xff]
        %v621 = vld [vmem:[%s292 + $0x660] sm:$0xff]
        %v622 = vld [vmem:[%s292 + $0x668] sm:$0xff]
        %v623 = vld [vmem:[%s292 + $0x670] sm:$0xff]
        %v624 = vld [vmem:[%s292 + $0x678] sm:$0xff]
        %v625 = vld [vmem:[%s292 + $0x680] sm:$0xff]
        %v626 = vld [vmem:[%s292 + $0x688] sm:$0xff]
        %v627 = vld [vmem:[%s292 + $0x690] sm:$0xff]
        %v628 = vld [vmem:[%s292 + $0x698] sm:$0xff]
        %v629 = vld [vmem:[%s292 + $0x6a0] sm:$0xff]
        %v630 = vld [vmem:[%s292 + $0x6a8] sm:$0xff]
        %v631 = vld [vmem:[%s292 + $0x6b0] sm:$0xff]
        %v632 = vld [vmem:[%s292 + $0x6b8] sm:$0xff]
        %v633 = vld [vmem:[%s292 + $0x6c0] sm:$0xff]
        %v634 = vld [vmem:[%s292 + $0x6c8] sm:$0xff]
        %v635 = vld [vmem:[%s292 + $0x6d0] sm:$0xff]
        %v636 = vld [vmem:[%s292 + $0x6d8] sm:$0xff]
        %v637 = vld [vmem:[%s292 + $0x6e0] sm:$0xff]
        %v638 = vld [vmem:[%s292 + $0x6e8] sm:$0xff]
        %v639 = vld [vmem:[%s292 + $0x6f0] sm:$0xff]
        %v640 = vld [vmem:[%s292 + $0x6f8] sm:$0xff]
        %v641 = vld [vmem:[%s292 + $0x700] sm:$0xff]
        %v642 = vld [vmem:[%s292 + $0x708] sm:$0xff]
        %v643 = vld [vmem:[%s292 + $0x710] sm:$0xff]
        %v644 = vld [vmem:[%s292 + $0x718] sm:$0xff]
        %v645 = vld [vmem:[%s292 + $0x720] sm:$0xff]
        %v646 = vld [vmem:[%s292 + $0x728] sm:$0xff]
        %v647 = vld [vmem:[%s292 + $0x730] sm:$0xff]
        %v648 = vld [vmem:[%s292 + $0x738] sm:$0xff]
        %v649 = vld [vmem:[%s292 + $0x740] sm:$0xff]
        %v650 = vld [vmem:[%s292 + $0x748] sm:$0xff]
        %v651 = vld [vmem:[%s292 + $0x750] sm:$0xff]
        %v652 = vld [vmem:[%s292 + $0x758] sm:$0xff]
        %v653 = vld [vmem:[%s292 + $0x760] sm:$0xff]
        %v654 = vld [vmem:[%s292 + $0x768] sm:$0xff]
        %v655 = vld [vmem:[%s292 + $0x770] sm:$0xff]
        %v656 = vld [vmem:[%s292 + $0x778] sm:$0xff]
        %v657 = vld [vmem:[%s292 + $0x780] sm:$0xff]
        %v658 = vld [vmem:[%s292 + $0x788] sm:$0xff]
        %v659 = vld [vmem:[%s292 + $0x790] sm:$0xff]
        %v660 = vld [vmem:[%s292 + $0x798] sm:$0xff]
        %v661 = vld [vmem:[%s292 + $0x7a0] sm:$0xff]
        %v662 = vld [vmem:[%s292 + $0x7a8] sm:$0xff]
        %v663 = vld [vmem:[%s292 + $0x7b0] sm:$0xff]
        %v664 = vld [vmem:[%s292 + $0x7b8] sm:$0xff]
        %v665 = vld [vmem:[%s292 + $0x7c0] sm:$0xff]
        %v666 = vld [vmem:[%s292 + $0x7c8] sm:$0xff]
        %v667 = vld [vmem:[%s292 + $0x7d0] sm:$0xff]
        %v668 = vld [vmem:[%s292 + $0x7d8] sm:$0xff]
        %v669 = vld [vmem:[%s292 + $0x7e0] sm:$0xff]
        %v670 = vld [vmem:[%s292 + $0x7e8] sm:$0xff]
        %v671 = vld [vmem:[%s292 + $0x7f0] sm:$0xff]
        %v672 = vld [vmem:[%s292 + $0x7f8] sm:$0xff]
        %v673 = vld [vmem:[%s292 + $0x800] sm:$0xff]
        %v674 = vld [vmem:[%s292 + $0x808] sm:$0xff]
        %v675 = vld [vmem:[%s292 + $0x810] sm:$0xff]
        %v676 = vld [vmem:[%s292 + $0x818] sm:$0xff]
        %v677 = vld [vmem:[%s292 + $0x820] sm:$0xff]
        %v678 = vld [vmem:[%s292 + $0x828] sm:$0xff]
        %v679 = vld [vmem:[%s292 + $0x830] sm:$0xff]
        %v680 = vld [vmem:[%s292 + $0x838] sm:$0xff]
        %v681 = vld [vmem:[%s292 + $0x840] sm:$0xff]
        %v682 = vld [vmem:[%s292 + $0x848] sm:$0xff]
        %v683 = vld [vmem:[%s292 + $0x850] sm:$0xff]
        %v684 = vld [vmem:[%s292 + $0x858] sm:$0xff]
        %v685 = vld [vmem:[%s292 + $0x860] sm:$0xff]
        %v686 = vld [vmem:[%s292 + $0x868] sm:$0xff]
        %v687 = vld [vmem:[%s292 + $0x870] sm:$0xff]
        %v688 = vld [vmem:[%s292 + $0x878] sm:$0xff]
        %v689 = vld [vmem:[%s292 + $0x880] sm:$0xff]
        %v690 = vld [vmem:[%s292 + $0x888] sm:$0xff]
        %v691 = vld [vmem:[%s292 + $0x890] sm:$0xff]
        %v692 = vld [vmem:[%s292 + $0x898] sm:$0xff]
        %v693 = vld [vmem:[%s292 + $0x8a0] sm:$0xff]
        %v694 = vld [vmem:[%s292 + $0x8a8] sm:$0xff]
        %v695 = vld [vmem:[%s292 + $0x8b0] sm:$0xff]
        %v696 = vld [vmem:[%s292 + $0x8b8] sm:$0xff]
        %v697 = vld [vmem:[%s292 + $0x8c0] sm:$0xff]
        %v698 = vld [vmem:[%s292 + $0x8c8] sm:$0xff]
        %v699 = vld [vmem:[%s292 + $0x8d0] sm:$0xff]
        %v700 = vld [vmem:[%s292 + $0x8d8] sm:$0xff]
        %v701 = vld [vmem:[%s292 + $0x8e0] sm:$0xff]
        %v702 = vld [vmem:[%s292 + $0x8e8] sm:$0xff]
        %v703 = vld [vmem:[%s292 + $0x8f0] sm:$0xff]
        %v704 = vld [vmem:[%s292 + $0x8f8] sm:$0xff]
        %v705 = vld [vmem:[%s292 + $0x900] sm:$0xff]
        %v706 = vld [vmem:[%s292 + $0x908] sm:$0xff]
        %v707 = vld [vmem:[%s292 + $0x910] sm:$0xff]
        %v708 = vld [vmem:[%s292 + $0x918] sm:$0xff]
        %v709 = vld [vmem:[%s292 + $0x920] sm:$0xff]
        %v710 = vld [vmem:[%s292 + $0x928] sm:$0xff]
        %v711 = vld [vmem:[%s292 + $0x930] sm:$0xff]
        %v712 = vld [vmem:[%s292 + $0x938] sm:$0xff]
        %v713 = vld [vmem:[%s292 + $0x940] sm:$0xff]
        %v714 = vld [vmem:[%s292 + $0x948] sm:$0xff]
        %v715 = vld [vmem:[%s292 + $0x950] sm:$0xff]
        %v716 = vld [vmem:[%s292 + $0x958] sm:$0xff]
        %v717 = vld [vmem:[%s292 + $0x960] sm:$0xff]
        %v718 = vld [vmem:[%s292 + $0x968] sm:$0xff]
        %v719 = vld [vmem:[%s292 + $0x970] sm:$0xff]
        %v720 = vld [vmem:[%s292 + $0x978] sm:$0xff]
        %v721 = vld [vmem:[%s292 + $0x980] sm:$0xff]
        %v722 = vld [vmem:[%s292 + $0x988] sm:$0xff]
        %v723 = vld [vmem:[%s292 + $0x990] sm:$0xff]
        %v724 = vld [vmem:[%s292 + $0x998] sm:$0xff]
        %v725 = vld [vmem:[%s292 + $0x9a0] sm:$0xff]
        %v726 = vld [vmem:[%s292 + $0x9a8] sm:$0xff]
        %v727 = vld [vmem:[%s292 + $0x9b0] sm:$0xff]
        %v728 = vld [vmem:[%s292 + $0x9b8] sm:$0xff]
        %v729 = vld [vmem:[%s292 + $0x9c0] sm:$0xff]
        %v730 = vld [vmem:[%s292 + $0x9c8] sm:$0xff]
        %v731 = vld [vmem:[%s292 + $0x9d0] sm:$0xff]
        %v732 = vld [vmem:[%s292 + $0x9d8] sm:$0xff]
        %v733 = vld [vmem:[%s292 + $0x9e0] sm:$0xff]
        %v734 = vld [vmem:[%s292 + $0x9e8] sm:$0xff]
        %v735 = vld [vmem:[%s292 + $0x9f0] sm:$0xff]
        %v736 = vld [vmem:[%s292 + $0x9f8] sm:$0xff]
        %v737 = vld [vmem:[%s292 + $0xa00] sm:$0xff]
        %v738 = vld [vmem:[%s292 + $0xa08] sm:$0xff]
        %v739 = vld [vmem:[%s292 + $0xa10] sm:$0xff]
        %v740 = vld [vmem:[%s292 + $0xa18] sm:$0xff]
        %v741 = vld [vmem:[%s292 + $0xa20] sm:$0xff]
        %v742 = vld [vmem:[%s292 + $0xa28] sm:$0xff]
        %v743 = vld [vmem:[%s292 + $0xa30] sm:$0xff]
        %v744 = vld [vmem:[%s292 + $0xa38] sm:$0xff]
        %v745 = vld [vmem:[%s292 + $0xa40] sm:$0xff]
        %v746 = vld [vmem:[%s292 + $0xa48] sm:$0xff]
        %v747 = vld [vmem:[%s292 + $0xa50] sm:$0xff]
        %v748 = vld [vmem:[%s292 + $0xa58] sm:$0xff]
        %v749 = vld [vmem:[%s292 + $0xa60] sm:$0xff]
        %v750 = vld [vmem:[%s292 + $0xa68] sm:$0xff]
        %v751 = vld [vmem:[%s292 + $0xa70] sm:$0xff]
        %v752 = vld [vmem:[%s292 + $0xa78] sm:$0xff]
        %v753 = vld [vmem:[%s292 + $0xa80] sm:$0xff]
        %v754 = vld [vmem:[%s292 + $0xa88] sm:$0xff]
        %v755 = vld [vmem:[%s292 + $0xa90] sm:$0xff]
        %v756 = vld [vmem:[%s292 + $0xa98] sm:$0xff]
        %v757 = vld [vmem:[%s292 + $0xaa0] sm:$0xff]
        %v758 = vld [vmem:[%s292 + $0xaa8] sm:$0xff]
        %v759 = vld [vmem:[%s292 + $0xab0] sm:$0xff]
        %v760 = vld [vmem:[%s292 + $0xab8] sm:$0xff]
        %v761 = vld [vmem:[%s292 + $0xac0] sm:$0xff]
        %v762 = vld [vmem:[%s292 + $0xac8] sm:$0xff]
        %v763 = vld [vmem:[%s292 + $0xad0] sm:$0xff]
        %v764 = vld [vmem:[%s292 + $0xad8] sm:$0xff]
        %v765 = vld [vmem:[%s292 + $0xae0] sm:$0xff]
        %v766 = vld [vmem:[%s292 + $0xae8] sm:$0xff]
        %v767 = vld [vmem:[%s292 + $0xaf0] sm:$0xff]
        %v768 = vld [vmem:[%s292 + $0xaf8] sm:$0xff]
        %v769 = vld [vmem:[%s292 + $0xb00] sm:$0xff]
        %v770 = vld [vmem:[%s292 + $0xb08] sm:$0xff]
        %v771 = vld [vmem:[%s292 + $0xb10] sm:$0xff]
        %v772 = vld [vmem:[%s292 + $0xb18] sm:$0xff]
        %v773 = vld [vmem:[%s292 + $0xb20] sm:$0xff]
        %v774 = vld [vmem:[%s292 + $0xb28] sm:$0xff]
        %v775 = vld [vmem:[%s292 + $0xb30] sm:$0xff]
        %v776 = vld [vmem:[%s292 + $0xb38] sm:$0xff]
        %v777 = vld [vmem:[%s292 + $0xb40] sm:$0xff]
        %v778 = vld [vmem:[%s292 + $0xb48] sm:$0xff]
        %v779 = vld [vmem:[%s292 + $0xb50] sm:$0xff]
        %v780 = vld [vmem:[%s292 + $0xb58] sm:$0xff]
        %v781 = vld [vmem:[%s292 + $0xb60] sm:$0xff]
        %v782 = vld [vmem:[%s292 + $0xb68] sm:$0xff]
        %v783 = vld [vmem:[%s292 + $0xb70] sm:$0xff]
        %v784 = vld [vmem:[%s292 + $0xb78] sm:$0xff]
        %v785 = vld [vmem:[%s292 + $0xb80] sm:$0xff]
        %v786 = vld [vmem:[%s292 + $0xb88] sm:$0xff]
        %v787 = vld [vmem:[%s292 + $0xb90] sm:$0xff]
        %v788 = vld [vmem:[%s292 + $0xb98] sm:$0xff]
        %v789 = vld [vmem:[%s292 + $0xba0] sm:$0xff]
        %v790 = vld [vmem:[%s292 + $0xba8] sm:$0xff]
        %v791 = vld [vmem:[%s292 + $0xbb0] sm:$0xff]
        %v792 = vld [vmem:[%s292 + $0xbb8] sm:$0xff]
        %v793 = vld [vmem:[%s292 + $0xbc0] sm:$0xff]
        %v794 = vld [vmem:[%s292 + $0xbc8] sm:$0xff]
        %v795 = vld [vmem:[%s292 + $0xbd0] sm:$0xff]
        %v796 = vld [vmem:[%s292 + $0xbd8] sm:$0xff]
        %v797 = vld [vmem:[%s292 + $0xbe0] sm:$0xff]
        %v798 = vld [vmem:[%s292 + $0xbe8] sm:$0xff]
        %v799 = vld [vmem:[%s292 + $0xbf0] sm:$0xff]
        %v800 = vld [vmem:[%s292 + $0xbf8] sm:$0xff]
        %v801 = vld [vmem:[%s292 + $0xc00] sm:$0xff]
        %v802 = vld [vmem:[%s292 + $0xc08] sm:$0xff]
        %v803 = vld [vmem:[%s292 + $0xc10] sm:$0xff]
        %v804 = vld [vmem:[%s292 + $0xc18] sm:$0xff]
        %v805 = vld [vmem:[%s292 + $0xc20] sm:$0xff]
        %v806 = vld [vmem:[%s292 + $0xc28] sm:$0xff]
        %v807 = vld [vmem:[%s292 + $0xc30] sm:$0xff]
        %v808 = vld [vmem:[%s292 + $0xc38] sm:$0xff]
        %v809 = vld [vmem:[%s292 + $0xc40] sm:$0xff]
        %v810 = vld [vmem:[%s292 + $0xc48] sm:$0xff]
        %v811 = vld [vmem:[%s292 + $0xc50] sm:$0xff]
        %v812 = vld [vmem:[%s292 + $0xc58] sm:$0xff]
        %v813 = vld [vmem:[%s292 + $0xc60] sm:$0xff]
        %v814 = vld [vmem:[%s292 + $0xc68] sm:$0xff]
        %v815 = vld [vmem:[%s292 + $0xc70] sm:$0xff]
        %v816 = vld [vmem:[%s292 + $0xc78] sm:$0xff]
        %v817 = vld [vmem:[%s292 + $0xc80] sm:$0xff]
        %v818 = vld [vmem:[%s292 + $0xc88] sm:$0xff]
        %v819 = vld [vmem:[%s292 + $0xc90] sm:$0xff]
        %v820 = vld [vmem:[%s292 + $0xc98] sm:$0xff]
        %v821 = vld [vmem:[%s292 + $0xca0] sm:$0xff]
        %v822 = vld [vmem:[%s292 + $0xca8] sm:$0xff]
        %v823 = vld [vmem:[%s292 + $0xcb0] sm:$0xff]
        %v824 = vld [vmem:[%s292 + $0xcb8] sm:$0xff]
        %v825 = vld [vmem:[%s292 + $0xcc0] sm:$0xff]
        %v826 = vld [vmem:[%s292 + $0xcc8] sm:$0xff]
        %v827 = vld [vmem:[%s292 + $0xcd0] sm:$0xff]
        %v828 = vld [vmem:[%s292 + $0xcd8] sm:$0xff]
        %v829 = vld [vmem:[%s292 + $0xce0] sm:$0xff]
        %v830 = vld [vmem:[%s292 + $0xce8] sm:$0xff]
        %v831 = vld [vmem:[%s292 + $0xcf0] sm:$0xff]
        %v832 = vld [vmem:[%s292 + $0xcf8] sm:$0xff]
        %v833 = vld [vmem:[%s292 + $0xd00] sm:$0xff]
        %v834 = vld [vmem:[%s292 + $0xd08] sm:$0xff]
        %v835 = vld [vmem:[%s292 + $0xd10] sm:$0xff]
        %v836 = vld [vmem:[%s292 + $0xd18] sm:$0xff]
        %v837 = vld [vmem:[%s292 + $0xd20] sm:$0xff]
        %v838 = vld [vmem:[%s292 + $0xd28] sm:$0xff]
        %v839 = vld [vmem:[%s292 + $0xd30] sm:$0xff]
        %v840 = vld [vmem:[%s292 + $0xd38] sm:$0xff]
        %v841 = vld [vmem:[%s292 + $0xd40] sm:$0xff]
        %v842 = vld [vmem:[%s292 + $0xd48] sm:$0xff]
        %v843 = vld [vmem:[%s292 + $0xd50] sm:$0xff]
        %v844 = vld [vmem:[%s292 + $0xd58] sm:$0xff]
        %v845 = vld [vmem:[%s292 + $0xd60] sm:$0xff]
        %v846 = vld [vmem:[%s292 + $0xd68] sm:$0xff]
        %v847 = vld [vmem:[%s292 + $0xd70] sm:$0xff]
        %v848 = vld [vmem:[%s292 + $0xd78] sm:$0xff]
        %v849 = vld [vmem:[%s292 + $0xd80] sm:$0xff]
        %v850 = vld [vmem:[%s292 + $0xd88] sm:$0xff]
        %v851 = vld [vmem:[%s292 + $0xd90] sm:$0xff]
        %v852 = vld [vmem:[%s292 + $0xd98] sm:$0xff]
        %v853 = vld [vmem:[%s292 + $0xda0] sm:$0xff]
        %v854 = vld [vmem:[%s292 + $0xda8] sm:$0xff]
        %v855 = vld [vmem:[%s292 + $0xdb0] sm:$0xff]
        %v856 = vld [vmem:[%s292 + $0xdb8] sm:$0xff]
        %v857 = vld [vmem:[%s292 + $0xdc0] sm:$0xff]
        %v858 = vld [vmem:[%s292 + $0xdc8] sm:$0xff]
        %v859 = vld [vmem:[%s292 + $0xdd0] sm:$0xff]
        %v860 = vld [vmem:[%s292 + $0xdd8] sm:$0xff]
        %v861 = vld [vmem:[%s292 + $0xde0] sm:$0xff]
        %v862 = vld [vmem:[%s292 + $0xde8] sm:$0xff]
        %v863 = vld [vmem:[%s292 + $0xdf0] sm:$0xff]
        %v864 = vld [vmem:[%s292 + $0xdf8] sm:$0xff]
        %v865 = vld [vmem:[%s292 + $0xe00] sm:$0xff]
        %v866 = vld [vmem:[%s292 + $0xe08] sm:$0xff]
        %v867 = vld [vmem:[%s292 + $0xe10] sm:$0xff]
        %v868 = vld [vmem:[%s292 + $0xe18] sm:$0xff]
        %v869 = vld [vmem:[%s292 + $0xe20] sm:$0xff]
        %v870 = vld [vmem:[%s292 + $0xe28] sm:$0xff]
        %v871 = vld [vmem:[%s292 + $0xe30] sm:$0xff]
        %v872 = vld [vmem:[%s292 + $0xe38] sm:$0xff]
        %v873 = vld [vmem:[%s292 + $0xe40] sm:$0xff]
        %v874 = vld [vmem:[%s292 + $0xe48] sm:$0xff]
        %v875 = vld [vmem:[%s292 + $0xe50] sm:$0xff]
        %v876 = vld [vmem:[%s292 + $0xe58] sm:$0xff]
        %v877 = vld [vmem:[%s292 + $0xe60] sm:$0xff]
        %v878 = vld [vmem:[%s292 + $0xe68] sm:$0xff]
        %v879 = vld [vmem:[%s292 + $0xe70] sm:$0xff]
        %v880 = vld [vmem:[%s292 + $0xe78] sm:$0xff]
        %v881 = vld [vmem:[%s292 + $0xe80] sm:$0xff]
        %v882 = vld [vmem:[%s292 + $0xe88] sm:$0xff]
        %v883 = vld [vmem:[%s292 + $0xe90] sm:$0xff]
        %v884 = vld [vmem:[%s292 + $0xe98] sm:$0xff]
        %v885 = vld [vmem:[%s292 + $0xea0] sm:$0xff]
        %v886 = vld [vmem:[%s292 + $0xea8] sm:$0xff]
        %v887 = vld [vmem:[%s292 + $0xeb0] sm:$0xff]
        %v888 = vld [vmem:[%s292 + $0xeb8] sm:$0xff]
        %v889 = vld [vmem:[%s292 + $0xec0] sm:$0xff]
        %v890 = vld [vmem:[%s292 + $0xec8] sm:$0xff]
        %v891 = vld [vmem:[%s292 + $0xed0] sm:$0xff]
        %v892 = vld [vmem:[%s292 + $0xed8] sm:$0xff]
        %v893 = vld [vmem:[%s292 + $0xee0] sm:$0xff]
        %v894 = vld [vmem:[%s292 + $0xee8] sm:$0xff]
        %v895 = vld [vmem:[%s292 + $0xef0] sm:$0xff]
        %v896 = vld [vmem:[%s292 + $0xef8] sm:$0xff]
        %v897 = vld [vmem:[%s292 + $0xf00] sm:$0xff]
        %v898 = vld [vmem:[%s292 + $0xf08] sm:$0xff]
        %v899 = vld [vmem:[%s292 + $0xf10] sm:$0xff]
        %v900 = vld [vmem:[%s292 + $0xf18] sm:$0xff]
        %v901 = vld [vmem:[%s292 + $0xf20] sm:$0xff]
        %v902 = vld [vmem:[%s292 + $0xf28] sm:$0xff]
        %v903 = vld [vmem:[%s292 + $0xf30] sm:$0xff]
        %v904 = vld [vmem:[%s292 + $0xf38] sm:$0xff]
        %v905 = vld [vmem:[%s292 + $0xf40] sm:$0xff]
        %v906 = vld [vmem:[%s292 + $0xf48] sm:$0xff]
        %v907 = vld [vmem:[%s292 + $0xf50] sm:$0xff]
        %v908 = vld [vmem:[%s292 + $0xf58] sm:$0xff]
        %v909 = vld [vmem:[%s292 + $0xf60] sm:$0xff]
        %v910 = vld [vmem:[%s292 + $0xf68] sm:$0xff]
        %v911 = vld [vmem:[%s292 + $0xf70] sm:$0xff]
        %v912 = vld [vmem:[%s292 + $0xf78] sm:$0xff]
        %v913 = vld [vmem:[%s292 + $0xf80] sm:$0xff]
        %v914 = vld [vmem:[%s292 + $0xf88] sm:$0xff]
        %v915 = vld [vmem:[%s292 + $0xf90] sm:$0xff]
        %v916 = vld [vmem:[%s292 + $0xf98] sm:$0xff]
        %v917 = vld [vmem:[%s292 + $0xfa0] sm:$0xff]
        %v918 = vld [vmem:[%s292 + $0xfa8] sm:$0xff]
        %v919 = vld [vmem:[%s292 + $0xfb0] sm:$0xff]
        %v920 = vld [vmem:[%s292 + $0xfb8] sm:$0xff]
        %v921 = vld [vmem:[%s292 + $0xfc0] sm:$0xff]
        %v922 = vld [vmem:[%s292 + $0xfc8] sm:$0xff]
        %v923 = vld [vmem:[%s292 + $0xfd0] sm:$0xff]
        %v924 = vld [vmem:[%s292 + $0xfd8] sm:$0xff]
        %v925 = vld [vmem:[%s292 + $0xfe0] sm:$0xff]
        %v926 = vld [vmem:[%s292 + $0xfe8] sm:$0xff]
        %v927 = vld [vmem:[%s292 + $0xff0] sm:$0xff]
        %v928 = vld [vmem:[%s292 + $0xff8] sm:$0xff]
        %v929 = vld [vmem:[%s292 + $0x1000] sm:$0xff]
        %v930 = vld [vmem:[%s292 + $0x1008] sm:$0xff]
        %v931 = vld [vmem:[%s292 + $0x1010] sm:$0xff]
        %v932 = vld [vmem:[%s292 + $0x1018] sm:$0xff]
        %v933 = vld [vmem:[%s292 + $0x1020] sm:$0xff]
        %v934 = vld [vmem:[%s292 + $0x1028] sm:$0xff]
        %v935 = vld [vmem:[%s292 + $0x1030] sm:$0xff]
        %v936 = vld [vmem:[%s292 + $0x1038] sm:$0xff]
        %v937 = vld [vmem:[%s292 + $0x1040] sm:$0xff]
        %v938 = vld [vmem:[%s292 + $0x1048] sm:$0xff]
        %v939 = vld [vmem:[%s292 + $0x1050] sm:$0xff]
        %v940 = vld [vmem:[%s292 + $0x1058] sm:$0xff]
        %v941 = vld [vmem:[%s292 + $0x1060] sm:$0xff]
        %v942 = vld [vmem:[%s292 + $0x1068] sm:$0xff]
        %v943 = vld [vmem:[%s292 + $0x1070] sm:$0xff]
        %v944 = vld [vmem:[%s292 + $0x1078] sm:$0xff]
        %v945 = vld [vmem:[%s292 + $0x1080] sm:$0xff]
        %v946 = vld [vmem:[%s292 + $0x1088] sm:$0xff]
        %v947 = vld [vmem:[%s292 + $0x1090] sm:$0xff]
        %v948 = vld [vmem:[%s292 + $0x1098] sm:$0xff]
        %v949 = vld [vmem:[%s292 + $0x10a0] sm:$0xff]
        %v950 = vld [vmem:[%s292 + $0x10a8] sm:$0xff]
        %v951 = vld [vmem:[%s292 + $0x10b0] sm:$0xff]
        %v952 = vld [vmem:[%s292 + $0x10b8] sm:$0xff]
        %v953 = vld [vmem:[%s292 + $0x10c0] sm:$0xff]
        %v954 = vld [vmem:[%s292 + $0x10c8] sm:$0xff]
        %v955 = vld [vmem:[%s292 + $0x10d0] sm:$0xff]
        %v956 = vld [vmem:[%s292 + $0x10d8] sm:$0xff]
        %v957 = vld [vmem:[%s292 + $0x10e0] sm:$0xff]
        %v958 = vld [vmem:[%s292 + $0x10e8] sm:$0xff]
        %v959 = vld [vmem:[%s292 + $0x10f0] sm:$0xff]
        %v960 = vld [vmem:[%s292 + $0x10f8] sm:$0xff]
        %v961 = vld [vmem:[%s292 + $0x1100] sm:$0xff]
        %v962 = vld [vmem:[%s292 + $0x1108] sm:$0xff]
        %v963 = vld [vmem:[%s292 + $0x1110] sm:$0xff]
        %v964 = vld [vmem:[%s292 + $0x1118] sm:$0xff]
        %v965 = vld [vmem:[%s292 + $0x1120] sm:$0xff]
        %v966 = vld [vmem:[%s292 + $0x1128] sm:$0xff]
        %v967 = vld [vmem:[%s292 + $0x1130] sm:$0xff]
        %v968 = vld [vmem:[%s292 + $0x1138] sm:$0xff]
        %v969 = vld [vmem:[%s292 + $0x1140] sm:$0xff]
        %v970 = vld [vmem:[%s292 + $0x1148] sm:$0xff]
        %v971 = vld [vmem:[%s292 + $0x1150] sm:$0xff]
        %v972 = vld [vmem:[%s292 + $0x1158] sm:$0xff]
        %v973 = vld [vmem:[%s292 + $0x1160] sm:$0xff]
        %v974 = vld [vmem:[%s292 + $0x1168] sm:$0xff]
        %v975 = vld [vmem:[%s292 + $0x1170] sm:$0xff]
        %v976 = vld [vmem:[%s292 + $0x1178] sm:$0xff]
        %v977 = vld [vmem:[%s292 + $0x1180] sm:$0xff]
        %v978 = vld [vmem:[%s292 + $0x1188] sm:$0xff]
        %v979 = vld [vmem:[%s292 + $0x1190] sm:$0xff]
        %v980 = vld [vmem:[%s292 + $0x1198] sm:$0xff]
        %v981 = vld [vmem:[%s292 + $0x11a0] sm:$0xff]
        %v982 = vld [vmem:[%s292 + $0x11a8] sm:$0xff]
        %v983 = vld [vmem:[%s292 + $0x11b0] sm:$0xff]
        %v984 = vld [vmem:[%s292 + $0x11b8] sm:$0xff]
        %v985 = vld [vmem:[%s292 + $0x11c0] sm:$0xff]
        %v986 = vld [vmem:[%s292 + $0x11c8] sm:$0xff]
        %v987 = vld [vmem:[%s292 + $0x11d0] sm:$0xff]
        %v988 = vld [vmem:[%s292 + $0x11d8] sm:$0xff]
        %v989 = vld [vmem:[%s292 + $0x11e0] sm:$0xff]
        %v990 = vld [vmem:[%s292 + $0x11e8] sm:$0xff]
        %v991 = vld [vmem:[%s292 + $0x11f0] sm:$0xff]
        %v992 = vld [vmem:[%s292 + $0x11f8] sm:$0xff]
        %v993 = vld [vmem:[%s292 + $0x1200] sm:$0xff]
        %v994 = vld [vmem:[%s292 + $0x1208] sm:$0xff]
        %v995 = vld [vmem:[%s292 + $0x1210] sm:$0xff]
        %v996 = vld [vmem:[%s292 + $0x1218] sm:$0xff]
        %v997 = vld [vmem:[%s292 + $0x1220] sm:$0xff]
        %v998 = vld [vmem:[%s292 + $0x1228] sm:$0xff]
        %v999 = vld [vmem:[%s292 + $0x1230] sm:$0xff]
        %v1000 = vld [vmem:[%s292 + $0x1238] sm:$0xff]
        %v1001 = vld [vmem:[%s292 + $0x1240] sm:$0xff]
        %v1002 = vld [vmem:[%s292 + $0x1248] sm:$0xff]
        %v1003 = vld [vmem:[%s292 + $0x1250] sm:$0xff]
        %v1004 = vld [vmem:[%s292 + $0x1258] sm:$0xff]
        %v1005 = vld [vmem:[%s292 + $0x1260] sm:$0xff]
        %v1006 = vld [vmem:[%s292 + $0x1268] sm:$0xff]
        %v1007 = vld [vmem:[%s292 + $0x1270] sm:$0xff]
        %v1008 = vld [vmem:[%s292 + $0x1278] sm:$0xff]
        %v1009 = vld [vmem:[%s292 + $0x1280] sm:$0xff]
        %v1010 = vld [vmem:[%s292 + $0x1288] sm:$0xff]
        %v1011 = vld [vmem:[%s292 + $0x1290] sm:$0xff]
        %v1012 = vld [vmem:[%s292 + $0x1298] sm:$0xff]
        %v1013 = vld [vmem:[%s292 + $0x12a0] sm:$0xff]
        %v1014 = vld [vmem:[%s292 + $0x12a8] sm:$0xff]
        %v1015 = vld [vmem:[%s292 + $0x12b0] sm:$0xff]
        %v1016 = vld [vmem:[%s292 + $0x12b8] sm:$0xff]
        %v1017 = vld [vmem:[%s292 + $0x12c0] sm:$0xff]
        %v1018 = vld [vmem:[%s292 + $0x12c8] sm:$0xff]
        %v1019 = vld [vmem:[%s292 + $0x12d0] sm:$0xff]
        %v1020 = vld [vmem:[%s292 + $0x12d8] sm:$0xff]
        %v1021 = vld [vmem:[%s292 + $0x12e0] sm:$0xff]
        %v1022 = vld [vmem:[%s292 + $0x12e8] sm:$0xff]
        %v1023 = vld [vmem:[%s292 + $0x12f0] sm:$0xff]
        %v1024 = vld [vmem:[%s292 + $0x12f8] sm:$0xff]
        %v1025 = vld [vmem:[%s292 + $0x1300] sm:$0xff]
        %v1026 = vld [vmem:[%s292 + $0x1308] sm:$0xff]
        %v1027 = vld [vmem:[%s292 + $0x1310] sm:$0xff]
        %v1028 = vld [vmem:[%s292 + $0x1318] sm:$0xff]
        %v1029 = vld [vmem:[%s292 + $0x1320] sm:$0xff]
        %v1030 = vld [vmem:[%s292 + $0x1328] sm:$0xff]
        %v1031 = vld [vmem:[%s292 + $0x1330] sm:$0xff]
        %v1032 = vld [vmem:[%s292 + $0x1338] sm:$0xff]
        %v1033 = vld [vmem:[%s292 + $0x1340] sm:$0xff]
        %v1034 = vld [vmem:[%s292 + $0x1348] sm:$0xff]
        %v1035 = vld [vmem:[%s292 + $0x1350] sm:$0xff]
        %v1036 = vld [vmem:[%s292 + $0x1358] sm:$0xff]
        %v1037 = vld [vmem:[%s292 + $0x1360] sm:$0xff]
        %v1038 = vld [vmem:[%s292 + $0x1368] sm:$0xff]
        %v1039 = vld [vmem:[%s292 + $0x1370] sm:$0xff]
        %v1040 = vld [vmem:[%s292 + $0x1378] sm:$0xff]
        %v1041 = vld [vmem:[%s292 + $0x1380] sm:$0xff]
        %v1042 = vld [vmem:[%s292 + $0x1388] sm:$0xff]
        %v1043 = vld [vmem:[%s292 + $0x1390] sm:$0xff]
        %v1044 = vld [vmem:[%s292 + $0x1398] sm:$0xff]
        %v1045 = vld [vmem:[%s292 + $0x13a0] sm:$0xff]
        %v1046 = vld [vmem:[%s292 + $0x13a8] sm:$0xff]
        %v1047 = vld [vmem:[%s292 + $0x13b0] sm:$0xff]
        %v1048 = vld [vmem:[%s292 + $0x13b8] sm:$0xff]
        %v1049 = vld [vmem:[%s292 + $0x13c0] sm:$0xff]
        %v1050 = vld [vmem:[%s292 + $0x13c8] sm:$0xff]
        %v1051 = vld [vmem:[%s292 + $0x13d0] sm:$0xff]
        %v1052 = vld [vmem:[%s292 + $0x13d8] sm:$0xff]
        %v1053 = vld [vmem:[%s292 + $0x13e0] sm:$0xff]
        %v1054 = vld [vmem:[%s292 + $0x13e8] sm:$0xff]
        %v1055 = vld [vmem:[%s292 + $0x13f0] sm:$0xff]
        %v1056 = vld [vmem:[%s292 + $0x13f8] sm:$0xff]
        %v1057 = vld [vmem:[%s292 + $0x1400] sm:$0xff]
        %v1058 = vld [vmem:[%s292 + $0x1408] sm:$0xff]
        %v1059 = vld [vmem:[%s292 + $0x1410] sm:$0xff]
        %v1060 = vld [vmem:[%s292 + $0x1418] sm:$0xff]
        %v1061 = vld [vmem:[%s292 + $0x1420] sm:$0xff]
        %v1062 = vld [vmem:[%s292 + $0x1428] sm:$0xff]
        %v1063 = vld [vmem:[%s292 + $0x1430] sm:$0xff]
        %v1064 = vld [vmem:[%s292 + $0x1438] sm:$0xff]
        %v1065 = vld [vmem:[%s292 + $0x1440] sm:$0xff]
        %v1066 = vld [vmem:[%s292 + $0x1448] sm:$0xff]
        %v1067 = vld [vmem:[%s292 + $0x1450] sm:$0xff]
        %v1068 = vld [vmem:[%s292 + $0x1458] sm:$0xff]
        %v1069 = vld [vmem:[%s292 + $0x1460] sm:$0xff]
        %v1070 = vld [vmem:[%s292 + $0x1468] sm:$0xff]
        %v1071 = vld [vmem:[%s292 + $0x1470] sm:$0xff]
        %v1072 = vld [vmem:[%s292 + $0x1478] sm:$0xff]
        %v1073 = vld [vmem:[%s292 + $0x1480] sm:$0xff]
        %v1074 = vld [vmem:[%s292 + $0x1488] sm:$0xff]
        %v1075 = vld [vmem:[%s292 + $0x1490] sm:$0xff]
        %v1076 = vld [vmem:[%s292 + $0x1498] sm:$0xff]
        %v1077 = vld [vmem:[%s292 + $0x14a0] sm:$0xff]
        %v1078 = vld [vmem:[%s292 + $0x14a8] sm:$0xff]
        %v1079 = vld [vmem:[%s292 + $0x14b0] sm:$0xff]
        %v1080 = vld [vmem:[%s292 + $0x14b8] sm:$0xff]
        %v1081 = vld [vmem:[%s292 + $0x14c0] sm:$0xff]
        %v1082 = vld [vmem:[%s292 + $0x14c8] sm:$0xff]
        %v1083 = vld [vmem:[%s292 + $0x14d0] sm:$0xff]
        %v1084 = vld [vmem:[%s292 + $0x14d8] sm:$0xff]
        %v1085 = vld [vmem:[%s292 + $0x14e0] sm:$0xff]
        %v1086 = vld [vmem:[%s292 + $0x14e8] sm:$0xff]
        %v1087 = vld [vmem:[%s292 + $0x14f0] sm:$0xff]
        %v1088 = vld [vmem:[%s292 + $0x14f8] sm:$0xff]
        %v1089 = vld [vmem:[%s292 + $0x1500] sm:$0xff]
        %v1090 = vld [vmem:[%s292 + $0x1508] sm:$0xff]
        %v1091 = vld [vmem:[%s292 + $0x1510] sm:$0xff]
        %v1092 = vld [vmem:[%s292 + $0x1518] sm:$0xff]
        %v1093 = vld [vmem:[%s292 + $0x1520] sm:$0xff]
        %v1094 = vld [vmem:[%s292 + $0x1528] sm:$0xff]
        %v1095 = vld [vmem:[%s292 + $0x1530] sm:$0xff]
        %v1096 = vld [vmem:[%s292 + $0x1538] sm:$0xff]
        %v1097 = vld [vmem:[%s292 + $0x1540] sm:$0xff]
        %v1098 = vld [vmem:[%s292 + $0x1548] sm:$0xff]
        %v1099 = vld [vmem:[%s292 + $0x1550] sm:$0xff]
        %v1100 = vld [vmem:[%s292 + $0x1558] sm:$0xff]
        %v1101 = vld [vmem:[%s292 + $0x1560] sm:$0xff]
        %v1102 = vld [vmem:[%s292 + $0x1568] sm:$0xff]
        %v1103 = vld [vmem:[%s292 + $0x1570] sm:$0xff]
        %v1104 = vld [vmem:[%s292 + $0x1578] sm:$0xff]
        %v1105 = vld [vmem:[%s292 + $0x1580] sm:$0xff]
        %v1106 = vld [vmem:[%s292 + $0x1588] sm:$0xff]
        %v1107 = vld [vmem:[%s292 + $0x1590] sm:$0xff]
        %v1108 = vld [vmem:[%s292 + $0x1598] sm:$0xff]
        %v1109 = vld [vmem:[%s292 + $0x15a0] sm:$0xff]
        %v1110 = vld [vmem:[%s292 + $0x15a8] sm:$0xff]
        %v1111 = vld [vmem:[%s292 + $0x15b0] sm:$0xff]
        %v1112 = vld [vmem:[%s292 + $0x15b8] sm:$0xff]
        %v1113 = vld [vmem:[%s292 + $0x15c0] sm:$0xff]
        %v1114 = vld [vmem:[%s292 + $0x15c8] sm:$0xff]
        %v1115 = vld [vmem:[%s292 + $0x15d0] sm:$0xff]
        %v1116 = vld [vmem:[%s292 + $0x15d8] sm:$0xff]
        %v1117 = vld [vmem:[%s292 + $0x15e0] sm:$0xff]
        %v1118 = vld [vmem:[%s292 + $0x15e8] sm:$0xff]
        %v1119 = vld [vmem:[%s292 + $0x15f0] sm:$0xff]
        %v1120 = vld [vmem:[%s292 + $0x15f8] sm:$0xff]
        %v1121 = vld [vmem:[%s292 + $0x1600] sm:$0xff]
        %v1122 = vld [vmem:[%s292 + $0x1608] sm:$0xff]
        %v1123 = vld [vmem:[%s292 + $0x1610] sm:$0xff]
        %v1124 = vld [vmem:[%s292 + $0x1618] sm:$0xff]
        %v1125 = vld [vmem:[%s292 + $0x1620] sm:$0xff]
        %v1126 = vld [vmem:[%s292 + $0x1628] sm:$0xff]
        %v1127 = vld [vmem:[%s292 + $0x1630] sm:$0xff]
        %v1128 = vld [vmem:[%s292 + $0x1638] sm:$0xff]
        %v1129 = vld [vmem:[%s292 + $0x1640] sm:$0xff]
        %v1130 = vld [vmem:[%s292 + $0x1648] sm:$0xff]
        %v1131 = vld [vmem:[%s292 + $0x1650] sm:$0xff]
        %v1132 = vld [vmem:[%s292 + $0x1658] sm:$0xff]
        %v1133 = vld [vmem:[%s292 + $0x1660] sm:$0xff]
        %v1134 = vld [vmem:[%s292 + $0x1668] sm:$0xff]
        %v1135 = vld [vmem:[%s292 + $0x1670] sm:$0xff]
        %v1136 = vld [vmem:[%s292 + $0x1678] sm:$0xff]
        %v1137 = vld [vmem:[%s292 + $0x1680] sm:$0xff]
        %v1138 = vld [vmem:[%s292 + $0x1688] sm:$0xff]
        %v1139 = vld [vmem:[%s292 + $0x1690] sm:$0xff]
        %v1140 = vld [vmem:[%s292 + $0x1698] sm:$0xff]
        %v1141 = vld [vmem:[%s292 + $0x16a0] sm:$0xff]
        %v1142 = vld [vmem:[%s292 + $0x16a8] sm:$0xff]
        %v1143 = vld [vmem:[%s292 + $0x16b0] sm:$0xff]
        %v1144 = vld [vmem:[%s292 + $0x16b8] sm:$0xff]
        %v1145 = vld [vmem:[%s292 + $0x16c0] sm:$0xff]
        %v1146 = vld [vmem:[%s292 + $0x16c8] sm:$0xff]
        %v1147 = vld [vmem:[%s292 + $0x16d0] sm:$0xff]
        %v1148 = vld [vmem:[%s292 + $0x16d8] sm:$0xff]
        %v1149 = vld [vmem:[%s292 + $0x16e0] sm:$0xff]
        %v1150 = vld [vmem:[%s292 + $0x16e8] sm:$0xff]
        %v1151 = vld [vmem:[%s292 + $0x16f0] sm:$0xff]
        %v1152 = vld [vmem:[%s292 + $0x16f8] sm:$0xff]
        %v1153 = vld [vmem:[%s292 + $0x1700] sm:$0xff]
        %v1154 = vld [vmem:[%s292 + $0x1708] sm:$0xff]
        %v1155 = vld [vmem:[%s292 + $0x1710] sm:$0xff]
        %v1156 = vld [vmem:[%s292 + $0x1718] sm:$0xff]
        %v1157 = vld [vmem:[%s292 + $0x1720] sm:$0xff]
        %v1158 = vld [vmem:[%s292 + $0x1728] sm:$0xff]
        %v1159 = vld [vmem:[%s292 + $0x1730] sm:$0xff]
        %v1160 = vld [vmem:[%s292 + $0x1738] sm:$0xff]
        %v1161 = vld [vmem:[%s292 + $0x1740] sm:$0xff]
        %v1162 = vld [vmem:[%s292 + $0x1748] sm:$0xff]
        %v1163 = vld [vmem:[%s292 + $0x1750] sm:$0xff]
        %v1164 = vld [vmem:[%s292 + $0x1758] sm:$0xff]
        %v1165 = vld [vmem:[%s292 + $0x1760] sm:$0xff]
        %v1166 = vld [vmem:[%s292 + $0x1768] sm:$0xff]
        %v1167 = vld [vmem:[%s292 + $0x1770] sm:$0xff]
        %v1168 = vld [vmem:[%s292 + $0x1778] sm:$0xff]
        %v1169 = vld [vmem:[%s292 + $0x1780] sm:$0xff]
        %v1170 = vld [vmem:[%s292 + $0x1788] sm:$0xff]
        %v1171 = vld [vmem:[%s292 + $0x1790] sm:$0xff]
        %v1172 = vld [vmem:[%s292 + $0x1798] sm:$0xff]
        %v1173 = vld [vmem:[%s292 + $0x17a0] sm:$0xff]
        %v1174 = vld [vmem:[%s292 + $0x17a8] sm:$0xff]
        %v1175 = vld [vmem:[%s292 + $0x17b0] sm:$0xff]
        %v1176 = vld [vmem:[%s292 + $0x17b8] sm:$0xff]
        %v1177 = vld [vmem:[%s292 + $0x17c0] sm:$0xff]
        %v1178 = vld [vmem:[%s292 + $0x17c8] sm:$0xff]
        %v1179 = vld [vmem:[%s292 + $0x17d0] sm:$0xff]
        %v1180 = vld [vmem:[%s292 + $0x17d8] sm:$0xff]
        %v1181 = vld [vmem:[%s292 + $0x17e0] sm:$0xff]
        %v1182 = vld [vmem:[%s292 + $0x17e8] sm:$0xff]
        %v1183 = vld [vmem:[%s292 + $0x17f0] sm:$0xff]
        %v1184 = vld [vmem:[%s292 + $0x17f8] sm:$0xff]
        %v1185 = vld [vmem:[%s292 + $0x1800] sm:$0xff]
        %v1186 = vld [vmem:[%s292 + $0x1808] sm:$0xff]
        %v1187 = vld [vmem:[%s292 + $0x1810] sm:$0xff]
        %v1188 = vld [vmem:[%s292 + $0x1818] sm:$0xff]
        %v1189 = vld [vmem:[%s292 + $0x1820] sm:$0xff]
        %v1190 = vld [vmem:[%s292 + $0x1828] sm:$0xff]
        %v1191 = vld [vmem:[%s292 + $0x1830] sm:$0xff]
        %v1192 = vld [vmem:[%s292 + $0x1838] sm:$0xff]
        %v1193 = vld [vmem:[%s292 + $0x1840] sm:$0xff]
        %v1194 = vld [vmem:[%s292 + $0x1848] sm:$0xff]
        %v1195 = vld [vmem:[%s292 + $0x1850] sm:$0xff]
        %v1196 = vld [vmem:[%s292 + $0x1858] sm:$0xff]
        %v1197 = vld [vmem:[%s292 + $0x1860] sm:$0xff]
        %v1198 = vld [vmem:[%s292 + $0x1868] sm:$0xff]
        %v1199 = vld [vmem:[%s292 + $0x1870] sm:$0xff]
        %v1200 = vld [vmem:[%s292 + $0x1878] sm:$0xff]
        %v1201 = vld [vmem:[%s292 + $0x1880] sm:$0xff]
        %v1202 = vld [vmem:[%s292 + $0x1888] sm:$0xff]
        %v1203 = vld [vmem:[%s292 + $0x1890] sm:$0xff]
        %v1204 = vld [vmem:[%s292 + $0x1898] sm:$0xff]
        %v1205 = vld [vmem:[%s292 + $0x18a0] sm:$0xff]
        %v1206 = vld [vmem:[%s292 + $0x18a8] sm:$0xff]
        %v1207 = vld [vmem:[%s292 + $0x18b0] sm:$0xff]
        %v1208 = vld [vmem:[%s292 + $0x18b8] sm:$0xff]
        %v1209 = vld [vmem:[%s292 + $0x18c0] sm:$0xff]
        %v1210 = vld [vmem:[%s292 + $0x18c8] sm:$0xff]
        %v1211 = vld [vmem:[%s292 + $0x18d0] sm:$0xff]
        %v1212 = vld [vmem:[%s292 + $0x18d8] sm:$0xff]
        %v1213 = vld [vmem:[%s292 + $0x18e0] sm:$0xff]
        %v1214 = vld [vmem:[%s292 + $0x18e8] sm:$0xff]
        %v1215 = vld [vmem:[%s292 + $0x18f0] sm:$0xff]
        %v1216 = vld [vmem:[%s292 + $0x18f8] sm:$0xff]
        %v1217 = vld [vmem:[%s292 + $0x1900] sm:$0xff]
        %v1218 = vld [vmem:[%s292 + $0x1908] sm:$0xff]
        %v1219 = vld [vmem:[%s292 + $0x1910] sm:$0xff]
        %v1220 = vld [vmem:[%s292 + $0x1918] sm:$0xff]
        %v1221 = vld [vmem:[%s292 + $0x1920] sm:$0xff]
        %v1222 = vld [vmem:[%s292 + $0x1928] sm:$0xff]
        %v1223 = vld [vmem:[%s292 + $0x1930] sm:$0xff]
        %v1224 = vld [vmem:[%s292 + $0x1938] sm:$0xff]
        %v1225 = vld [vmem:[%s292 + $0x1940] sm:$0xff]
        %v1226 = vld [vmem:[%s292 + $0x1948] sm:$0xff]
        %v1227 = vld [vmem:[%s292 + $0x1950] sm:$0xff]
        %v1228 = vld [vmem:[%s292 + $0x1958] sm:$0xff]
        %v1229 = vld [vmem:[%s292 + $0x1960] sm:$0xff]
        %v1230 = vld [vmem:[%s292 + $0x1968] sm:$0xff]
        %v1231 = vld [vmem:[%s292 + $0x1970] sm:$0xff]
        %v1232 = vld [vmem:[%s292 + $0x1978] sm:$0xff]
        %v1233 = vld [vmem:[%s292 + $0x1980] sm:$0xff]
        %v1234 = vld [vmem:[%s292 + $0x1988] sm:$0xff]
        %v1235 = vld [vmem:[%s292 + $0x1990] sm:$0xff]
        %v1236 = vld [vmem:[%s292 + $0x1998] sm:$0xff]
        %v1237 = vld [vmem:[%s292 + $0x19a0] sm:$0xff]
        %v1238 = vld [vmem:[%s292 + $0x19a8] sm:$0xff]
        %v1239 = vld [vmem:[%s292 + $0x19b0] sm:$0xff]
        %v1240 = vld [vmem:[%s292 + $0x19b8] sm:$0xff]
        %v1241 = vld [vmem:[%s292 + $0x19c0] sm:$0xff]
        %v1242 = vld [vmem:[%s292 + $0x19c8] sm:$0xff]
        %v1243 = vld [vmem:[%s292 + $0x19d0] sm:$0xff]
        %v1244 = vld [vmem:[%s292 + $0x19d8] sm:$0xff]
        %v1245 = vld [vmem:[%s292 + $0x19e0] sm:$0xff]
        %v1246 = vld [vmem:[%s292 + $0x19e8] sm:$0xff]
        %v1247 = vld [vmem:[%s292 + $0x19f0] sm:$0xff]
        %v1248 = vld [vmem:[%s292 + $0x19f8] sm:$0xff]
        %v1249 = vld [vmem:[%s292 + $0x1a00] sm:$0xff]
        %v1250 = vld [vmem:[%s292 + $0x1a08] sm:$0xff]
        %v1251 = vld [vmem:[%s292 + $0x1a10] sm:$0xff]
        %v1252 = vld [vmem:[%s292 + $0x1a18] sm:$0xff]
        %v1253 = vld [vmem:[%s292 + $0x1a20] sm:$0xff]
        %v1254 = vld [vmem:[%s292 + $0x1a28] sm:$0xff]
        %v1255 = vld [vmem:[%s292 + $0x1a30] sm:$0xff]
        %v1256 = vld [vmem:[%s292 + $0x1a38] sm:$0xff]
        %v1257 = vld [vmem:[%s292 + $0x1a40] sm:$0xff]
        %v1258 = vld [vmem:[%s292 + $0x1a48] sm:$0xff]
        %v1259 = vld [vmem:[%s292 + $0x1a50] sm:$0xff]
        %v1260 = vld [vmem:[%s292 + $0x1a58] sm:$0xff]
        %v1261 = vld [vmem:[%s292 + $0x1a60] sm:$0xff]
        %v1262 = vld [vmem:[%s292 + $0x1a68] sm:$0xff]
        %v1263 = vld [vmem:[%s292 + $0x1a70] sm:$0xff]
        %v1264 = vld [vmem:[%s292 + $0x1a78] sm:$0xff]
        %v1265 = vld [vmem:[%s292 + $0x1a80] sm:$0xff]
        %v1266 = vld [vmem:[%s292 + $0x1a88] sm:$0xff]
        %v1267 = vld [vmem:[%s292 + $0x1a90] sm:$0xff]
        %v1268 = vld [vmem:[%s292 + $0x1a98] sm:$0xff]
        %v1269 = vld [vmem:[%s292 + $0x1aa0] sm:$0xff]
        %v1270 = vld [vmem:[%s292 + $0x1aa8] sm:$0xff]
        %v1271 = vld [vmem:[%s292 + $0x1ab0] sm:$0xff]
        %v1272 = vld [vmem:[%s292 + $0x1ab8] sm:$0xff]
        %v1273 = vld [vmem:[%s292 + $0x1ac0] sm:$0xff]
        %v1274 = vld [vmem:[%s292 + $0x1ac8] sm:$0xff]
        %v1275 = vld [vmem:[%s292 + $0x1ad0] sm:$0xff]
        %v1276 = vld [vmem:[%s292 + $0x1ad8] sm:$0xff]
        %v1277 = vld [vmem:[%s292 + $0x1ae0] sm:$0xff]
        %v1278 = vld [vmem:[%s292 + $0x1ae8] sm:$0xff]
        %v1279 = vld [vmem:[%s292 + $0x1af0] sm:$0xff]
        %v1280 = vld [vmem:[%s292 + $0x1af8] sm:$0xff]
        %v1281 = vld [vmem:[%s292 + $0x1b00] sm:$0xff]
        %v1282 = vld [vmem:[%s292 + $0x1b08] sm:$0xff]
        %v1283 = vld [vmem:[%s292 + $0x1b10] sm:$0xff]
        %v1284 = vld [vmem:[%s292 + $0x1b18] sm:$0xff]
        %v1285 = vld [vmem:[%s292 + $0x1b20] sm:$0xff]
        %v1286 = vld [vmem:[%s292 + $0x1b28] sm:$0xff]
        %v1287 = vld [vmem:[%s292 + $0x1b30] sm:$0xff]
        %v1288 = vld [vmem:[%s292 + $0x1b38] sm:$0xff]
        %v1289 = vld [vmem:[%s292 + $0x1b40] sm:$0xff]
        %v1290 = vld [vmem:[%s292 + $0x1b48] sm:$0xff]
        %v1291 = vld [vmem:[%s292 + $0x1b50] sm:$0xff]
        %v1292 = vld [vmem:[%s292 + $0x1b58] sm:$0xff]
        %v1293 = vld [vmem:[%s292 + $0x1b60] sm:$0xff]
        %v1294 = vld [vmem:[%s292 + $0x1b68] sm:$0xff]
        %v1295 = vld [vmem:[%s292 + $0x1b70] sm:$0xff]
        %v1296 = vld [vmem:[%s292 + $0x1b78] sm:$0xff]
        %v1297 = vld [vmem:[%s292 + $0x1b80] sm:$0xff]
        %v1298 = vld [vmem:[%s292 + $0x1b88] sm:$0xff]
        %v1299 = vld [vmem:[%s292 + $0x1b90] sm:$0xff]
        %v1300 = vld [vmem:[%s292 + $0x1b98] sm:$0xff]
        %v1301 = vld [vmem:[%s292 + $0x1ba0] sm:$0xff]
        %v1302 = vld [vmem:[%s292 + $0x1ba8] sm:$0xff]
        %v1303 = vld [vmem:[%s292 + $0x1bb0] sm:$0xff]
        %v1304 = vld [vmem:[%s292 + $0x1bb8] sm:$0xff]
        %v1305 = vld [vmem:[%s292 + $0x1bc0] sm:$0xff]
        %v1306 = vld [vmem:[%s292 + $0x1bc8] sm:$0xff]
        %v1307 = vld [vmem:[%s292 + $0x1bd0] sm:$0xff]
        %v1308 = vld [vmem:[%s292 + $0x1bd8] sm:$0xff]
        %v1309 = vld [vmem:[%s292 + $0x1be0] sm:$0xff]
        %v1310 = vld [vmem:[%s292 + $0x1be8] sm:$0xff]
        %v1311 = vld [vmem:[%s292 + $0x1bf0] sm:$0xff]
        %v1312 = vld [vmem:[%s292 + $0x1bf8] sm:$0xff]
        %v1313 = vld [vmem:[%s292 + $0x1c00] sm:$0xff]
        %v1314 = vld [vmem:[%s292 + $0x1c08] sm:$0xff]
        %v1315 = vld [vmem:[%s292 + $0x1c10] sm:$0xff]
        %v1316 = vld [vmem:[%s292 + $0x1c18] sm:$0xff]
        %v1317 = vld [vmem:[%s292 + $0x1c20] sm:$0xff]
        %v1318 = vld [vmem:[%s292 + $0x1c28] sm:$0xff]
        %v1319 = vld [vmem:[%s292 + $0x1c30] sm:$0xff]
        %v1320 = vld [vmem:[%s292 + $0x1c38] sm:$0xff]
        %v1321 = vld [vmem:[%s292 + $0x1c40] sm:$0xff]
        %v1322 = vld [vmem:[%s292 + $0x1c48] sm:$0xff]
        %v1323 = vld [vmem:[%s292 + $0x1c50] sm:$0xff]
        %v1324 = vld [vmem:[%s292 + $0x1c58] sm:$0xff]
        %v1325 = vld [vmem:[%s292 + $0x1c60] sm:$0xff]
        %v1326 = vld [vmem:[%s292 + $0x1c68] sm:$0xff]
        %v1327 = vld [vmem:[%s292 + $0x1c70] sm:$0xff]
        %v1328 = vld [vmem:[%s292 + $0x1c78] sm:$0xff]
        %v1329 = vld [vmem:[%s292 + $0x1c80] sm:$0xff]
        %v1330 = vld [vmem:[%s292 + $0x1c88] sm:$0xff]
        %v1331 = vld [vmem:[%s292 + $0x1c90] sm:$0xff]
        %v1332 = vld [vmem:[%s292 + $0x1c98] sm:$0xff]
        %v1333 = vld [vmem:[%s292 + $0x1ca0] sm:$0xff]
        %v1334 = vld [vmem:[%s292 + $0x1ca8] sm:$0xff]
        %v1335 = vld [vmem:[%s292 + $0x1cb0] sm:$0xff]
        %v1336 = vld [vmem:[%s292 + $0x1cb8] sm:$0xff]
        %v1337 = vld [vmem:[%s292 + $0x1cc0] sm:$0xff]
        %v1338 = vld [vmem:[%s292 + $0x1cc8] sm:$0xff]
        %v1339 = vld [vmem:[%s292 + $0x1cd0] sm:$0xff]
        %v1340 = vld [vmem:[%s292 + $0x1cd8] sm:$0xff]
        %v1341 = vld [vmem:[%s292 + $0x1ce0] sm:$0xff]
        %v1342 = vld [vmem:[%s292 + $0x1ce8] sm:$0xff]
        %v1343 = vld [vmem:[%s292 + $0x1cf0] sm:$0xff]
        %v1344 = vld [vmem:[%s292 + $0x1cf8] sm:$0xff]
        %v1345 = vld [vmem:[%s292 + $0x1d00] sm:$0xff]
        %v1346 = vld [vmem:[%s292 + $0x1d08] sm:$0xff]
        %v1347 = vld [vmem:[%s292 + $0x1d10] sm:$0xff]
        %v1348 = vld [vmem:[%s292 + $0x1d18] sm:$0xff]
        %v1349 = vld [vmem:[%s292 + $0x1d20] sm:$0xff]
        %v1350 = vld [vmem:[%s292 + $0x1d28] sm:$0xff]
        %v1351 = vld [vmem:[%s292 + $0x1d30] sm:$0xff]
        %v1352 = vld [vmem:[%s292 + $0x1d38] sm:$0xff]
        %v1353 = vld [vmem:[%s292 + $0x1d40] sm:$0xff]
        %v1354 = vld [vmem:[%s292 + $0x1d48] sm:$0xff]
        %v1355 = vld [vmem:[%s292 + $0x1d50] sm:$0xff]
        %v1356 = vld [vmem:[%s292 + $0x1d58] sm:$0xff]
        %v1357 = vld [vmem:[%s292 + $0x1d60] sm:$0xff]
        %v1358 = vld [vmem:[%s292 + $0x1d68] sm:$0xff]
        %v1359 = vld [vmem:[%s292 + $0x1d70] sm:$0xff]
        %v1360 = vld [vmem:[%s292 + $0x1d78] sm:$0xff]
        %v1361 = vld [vmem:[%s292 + $0x1d80] sm:$0xff]
        %v1362 = vld [vmem:[%s292 + $0x1d88] sm:$0xff]
        %v1363 = vld [vmem:[%s292 + $0x1d90] sm:$0xff]
        %v1364 = vld [vmem:[%s292 + $0x1d98] sm:$0xff]
        %v1365 = vld [vmem:[%s292 + $0x1da0] sm:$0xff]
        %v1366 = vld [vmem:[%s292 + $0x1da8] sm:$0xff]
        %v1367 = vld [vmem:[%s292 + $0x1db0] sm:$0xff]
        %v1368 = vld [vmem:[%s292 + $0x1db8] sm:$0xff]
        %v1369 = vld [vmem:[%s292 + $0x1dc0] sm:$0xff]
        %v1370 = vld [vmem:[%s292 + $0x1dc8] sm:$0xff]
        %v1371 = vld [vmem:[%s292 + $0x1dd0] sm:$0xff]
        %v1372 = vld [vmem:[%s292 + $0x1dd8] sm:$0xff]
        %v1373 = vld [vmem:[%s292 + $0x1de0] sm:$0xff]
        %v1374 = vld [vmem:[%s292 + $0x1de8] sm:$0xff]
        %v1375 = vld [vmem:[%s292 + $0x1df0] sm:$0xff]
        %v1376 = vld [vmem:[%s292 + $0x1df8] sm:$0xff]
        %v1377 = vld [vmem:[%s292 + $0x1e00] sm:$0xff]
        %v1378 = vld [vmem:[%s292 + $0x1e08] sm:$0xff]
        %v1379 = vld [vmem:[%s292 + $0x1e10] sm:$0xff]
        %v1380 = vld [vmem:[%s292 + $0x1e18] sm:$0xff]
        %v1381 = vld [vmem:[%s292 + $0x1e20] sm:$0xff]
        %v1382 = vld [vmem:[%s292 + $0x1e28] sm:$0xff]
        %v1383 = vld [vmem:[%s292 + $0x1e30] sm:$0xff]
        %v1384 = vld [vmem:[%s292 + $0x1e38] sm:$0xff]
        %v1385 = vld [vmem:[%s292 + $0x1e40] sm:$0xff]
        %v1386 = vld [vmem:[%s292 + $0x1e48] sm:$0xff]
        %v1387 = vld [vmem:[%s292 + $0x1e50] sm:$0xff]
        %v1388 = vld [vmem:[%s292 + $0x1e58] sm:$0xff]
        %v1389 = vld [vmem:[%s292 + $0x1e60] sm:$0xff]
        %v1390 = vld [vmem:[%s292 + $0x1e68] sm:$0xff]
        %v1391 = vld [vmem:[%s292 + $0x1e70] sm:$0xff]
        %v1392 = vld [vmem:[%s292 + $0x1e78] sm:$0xff]
        %v1393 = vld [vmem:[%s292 + $0x1e80] sm:$0xff]
        %v1394 = vld [vmem:[%s292 + $0x1e88] sm:$0xff]
        %v1395 = vld [vmem:[%s292 + $0x1e90] sm:$0xff]
        %v1396 = vld [vmem:[%s292 + $0x1e98] sm:$0xff]
        %v1397 = vld [vmem:[%s292 + $0x1ea0] sm:$0xff]
        %v1398 = vld [vmem:[%s292 + $0x1ea8] sm:$0xff]
        %v1399 = vld [vmem:[%s292 + $0x1eb0] sm:$0xff]
        %v1400 = vld [vmem:[%s292 + $0x1eb8] sm:$0xff]
        %v1401 = vld [vmem:[%s292 + $0x1ec0] sm:$0xff]
        %v1402 = vld [vmem:[%s292 + $0x1ec8] sm:$0xff]
        %v1403 = vld [vmem:[%s292 + $0x1ed0] sm:$0xff]
        %v1404 = vld [vmem:[%s292 + $0x1ed8] sm:$0xff]
        %v1405 = vld [vmem:[%s292 + $0x1ee0] sm:$0xff]
        %v1406 = vld [vmem:[%s292 + $0x1ee8] sm:$0xff]
        %v1407 = vld [vmem:[%s292 + $0x1ef0] sm:$0xff]
        %v1408 = vld [vmem:[%s292 + $0x1ef8] sm:$0xff]
        %v1409 = vld [vmem:[%s292 + $0x1f00] sm:$0xff]
        %v1410 = vld [vmem:[%s292 + $0x1f08] sm:$0xff]
        %v1411 = vld [vmem:[%s292 + $0x1f10] sm:$0xff]
        %v1412 = vld [vmem:[%s292 + $0x1f18] sm:$0xff]
        %v1413 = vld [vmem:[%s292 + $0x1f20] sm:$0xff]
        %v1414 = vld [vmem:[%s292 + $0x1f28] sm:$0xff]
        %v1415 = vld [vmem:[%s292 + $0x1f30] sm:$0xff]
        %v1416 = vld [vmem:[%s292 + $0x1f38] sm:$0xff]
        %v1417 = vld [vmem:[%s292 + $0x1f40] sm:$0xff]
        %v1418 = vld [vmem:[%s292 + $0x1f48] sm:$0xff]
        %v1419 = vld [vmem:[%s292 + $0x1f50] sm:$0xff]
        %v1420 = vld [vmem:[%s292 + $0x1f58] sm:$0xff]
        %v1421 = vld [vmem:[%s292 + $0x1f60] sm:$0xff]
        %v1422 = vld [vmem:[%s292 + $0x1f68] sm:$0xff]
        %v1423 = vld [vmem:[%s292 + $0x1f70] sm:$0xff]
        %v1424 = vld [vmem:[%s292 + $0x1f78] sm:$0xff]
        %v1425 = vld [vmem:[%s292 + $0x1f80] sm:$0xff]
        %v1426 = vld [vmem:[%s292 + $0x1f88] sm:$0xff]
        %v1427 = vld [vmem:[%s292 + $0x1f90] sm:$0xff]
        %v1428 = vld [vmem:[%s292 + $0x1f98] sm:$0xff]
        %v1429 = vld [vmem:[%s292 + $0x1fa0] sm:$0xff]
        %v1430 = vld [vmem:[%s292 + $0x1fa8] sm:$0xff]
        %v1431 = vld [vmem:[%s292 + $0x1fb0] sm:$0xff]
        %v1432 = vld [vmem:[%s292 + $0x1fb8] sm:$0xff]
        %v1433 = vld [vmem:[%s292 + $0x1fc0] sm:$0xff]
        %v1434 = vld [vmem:[%s292 + $0x1fc8] sm:$0xff]
        %v1435 = vld [vmem:[%s292 + $0x1fd0] sm:$0xff]
        %v1436 = vld [vmem:[%s292 + $0x1fd8] sm:$0xff]
        %v1437 = vld [vmem:[%s292 + $0x1fe0] sm:$0xff]
        %v1438 = vld [vmem:[%s292 + $0x1fe8] sm:$0xff]
        %v1439 = vld [vmem:[%s292 + $0x1ff0] sm:$0xff]
        %v1440 = vld [vmem:[%s292 + $0x1ff8] sm:$0xff]
        %v1441 = vld [vmem:[%s292 + $0x2000] sm:$0xff]
        %v1442 = vld [vmem:[%s292 + $0x2008] sm:$0xff]
        %v1443 = vld [vmem:[%s292 + $0x2010] sm:$0xff]
        %v1444 = vld [vmem:[%s292 + $0x2018] sm:$0xff]
        %v1445 = vld [vmem:[%s292 + $0x2020] sm:$0xff]
        %v1446 = vld [vmem:[%s292 + $0x2028] sm:$0xff]
        %v1447 = vld [vmem:[%s292 + $0x2030] sm:$0xff]
        %v1448 = vld [vmem:[%s292 + $0x2038] sm:$0xff]
        %v1449 = vld [vmem:[%s292 + $0x2040] sm:$0xff]
        %v1450 = vld [vmem:[%s292 + $0x2048] sm:$0xff]
        %v1451 = vld [vmem:[%s292 + $0x2050] sm:$0xff]
        %v1452 = vld [vmem:[%s292 + $0x2058] sm:$0xff]
        %v1453 = vld [vmem:[%s292 + $0x2060] sm:$0xff]
        %v1454 = vld [vmem:[%s292 + $0x2068] sm:$0xff]
        %v1455 = vld [vmem:[%s292 + $0x2070] sm:$0xff]
        %v1456 = vld [vmem:[%s292 + $0x2078] sm:$0xff]
        %v1457 = vld [vmem:[%s292 + $0x2080] sm:$0xff]
        %v1458 = vld [vmem:[%s292 + $0x2088] sm:$0xff]
        %v1459 = vld [vmem:[%s292 + $0x2090] sm:$0xff]
        %v1460 = vld [vmem:[%s292 + $0x2098] sm:$0xff]
        %v1461 = vld [vmem:[%s292 + $0x20a0] sm:$0xff]
        %v1462 = vld [vmem:[%s292 + $0x20a8] sm:$0xff]
        %v1463 = vld [vmem:[%s292 + $0x20b0] sm:$0xff]
        %v1464 = vld [vmem:[%s292 + $0x20b8] sm:$0xff]
        %v1465 = vld [vmem:[%s292 + $0x20c0] sm:$0xff]
        %v1466 = vld [vmem:[%s292 + $0x20c8] sm:$0xff]
        %v1467 = vld [vmem:[%s292 + $0x20d0] sm:$0xff]
        %v1468 = vld [vmem:[%s292 + $0x20d8] sm:$0xff]
        %v1469 = vld [vmem:[%s292 + $0x20e0] sm:$0xff]
        %v1470 = vld [vmem:[%s292 + $0x20e8] sm:$0xff]
        %v1471 = vld [vmem:[%s292 + $0x20f0] sm:$0xff]
        %v1472 = vld [vmem:[%s292 + $0x20f8] sm:$0xff]
        %v1473 = vld [vmem:[%s292 + $0x2100] sm:$0xff]
        %v1474 = vld [vmem:[%s292 + $0x2108] sm:$0xff]
        %v1475 = vld [vmem:[%s292 + $0x2110] sm:$0xff]
        %v1476 = vld [vmem:[%s292 + $0x2118] sm:$0xff]
        %v1477 = vld [vmem:[%s292 + $0x2120] sm:$0xff]
        %v1478 = vld [vmem:[%s292 + $0x2128] sm:$0xff]
        %v1479 = vld [vmem:[%s292 + $0x2130] sm:$0xff]
        %v1480 = vld [vmem:[%s292 + $0x2138] sm:$0xff]
        %v1481 = vld [vmem:[%s292 + $0x2140] sm:$0xff]
        %v1482 = vld [vmem:[%s292 + $0x2148] sm:$0xff]
        %v1483 = vld [vmem:[%s292 + $0x2150] sm:$0xff]
        %v1484 = vld [vmem:[%s292 + $0x2158] sm:$0xff]
        %v1485 = vld [vmem:[%s292 + $0x2160] sm:$0xff]
        %v1486 = vld [vmem:[%s292 + $0x2168] sm:$0xff]
        %v1487 = vld [vmem:[%s292 + $0x2170] sm:$0xff]
        %v1488 = vld [vmem:[%s292 + $0x2178] sm:$0xff]
        %v1489 = vld [vmem:[%s292 + $0x2180] sm:$0xff]
        %v1490 = vld [vmem:[%s292 + $0x2188] sm:$0xff]
        %v1491 = vld [vmem:[%s292 + $0x2190] sm:$0xff]
        %v1492 = vld [vmem:[%s292 + $0x2198] sm:$0xff]
        %v1493 = vld [vmem:[%s292 + $0x21a0] sm:$0xff]
        %v1494 = vld [vmem:[%s292 + $0x21a8] sm:$0xff]
        %v1495 = vld [vmem:[%s292 + $0x21b0] sm:$0xff]
        %v1496 = vld [vmem:[%s292 + $0x21b8] sm:$0xff]
        %v1497 = vld [vmem:[%s292 + $0x21c0] sm:$0xff]
        %v1498 = vld [vmem:[%s292 + $0x21c8] sm:$0xff]
        %v1499 = vld [vmem:[%s292 + $0x21d0] sm:$0xff]
        %v1500 = vld [vmem:[%s292 + $0x21d8] sm:$0xff]
        %v1501 = vld [vmem:[%s292 + $0x21e0] sm:$0xff]
        %v1502 = vld [vmem:[%s292 + $0x21e8] sm:$0xff]
        %v1503 = vld [vmem:[%s292 + $0x21f0] sm:$0xff]
        %v1504 = vld [vmem:[%s292 + $0x21f8] sm:$0xff]
        %v1505 = vld [vmem:[%s292 + $0x2200] sm:$0xff]
        %v1506 = vld [vmem:[%s292 + $0x2208] sm:$0xff]
        %v1507 = vld [vmem:[%s292 + $0x2210] sm:$0xff]
        %v1508 = vld [vmem:[%s292 + $0x2218] sm:$0xff]
        %v1509 = vld [vmem:[%s292 + $0x2220] sm:$0xff]
        %v1510 = vld [vmem:[%s292 + $0x2228] sm:$0xff]
        %v1511 = vld [vmem:[%s292 + $0x2230] sm:$0xff]
        %v1512 = vld [vmem:[%s292 + $0x2238] sm:$0xff]
        %v1513 = vld [vmem:[%s292 + $0x2240] sm:$0xff]
        %v1514 = vld [vmem:[%s292 + $0x2248] sm:$0xff]
        %v1515 = vld [vmem:[%s292 + $0x2250] sm:$0xff]
        %v1516 = vld [vmem:[%s292 + $0x2258] sm:$0xff]
        %v1517 = vld [vmem:[%s292 + $0x2260] sm:$0xff]
        %v1518 = vld [vmem:[%s292 + $0x2268] sm:$0xff]
        %v1519 = vld [vmem:[%s292 + $0x2270] sm:$0xff]
        %v1520 = vld [vmem:[%s292 + $0x2278] sm:$0xff]
        %v1521 = vld [vmem:[%s292 + $0x2280] sm:$0xff]
        %v1522 = vld [vmem:[%s292 + $0x2288] sm:$0xff]
        %v1523 = vld [vmem:[%s292 + $0x2290] sm:$0xff]
        %v1524 = vld [vmem:[%s292 + $0x2298] sm:$0xff]
        %v1525 = vld [vmem:[%s292 + $0x22a0] sm:$0xff]
        %v1526 = vld [vmem:[%s292 + $0x22a8] sm:$0xff]
        %v1527 = vld [vmem:[%s292 + $0x22b0] sm:$0xff]
        %v1528 = vld [vmem:[%s292 + $0x22b8] sm:$0xff]
        %v1529 = vld [vmem:[%s292 + $0x22c0] sm:$0xff]
        %v1530 = vld [vmem:[%s292 + $0x22c8] sm:$0xff]
        %v1531 = vld [vmem:[%s292 + $0x22d0] sm:$0xff]
        %v1532 = vld [vmem:[%s292 + $0x22d8] sm:$0xff]
        %v1533 = vld [vmem:[%s292 + $0x22e0] sm:$0xff]
        %v1534 = vld [vmem:[%s292 + $0x22e8] sm:$0xff]
        %v1535 = vld [vmem:[%s292 + $0x22f0] sm:$0xff]
        %v1536 = vld [vmem:[%s292 + $0x22f8] sm:$0xff]
        %v1537 = vld [vmem:[%s292 + $0x2300] sm:$0xff]
        %v1538 = vld [vmem:[%s292 + $0x2308] sm:$0xff]
        %v1539 = vld [vmem:[%s292 + $0x2310] sm:$0xff]
        %v1540 = vld [vmem:[%s292 + $0x2318] sm:$0xff]
        %v1541 = vld [vmem:[%s292 + $0x2320] sm:$0xff]
        %v1542 = vld [vmem:[%s292 + $0x2328] sm:$0xff]
        %v1543 = vld [vmem:[%s292 + $0x2330] sm:$0xff]
        %v1544 = vld [vmem:[%s292 + $0x2338] sm:$0xff]
        %v1545 = vld [vmem:[%s292 + $0x2340] sm:$0xff]
        %v1546 = vld [vmem:[%s292 + $0x2348] sm:$0xff]
        %v1547 = vld [vmem:[%s292 + $0x2350] sm:$0xff]
        %v1548 = vld [vmem:[%s292 + $0x2358] sm:$0xff]
        %v1549 = vld [vmem:[%s292 + $0x2360] sm:$0xff]
        %v1550 = vld [vmem:[%s292 + $0x2368] sm:$0xff]
        %v1551 = vld [vmem:[%s292 + $0x2370] sm:$0xff]
        %v1552 = vld [vmem:[%s292 + $0x2378] sm:$0xff]
        %v1553 = vld [vmem:[%s292 + $0x2380] sm:$0xff]
        %v1554 = vld [vmem:[%s292 + $0x2388] sm:$0xff]
        %v1555 = vld [vmem:[%s292 + $0x2390] sm:$0xff]
        %v1556 = vld [vmem:[%s292 + $0x2398] sm:$0xff]
        %v1557 = vld [vmem:[%s292 + $0x23a0] sm:$0xff]
        %v1558 = vld [vmem:[%s292 + $0x23a8] sm:$0xff]
        %v1559 = vld [vmem:[%s292 + $0x23b0] sm:$0xff]
        %v1560 = vld [vmem:[%s292 + $0x23b8] sm:$0xff]
        %v1561 = vld [vmem:[%s292 + $0x23c0] sm:$0xff]
        %v1562 = vld [vmem:[%s292 + $0x23c8] sm:$0xff]
        %v1563 = vld [vmem:[%s292 + $0x23d0] sm:$0xff]
        %v1564 = vld [vmem:[%s292 + $0x23d8] sm:$0xff]
        %v1565 = vld [vmem:[%s292 + $0x23e0] sm:$0xff]
        %v1566 = vld [vmem:[%s292 + $0x23e8] sm:$0xff]
        %v1567 = vld [vmem:[%s292 + $0x23f0] sm:$0xff]
        %v1568 = vld [vmem:[%s292 + $0x23f8] sm:$0xff]
        %v1569 = vld [vmem:[%s292 + $0x2400] sm:$0xff]
        %v1570 = vld [vmem:[%s292 + $0x2408] sm:$0xff]
        %v1571 = vld [vmem:[%s292 + $0x2410] sm:$0xff]
        %v1572 = vld [vmem:[%s292 + $0x2418] sm:$0xff]
        %v1573 = vld [vmem:[%s292 + $0x2420] sm:$0xff]
        %v1574 = vld [vmem:[%s292 + $0x2428] sm:$0xff]
        %v1575 = vld [vmem:[%s292 + $0x2430] sm:$0xff]
        %v1576 = vld [vmem:[%s292 + $0x2438] sm:$0xff]
        %v1577 = vld [vmem:[%s292 + $0x2440] sm:$0xff]
        %v1578 = vld [vmem:[%s292 + $0x2448] sm:$0xff]
        %v1579 = vld [vmem:[%s292 + $0x2450] sm:$0xff]
        %v1580 = vld [vmem:[%s292 + $0x2458] sm:$0xff]
        %v1581 = vld [vmem:[%s292 + $0x2460] sm:$0xff]
        %v1582 = vld [vmem:[%s292 + $0x2468] sm:$0xff]
        %v1583 = vld [vmem:[%s292 + $0x2470] sm:$0xff]
        %v1584 = vld [vmem:[%s292 + $0x2478] sm:$0xff]
        %v1585 = vld [vmem:[%s292 + $0x2480] sm:$0xff]
        %v1586 = vld [vmem:[%s292 + $0x2488] sm:$0xff]
        %v1587 = vld [vmem:[%s292 + $0x2490] sm:$0xff]
        %v1588 = vld [vmem:[%s292 + $0x2498] sm:$0xff]
        %v1589 = vld [vmem:[%s292 + $0x24a0] sm:$0xff]
        %v1590 = vld [vmem:[%s292 + $0x24a8] sm:$0xff]
        %v1591 = vld [vmem:[%s292 + $0x24b0] sm:$0xff]
        %v1592 = vld [vmem:[%s292 + $0x24b8] sm:$0xff]
        %v1593 = vld [vmem:[%s292 + $0x24c0] sm:$0xff]
        %v1594 = vld [vmem:[%s292 + $0x24c8] sm:$0xff]
        %v1595 = vld [vmem:[%s292 + $0x24d0] sm:$0xff]
        %v1596 = vld [vmem:[%s292 + $0x24d8] sm:$0xff]
        %v1597 = vld [vmem:[%s292 + $0x24e0] sm:$0xff]
        %v1598 = vld [vmem:[%s292 + $0x24e8] sm:$0xff]
        %v1599 = vld [vmem:[%s292 + $0x24f0] sm:$0xff]
        %v1600 = vld [vmem:[%s292 + $0x24f8] sm:$0xff]
        %v1601 = vld [vmem:[%s292 + $0x2500] sm:$0xff]
        %v1602 = vld [vmem:[%s292 + $0x2508] sm:$0xff]
        %v1603 = vld [vmem:[%s292 + $0x2510] sm:$0xff]
        %v1604 = vld [vmem:[%s292 + $0x2518] sm:$0xff]
        %v1605 = vld [vmem:[%s292 + $0x2520] sm:$0xff]
        %v1606 = vld [vmem:[%s292 + $0x2528] sm:$0xff]
        %v1607 = vld [vmem:[%s292 + $0x2530] sm:$0xff]
        %v1608 = vld [vmem:[%s292 + $0x2538] sm:$0xff]
        %v1609 = vld [vmem:[%s292 + $0x2540] sm:$0xff]
        %v1610 = vld [vmem:[%s292 + $0x2548] sm:$0xff]
        %v1611 = vld [vmem:[%s292 + $0x2550] sm:$0xff]
        %v1612 = vld [vmem:[%s292 + $0x2558] sm:$0xff]
        %v1613 = vld [vmem:[%s292 + $0x2560] sm:$0xff]
        %v1614 = vld [vmem:[%s292 + $0x2568] sm:$0xff]
        %v1615 = vld [vmem:[%s292 + $0x2570] sm:$0xff]
        %v1616 = vld [vmem:[%s292 + $0x2578] sm:$0xff]
        %v1617 = vld [vmem:[%s292 + $0x2580] sm:$0xff]
        %v1618 = vld [vmem:[%s292 + $0x2588] sm:$0xff]
        %v1619 = vld [vmem:[%s292 + $0x2590] sm:$0xff]
        %v1620 = vld [vmem:[%s292 + $0x2598] sm:$0xff]
        %v1621 = vld [vmem:[%s292 + $0x25a0] sm:$0xff]
        %v1622 = vld [vmem:[%s292 + $0x25a8] sm:$0xff]
        %v1623 = vld [vmem:[%s292 + $0x25b0] sm:$0xff]
        %v1624 = vld [vmem:[%s292 + $0x25b8] sm:$0xff]
        %v1625 = vld [vmem:[%s292 + $0x25c0] sm:$0xff]
        %v1626 = vld [vmem:[%s292 + $0x25c8] sm:$0xff]
        %v1627 = vld [vmem:[%s292 + $0x25d0] sm:$0xff]
        %v1628 = vld [vmem:[%s292 + $0x25d8] sm:$0xff]
        %v1629 = vld [vmem:[%s292 + $0x25e0] sm:$0xff]
        %v1630 = vld [vmem:[%s292 + $0x25e8] sm:$0xff]
        %v1631 = vld [vmem:[%s292 + $0x25f0] sm:$0xff]
        %v1632 = vld [vmem:[%s292 + $0x25f8] sm:$0xff]
        %v1633 = vld [vmem:[%s292 + $0x2600] sm:$0xff]
        %v1634 = vld [vmem:[%s292 + $0x2608] sm:$0xff]
        %v1635 = vld [vmem:[%s292 + $0x2610] sm:$0xff]
        %v1636 = vld [vmem:[%s292 + $0x2618] sm:$0xff]
        %v1637 = vld [vmem:[%s292 + $0x2620] sm:$0xff]
        %v1638 = vld [vmem:[%s292 + $0x2628] sm:$0xff]
        %v1639 = vld [vmem:[%s292 + $0x2630] sm:$0xff]
        %v1640 = vld [vmem:[%s292 + $0x2638] sm:$0xff]
        %v1641 = vld [vmem:[%s292 + $0x2640] sm:$0xff]
        %v1642 = vld [vmem:[%s292 + $0x2648] sm:$0xff]
        %v1643 = vld [vmem:[%s292 + $0x2650] sm:$0xff]
        %v1644 = vld [vmem:[%s292 + $0x2658] sm:$0xff]
        %v1645 = vld [vmem:[%s292 + $0x2660] sm:$0xff]
        %v1646 = vld [vmem:[%s292 + $0x2668] sm:$0xff]
        %v1647 = vld [vmem:[%s292 + $0x2670] sm:$0xff]
        %v1648 = vld [vmem:[%s292 + $0x2678] sm:$0xff]
        %v1649 = vld [vmem:[%s292 + $0x2680] sm:$0xff]
        %v1650 = vld [vmem:[%s292 + $0x2688] sm:$0xff]
        %v1651 = vld [vmem:[%s292 + $0x2690] sm:$0xff]
        %v1652 = vld [vmem:[%s292 + $0x2698] sm:$0xff]
        %v1653 = vld [vmem:[%s292 + $0x26a0] sm:$0xff]
        %v1654 = vld [vmem:[%s292 + $0x26a8] sm:$0xff]
        %v1655 = vld [vmem:[%s292 + $0x26b0] sm:$0xff]
        %v1656 = vld [vmem:[%s292 + $0x26b8] sm:$0xff]
        %v1657 = vld [vmem:[%s292 + $0x26c0] sm:$0xff]
        %v1658 = vld [vmem:[%s292 + $0x26c8] sm:$0xff]
        %v1659 = vld [vmem:[%s292 + $0x26d0] sm:$0xff]
        %v1660 = vld [vmem:[%s292 + $0x26d8] sm:$0xff]
        %v1661 = vld [vmem:[%s292 + $0x26e0] sm:$0xff]
        %v1662 = vld [vmem:[%s292 + $0x26e8] sm:$0xff]
        %v1663 = vld [vmem:[%s292 + $0x26f0] sm:$0xff]
        %v1664 = vld [vmem:[%s292 + $0x26f8] sm:$0xff]
        %v1665 = vld [vmem:[%s292 + $0x2700] sm:$0xff]
        %v1666 = vld [vmem:[%s292 + $0x2708] sm:$0xff]
        %v1667 = vld [vmem:[%s292 + $0x2710] sm:$0xff]
        %v1668 = vld [vmem:[%s292 + $0x2718] sm:$0xff]
        %v1669 = vld [vmem:[%s292 + $0x2720] sm:$0xff]
        %v1670 = vld [vmem:[%s292 + $0x2728] sm:$0xff]
        %v1671 = vld [vmem:[%s292 + $0x2730] sm:$0xff]
        %v1672 = vld [vmem:[%s292 + $0x2738] sm:$0xff]
        %v1673 = vld [vmem:[%s292 + $0x2740] sm:$0xff]
        %v1674 = vld [vmem:[%s292 + $0x2748] sm:$0xff]
        %v1675 = vld [vmem:[%s292 + $0x2750] sm:$0xff]
        %v1676 = vld [vmem:[%s292 + $0x2758] sm:$0xff]
        %v1677 = vld [vmem:[%s292 + $0x2760] sm:$0xff]
        %v1678 = vld [vmem:[%s292 + $0x2768] sm:$0xff]
        %v1679 = vld [vmem:[%s292 + $0x2770] sm:$0xff]
        %v1680 = vld [vmem:[%s292 + $0x2778] sm:$0xff]
        %v1681 = vld [vmem:[%s292 + $0x2780] sm:$0xff]
        %v1682 = vld [vmem:[%s292 + $0x2788] sm:$0xff]
        %v1683 = vld [vmem:[%s292 + $0x2790] sm:$0xff]
        %v1684 = vld [vmem:[%s292 + $0x2798] sm:$0xff]
        %v1685 = vld [vmem:[%s292 + $0x27a0] sm:$0xff]
        %v1686 = vld [vmem:[%s292 + $0x27a8] sm:$0xff]
        %v1687 = vld [vmem:[%s292 + $0x27b0] sm:$0xff]
        %v1688 = vld [vmem:[%s292 + $0x27b8] sm:$0xff]
        %v1689 = vld [vmem:[%s292 + $0x27c0] sm:$0xff]
        %v1690 = vld [vmem:[%s292 + $0x27c8] sm:$0xff]
        %v1691 = vld [vmem:[%s292 + $0x27d0] sm:$0xff]
        %v1692 = vld [vmem:[%s292 + $0x27d8] sm:$0xff]
        %v1693 = vld [vmem:[%s292 + $0x27e0] sm:$0xff]
        %v1694 = vld [vmem:[%s292 + $0x27e8] sm:$0xff]
        %v1695 = vld [vmem:[%s292 + $0x27f0] sm:$0xff]
        %v1696 = vld [vmem:[%s292 + $0x27f8] sm:$0xff]
        %v1697 = vld [vmem:[%s292 + $0x2800] sm:$0xff]
        %v1698 = vld [vmem:[%s292 + $0x2808] sm:$0xff]
        %v1699 = vld [vmem:[%s292 + $0x2810] sm:$0xff]
        %v1700 = vld [vmem:[%s292 + $0x2818] sm:$0xff]
        %v1701 = vld [vmem:[%s292 + $0x2820] sm:$0xff]
        %v1702 = vld [vmem:[%s292 + $0x2828] sm:$0xff]
        %v1703 = vld [vmem:[%s292 + $0x2830] sm:$0xff]
        %v1704 = vld [vmem:[%s292 + $0x2838] sm:$0xff]
        %v1705 = vld [vmem:[%s292 + $0x2840] sm:$0xff]
        %v1706 = vld [vmem:[%s292 + $0x2848] sm:$0xff]
        %v1707 = vld [vmem:[%s292 + $0x2850] sm:$0xff]
        %v1708 = vld [vmem:[%s292 + $0x2858] sm:$0xff]
        %v1709 = vld [vmem:[%s292 + $0x2860] sm:$0xff]
        %v1710 = vld [vmem:[%s292 + $0x2868] sm:$0xff]
        %v1711 = vld [vmem:[%s292 + $0x2870] sm:$0xff]
        %v1712 = vld [vmem:[%s292 + $0x2878] sm:$0xff]
        %v1713 = vld [vmem:[%s292 + $0x2880] sm:$0xff]
        %v1714 = vld [vmem:[%s292 + $0x2888] sm:$0xff]
        %v1715 = vld [vmem:[%s292 + $0x2890] sm:$0xff]
        %v1716 = vld [vmem:[%s292 + $0x2898] sm:$0xff]
        %v1717 = vld [vmem:[%s292 + $0x28a0] sm:$0xff]
        %v1718 = vld [vmem:[%s292 + $0x28a8] sm:$0xff]
        %v1719 = vld [vmem:[%s292 + $0x28b0] sm:$0xff]
        %v1720 = vld [vmem:[%s292 + $0x28b8] sm:$0xff]
        %v1721 = vld [vmem:[%s292 + $0x28c0] sm:$0xff]
        %v1722 = vld [vmem:[%s292 + $0x28c8] sm:$0xff]
        %v1723 = vld [vmem:[%s292 + $0x28d0] sm:$0xff]
        %v1724 = vld [vmem:[%s292 + $0x28d8] sm:$0xff]
        %v1725 = vld [vmem:[%s292 + $0x28e0] sm:$0xff]
        %v1726 = vld [vmem:[%s292 + $0x28e8] sm:$0xff]
        %v1727 = vld [vmem:[%s292 + $0x28f0] sm:$0xff]
        %v1728 = vld [vmem:[%s292 + $0x28f8] sm:$0xff]
        %v1729 = vld [vmem:[%s292 + $0x2900] sm:$0xff]
        %v1730 = vld [vmem:[%s292 + $0x2908] sm:$0xff]
        %v1731 = vld [vmem:[%s292 + $0x2910] sm:$0xff]
        %v1732 = vld [vmem:[%s292 + $0x2918] sm:$0xff]
        %v1733 = vld [vmem:[%s292 + $0x2920] sm:$0xff]
        %v1734 = vld [vmem:[%s292 + $0x2928] sm:$0xff]
        %v1735 = vld [vmem:[%s292 + $0x2930] sm:$0xff]
        %v1736 = vld [vmem:[%s292 + $0x2938] sm:$0xff]
        %v1737 = vld [vmem:[%s292 + $0x2940] sm:$0xff]
        %v1738 = vld [vmem:[%s292 + $0x2948] sm:$0xff]
        %v1739 = vld [vmem:[%s292 + $0x2950] sm:$0xff]
        %v1740 = vld [vmem:[%s292 + $0x2958] sm:$0xff]
        %v1741 = vld [vmem:[%s292 + $0x2960] sm:$0xff]
        %v1742 = vld [vmem:[%s292 + $0x2968] sm:$0xff]
        %v1743 = vld [vmem:[%s292 + $0x2970] sm:$0xff]
        %v1744 = vld [vmem:[%s292 + $0x2978] sm:$0xff]
        %v1745 = vld [vmem:[%s292 + $0x2980] sm:$0xff]
        %v1746 = vld [vmem:[%s292 + $0x2988] sm:$0xff]
        %v1747 = vld [vmem:[%s292 + $0x2990] sm:$0xff]
        %v1748 = vld [vmem:[%s292 + $0x2998] sm:$0xff]
        %v1749 = vld [vmem:[%s292 + $0x29a0] sm:$0xff]
        %v1750 = vld [vmem:[%s292 + $0x29a8] sm:$0xff]
        %v1751 = vld [vmem:[%s292 + $0x29b0] sm:$0xff]
        %v1752 = vld [vmem:[%s292 + $0x29b8] sm:$0xff]
        %v1753 = vld [vmem:[%s292 + $0x29c0] sm:$0xff]
        %v1754 = vld [vmem:[%s292 + $0x29c8] sm:$0xff]
        %v1755 = vld [vmem:[%s292 + $0x29d0] sm:$0xff]
        %v1756 = vld [vmem:[%s292 + $0x29d8] sm:$0xff]
        %v1757 = vld [vmem:[%s292 + $0x29e0] sm:$0xff]
        %v1758 = vld [vmem:[%s292 + $0x29e8] sm:$0xff]
        %v1759 = vld [vmem:[%s292 + $0x29f0] sm:$0xff]
        %v1760 = vld [vmem:[%s292 + $0x29f8] sm:$0xff]
        %v1761 = vld [vmem:[%s292 + $0x2a00] sm:$0xff]
        %v1762 = vld [vmem:[%s292 + $0x2a08] sm:$0xff]
        %v1763 = vld [vmem:[%s292 + $0x2a10] sm:$0xff]
        %v1764 = vld [vmem:[%s292 + $0x2a18] sm:$0xff]
        %v1765 = vld [vmem:[%s292 + $0x2a20] sm:$0xff]
        %v1766 = vld [vmem:[%s292 + $0x2a28] sm:$0xff]
        %v1767 = vld [vmem:[%s292 + $0x2a30] sm:$0xff]
        %v1768 = vld [vmem:[%s292 + $0x2a38] sm:$0xff]
        %v1769 = vld [vmem:[%s292 + $0x2a40] sm:$0xff]
        %v1770 = vld [vmem:[%s292 + $0x2a48] sm:$0xff]
        %v1771 = vld [vmem:[%s292 + $0x2a50] sm:$0xff]
        %v1772 = vld [vmem:[%s292 + $0x2a58] sm:$0xff]
        %v1773 = vld [vmem:[%s292 + $0x2a60] sm:$0xff]
        %v1774 = vld [vmem:[%s292 + $0x2a68] sm:$0xff]
        %v1775 = vld [vmem:[%s292 + $0x2a70] sm:$0xff]
        %v1776 = vld [vmem:[%s292 + $0x2a78] sm:$0xff]
        %v1777 = vld [vmem:[%s292 + $0x2a80] sm:$0xff]
        %v1778 = vld [vmem:[%s292 + $0x2a88] sm:$0xff]
        %v1779 = vld [vmem:[%s292 + $0x2a90] sm:$0xff]
        %v1780 = vld [vmem:[%s292 + $0x2a98] sm:$0xff]
        %v1781 = vld [vmem:[%s292 + $0x2aa0] sm:$0xff]
        %v1782 = vld [vmem:[%s292 + $0x2aa8] sm:$0xff]
        %v1783 = vld [vmem:[%s292 + $0x2ab0] sm:$0xff]
        %v1784 = vld [vmem:[%s292 + $0x2ab8] sm:$0xff]
        %v1785 = vld [vmem:[%s292 + $0x2ac0] sm:$0xff]
        %v1786 = vld [vmem:[%s292 + $0x2ac8] sm:$0xff]
        %v1787 = vld [vmem:[%s292 + $0x2ad0] sm:$0xff]
        %v1788 = vld [vmem:[%s292 + $0x2ad8] sm:$0xff]
        %v1789 = vld [vmem:[%s292 + $0x2ae0] sm:$0xff]
        %v1790 = vld [vmem:[%s292 + $0x2ae8] sm:$0xff]
        %v1791 = vld [vmem:[%s292 + $0x2af0] sm:$0xff]
        %v1792 = vld [vmem:[%s292 + $0x2af8] sm:$0xff]
        %v1793 = vld [vmem:[%s292 + $0x2b00] sm:$0xff]
        %v1794 = vld [vmem:[%s292 + $0x2b08] sm:$0xff]
        %v1795 = vld [vmem:[%s292 + $0x2b10] sm:$0xff]
        %v1796 = vld [vmem:[%s292 + $0x2b18] sm:$0xff]
        %v1797 = vld [vmem:[%s292 + $0x2b20] sm:$0xff]
        %v1798 = vld [vmem:[%s292 + $0x2b28] sm:$0xff]
        %v1799 = vld [vmem:[%s292 + $0x2b30] sm:$0xff]
        %v1800 = vld [vmem:[%s292 + $0x2b38] sm:$0xff]
        %v1801 = vld [vmem:[%s292 + $0x2b40] sm:$0xff]
        %v1802 = vld [vmem:[%s292 + $0x2b48] sm:$0xff]
        %v1803 = vld [vmem:[%s292 + $0x2b50] sm:$0xff]
        %v1804 = vld [vmem:[%s292 + $0x2b58] sm:$0xff]
        %v1805 = vld [vmem:[%s292 + $0x2b60] sm:$0xff]
        %v1806 = vld [vmem:[%s292 + $0x2b68] sm:$0xff]
        %v1807 = vld [vmem:[%s292 + $0x2b70] sm:$0xff]
        %v1808 = vld [vmem:[%s292 + $0x2b78] sm:$0xff]
        %v1809 = vld [vmem:[%s292 + $0x2b80] sm:$0xff]
        %v1810 = vld [vmem:[%s292 + $0x2b88] sm:$0xff]
        %v1811 = vld [vmem:[%s292 + $0x2b90] sm:$0xff]
        %v1812 = vld [vmem:[%s292 + $0x2b98] sm:$0xff]
        %v1813 = vld [vmem:[%s292 + $0x2ba0] sm:$0xff]
        %v1814 = vld [vmem:[%s292 + $0x2ba8] sm:$0xff]
        %v1815 = vld [vmem:[%s292 + $0x2bb0] sm:$0xff]
        %v1816 = vld [vmem:[%s292 + $0x2bb8] sm:$0xff]
        %v1817 = vld [vmem:[%s292 + $0x2bc0] sm:$0xff]
        %v1818 = vld [vmem:[%s292 + $0x2bc8] sm:$0xff]
        %v1819 = vld [vmem:[%s292 + $0x2bd0] sm:$0xff]
        %v1820 = vld [vmem:[%s292 + $0x2bd8] sm:$0xff]
        %v1821 = vld [vmem:[%s292 + $0x2be0] sm:$0xff]
        %v1822 = vld [vmem:[%s292 + $0x2be8] sm:$0xff]
        %v1823 = vld [vmem:[%s292 + $0x2bf0] sm:$0xff]
        %v1824 = vld [vmem:[%s292 + $0x2bf8] sm:$0xff]
        %v1825 = vld [vmem:[%s292 + $0x2c00] sm:$0xff]
        %v1826 = vld [vmem:[%s292 + $0x2c08] sm:$0xff]
        %v1827 = vld [vmem:[%s292 + $0x2c10] sm:$0xff]
        %v1828 = vld [vmem:[%s292 + $0x2c18] sm:$0xff]
        %v1829 = vld [vmem:[%s292 + $0x2c20] sm:$0xff]
        %v1830 = vld [vmem:[%s292 + $0x2c28] sm:$0xff]
        %v1831 = vld [vmem:[%s292 + $0x2c30] sm:$0xff]
        %v1832 = vld [vmem:[%s292 + $0x2c38] sm:$0xff]
        %v1833 = vld [vmem:[%s292 + $0x2c40] sm:$0xff]
        %v1834 = vld [vmem:[%s292 + $0x2c48] sm:$0xff]
        %v1835 = vld [vmem:[%s292 + $0x2c50] sm:$0xff]
        %v1836 = vld [vmem:[%s292 + $0x2c58] sm:$0xff]
        %v1837 = vld [vmem:[%s292 + $0x2c60] sm:$0xff]
        %v1838 = vld [vmem:[%s292 + $0x2c68] sm:$0xff]
        %v1839 = vld [vmem:[%s292 + $0x2c70] sm:$0xff]
        %v1840 = vld [vmem:[%s292 + $0x2c78] sm:$0xff]
        %v1841 = vld [vmem:[%s292 + $0x2c80] sm:$0xff]
        %v1842 = vld [vmem:[%s292 + $0x2c88] sm:$0xff]
        %v1843 = vld [vmem:[%s292 + $0x2c90] sm:$0xff]
        %v1844 = vld [vmem:[%s292 + $0x2c98] sm:$0xff]
        %v1845 = vld [vmem:[%s292 + $0x2ca0] sm:$0xff]
        %v1846 = vld [vmem:[%s292 + $0x2ca8] sm:$0xff]
        %v1847 = vld [vmem:[%s292 + $0x2cb0] sm:$0xff]
        %v1848 = vld [vmem:[%s292 + $0x2cb8] sm:$0xff]
        %v1849 = vld [vmem:[%s292 + $0x2cc0] sm:$0xff]
        %v1850 = vld [vmem:[%s292 + $0x2cc8] sm:$0xff]
        %v1851 = vld [vmem:[%s292 + $0x2cd0] sm:$0xff]
        %v1852 = vld [vmem:[%s292 + $0x2cd8] sm:$0xff]
        %v1853 = vld [vmem:[%s292 + $0x2ce0] sm:$0xff]
        %v1854 = vld [vmem:[%s292 + $0x2ce8] sm:$0xff]
        %v1855 = vld [vmem:[%s292 + $0x2cf0] sm:$0xff]
        %v1856 = vld [vmem:[%s292 + $0x2cf8] sm:$0xff]
        %v1857 = vld [vmem:[%s292 + $0x2d00] sm:$0xff]
        %v1858 = vld [vmem:[%s292 + $0x2d08] sm:$0xff]
        %v1859 = vld [vmem:[%s292 + $0x2d10] sm:$0xff]
        %v1860 = vld [vmem:[%s292 + $0x2d18] sm:$0xff]
        %v1861 = vld [vmem:[%s292 + $0x2d20] sm:$0xff]
        %v1862 = vld [vmem:[%s292 + $0x2d28] sm:$0xff]
        %v1863 = vld [vmem:[%s292 + $0x2d30] sm:$0xff]
        %v1864 = vld [vmem:[%s292 + $0x2d38] sm:$0xff]
        %v1865 = vld [vmem:[%s292 + $0x2d40] sm:$0xff]
        %v1866 = vld [vmem:[%s292 + $0x2d48] sm:$0xff]
        %v1867 = vld [vmem:[%s292 + $0x2d50] sm:$0xff]
        %v1868 = vld [vmem:[%s292 + $0x2d58] sm:$0xff]
        %v1869 = vld [vmem:[%s292 + $0x2d60] sm:$0xff]
        %v1870 = vld [vmem:[%s292 + $0x2d68] sm:$0xff]
        %v1871 = vld [vmem:[%s292 + $0x2d70] sm:$0xff]
        %v1872 = vld [vmem:[%s292 + $0x2d78] sm:$0xff]
        %v1873 = vld [vmem:[%s292 + $0x2d80] sm:$0xff]
        %v1874 = vld [vmem:[%s292 + $0x2d88] sm:$0xff]
        %v1875 = vld [vmem:[%s292 + $0x2d90] sm:$0xff]
        %v1876 = vld [vmem:[%s292 + $0x2d98] sm:$0xff]
        %v1877 = vld [vmem:[%s292 + $0x2da0] sm:$0xff]
        %v1878 = vld [vmem:[%s292 + $0x2da8] sm:$0xff]
        %v1879 = vld [vmem:[%s292 + $0x2db0] sm:$0xff]
        %v1880 = vld [vmem:[%s292 + $0x2db8] sm:$0xff]
        %v1881 = vld [vmem:[%s292 + $0x2dc0] sm:$0xff]
        %v1882 = vld [vmem:[%s292 + $0x2dc8] sm:$0xff]
        %v1883 = vld [vmem:[%s292 + $0x2dd0] sm:$0xff]
        %v1884 = vld [vmem:[%s292 + $0x2dd8] sm:$0xff]
        %v1885 = vld [vmem:[%s292 + $0x2de0] sm:$0xff]
        %v1886 = vld [vmem:[%s292 + $0x2de8] sm:$0xff]
        %v1887 = vld [vmem:[%s292 + $0x2df0] sm:$0xff]
        %v1888 = vld [vmem:[%s292 + $0x2df8] sm:$0xff]
        %v1889 = vld [vmem:[%s292 + $0x2e00] sm:$0xff]
        %v1890 = vld [vmem:[%s292 + $0x2e08] sm:$0xff]
        %v1891 = vld [vmem:[%s292 + $0x2e10] sm:$0xff]
        %v1892 = vld [vmem:[%s292 + $0x2e18] sm:$0xff]
        %v1893 = vld [vmem:[%s292 + $0x2e20] sm:$0xff]
        %v1894 = vld [vmem:[%s292 + $0x2e28] sm:$0xff]
        %v1895 = vld [vmem:[%s292 + $0x2e30] sm:$0xff]
        %v1896 = vld [vmem:[%s292 + $0x2e38] sm:$0xff]
        %v1897 = vld [vmem:[%s292 + $0x2e40] sm:$0xff]
        %v1898 = vld [vmem:[%s292 + $0x2e48] sm:$0xff]
        %v1899 = vld [vmem:[%s292 + $0x2e50] sm:$0xff]
        %v1900 = vld [vmem:[%s292 + $0x2e58] sm:$0xff]
        %v1901 = vld [vmem:[%s292 + $0x2e60] sm:$0xff]
        %v1902 = vld [vmem:[%s292 + $0x2e68] sm:$0xff]
        %v1903 = vld [vmem:[%s292 + $0x2e70] sm:$0xff]
        %v1904 = vld [vmem:[%s292 + $0x2e78] sm:$0xff]
        %v1905 = vld [vmem:[%s292 + $0x2e80] sm:$0xff]
        %v1906 = vld [vmem:[%s292 + $0x2e88] sm:$0xff]
        %v1907 = vld [vmem:[%s292 + $0x2e90] sm:$0xff]
        %v1908 = vld [vmem:[%s292 + $0x2e98] sm:$0xff]
        %v1909 = vld [vmem:[%s292 + $0x2ea0] sm:$0xff]
        %v1910 = vld [vmem:[%s292 + $0x2ea8] sm:$0xff]
        %v1911 = vld [vmem:[%s292 + $0x2eb0] sm:$0xff]
        %v1912 = vld [vmem:[%s292 + $0x2eb8] sm:$0xff]
        %v1913 = vld [vmem:[%s292 + $0x2ec0] sm:$0xff]
        %v1914 = vld [vmem:[%s292 + $0x2ec8] sm:$0xff]
        %v1915 = vld [vmem:[%s292 + $0x2ed0] sm:$0xff]
        %v1916 = vld [vmem:[%s292 + $0x2ed8] sm:$0xff]
        %v1917 = vld [vmem:[%s292 + $0x2ee0] sm:$0xff]
        %v1918 = vld [vmem:[%s292 + $0x2ee8] sm:$0xff]
        %v1919 = vld [vmem:[%s292 + $0x2ef0] sm:$0xff]
        %v1920 = vld [vmem:[%s292 + $0x2ef8] sm:$0xff]
        %v1921 = vld [vmem:[%s292 + $0x2f00] sm:$0xff]
        %v1922 = vld [vmem:[%s292 + $0x2f08] sm:$0xff]
        %v1923 = vld [vmem:[%s292 + $0x2f10] sm:$0xff]
        %v1924 = vld [vmem:[%s292 + $0x2f18] sm:$0xff]
        %v1925 = vld [vmem:[%s292 + $0x2f20] sm:$0xff]
        %v1926 = vld [vmem:[%s292 + $0x2f28] sm:$0xff]
        %v1927 = vld [vmem:[%s292 + $0x2f30] sm:$0xff]
        %v1928 = vld [vmem:[%s292 + $0x2f38] sm:$0xff]
        %v1929 = vld [vmem:[%s292 + $0x2f40] sm:$0xff]
        %v1930 = vld [vmem:[%s292 + $0x2f48] sm:$0xff]
        %v1931 = vld [vmem:[%s292 + $0x2f50] sm:$0xff]
        %v1932 = vld [vmem:[%s292 + $0x2f58] sm:$0xff]
        %v1933 = vld [vmem:[%s292 + $0x2f60] sm:$0xff]
        %v1934 = vld [vmem:[%s292 + $0x2f68] sm:$0xff]
        %v1935 = vld [vmem:[%s292 + $0x2f70] sm:$0xff]
        %v1936 = vld [vmem:[%s292 + $0x2f78] sm:$0xff]
        %v1937 = vld [vmem:[%s292 + $0x2f80] sm:$0xff]
        %v1938 = vld [vmem:[%s292 + $0x2f88] sm:$0xff]
        %v1939 = vld [vmem:[%s292 + $0x2f90] sm:$0xff]
        %v1940 = vld [vmem:[%s292 + $0x2f98] sm:$0xff]
        %v1941 = vld [vmem:[%s292 + $0x2fa0] sm:$0xff]
        %v1942 = vld [vmem:[%s292 + $0x2fa8] sm:$0xff]
        %v1943 = vld [vmem:[%s292 + $0x2fb0] sm:$0xff]
        %v1944 = vld [vmem:[%s292 + $0x2fb8] sm:$0xff]
        %v1945 = vld [vmem:[%s292 + $0x2fc0] sm:$0xff]
        %v1946 = vld [vmem:[%s292 + $0x2fc8] sm:$0xff]
        %v1947 = vld [vmem:[%s292 + $0x2fd0] sm:$0xff]
        %v1948 = vld [vmem:[%s292 + $0x2fd8] sm:$0xff]
        %v1949 = vld [vmem:[%s292 + $0x2fe0] sm:$0xff]
        %v1950 = vld [vmem:[%s292 + $0x2fe8] sm:$0xff]
        %v1951 = vld [vmem:[%s292 + $0x2ff0] sm:$0xff]
        %v1952 = vld [vmem:[%s292 + $0x2ff8] sm:$0xff]
        %v1953 = vld [vmem:[%s292 + $0x3000] sm:$0xff]
        %v1954 = vld [vmem:[%s292 + $0x3008] sm:$0xff]
        %v1955 = vld [vmem:[%s292 + $0x3010] sm:$0xff]
        %v1956 = vld [vmem:[%s292 + $0x3018] sm:$0xff]
        %v1957 = vld [vmem:[%s292 + $0x3020] sm:$0xff]
        %v1958 = vld [vmem:[%s292 + $0x3028] sm:$0xff]
        %v1959 = vld [vmem:[%s292 + $0x3030] sm:$0xff]
        %v1960 = vld [vmem:[%s292 + $0x3038] sm:$0xff]
        %v1961 = vld [vmem:[%s292 + $0x3040] sm:$0xff]
        %v1962 = vld [vmem:[%s292 + $0x3048] sm:$0xff]
        %v1963 = vld [vmem:[%s292 + $0x3050] sm:$0xff]
        %v1964 = vld [vmem:[%s292 + $0x3058] sm:$0xff]
        %v1965 = vld [vmem:[%s292 + $0x3060] sm:$0xff]
        %v1966 = vld [vmem:[%s292 + $0x3068] sm:$0xff]
        %v1967 = vld [vmem:[%s292 + $0x3070] sm:$0xff]
        %v1968 = vld [vmem:[%s292 + $0x3078] sm:$0xff]
        %v1969 = vld [vmem:[%s292 + $0x3080] sm:$0xff]
        %v1970 = vld [vmem:[%s292 + $0x3088] sm:$0xff]
        %v1971 = vld [vmem:[%s292 + $0x3090] sm:$0xff]
        %v1972 = vld [vmem:[%s292 + $0x3098] sm:$0xff]
        %v1973 = vld [vmem:[%s292 + $0x30a0] sm:$0xff]
        %v1974 = vld [vmem:[%s292 + $0x30a8] sm:$0xff]
        %v1975 = vld [vmem:[%s292 + $0x30b0] sm:$0xff]
        %v1976 = vld [vmem:[%s292 + $0x30b8] sm:$0xff]
        %v1977 = vld [vmem:[%s292 + $0x30c0] sm:$0xff]
        %v1978 = vld [vmem:[%s292 + $0x30c8] sm:$0xff]
        %v1979 = vld [vmem:[%s292 + $0x30d0] sm:$0xff]
        %v1980 = vld [vmem:[%s292 + $0x30d8] sm:$0xff]
        %v1981 = vld [vmem:[%s292 + $0x30e0] sm:$0xff]
        %v1982 = vld [vmem:[%s292 + $0x30e8] sm:$0xff]
        %v1983 = vld [vmem:[%s292 + $0x30f0] sm:$0xff]
        %v1984 = vld [vmem:[%s292 + $0x30f8] sm:$0xff]
        %v1985 = vld [vmem:[%s292 + $0x3100] sm:$0xff]
        %v1986 = vld [vmem:[%s292 + $0x3108] sm:$0xff]
        %v1987 = vld [vmem:[%s292 + $0x3110] sm:$0xff]
        %v1988 = vld [vmem:[%s292 + $0x3118] sm:$0xff]
        %v1989 = vld [vmem:[%s292 + $0x3120] sm:$0xff]
        %v1990 = vld [vmem:[%s292 + $0x3128] sm:$0xff]
        %v1991 = vld [vmem:[%s292 + $0x3130] sm:$0xff]
        %v1992 = vld [vmem:[%s292 + $0x3138] sm:$0xff]
        %v1993 = vld [vmem:[%s292 + $0x3140] sm:$0xff]
        %v1994 = vld [vmem:[%s292 + $0x3148] sm:$0xff]
        %v1995 = vld [vmem:[%s292 + $0x3150] sm:$0xff]
        %v1996 = vld [vmem:[%s292 + $0x3158] sm:$0xff]
        %v1997 = vld [vmem:[%s292 + $0x3160] sm:$0xff]
        %v1998 = vld [vmem:[%s292 + $0x3168] sm:$0xff]
        %v1999 = vld [vmem:[%s292 + $0x3170] sm:$0xff]
        %v2000 = vld [vmem:[%s292 + $0x3178] sm:$0xff]
        %v2001 = vld [vmem:[%s292 + $0x3180] sm:$0xff]
        %v2002 = vld [vmem:[%s292 + $0x3188] sm:$0xff]
        %v2003 = vld [vmem:[%s292 + $0x3190] sm:$0xff]
        %v2004 = vld [vmem:[%s292 + $0x3198] sm:$0xff]
        %v2005 = vld [vmem:[%s292 + $0x31a0] sm:$0xff]
        %v2006 = vld [vmem:[%s292 + $0x31a8] sm:$0xff]
        %v2007 = vld [vmem:[%s292 + $0x31b0] sm:$0xff]
        %v2008 = vld [vmem:[%s292 + $0x31b8] sm:$0xff]
        %v2009 = vld [vmem:[%s292 + $0x31c0] sm:$0xff]
        %v2010 = vld [vmem:[%s292 + $0x31c8] sm:$0xff]
        %v2011 = vld [vmem:[%s292 + $0x31d0] sm:$0xff]
        %v2012 = vld [vmem:[%s292 + $0x31d8] sm:$0xff]
        %v2013 = vld [vmem:[%s292 + $0x31e0] sm:$0xff]
        %v2014 = vld [vmem:[%s292 + $0x31e8] sm:$0xff]
        %v2015 = vld [vmem:[%s292 + $0x31f0] sm:$0xff]
        %v2016 = vld [vmem:[%s292 + $0x31f8] sm:$0xff]
        %v2017 = vld [vmem:[%s292 + $0x3200] sm:$0xff]
        %v2018 = vld [vmem:[%s292 + $0x3208] sm:$0xff]
        %v2019 = vld [vmem:[%s292 + $0x3210] sm:$0xff]
        %v2020 = vld [vmem:[%s292 + $0x3218] sm:$0xff]
        %v2021 = vld [vmem:[%s292 + $0x3220] sm:$0xff]
        %v2022 = vld [vmem:[%s292 + $0x3228] sm:$0xff]
        %v2023 = vld [vmem:[%s292 + $0x3230] sm:$0xff]
        %v2024 = vld [vmem:[%s292 + $0x3238] sm:$0xff]
        %v2025 = vld [vmem:[%s292 + $0x3240] sm:$0xff]
        %v2026 = vld [vmem:[%s292 + $0x3248] sm:$0xff]
        %v2027 = vld [vmem:[%s292 + $0x3250] sm:$0xff]
        %v2028 = vld [vmem:[%s292 + $0x3258] sm:$0xff]
        %v2029 = vld [vmem:[%s292 + $0x3260] sm:$0xff]
        %v2030 = vld [vmem:[%s292 + $0x3268] sm:$0xff]
        %v2031 = vld [vmem:[%s292 + $0x3270] sm:$0xff]
        %v2032 = vld [vmem:[%s292 + $0x3278] sm:$0xff]
        %v2033 = vld [vmem:[%s292 + $0x3280] sm:$0xff]
        %v2034 = vld [vmem:[%s292 + $0x3288] sm:$0xff]
        %v2035 = vld [vmem:[%s292 + $0x3290] sm:$0xff]
        %v2036 = vld [vmem:[%s292 + $0x3298] sm:$0xff]
        %v2037 = vld [vmem:[%s292 + $0x32a0] sm:$0xff]
        %v2038 = vld [vmem:[%s292 + $0x32a8] sm:$0xff]
        %v2039 = vld [vmem:[%s292 + $0x32b0] sm:$0xff]
        %v2040 = vld [vmem:[%s292 + $0x32b8] sm:$0xff]
        %v2041 = vld [vmem:[%s292 + $0x32c0] sm:$0xff]
        %v2042 = vld [vmem:[%s292 + $0x32c8] sm:$0xff]
        %v2043 = vld [vmem:[%s292 + $0x32d0] sm:$0xff]
        %v2044 = vld [vmem:[%s292 + $0x32d8] sm:$0xff]
        %v2045 = vld [vmem:[%s292 + $0x32e0] sm:$0xff]
        %v2046 = vld [vmem:[%s292 + $0x32e8] sm:$0xff]
        %v2047 = vld [vmem:[%s292 + $0x32f0] sm:$0xff]
        %v2048 = vld [vmem:[%s292 + $0x32f8] sm:$0xff]
        %v2049 = vld [vmem:[%s292 + $0x3300] sm:$0xff]
        %v2050 = vld [vmem:[%s292 + $0x3308] sm:$0xff]
        %v2051 = vld [vmem:[%s292 + $0x3310] sm:$0xff]
        %v2052 = vld [vmem:[%s292 + $0x3318] sm:$0xff]
        %v2053 = vld [vmem:[%s292 + $0x3320] sm:$0xff]
        %v2054 = vld [vmem:[%s292 + $0x3328] sm:$0xff]
        %v2055 = vld [vmem:[%s292 + $0x3330] sm:$0xff]
        %v2056 = vld [vmem:[%s292 + $0x3338] sm:$0xff]
        %v2057 = vld [vmem:[%s292 + $0x3340] sm:$0xff]
        %v2058 = vld [vmem:[%s292 + $0x3348] sm:$0xff]
        %v2059 = vld [vmem:[%s292 + $0x3350] sm:$0xff]
        %v2060 = vld [vmem:[%s292 + $0x3358] sm:$0xff]
        %v2061 = vld [vmem:[%s292 + $0x3360] sm:$0xff]
        %v2062 = vld [vmem:[%s292 + $0x3368] sm:$0xff]
        %v2063 = vld [vmem:[%s292 + $0x3370] sm:$0xff]
        %v2064 = vld [vmem:[%s292 + $0x3378] sm:$0xff]
        %v2065 = vld [vmem:[%s292 + $0x3380] sm:$0xff]
        %v2066 = vld [vmem:[%s292 + $0x3388] sm:$0xff]
        %v2067 = vld [vmem:[%s292 + $0x3390] sm:$0xff]
        %v2068 = vld [vmem:[%s292 + $0x3398] sm:$0xff]
        %v2069 = vld [vmem:[%s292 + $0x33a0] sm:$0xff]
        %v2070 = vld [vmem:[%s292 + $0x33a8] sm:$0xff]
        %v2071 = vld [vmem:[%s292 + $0x33b0] sm:$0xff]
        %v2072 = vld [vmem:[%s292 + $0x33b8] sm:$0xff]
        %v2073 = vld [vmem:[%s292 + $0x33c0] sm:$0xff]
        %v2074 = vld [vmem:[%s292 + $0x33c8] sm:$0xff]
        %v2075 = vld [vmem:[%s292 + $0x33d0] sm:$0xff]
        %v2076 = vld [vmem:[%s292 + $0x33d8] sm:$0xff]
        %v2077 = vld [vmem:[%s292 + $0x33e0] sm:$0xff]
        %v2078 = vld [vmem:[%s292 + $0x33e8] sm:$0xff]
        %v2079 = vld [vmem:[%s292 + $0x33f0] sm:$0xff]
        %v2080 = vld [vmem:[%s292 + $0x33f8] sm:$0xff]
        %v2081 = vld [vmem:[%s292 + $0x3400] sm:$0xff]
        %v2082 = vld [vmem:[%s292 + $0x3408] sm:$0xff]
        %v2083 = vld [vmem:[%s292 + $0x3410] sm:$0xff]
        %v2084 = vld [vmem:[%s292 + $0x3418] sm:$0xff]
        %v2085 = vld [vmem:[%s292 + $0x3420] sm:$0xff]
        %v2086 = vld [vmem:[%s292 + $0x3428] sm:$0xff]
        %v2087 = vld [vmem:[%s292 + $0x3430] sm:$0xff]
        %v2088 = vld [vmem:[%s292 + $0x3438] sm:$0xff]
        %v2089 = vld [vmem:[%s292 + $0x3440] sm:$0xff]
        %v2090 = vld [vmem:[%s292 + $0x3448] sm:$0xff]
        %v2091 = vld [vmem:[%s292 + $0x3450] sm:$0xff]
        %v2092 = vld [vmem:[%s292 + $0x3458] sm:$0xff]
        %v2093 = vld [vmem:[%s292 + $0x3460] sm:$0xff]
        %v2094 = vld [vmem:[%s292 + $0x3468] sm:$0xff]
        %v2095 = vld [vmem:[%s292 + $0x3470] sm:$0xff]
        %v2096 = vld [vmem:[%s292 + $0x3478] sm:$0xff]
        %v2097 = vld [vmem:[%s292 + $0x3480] sm:$0xff]
        %v2098 = vld [vmem:[%s292 + $0x3488] sm:$0xff]
        %v2099 = vld [vmem:[%s292 + $0x3490] sm:$0xff]
        %v2100 = vld [vmem:[%s292 + $0x3498] sm:$0xff]
        %v2101 = vld [vmem:[%s292 + $0x34a0] sm:$0xff]
        %v2102 = vld [vmem:[%s292 + $0x34a8] sm:$0xff]
        %v2103 = vld [vmem:[%s292 + $0x34b0] sm:$0xff]
        %v2104 = vld [vmem:[%s292 + $0x34b8] sm:$0xff]
        %v2105 = vld [vmem:[%s292 + $0x34c0] sm:$0xff]
        %v2106 = vld [vmem:[%s292 + $0x34c8] sm:$0xff]
        %v2107 = vld [vmem:[%s292 + $0x34d0] sm:$0xff]
        %v2108 = vld [vmem:[%s292 + $0x34d8] sm:$0xff]
        %v2109 = vld [vmem:[%s292 + $0x34e0] sm:$0xff]
        %v2110 = vld [vmem:[%s292 + $0x34e8] sm:$0xff]
        %v2111 = vld [vmem:[%s292 + $0x34f0] sm:$0xff]
        %v2112 = vld [vmem:[%s292 + $0x34f8] sm:$0xff]
        %v2113 = vld [vmem:[%s292 + $0x3500] sm:$0xff]
        %v2114 = vld [vmem:[%s292 + $0x3508] sm:$0xff]
        %v2115 = vld [vmem:[%s292 + $0x3510] sm:$0xff]
        %v2116 = vld [vmem:[%s292 + $0x3518] sm:$0xff]
        %v2117 = vld [vmem:[%s292 + $0x3520] sm:$0xff]
        %v2118 = vld [vmem:[%s292 + $0x3528] sm:$0xff]
        %v2119 = vld [vmem:[%s292 + $0x3530] sm:$0xff]
        %v2120 = vld [vmem:[%s292 + $0x3538] sm:$0xff]
        %v2121 = vld [vmem:[%s292 + $0x3540] sm:$0xff]
        %v2122 = vld [vmem:[%s292 + $0x3548] sm:$0xff]
        %v2123 = vld [vmem:[%s292 + $0x3550] sm:$0xff]
        %v2124 = vld [vmem:[%s292 + $0x3558] sm:$0xff]
        %v2125 = vld [vmem:[%s292 + $0x3560] sm:$0xff]
        %v2126 = vld [vmem:[%s292 + $0x3568] sm:$0xff]
        %v2127 = vld [vmem:[%s292 + $0x3570] sm:$0xff]
        %v2128 = vld [vmem:[%s292 + $0x3578] sm:$0xff]
        %v2129 = vld [vmem:[%s292 + $0x3580] sm:$0xff]
        %v2130 = vld [vmem:[%s292 + $0x3588] sm:$0xff]
        %v2131 = vld [vmem:[%s292 + $0x3590] sm:$0xff]
        %v2132 = vld [vmem:[%s292 + $0x3598] sm:$0xff]
        %v2133 = vld [vmem:[%s292 + $0x35a0] sm:$0xff]
        %v2134 = vld [vmem:[%s292 + $0x35a8] sm:$0xff]
        %v2135 = vld [vmem:[%s292 + $0x35b0] sm:$0xff]
        %v2136 = vld [vmem:[%s292 + $0x35b8] sm:$0xff]
        %v2137 = vld [vmem:[%s292 + $0x35c0] sm:$0xff]
        %v2138 = vld [vmem:[%s292 + $0x35c8] sm:$0xff]
        %v2139 = vld [vmem:[%s292 + $0x35d0] sm:$0xff]
        %v2140 = vld [vmem:[%s292 + $0x35d8] sm:$0xff]
        %v2141 = vld [vmem:[%s292 + $0x35e0] sm:$0xff]
        %v2142 = vld [vmem:[%s292 + $0x35e8] sm:$0xff]
        %v2143 = vld [vmem:[%s292 + $0x35f0] sm:$0xff]
        %v2144 = vld [vmem:[%s292 + $0x35f8] sm:$0xff]
        %v2145 = vld [vmem:[%s292 + $0x3600] sm:$0xff]
        %v2146 = vld [vmem:[%s292 + $0x3608] sm:$0xff]
        %v2147 = vld [vmem:[%s292 + $0x3610] sm:$0xff]
        %v2148 = vld [vmem:[%s292 + $0x3618] sm:$0xff]
        %v2149 = vld [vmem:[%s292 + $0x3620] sm:$0xff]
        %v2150 = vld [vmem:[%s292 + $0x3628] sm:$0xff]
        %v2151 = vld [vmem:[%s292 + $0x3630] sm:$0xff]
        %v2152 = vld [vmem:[%s292 + $0x3638] sm:$0xff]
        %v2153 = vld [vmem:[%s292 + $0x3640] sm:$0xff]
        %v2154 = vld [vmem:[%s292 + $0x3648] sm:$0xff]
        %v2155 = vld [vmem:[%s292 + $0x3650] sm:$0xff]
        %v2156 = vld [vmem:[%s292 + $0x3658] sm:$0xff]
        %v2157 = vld [vmem:[%s292 + $0x3660] sm:$0xff]
        %v2158 = vld [vmem:[%s292 + $0x3668] sm:$0xff]
        %v2159 = vld [vmem:[%s292 + $0x3670] sm:$0xff]
        %v2160 = vld [vmem:[%s292 + $0x3678] sm:$0xff]
        %v2161 = vld [vmem:[%s292 + $0x3680] sm:$0xff]
        %v2162 = vld [vmem:[%s292 + $0x3688] sm:$0xff]
        %v2163 = vld [vmem:[%s292 + $0x3690] sm:$0xff]
        %v2164 = vld [vmem:[%s292 + $0x3698] sm:$0xff]
        %v2165 = vld [vmem:[%s292 + $0x36a0] sm:$0xff]
        %v2166 = vld [vmem:[%s292 + $0x36a8] sm:$0xff]
        %v2167 = vld [vmem:[%s292 + $0x36b0] sm:$0xff]
        %v2168 = vld [vmem:[%s292 + $0x36b8] sm:$0xff]
        %v2169 = vld [vmem:[%s292 + $0x36c0] sm:$0xff]
        %v2170 = vld [vmem:[%s292 + $0x36c8] sm:$0xff]
        %v2171 = vld [vmem:[%s292 + $0x36d0] sm:$0xff]
        %v2172 = vld [vmem:[%s292 + $0x36d8] sm:$0xff]
        %v2173 = vld [vmem:[%s292 + $0x36e0] sm:$0xff]
        %v2174 = vld [vmem:[%s292 + $0x36e8] sm:$0xff]
        %v2175 = vld [vmem:[%s292 + $0x36f0] sm:$0xff]
        %v2176 = vld [vmem:[%s292 + $0x36f8] sm:$0xff]
        %v2177 = vld [vmem:[%s292 + $0x3700] sm:$0xff]
        %v2178 = vld [vmem:[%s292 + $0x3708] sm:$0xff]
        %v2179 = vld [vmem:[%s292 + $0x3710] sm:$0xff]
        %v2180 = vld [vmem:[%s292 + $0x3718] sm:$0xff]
        %v2181 = vld [vmem:[%s292 + $0x3720] sm:$0xff]
        %v2182 = vld [vmem:[%s292 + $0x3728] sm:$0xff]
        %v2183 = vld [vmem:[%s292 + $0x3730] sm:$0xff]
        %v2184 = vld [vmem:[%s292 + $0x3738] sm:$0xff]
        %v2185 = vld [vmem:[%s292 + $0x3740] sm:$0xff]
        %v2186 = vld [vmem:[%s292 + $0x3748] sm:$0xff]
        %v2187 = vld [vmem:[%s292 + $0x3750] sm:$0xff]
        %v2188 = vld [vmem:[%s292 + $0x3758] sm:$0xff]
        %v2189 = vld [vmem:[%s292 + $0x3760] sm:$0xff]
        %v2190 = vld [vmem:[%s292 + $0x3768] sm:$0xff]
        %v2191 = vld [vmem:[%s292 + $0x3770] sm:$0xff]
        %v2192 = vld [vmem:[%s292 + $0x3778] sm:$0xff]
        %v2193 = vld [vmem:[%s292 + $0x3780] sm:$0xff]
        %v2194 = vld [vmem:[%s292 + $0x3788] sm:$0xff]
        %v2195 = vld [vmem:[%s292 + $0x3790] sm:$0xff]
        %v2196 = vld [vmem:[%s292 + $0x3798] sm:$0xff]
        %v2197 = vld [vmem:[%s292 + $0x37a0] sm:$0xff]
        %v2198 = vld [vmem:[%s292 + $0x37a8] sm:$0xff]
        %v2199 = vld [vmem:[%s292 + $0x37b0] sm:$0xff]
        %v2200 = vld [vmem:[%s292 + $0x37b8] sm:$0xff]
        %v2201 = vld [vmem:[%s292 + $0x37c0] sm:$0xff]
        %v2202 = vld [vmem:[%s292 + $0x37c8] sm:$0xff]
        %v2203 = vld [vmem:[%s292 + $0x37d0] sm:$0xff]
        %v2204 = vld [vmem:[%s292 + $0x37d8] sm:$0xff]
        %v2205 = vld [vmem:[%s292 + $0x37e0] sm:$0xff]
        %v2206 = vld [vmem:[%s292 + $0x37e8] sm:$0xff]
        %v2207 = vld [vmem:[%s292 + $0x37f0] sm:$0xff]
        %v2208 = vld [vmem:[%s292 + $0x37f8] sm:$0xff]
        %v2209 = vld [vmem:[%s292 + $0x3800] sm:$0xff]
        %v2210 = vld [vmem:[%s292 + $0x3808] sm:$0xff]
        %v2211 = vld [vmem:[%s292 + $0x3810] sm:$0xff]
        %v2212 = vld [vmem:[%s292 + $0x3818] sm:$0xff]
        %v2213 = vld [vmem:[%s292 + $0x3820] sm:$0xff]
        %v2214 = vld [vmem:[%s292 + $0x3828] sm:$0xff]
        %v2215 = vld [vmem:[%s292 + $0x3830] sm:$0xff]
        %v2216 = vld [vmem:[%s292 + $0x3838] sm:$0xff]
        %v2217 = vld [vmem:[%s292 + $0x3840] sm:$0xff]
        %v2218 = vld [vmem:[%s292 + $0x3848] sm:$0xff]
        %v2219 = vld [vmem:[%s292 + $0x3850] sm:$0xff]
        %v2220 = vld [vmem:[%s292 + $0x3858] sm:$0xff]
        %v2221 = vld [vmem:[%s292 + $0x3860] sm:$0xff]
        %v2222 = vld [vmem:[%s292 + $0x3868] sm:$0xff]
        %v2223 = vld [vmem:[%s292 + $0x3870] sm:$0xff]
        %v2224 = vld [vmem:[%s292 + $0x3878] sm:$0xff]
        %v2225 = vld [vmem:[%s292 + $0x3880] sm:$0xff]
        %v2226 = vld [vmem:[%s292 + $0x3888] sm:$0xff]
        %v2227 = vld [vmem:[%s292 + $0x3890] sm:$0xff]
        %v2228 = vld [vmem:[%s292 + $0x3898] sm:$0xff]
        %v2229 = vld [vmem:[%s292 + $0x38a0] sm:$0xff]
        %v2230 = vld [vmem:[%s292 + $0x38a8] sm:$0xff]
        %v2231 = vld [vmem:[%s292 + $0x38b0] sm:$0xff]
        %v2232 = vld [vmem:[%s292 + $0x38b8] sm:$0xff]
        %v2233 = vld [vmem:[%s292 + $0x38c0] sm:$0xff]
        %v2234 = vld [vmem:[%s292 + $0x38c8] sm:$0xff]
        %v2235 = vld [vmem:[%s292 + $0x38d0] sm:$0xff]
        %v2236 = vld [vmem:[%s292 + $0x38d8] sm:$0xff]
        %v2237 = vld [vmem:[%s292 + $0x38e0] sm:$0xff]
        %v2238 = vld [vmem:[%s292 + $0x38e8] sm:$0xff]
        %v2239 = vld [vmem:[%s292 + $0x38f0] sm:$0xff]
        %v2240 = vld [vmem:[%s292 + $0x38f8] sm:$0xff]
        %v2241 = vld [vmem:[%s292 + $0x3900] sm:$0xff]
        %v2242 = vld [vmem:[%s292 + $0x3908] sm:$0xff]
        %v2243 = vld [vmem:[%s292 + $0x3910] sm:$0xff]
        %v2244 = vld [vmem:[%s292 + $0x3918] sm:$0xff]
        %v2245 = vld [vmem:[%s292 + $0x3920] sm:$0xff]
        %v2246 = vld [vmem:[%s292 + $0x3928] sm:$0xff]
        %v2247 = vld [vmem:[%s292 + $0x3930] sm:$0xff]
        %v2248 = vld [vmem:[%s292 + $0x3938] sm:$0xff]
        %v2249 = vld [vmem:[%s292 + $0x3940] sm:$0xff]
        %v2250 = vld [vmem:[%s292 + $0x3948] sm:$0xff]
        %v2251 = vld [vmem:[%s292 + $0x3950] sm:$0xff]
        %v2252 = vld [vmem:[%s292 + $0x3958] sm:$0xff]
        %v2253 = vld [vmem:[%s292 + $0x3960] sm:$0xff]
        %v2254 = vld [vmem:[%s292 + $0x3968] sm:$0xff]
        %v2255 = vld [vmem:[%s292 + $0x3970] sm:$0xff]
        %v2256 = vld [vmem:[%s292 + $0x3978] sm:$0xff]
        %v2257 = vld [vmem:[%s292 + $0x3980] sm:$0xff]
        %v2258 = vld [vmem:[%s292 + $0x3988] sm:$0xff]
        %v2259 = vld [vmem:[%s292 + $0x3990] sm:$0xff]
        %v2260 = vld [vmem:[%s292 + $0x3998] sm:$0xff]
        %v2261 = vld [vmem:[%s292 + $0x39a0] sm:$0xff]
        %v2262 = vld [vmem:[%s292 + $0x39a8] sm:$0xff]
        %v2263 = vld [vmem:[%s292 + $0x39b0] sm:$0xff]
        %v2264 = vld [vmem:[%s292 + $0x39b8] sm:$0xff]
        %v2265 = vld [vmem:[%s292 + $0x39c0] sm:$0xff]
        %v2266 = vld [vmem:[%s292 + $0x39c8] sm:$0xff]
        %v2267 = vld [vmem:[%s292 + $0x39d0] sm:$0xff]
        %v2268 = vld [vmem:[%s292 + $0x39d8] sm:$0xff]
        %v2269 = vld [vmem:[%s292 + $0x39e0] sm:$0xff]
        %v2270 = vld [vmem:[%s292 + $0x39e8] sm:$0xff]
        %v2271 = vld [vmem:[%s292 + $0x39f0] sm:$0xff]
        %v2272 = vld [vmem:[%s292 + $0x39f8] sm:$0xff]
        %v2273 = vld [vmem:[%s292 + $0x3a00] sm:$0xff]
        %v2274 = vld [vmem:[%s292 + $0x3a08] sm:$0xff]
        %v2275 = vld [vmem:[%s292 + $0x3a10] sm:$0xff]
        %v2276 = vld [vmem:[%s292 + $0x3a18] sm:$0xff]
        %v2277 = vld [vmem:[%s292 + $0x3a20] sm:$0xff]
        %v2278 = vld [vmem:[%s292 + $0x3a28] sm:$0xff]
        %v2279 = vld [vmem:[%s292 + $0x3a30] sm:$0xff]
        %v2280 = vld [vmem:[%s292 + $0x3a38] sm:$0xff]
        %v2281 = vld [vmem:[%s292 + $0x3a40] sm:$0xff]
        %v2282 = vld [vmem:[%s292 + $0x3a48] sm:$0xff]
        %v2283 = vld [vmem:[%s292 + $0x3a50] sm:$0xff]
        %v2284 = vld [vmem:[%s292 + $0x3a58] sm:$0xff]
        %v2285 = vld [vmem:[%s292 + $0x3a60] sm:$0xff]
        %v2286 = vld [vmem:[%s292 + $0x3a68] sm:$0xff]
        %v2287 = vld [vmem:[%s292 + $0x3a70] sm:$0xff]
        %v2288 = vld [vmem:[%s292 + $0x3a78] sm:$0xff]
        %v2289 = vld [vmem:[%s292 + $0x3a80] sm:$0xff]
        %v2290 = vld [vmem:[%s292 + $0x3a88] sm:$0xff]
        %v2291 = vld [vmem:[%s292 + $0x3a90] sm:$0xff]
        %v2292 = vld [vmem:[%s292 + $0x3a98] sm:$0xff]
        %v2293 = vld [vmem:[%s292 + $0x3aa0] sm:$0xff]
        %v2294 = vld [vmem:[%s292 + $0x3aa8] sm:$0xff]
        %v2295 = vld [vmem:[%s292 + $0x3ab0] sm:$0xff]
        %v2296 = vld [vmem:[%s292 + $0x3ab8] sm:$0xff]
        %v2297 = vld [vmem:[%s292 + $0x3ac0] sm:$0xff]
        %v2298 = vld [vmem:[%s292 + $0x3ac8] sm:$0xff]
        %v2299 = vld [vmem:[%s292 + $0x3ad0] sm:$0xff]
        %v2300 = vld [vmem:[%s292 + $0x3ad8] sm:$0xff]
        %v2301 = vld [vmem:[%s292 + $0x3ae0] sm:$0xff]
        %v2302 = vld [vmem:[%s292 + $0x3ae8] sm:$0xff]
        %v2303 = vld [vmem:[%s292 + $0x3af0] sm:$0xff]
        %v2304 = vld [vmem:[%s292 + $0x3af8] sm:$0xff]
        %v2305 = vld [vmem:[%s292 + $0x3b00] sm:$0xff]
        %v2306 = vld [vmem:[%s292 + $0x3b08] sm:$0xff]
        %v2307 = vld [vmem:[%s292 + $0x3b10] sm:$0xff]
        %v2308 = vld [vmem:[%s292 + $0x3b18] sm:$0xff]
        %v2309 = vld [vmem:[%s292 + $0x3b20] sm:$0xff]
        %v2310 = vld [vmem:[%s292 + $0x3b28] sm:$0xff]
        %v2311 = vld [vmem:[%s292 + $0x3b30] sm:$0xff]
        %v2312 = vld [vmem:[%s292 + $0x3b38] sm:$0xff]
        %v2313 = vld [vmem:[%s292 + $0x3b40] sm:$0xff]
        %v2314 = vld [vmem:[%s292 + $0x3b48] sm:$0xff]
        %v2315 = vld [vmem:[%s292 + $0x3b50] sm:$0xff]
        %v2316 = vld [vmem:[%s292 + $0x3b58] sm:$0xff]
        %v2317 = vld [vmem:[%s292 + $0x3b60] sm:$0xff]
        %v2318 = vld [vmem:[%s292 + $0x3b68] sm:$0xff]
        %v2319 = vld [vmem:[%s292 + $0x3b70] sm:$0xff]
        %v2320 = vld [vmem:[%s292 + $0x3b78] sm:$0xff]
        %v2321 = vld [vmem:[%s292 + $0x3b80] sm:$0xff]
        %v2322 = vld [vmem:[%s292 + $0x3b88] sm:$0xff]
        %v2323 = vld [vmem:[%s292 + $0x3b90] sm:$0xff]
        %v2324 = vld [vmem:[%s292 + $0x3b98] sm:$0xff]
        %v2325 = vld [vmem:[%s292 + $0x3ba0] sm:$0xff]
        %v2326 = vld [vmem:[%s292 + $0x3ba8] sm:$0xff]
        %v2327 = vld [vmem:[%s292 + $0x3bb0] sm:$0xff]
        %v2328 = vld [vmem:[%s292 + $0x3bb8] sm:$0xff]
        %v2329 = vld [vmem:[%s292 + $0x3bc0] sm:$0xff]
        %v2330 = vld [vmem:[%s292 + $0x3bc8] sm:$0xff]
        %v2331 = vld [vmem:[%s292 + $0x3bd0] sm:$0xff]
        %v2332 = vld [vmem:[%s292 + $0x3bd8] sm:$0xff]
        %v2333 = vld [vmem:[%s292 + $0x3be0] sm:$0xff]
        %v2334 = vld [vmem:[%s292 + $0x3be8] sm:$0xff]
        %v2335 = vld [vmem:[%s292 + $0x3bf0] sm:$0xff]
        %v2336 = vld [vmem:[%s292 + $0x3bf8] sm:$0xff]
        %v2337 = vld [vmem:[%s292 + $0x3c00] sm:$0xff]
        %v2338 = vld [vmem:[%s292 + $0x3c08] sm:$0xff]
        %v2339 = vld [vmem:[%s292 + $0x3c10] sm:$0xff]
        %v2340 = vld [vmem:[%s292 + $0x3c18] sm:$0xff]
        %v2341 = vld [vmem:[%s292 + $0x3c20] sm:$0xff]
        %v2342 = vld [vmem:[%s292 + $0x3c28] sm:$0xff]
        %v2343 = vld [vmem:[%s292 + $0x3c30] sm:$0xff]
        %v2344 = vld [vmem:[%s292 + $0x3c38] sm:$0xff]
        %v2345 = vld [vmem:[%s292 + $0x3c40] sm:$0xff]
        %v2346 = vld [vmem:[%s292 + $0x3c48] sm:$0xff]
        %v2347 = vld [vmem:[%s292 + $0x3c50] sm:$0xff]
        %v2348 = vld [vmem:[%s292 + $0x3c58] sm:$0xff]
        %v2349 = vld [vmem:[%s292 + $0x3c60] sm:$0xff]
        %v2350 = vld [vmem:[%s292 + $0x3c68] sm:$0xff]
        %v2351 = vld [vmem:[%s292 + $0x3c70] sm:$0xff]
        %v2352 = vld [vmem:[%s292 + $0x3c78] sm:$0xff]
        %v2353 = vld [vmem:[%s292 + $0x3c80] sm:$0xff]
        %v2354 = vld [vmem:[%s292 + $0x3c88] sm:$0xff]
        %v2355 = vld [vmem:[%s292 + $0x3c90] sm:$0xff]
        %v2356 = vld [vmem:[%s292 + $0x3c98] sm:$0xff]
        %v2357 = vld [vmem:[%s292 + $0x3ca0] sm:$0xff]
        %v2358 = vld [vmem:[%s292 + $0x3ca8] sm:$0xff]
        %v2359 = vld [vmem:[%s292 + $0x3cb0] sm:$0xff]
        %v2360 = vld [vmem:[%s292 + $0x3cb8] sm:$0xff]
        %v2361 = vld [vmem:[%s292 + $0x3cc0] sm:$0xff]
        %v2362 = vld [vmem:[%s292 + $0x3cc8] sm:$0xff]
        %v2363 = vld [vmem:[%s292 + $0x3cd0] sm:$0xff]
        %v2364 = vld [vmem:[%s292 + $0x3cd8] sm:$0xff]
        %v2365 = vld [vmem:[%s292 + $0x3ce0] sm:$0xff]
        %v2366 = vld [vmem:[%s292 + $0x3ce8] sm:$0xff]
        %v2367 = vld [vmem:[%s292 + $0x3cf0] sm:$0xff]
        %v2368 = vld [vmem:[%s292 + $0x3cf8] sm:$0xff]
        %v2369 = vld [vmem:[%s292 + $0x3d00] sm:$0xff]
        %v2370 = vld [vmem:[%s292 + $0x3d08] sm:$0xff]
        %v2371 = vld [vmem:[%s292 + $0x3d10] sm:$0xff]
        %v2372 = vld [vmem:[%s292 + $0x3d18] sm:$0xff]
        %v2373 = vld [vmem:[%s292 + $0x3d20] sm:$0xff]
        %v2374 = vld [vmem:[%s292 + $0x3d28] sm:$0xff]
        %v2375 = vld [vmem:[%s292 + $0x3d30] sm:$0xff]
        %v2376 = vld [vmem:[%s292 + $0x3d38] sm:$0xff]
        %v2377 = vld [vmem:[%s292 + $0x3d40] sm:$0xff]
        %v2378 = vld [vmem:[%s292 + $0x3d48] sm:$0xff]
        %v2379 = vld [vmem:[%s292 + $0x3d50] sm:$0xff]
        %v2380 = vld [vmem:[%s292 + $0x3d58] sm:$0xff]
        %v2381 = vld [vmem:[%s292 + $0x3d60] sm:$0xff]
        %v2382 = vld [vmem:[%s292 + $0x3d68] sm:$0xff]
        %v2383 = vld [vmem:[%s292 + $0x3d70] sm:$0xff]
        %v2384 = vld [vmem:[%s292 + $0x3d78] sm:$0xff]
        %v2385 = vld [vmem:[%s292 + $0x3d80] sm:$0xff]
        %v2386 = vld [vmem:[%s292 + $0x3d88] sm:$0xff]
        %v2387 = vld [vmem:[%s292 + $0x3d90] sm:$0xff]
        %v2388 = vld [vmem:[%s292 + $0x3d98] sm:$0xff]
        %v2389 = vld [vmem:[%s292 + $0x3da0] sm:$0xff]
        %v2390 = vld [vmem:[%s292 + $0x3da8] sm:$0xff]
        %v2391 = vld [vmem:[%s292 + $0x3db0] sm:$0xff]
        %v2392 = vld [vmem:[%s292 + $0x3db8] sm:$0xff]
        %v2393 = vld [vmem:[%s292 + $0x3dc0] sm:$0xff]
        %v2394 = vld [vmem:[%s292 + $0x3dc8] sm:$0xff]
        %v2395 = vld [vmem:[%s292 + $0x3dd0] sm:$0xff]
        %v2396 = vld [vmem:[%s292 + $0x3dd8] sm:$0xff]
        %v2397 = vld [vmem:[%s292 + $0x3de0] sm:$0xff]
        %v2398 = vld [vmem:[%s292 + $0x3de8] sm:$0xff]
        %v2399 = vld [vmem:[%s292 + $0x3df0] sm:$0xff]
        %v2400 = vld [vmem:[%s292 + $0x3df8] sm:$0xff]
        %v2401 = vld [vmem:[%s292 + $0x3e00] sm:$0xff]
        %v2402 = vld [vmem:[%s292 + $0x3e08] sm:$0xff]
        %v2403 = vld [vmem:[%s292 + $0x3e10] sm:$0xff]
        %v2404 = vld [vmem:[%s292 + $0x3e18] sm:$0xff]
        %v2405 = vld [vmem:[%s292 + $0x3e20] sm:$0xff]
        %v2406 = vld [vmem:[%s292 + $0x3e28] sm:$0xff]
        %v2407 = vld [vmem:[%s292 + $0x3e30] sm:$0xff]
        %v2408 = vld [vmem:[%s292 + $0x3e38] sm:$0xff]
        %v2409 = vld [vmem:[%s292 + $0x3e40] sm:$0xff]
        %v2410 = vld [vmem:[%s292 + $0x3e48] sm:$0xff]
        %v2411 = vld [vmem:[%s292 + $0x3e50] sm:$0xff]
        %v2412 = vld [vmem:[%s292 + $0x3e58] sm:$0xff]
        %v2413 = vld [vmem:[%s292 + $0x3e60] sm:$0xff]
        %v2414 = vld [vmem:[%s292 + $0x3e68] sm:$0xff]
        %v2415 = vld [vmem:[%s292 + $0x3e70] sm:$0xff]
        %v2416 = vld [vmem:[%s292 + $0x3e78] sm:$0xff]
        %v2417 = vld [vmem:[%s292 + $0x3e80] sm:$0xff]
        %v2418 = vld [vmem:[%s292 + $0x3e88] sm:$0xff]
        %v2419 = vld [vmem:[%s292 + $0x3e90] sm:$0xff]
        %v2420 = vld [vmem:[%s292 + $0x3e98] sm:$0xff]
        %v2421 = vld [vmem:[%s292 + $0x3ea0] sm:$0xff]
        %v2422 = vld [vmem:[%s292 + $0x3ea8] sm:$0xff]
        %v2423 = vld [vmem:[%s292 + $0x3eb0] sm:$0xff]
        %v2424 = vld [vmem:[%s292 + $0x3eb8] sm:$0xff]
        %v2425 = vld [vmem:[%s292 + $0x3ec0] sm:$0xff]
        %v2426 = vld [vmem:[%s292 + $0x3ec8] sm:$0xff]
        %v2427 = vld [vmem:[%s292 + $0x3ed0] sm:$0xff]
        %v2428 = vld [vmem:[%s292 + $0x3ed8] sm:$0xff]
        %v2429 = vld [vmem:[%s292 + $0x3ee0] sm:$0xff]
        %v2430 = vld [vmem:[%s292 + $0x3ee8] sm:$0xff]
        %v2431 = vld [vmem:[%s292 + $0x3ef0] sm:$0xff]
        %v2432 = vld [vmem:[%s292 + $0x3ef8] sm:$0xff]
        %v2433 = vld [vmem:[%s292 + $0x3f00] sm:$0xff]
        %v2434 = vld [vmem:[%s292 + $0x3f08] sm:$0xff]
        %v2435 = vld [vmem:[%s292 + $0x3f10] sm:$0xff]
        %v2436 = vld [vmem:[%s292 + $0x3f18] sm:$0xff]
        %v2437 = vld [vmem:[%s292 + $0x3f20] sm:$0xff]
        %v2438 = vld [vmem:[%s292 + $0x3f28] sm:$0xff]
        %v2439 = vld [vmem:[%s292 + $0x3f30] sm:$0xff]
        %v2440 = vld [vmem:[%s292 + $0x3f38] sm:$0xff]
        %v2441 = vld [vmem:[%s292 + $0x3f40] sm:$0xff]
        %v2442 = vld [vmem:[%s292 + $0x3f48] sm:$0xff]
        %v2443 = vld [vmem:[%s292 + $0x3f50] sm:$0xff]
        %v2444 = vld [vmem:[%s292 + $0x3f58] sm:$0xff]
        %v2445 = vld [vmem:[%s292 + $0x3f60] sm:$0xff]
        %v2446 = vld [vmem:[%s292 + $0x3f68] sm:$0xff]
        %v2447 = vld [vmem:[%s292 + $0x3f70] sm:$0xff]
        %v2448 = vld [vmem:[%s292 + $0x3f78] sm:$0xff]
        %v2449 = vld [vmem:[%s292 + $0x3f80] sm:$0xff]
        %v2450 = vld [vmem:[%s292 + $0x3f88] sm:$0xff]
        %v2451 = vld [vmem:[%s292 + $0x3f90] sm:$0xff]
        %v2452 = vld [vmem:[%s292 + $0x3f98] sm:$0xff]
        %v2453 = vld [vmem:[%s292 + $0x3fa0] sm:$0xff]
        %v2454 = vld [vmem:[%s292 + $0x3fa8] sm:$0xff]
        %v2455 = vld [vmem:[%s292 + $0x3fb0] sm:$0xff]
        %v2456 = vld [vmem:[%s292 + $0x3fb8] sm:$0xff]
        %v2457 = vld [vmem:[%s292 + $0x3fc0] sm:$0xff]
        %v2458 = vld [vmem:[%s292 + $0x3fc8] sm:$0xff]
        %v2459 = vld [vmem:[%s292 + $0x3fd0] sm:$0xff]
        %v2460 = vld [vmem:[%s292 + $0x3fd8] sm:$0xff]
        %v2461 = vld [vmem:[%s292 + $0x3fe0] sm:$0xff]
        %v2462 = vld [vmem:[%s292 + $0x3fe8] sm:$0xff]
        %v2463 = vld [vmem:[%s292 + $0x3ff0] sm:$0xff]
        %v2464 = vld [vmem:[%s292 + $0x3ff8] sm:$0xff]
        %v2465 = vld [vmem:[%s292 + $0x4000] sm:$0xff]
        %v2466 = vld [vmem:[%s292 + $0x4008] sm:$0xff]
        %v2467 = vld [vmem:[%s292 + $0x4010] sm:$0xff]
        %v2468 = vld [vmem:[%s292 + $0x4018] sm:$0xff]
        %v2469 = vld [vmem:[%s292 + $0x4020] sm:$0xff]
        %v2470 = vld [vmem:[%s292 + $0x4028] sm:$0xff]
        %v2471 = vld [vmem:[%s292 + $0x4030] sm:$0xff]
        %v2472 = vld [vmem:[%s292 + $0x4038] sm:$0xff]
        %v2473 = vld [vmem:[%s292 + $0x4040] sm:$0xff]
        %v2474 = vld [vmem:[%s292 + $0x4048] sm:$0xff]
        %v2475 = vld [vmem:[%s292 + $0x4050] sm:$0xff]
        %v2476 = vld [vmem:[%s292 + $0x4058] sm:$0xff]
        %v2477 = vld [vmem:[%s292 + $0x4060] sm:$0xff]
        %v2478 = vld [vmem:[%s292 + $0x4068] sm:$0xff]
        %v2479 = vld [vmem:[%s292 + $0x4070] sm:$0xff]
        %v2480 = vld [vmem:[%s292 + $0x4078] sm:$0xff]
        %v2481 = vld [vmem:[%s292 + $0x4080] sm:$0xff]
        %v2482 = vld [vmem:[%s292 + $0x4088] sm:$0xff]
        %v2483 = vld [vmem:[%s292 + $0x4090] sm:$0xff]
        %v2484 = vld [vmem:[%s292 + $0x4098] sm:$0xff]
        %v2485 = vld [vmem:[%s292 + $0x40a0] sm:$0xff]
        %v2486 = vld [vmem:[%s292 + $0x40a8] sm:$0xff]
        %v2487 = vld [vmem:[%s292 + $0x40b0] sm:$0xff]
        %v2488 = vld [vmem:[%s292 + $0x40b8] sm:$0xff]
        %v2489 = vld [vmem:[%s292 + $0x40c0] sm:$0xff]
        %v2490 = vld [vmem:[%s292 + $0x40c8] sm:$0xff]
        %v2491 = vld [vmem:[%s292 + $0x40d0] sm:$0xff]
        %v2492 = vld [vmem:[%s292 + $0x40d8] sm:$0xff]
        %v2493 = vld [vmem:[%s292 + $0x40e0] sm:$0xff]
        %v2494 = vld [vmem:[%s292 + $0x40e8] sm:$0xff]
        %v2495 = vld [vmem:[%s292 + $0x40f0] sm:$0xff]
        %v2496 = vld [vmem:[%s292 + $0x40f8] sm:$0xff]
        %v2497 = vld [vmem:[%s292 + $0x4100] sm:$0xff]
        %v2498 = vld [vmem:[%s292 + $0x4108] sm:$0xff]
        %v2499 = vld [vmem:[%s292 + $0x4110] sm:$0xff]
        %v2500 = vld [vmem:[%s292 + $0x4118] sm:$0xff]
        %v2501 = vld [vmem:[%s292 + $0x4120] sm:$0xff]
        %v2502 = vld [vmem:[%s292 + $0x4128] sm:$0xff]
        %v2503 = vld [vmem:[%s292 + $0x4130] sm:$0xff]
        %v2504 = vld [vmem:[%s292 + $0x4138] sm:$0xff]
        %v2505 = vld [vmem:[%s292 + $0x4140] sm:$0xff]
        %v2506 = vld [vmem:[%s292 + $0x4148] sm:$0xff]
        %v2507 = vld [vmem:[%s292 + $0x4150] sm:$0xff]
        %v2508 = vld [vmem:[%s292 + $0x4158] sm:$0xff]
        %v2509 = vld [vmem:[%s292 + $0x4160] sm:$0xff]
        %v2510 = vld [vmem:[%s292 + $0x4168] sm:$0xff]
        %v2511 = vld [vmem:[%s292 + $0x4170] sm:$0xff]
        %v2512 = vld [vmem:[%s292 + $0x4178] sm:$0xff]
        %v2513 = vld [vmem:[%s292 + $0x4180] sm:$0xff]
        %v2514 = vld [vmem:[%s292 + $0x4188] sm:$0xff]
        %v2515 = vld [vmem:[%s292 + $0x4190] sm:$0xff]
        %v2516 = vld [vmem:[%s292 + $0x4198] sm:$0xff]
        %v2517 = vld [vmem:[%s292 + $0x41a0] sm:$0xff]
        %v2518 = vld [vmem:[%s292 + $0x41a8] sm:$0xff]
        %v2519 = vld [vmem:[%s292 + $0x41b0] sm:$0xff]
        %v2520 = vld [vmem:[%s292 + $0x41b8] sm:$0xff]
        %v2521 = vld [vmem:[%s292 + $0x41c0] sm:$0xff]
        %v2522 = vld [vmem:[%s292 + $0x41c8] sm:$0xff]
        %v2523 = vld [vmem:[%s292 + $0x41d0] sm:$0xff]
        %v2524 = vld [vmem:[%s292 + $0x41d8] sm:$0xff]
        %v2525 = vld [vmem:[%s292 + $0x41e0] sm:$0xff]
        %v2526 = vld [vmem:[%s292 + $0x41e8] sm:$0xff]
        %v2527 = vld [vmem:[%s292 + $0x41f0] sm:$0xff]
        %v2528 = vld [vmem:[%s292 + $0x41f8] sm:$0xff]
        %v2529 = vld [vmem:[%s292 + $0x4200] sm:$0xff]
        %v2530 = vld [vmem:[%s292 + $0x4208] sm:$0xff]
        %v2531 = vld [vmem:[%s292 + $0x4210] sm:$0xff]
        %v2532 = vld [vmem:[%s292 + $0x4218] sm:$0xff]
        %v2533 = vld [vmem:[%s292 + $0x4220] sm:$0xff]
        %v2534 = vld [vmem:[%s292 + $0x4228] sm:$0xff]
        %v2535 = vld [vmem:[%s292 + $0x4230] sm:$0xff]
        %v2536 = vld [vmem:[%s292 + $0x4238] sm:$0xff]
        %v2537 = vld [vmem:[%s292 + $0x4240] sm:$0xff]
        %v2538 = vld [vmem:[%s292 + $0x4248] sm:$0xff]
        %v2539 = vld [vmem:[%s292 + $0x4250] sm:$0xff]
        %v2540 = vld [vmem:[%s292 + $0x4258] sm:$0xff]
        %v2541 = vld [vmem:[%s292 + $0x4260] sm:$0xff]
        %v2542 = vld [vmem:[%s292 + $0x4268] sm:$0xff]
        %v2543 = vld [vmem:[%s292 + $0x4270] sm:$0xff]
        %v2544 = vld [vmem:[%s292 + $0x4278] sm:$0xff]
        %v2545 = vld [vmem:[%s292 + $0x4280] sm:$0xff]
        %v2546 = vld [vmem:[%s292 + $0x4288] sm:$0xff]
        %v2547 = vld [vmem:[%s292 + $0x4290] sm:$0xff]
        %v2548 = vld [vmem:[%s292 + $0x4298] sm:$0xff]
        %v2549 = vld [vmem:[%s292 + $0x42a0] sm:$0xff]
        %v2550 = vld [vmem:[%s292 + $0x42a8] sm:$0xff]
        %v2551 = vld [vmem:[%s292 + $0x42b0] sm:$0xff]
        %v2552 = vld [vmem:[%s292 + $0x42b8] sm:$0xff]
        %v2553 = vld [vmem:[%s292 + $0x42c0] sm:$0xff]
        %v2554 = vld [vmem:[%s292 + $0x42c8] sm:$0xff]
        %v2555 = vld [vmem:[%s292 + $0x42d0] sm:$0xff]
        %v2556 = vld [vmem:[%s292 + $0x42d8] sm:$0xff]
        %v2557 = vld [vmem:[%s292 + $0x42e0] sm:$0xff]
        %v2558 = vld [vmem:[%s292 + $0x42e8] sm:$0xff]
        %v2559 = vld [vmem:[%s292 + $0x42f0] sm:$0xff]
        %v2560 = vld [vmem:[%s292 + $0x42f8] sm:$0xff]
        %v2561 = vld [vmem:[%s292 + $0x4300] sm:$0xff]
        %v2562 = vld [vmem:[%s292 + $0x4308] sm:$0xff]
        %v2563 = vld [vmem:[%s292 + $0x4310] sm:$0xff]
        %v2564 = vld [vmem:[%s292 + $0x4318] sm:$0xff]
        %v2565 = vld [vmem:[%s292 + $0x4320] sm:$0xff]
        %v2566 = vld [vmem:[%s292 + $0x4328] sm:$0xff]
        %v2567 = vld [vmem:[%s292 + $0x4330] sm:$0xff]
        %v2568 = vld [vmem:[%s292 + $0x4338] sm:$0xff]
        %v2569 = vld [vmem:[%s292 + $0x4340] sm:$0xff]
        %v2570 = vld [vmem:[%s292 + $0x4348] sm:$0xff]
        %v2571 = vld [vmem:[%s292 + $0x4350] sm:$0xff]
        %v2572 = vld [vmem:[%s292 + $0x4358] sm:$0xff]
        %v2573 = vld [vmem:[%s292 + $0x4360] sm:$0xff]
        %v2574 = vld [vmem:[%s292 + $0x4368] sm:$0xff]
        %v2575 = vld [vmem:[%s292 + $0x4370] sm:$0xff]
        %v2576 = vld [vmem:[%s292 + $0x4378] sm:$0xff]
        %v2577 = vld [vmem:[%s292 + $0x4380] sm:$0xff]
        %v2578 = vld [vmem:[%s292 + $0x4388] sm:$0xff]
        %v2579 = vld [vmem:[%s292 + $0x4390] sm:$0xff]
        %v2580 = vld [vmem:[%s292 + $0x4398] sm:$0xff]
        %v2581 = vld [vmem:[%s292 + $0x43a0] sm:$0xff]
        %v2582 = vld [vmem:[%s292 + $0x43a8] sm:$0xff]
        %v2583 = vld [vmem:[%s292 + $0x43b0] sm:$0xff]
        %v2584 = vld [vmem:[%s292 + $0x43b8] sm:$0xff]
        %v2585 = vld [vmem:[%s292 + $0x43c0] sm:$0xff]
        %v2586 = vld [vmem:[%s292 + $0x43c8] sm:$0xff]
        %v2587 = vld [vmem:[%s292 + $0x43d0] sm:$0xff]
        %v2588 = vld [vmem:[%s292 + $0x43d8] sm:$0xff]
        %v2589 = vld [vmem:[%s292 + $0x43e0] sm:$0xff]
        %v2590 = vld [vmem:[%s292 + $0x43e8] sm:$0xff]
        %v2591 = vld [vmem:[%s292 + $0x43f0] sm:$0xff]
        %v2592 = vld [vmem:[%s292 + $0x43f8] sm:$0xff]
        %v2593 = vld [vmem:[%s292 + $0x4400] sm:$0xff]
        %v2594 = vld [vmem:[%s292 + $0x4408] sm:$0xff]
        %v2595 = vld [vmem:[%s292 + $0x4410] sm:$0xff]
        %v2596 = vld [vmem:[%s292 + $0x4418] sm:$0xff]
        %v2597 = vld [vmem:[%s292 + $0x4420] sm:$0xff]
        %v2598 = vld [vmem:[%s292 + $0x4428] sm:$0xff]
        %v2599 = vld [vmem:[%s292 + $0x4430] sm:$0xff]
        %v2600 = vld [vmem:[%s292 + $0x4438] sm:$0xff]
        %v2601 = vld [vmem:[%s292 + $0x4440] sm:$0xff]
        %v2602 = vld [vmem:[%s292 + $0x4448] sm:$0xff]
        %v2603 = vld [vmem:[%s292 + $0x4450] sm:$0xff]
        %v2604 = vld [vmem:[%s292 + $0x4458] sm:$0xff]
        %v2605 = vld [vmem:[%s292 + $0x4460] sm:$0xff]
        %v2606 = vld [vmem:[%s292 + $0x4468] sm:$0xff]
        %v2607 = vld [vmem:[%s292 + $0x4470] sm:$0xff]
        %v2608 = vld [vmem:[%s292 + $0x4478] sm:$0xff]
        %v2609 = vld [vmem:[%s292 + $0x4480] sm:$0xff]
        %v2610 = vld [vmem:[%s292 + $0x4488] sm:$0xff]
        %v2611 = vld [vmem:[%s292 + $0x4490] sm:$0xff]
        %v2612 = vld [vmem:[%s292 + $0x4498] sm:$0xff]
        %v2613 = vld [vmem:[%s292 + $0x44a0] sm:$0xff]
        %v2614 = vld [vmem:[%s292 + $0x44a8] sm:$0xff]
        %v2615 = vld [vmem:[%s292 + $0x44b0] sm:$0xff]
        %v2616 = vld [vmem:[%s292 + $0x44b8] sm:$0xff]
        %v2617 = vld [vmem:[%s292 + $0x44c0] sm:$0xff]
        %v2618 = vld [vmem:[%s292 + $0x44c8] sm:$0xff]
        %v2619 = vld [vmem:[%s292 + $0x44d0] sm:$0xff]
        %v2620 = vld [vmem:[%s292 + $0x44d8] sm:$0xff]
        %v2621 = vld [vmem:[%s292 + $0x44e0] sm:$0xff]
        %v2622 = vld [vmem:[%s292 + $0x44e8] sm:$0xff]
        %v2623 = vld [vmem:[%s292 + $0x44f0] sm:$0xff]
        %v2624 = vld [vmem:[%s292 + $0x44f8] sm:$0xff]
        %v2625 = vld [vmem:[%s292 + $0x4500] sm:$0xff]
        %v2626 = vld [vmem:[%s292 + $0x4508] sm:$0xff]
        %v2627 = vld [vmem:[%s292 + $0x4510] sm:$0xff]
        %v2628 = vld [vmem:[%s292 + $0x4518] sm:$0xff]
        %v2629 = vld [vmem:[%s292 + $0x4520] sm:$0xff]
        %v2630 = vld [vmem:[%s292 + $0x4528] sm:$0xff]
        %v2631 = vld [vmem:[%s292 + $0x4530] sm:$0xff]
        %v2632 = vld [vmem:[%s292 + $0x4538] sm:$0xff]
        %v2633 = vld [vmem:[%s292 + $0x4540] sm:$0xff]
        %v2634 = vld [vmem:[%s292 + $0x4548] sm:$0xff]
        %v2635 = vld [vmem:[%s292 + $0x4550] sm:$0xff]
        %v2636 = vld [vmem:[%s292 + $0x4558] sm:$0xff]
        %v2637 = vld [vmem:[%s292 + $0x4560] sm:$0xff]
        %v2638 = vld [vmem:[%s292 + $0x4568] sm:$0xff]
        %v2639 = vld [vmem:[%s292 + $0x4570] sm:$0xff]
        %v2640 = vld [vmem:[%s292 + $0x4578] sm:$0xff]
        %v2641 = vld [vmem:[%s292 + $0x4580] sm:$0xff]
        %v2642 = vld [vmem:[%s292 + $0x4588] sm:$0xff]
        %v2643 = vld [vmem:[%s292 + $0x4590] sm:$0xff]
        %v2644 = vld [vmem:[%s292 + $0x4598] sm:$0xff]
        %v2645 = vld [vmem:[%s292 + $0x45a0] sm:$0xff]
        %v2646 = vld [vmem:[%s292 + $0x45a8] sm:$0xff]
        %v2647 = vld [vmem:[%s292 + $0x45b0] sm:$0xff]
        %v2648 = vld [vmem:[%s292 + $0x45b8] sm:$0xff]
        %v2649 = vld [vmem:[%s292 + $0x45c0] sm:$0xff]
        %v2650 = vld [vmem:[%s292 + $0x45c8] sm:$0xff]
        %v2651 = vld [vmem:[%s292 + $0x45d0] sm:$0xff]
        %v2652 = vld [vmem:[%s292 + $0x45d8] sm:$0xff]
        %v2653 = vld [vmem:[%s292 + $0x45e0] sm:$0xff]
        %v2654 = vld [vmem:[%s292 + $0x45e8] sm:$0xff]
        %v2655 = vld [vmem:[%s292 + $0x45f0] sm:$0xff]
        %v2656 = vld [vmem:[%s292 + $0x45f8] sm:$0xff]
        %v2657 = vld [vmem:[%s292 + $0x4600] sm:$0xff]
        %v2658 = vld [vmem:[%s292 + $0x4608] sm:$0xff]
        %v2659 = vld [vmem:[%s292 + $0x4610] sm:$0xff]
        %v2660 = vld [vmem:[%s292 + $0x4618] sm:$0xff]
        %v2661 = vld [vmem:[%s292 + $0x4620] sm:$0xff]
        %v2662 = vld [vmem:[%s292 + $0x4628] sm:$0xff]
        %v2663 = vld [vmem:[%s292 + $0x4630] sm:$0xff]
        %v2664 = vld [vmem:[%s292 + $0x4638] sm:$0xff]
        %v2665 = vld [vmem:[%s292 + $0x4640] sm:$0xff]
        %v2666 = vld [vmem:[%s292 + $0x4648] sm:$0xff]
        %v2667 = vld [vmem:[%s292 + $0x4650] sm:$0xff]
        %v2668 = vld [vmem:[%s292 + $0x4658] sm:$0xff]
        %v2669 = vld [vmem:[%s292 + $0x4660] sm:$0xff]
        %v2670 = vld [vmem:[%s292 + $0x4668] sm:$0xff]
        %v2671 = vld [vmem:[%s292 + $0x4670] sm:$0xff]
        %v2672 = vld [vmem:[%s292 + $0x4678] sm:$0xff]
        %v2673 = vld [vmem:[%s292 + $0x4680] sm:$0xff]
        %v2674 = vld [vmem:[%s292 + $0x4688] sm:$0xff]
        %v2675 = vld [vmem:[%s292 + $0x4690] sm:$0xff]
        %v2676 = vld [vmem:[%s292 + $0x4698] sm:$0xff]
        %v2677 = vld [vmem:[%s292 + $0x46a0] sm:$0xff]
        %v2678 = vld [vmem:[%s292 + $0x46a8] sm:$0xff]
        %v2679 = vld [vmem:[%s292 + $0x46b0] sm:$0xff]
        %v2680 = vld [vmem:[%s292 + $0x46b8] sm:$0xff]
        %v2681 = vld [vmem:[%s292 + $0x46c0] sm:$0xff]
        %v2682 = vld [vmem:[%s292 + $0x46c8] sm:$0xff]
        %v2683 = vld [vmem:[%s292 + $0x46d0] sm:$0xff]
        %v2684 = vld [vmem:[%s292 + $0x46d8] sm:$0xff]
        %v2685 = vld [vmem:[%s292 + $0x46e0] sm:$0xff]
        %v2686 = vld [vmem:[%s292 + $0x46e8] sm:$0xff]
        %v2687 = vld [vmem:[%s292 + $0x46f0] sm:$0xff]
        %v2688 = vld [vmem:[%s292 + $0x46f8] sm:$0xff]
        %v2689 = vld [vmem:[%s292 + $0x4700] sm:$0xff]
        %v2690 = vld [vmem:[%s292 + $0x4708] sm:$0xff]
        %v2691 = vld [vmem:[%s292 + $0x4710] sm:$0xff]
        %v2692 = vld [vmem:[%s292 + $0x4718] sm:$0xff]
        %v2693 = vld [vmem:[%s292 + $0x4720] sm:$0xff]
        %v2694 = vld [vmem:[%s292 + $0x4728] sm:$0xff]
        %v2695 = vld [vmem:[%s292 + $0x4730] sm:$0xff]
        %v2696 = vld [vmem:[%s292 + $0x4738] sm:$0xff]
        %v2697 = vld [vmem:[%s292 + $0x4740] sm:$0xff]
        %v2698 = vld [vmem:[%s292 + $0x4748] sm:$0xff]
        %v2699 = vld [vmem:[%s292 + $0x4750] sm:$0xff]
        %v2700 = vld [vmem:[%s292 + $0x4758] sm:$0xff]
        %v2701 = vld [vmem:[%s292 + $0x4760] sm:$0xff]
        %v2702 = vld [vmem:[%s292 + $0x4768] sm:$0xff]
        %v2703 = vld [vmem:[%s292 + $0x4770] sm:$0xff]
        %v2704 = vld [vmem:[%s292 + $0x4778] sm:$0xff]
        %v2705 = vld [vmem:[%s292 + $0x4780] sm:$0xff]
        %v2706 = vld [vmem:[%s292 + $0x4788] sm:$0xff]
        %v2707 = vld [vmem:[%s292 + $0x4790] sm:$0xff]
        %v2708 = vld [vmem:[%s292 + $0x4798] sm:$0xff]
        %v2709 = vld [vmem:[%s292 + $0x47a0] sm:$0xff]
        %v2710 = vld [vmem:[%s292 + $0x47a8] sm:$0xff]
        %v2711 = vld [vmem:[%s292 + $0x47b0] sm:$0xff]
        %v2712 = vld [vmem:[%s292 + $0x47b8] sm:$0xff]
        %v2713 = vld [vmem:[%s292 + $0x47c0] sm:$0xff]
        %v2714 = vld [vmem:[%s292 + $0x47c8] sm:$0xff]
        %v2715 = vld [vmem:[%s292 + $0x47d0] sm:$0xff]
        %v2716 = vld [vmem:[%s292 + $0x47d8] sm:$0xff]
        %v2717 = vld [vmem:[%s292 + $0x47e0] sm:$0xff]
        %v2718 = vld [vmem:[%s292 + $0x47e8] sm:$0xff]
        %v2719 = vld [vmem:[%s292 + $0x47f0] sm:$0xff]
        %v2720 = vld [vmem:[%s292 + $0x47f8] sm:$0xff]
        %v2721 = vld [vmem:[%s292 + $0x4800] sm:$0xff]
        %v2722 = vld [vmem:[%s292 + $0x4808] sm:$0xff]
        %v2723 = vld [vmem:[%s292 + $0x4810] sm:$0xff]
        %v2724 = vld [vmem:[%s292 + $0x4818] sm:$0xff]
        %v2725 = vld [vmem:[%s292 + $0x4820] sm:$0xff]
        %v2726 = vld [vmem:[%s292 + $0x4828] sm:$0xff]
        %v2727 = vld [vmem:[%s292 + $0x4830] sm:$0xff]
        %v2728 = vld [vmem:[%s292 + $0x4838] sm:$0xff]
        %v2729 = vld [vmem:[%s292 + $0x4840] sm:$0xff]
        %v2730 = vld [vmem:[%s292 + $0x4848] sm:$0xff]
        %v2731 = vld [vmem:[%s292 + $0x4850] sm:$0xff]
        %v2732 = vld [vmem:[%s292 + $0x4858] sm:$0xff]
        %v2733 = vld [vmem:[%s292 + $0x4860] sm:$0xff]
        %v2734 = vld [vmem:[%s292 + $0x4868] sm:$0xff]
        %v2735 = vld [vmem:[%s292 + $0x4870] sm:$0xff]
        %v2736 = vld [vmem:[%s292 + $0x4878] sm:$0xff]
        %v2737 = vld [vmem:[%s292 + $0x4880] sm:$0xff]
        %v2738 = vld [vmem:[%s292 + $0x4888] sm:$0xff]
        %v2739 = vld [vmem:[%s292 + $0x4890] sm:$0xff]
        %v2740 = vld [vmem:[%s292 + $0x4898] sm:$0xff]
        %v2741 = vld [vmem:[%s292 + $0x48a0] sm:$0xff]
        %v2742 = vld [vmem:[%s292 + $0x48a8] sm:$0xff]
        %v2743 = vld [vmem:[%s292 + $0x48b0] sm:$0xff]
        %v2744 = vld [vmem:[%s292 + $0x48b8] sm:$0xff]
        %v2745 = vld [vmem:[%s292 + $0x48c0] sm:$0xff]
        %v2746 = vld [vmem:[%s292 + $0x48c8] sm:$0xff]
        %v2747 = vld [vmem:[%s292 + $0x48d0] sm:$0xff]
        %v2748 = vld [vmem:[%s292 + $0x48d8] sm:$0xff]
        %v2749 = vld [vmem:[%s292 + $0x48e0] sm:$0xff]
        %v2750 = vld [vmem:[%s292 + $0x48e8] sm:$0xff]
        %v2751 = vld [vmem:[%s292 + $0x48f0] sm:$0xff]
        %v2752 = vld [vmem:[%s292 + $0x48f8] sm:$0xff]
        %v2753 = vld [vmem:[%s292 + $0x4900] sm:$0xff]
        %v2754 = vld [vmem:[%s292 + $0x4908] sm:$0xff]
        %v2755 = vld [vmem:[%s292 + $0x4910] sm:$0xff]
        %v2756 = vld [vmem:[%s292 + $0x4918] sm:$0xff]
        %v2757 = vld [vmem:[%s292 + $0x4920] sm:$0xff]
        %v2758 = vld [vmem:[%s292 + $0x4928] sm:$0xff]
        %v2759 = vld [vmem:[%s292 + $0x4930] sm:$0xff]
        %v2760 = vld [vmem:[%s292 + $0x4938] sm:$0xff]
        %v2761 = vld [vmem:[%s292 + $0x4940] sm:$0xff]
        %v2762 = vld [vmem:[%s292 + $0x4948] sm:$0xff]
        %v2763 = vld [vmem:[%s292 + $0x4950] sm:$0xff]
        %v2764 = vld [vmem:[%s292 + $0x4958] sm:$0xff]
        %v2765 = vld [vmem:[%s292 + $0x4960] sm:$0xff]
        %v2766 = vld [vmem:[%s292 + $0x4968] sm:$0xff]
        %v2767 = vld [vmem:[%s292 + $0x4970] sm:$0xff]
        %v2768 = vld [vmem:[%s292 + $0x4978] sm:$0xff]
        %v2769 = vld [vmem:[%s292 + $0x4980] sm:$0xff]
        %v2770 = vld [vmem:[%s292 + $0x4988] sm:$0xff]
        %v2771 = vld [vmem:[%s292 + $0x4990] sm:$0xff]
        %v2772 = vld [vmem:[%s292 + $0x4998] sm:$0xff]
        %v2773 = vld [vmem:[%s292 + $0x49a0] sm:$0xff]
        %v2774 = vld [vmem:[%s292 + $0x49a8] sm:$0xff]
        %v2775 = vld [vmem:[%s292 + $0x49b0] sm:$0xff]
        %v2776 = vld [vmem:[%s292 + $0x49b8] sm:$0xff]
        %v2777 = vld [vmem:[%s292 + $0x49c0] sm:$0xff]
        %v2778 = vld [vmem:[%s292 + $0x49c8] sm:$0xff]
        %v2779 = vld [vmem:[%s292 + $0x49d0] sm:$0xff]
        %v2780 = vld [vmem:[%s292 + $0x49d8] sm:$0xff]
        %v2781 = vld [vmem:[%s292 + $0x49e0] sm:$0xff]
        %v2782 = vld [vmem:[%s292 + $0x49e8] sm:$0xff]
        %v2783 = vld [vmem:[%s292 + $0x49f0] sm:$0xff]
        %v2784 = vld [vmem:[%s292 + $0x49f8] sm:$0xff]
        %v2785 = vld [vmem:[%s292 + $0x4a00] sm:$0xff]
        %v2786 = vld [vmem:[%s292 + $0x4a08] sm:$0xff]
        %v2787 = vld [vmem:[%s292 + $0x4a10] sm:$0xff]
        %v2788 = vld [vmem:[%s292 + $0x4a18] sm:$0xff]
        %v2789 = vld [vmem:[%s292 + $0x4a20] sm:$0xff]
        %v2790 = vld [vmem:[%s292 + $0x4a28] sm:$0xff]
        %v2791 = vld [vmem:[%s292 + $0x4a30] sm:$0xff]
        %v2792 = vld [vmem:[%s292 + $0x4a38] sm:$0xff]
        %v2793 = vld [vmem:[%s292 + $0x4a40] sm:$0xff]
        %v2794 = vld [vmem:[%s292 + $0x4a48] sm:$0xff]
        %v2795 = vld [vmem:[%s292 + $0x4a50] sm:$0xff]
        %v2796 = vld [vmem:[%s292 + $0x4a58] sm:$0xff]
        %v2797 = vld [vmem:[%s292 + $0x4a60] sm:$0xff]
        %v2798 = vld [vmem:[%s292 + $0x4a68] sm:$0xff]
        %v2799 = vld [vmem:[%s292 + $0x4a70] sm:$0xff]
        %v2800 = vld [vmem:[%s292 + $0x4a78] sm:$0xff]
        %v2801 = vld [vmem:[%s292 + $0x4a80] sm:$0xff]
        %v2802 = vld [vmem:[%s292 + $0x4a88] sm:$0xff]
        %v2803 = vld [vmem:[%s292 + $0x4a90] sm:$0xff]
        %v2804 = vld [vmem:[%s292 + $0x4a98] sm:$0xff]
        %v2805 = vld [vmem:[%s292 + $0x4aa0] sm:$0xff]
        %v2806 = vld [vmem:[%s292 + $0x4aa8] sm:$0xff]
        %v2807 = vld [vmem:[%s292 + $0x4ab0] sm:$0xff]
        %v2808 = vld [vmem:[%s292 + $0x4ab8] sm:$0xff]
        %v2809 = vld [vmem:[%s292 + $0x4ac0] sm:$0xff]
        %v2810 = vld [vmem:[%s292 + $0x4ac8] sm:$0xff]
        %v2811 = vld [vmem:[%s292 + $0x4ad0] sm:$0xff]
        %v2812 = vld [vmem:[%s292 + $0x4ad8] sm:$0xff]
        %v2813 = vld [vmem:[%s292 + $0x4ae0] sm:$0xff]
        %v2814 = vld [vmem:[%s292 + $0x4ae8] sm:$0xff]
        %v2815 = vld [vmem:[%s292 + $0x4af0] sm:$0xff]
        %v2816 = vld [vmem:[%s292 + $0x4af8] sm:$0xff]
        %v2817 = vld [vmem:[%s292 + $0x4b00] sm:$0xff]
        %v2818 = vld [vmem:[%s292 + $0x4b08] sm:$0xff]
        %v2819 = vld [vmem:[%s292 + $0x4b10] sm:$0xff]
        %v2820 = vld [vmem:[%s292 + $0x4b18] sm:$0xff]
        %v2821 = vld [vmem:[%s292 + $0x4b20] sm:$0xff]
        %v2822 = vld [vmem:[%s292 + $0x4b28] sm:$0xff]
        %v2823 = vld [vmem:[%s292 + $0x4b30] sm:$0xff]
        %v2824 = vld [vmem:[%s292 + $0x4b38] sm:$0xff]
        %v2825 = vld [vmem:[%s292 + $0x4b40] sm:$0xff]
        %v2826 = vld [vmem:[%s292 + $0x4b48] sm:$0xff]
        %v2827 = vld [vmem:[%s292 + $0x4b50] sm:$0xff]
        %v2828 = vld [vmem:[%s292 + $0x4b58] sm:$0xff]
        %v2829 = vld [vmem:[%s292 + $0x4b60] sm:$0xff]
        %v2830 = vld [vmem:[%s292 + $0x4b68] sm:$0xff]
        %v2831 = vld [vmem:[%s292 + $0x4b70] sm:$0xff]
        %v2832 = vld [vmem:[%s292 + $0x4b78] sm:$0xff]
        %v2833 = vld [vmem:[%s292 + $0x4b80] sm:$0xff]
        %v2834 = vld [vmem:[%s292 + $0x4b88] sm:$0xff]
        %v2835 = vld [vmem:[%s292 + $0x4b90] sm:$0xff]
        %v2836 = vld [vmem:[%s292 + $0x4b98] sm:$0xff]
        %v2837 = vld [vmem:[%s292 + $0x4ba0] sm:$0xff]
        %v2838 = vld [vmem:[%s292 + $0x4ba8] sm:$0xff]
        %v2839 = vld [vmem:[%s292 + $0x4bb0] sm:$0xff]
        %v2840 = vld [vmem:[%s292 + $0x4bb8] sm:$0xff]
        %v2841 = vld [vmem:[%s292 + $0x4bc0] sm:$0xff]
        %v2842 = vld [vmem:[%s292 + $0x4bc8] sm:$0xff]
        %v2843 = vld [vmem:[%s292 + $0x4bd0] sm:$0xff]
        %v2844 = vld [vmem:[%s292 + $0x4bd8] sm:$0xff]
        %v2845 = vld [vmem:[%s292 + $0x4be0] sm:$0xff]
        %v2846 = vld [vmem:[%s292 + $0x4be8] sm:$0xff]
        %v2847 = vld [vmem:[%s292 + $0x4bf0] sm:$0xff]
        %v2848 = vld [vmem:[%s292 + $0x4bf8] sm:$0xff]
        %v2849 = vld [vmem:[%s292 + $0x4c00] sm:$0xff]
        %v2850 = vld [vmem:[%s292 + $0x4c08] sm:$0xff]
        %v2851 = vld [vmem:[%s292 + $0x4c10] sm:$0xff]
        %v2852 = vld [vmem:[%s292 + $0x4c18] sm:$0xff]
        %v2853 = vld [vmem:[%s292 + $0x4c20] sm:$0xff]
        %v2854 = vld [vmem:[%s292 + $0x4c28] sm:$0xff]
        %v2855 = vld [vmem:[%s292 + $0x4c30] sm:$0xff]
        %v2856 = vld [vmem:[%s292 + $0x4c38] sm:$0xff]
        %v2857 = vld [vmem:[%s292 + $0x4c40] sm:$0xff]
        %v2858 = vld [vmem:[%s292 + $0x4c48] sm:$0xff]
        %v2859 = vld [vmem:[%s292 + $0x4c50] sm:$0xff]
        %v2860 = vld [vmem:[%s292 + $0x4c58] sm:$0xff]
        %v2861 = vld [vmem:[%s292 + $0x4c60] sm:$0xff]
        %v2862 = vld [vmem:[%s292 + $0x4c68] sm:$0xff]
        %v2863 = vld [vmem:[%s292 + $0x4c70] sm:$0xff]
        %v2864 = vld [vmem:[%s292 + $0x4c78] sm:$0xff]
        %v2865 = vld [vmem:[%s292 + $0x4c80] sm:$0xff]
        %v2866 = vld [vmem:[%s292 + $0x4c88] sm:$0xff]
        %v2867 = vld [vmem:[%s292 + $0x4c90] sm:$0xff]
        %v2868 = vld [vmem:[%s292 + $0x4c98] sm:$0xff]
        %v2869 = vld [vmem:[%s292 + $0x4ca0] sm:$0xff]
        %v2870 = vld [vmem:[%s292 + $0x4ca8] sm:$0xff]
        %v2871 = vld [vmem:[%s292 + $0x4cb0] sm:$0xff]
        %v2872 = vld [vmem:[%s292 + $0x4cb8] sm:$0xff]
        %v2873 = vld [vmem:[%s292 + $0x4cc0] sm:$0xff]
        %v2874 = vld [vmem:[%s292 + $0x4cc8] sm:$0xff]
        %v2875 = vld [vmem:[%s292 + $0x4cd0] sm:$0xff]
        %v2876 = vld [vmem:[%s292 + $0x4cd8] sm:$0xff]
        %v2877 = vld [vmem:[%s292 + $0x4ce0] sm:$0xff]
        %v2878 = vld [vmem:[%s292 + $0x4ce8] sm:$0xff]
        %v2879 = vld [vmem:[%s292 + $0x4cf0] sm:$0xff]
        %v2880 = vld [vmem:[%s292 + $0x4cf8] sm:$0xff]
        %v2881 = vld [vmem:[%s292 + $0x4d00] sm:$0xff]
        %v2882 = vld [vmem:[%s292 + $0x4d08] sm:$0xff]
        %v2883 = vld [vmem:[%s292 + $0x4d10] sm:$0xff]
        %v2884 = vld [vmem:[%s292 + $0x4d18] sm:$0xff]
        %v2885 = vld [vmem:[%s292 + $0x4d20] sm:$0xff]
        %v2886 = vld [vmem:[%s292 + $0x4d28] sm:$0xff]
        %v2887 = vld [vmem:[%s292 + $0x4d30] sm:$0xff]
        %v2888 = vld [vmem:[%s292 + $0x4d38] sm:$0xff]
        %v2889 = vld [vmem:[%s292 + $0x4d40] sm:$0xff]
        %v2890 = vld [vmem:[%s292 + $0x4d48] sm:$0xff]
        %v2891 = vld [vmem:[%s292 + $0x4d50] sm:$0xff]
        %v2892 = vld [vmem:[%s292 + $0x4d58] sm:$0xff]
        %v2893 = vld [vmem:[%s292 + $0x4d60] sm:$0xff]
        %v2894 = vld [vmem:[%s292 + $0x4d68] sm:$0xff]
        %v2895 = vld [vmem:[%s292 + $0x4d70] sm:$0xff]
        %v2896 = vld [vmem:[%s292 + $0x4d78] sm:$0xff]
        %v2897 = vld [vmem:[%s292 + $0x4d80] sm:$0xff]
        %v2898 = vld [vmem:[%s292 + $0x4d88] sm:$0xff]
        %v2899 = vld [vmem:[%s292 + $0x4d90] sm:$0xff]
        %v2900 = vld [vmem:[%s292 + $0x4d98] sm:$0xff]
        %v2901 = vld [vmem:[%s292 + $0x4da0] sm:$0xff]
        %v2902 = vld [vmem:[%s292 + $0x4da8] sm:$0xff]
        %v2903 = vld [vmem:[%s292 + $0x4db0] sm:$0xff]
        %v2904 = vld [vmem:[%s292 + $0x4db8] sm:$0xff]
        %v2905 = vld [vmem:[%s292 + $0x4dc0] sm:$0xff]
        %v2906 = vld [vmem:[%s292 + $0x4dc8] sm:$0xff]
        %v2907 = vld [vmem:[%s292 + $0x4dd0] sm:$0xff]
        %v2908 = vld [vmem:[%s292 + $0x4dd8] sm:$0xff]
        %v2909 = vld [vmem:[%s292 + $0x4de0] sm:$0xff]
        %v2910 = vld [vmem:[%s292 + $0x4de8] sm:$0xff]
        %v2911 = vld [vmem:[%s292 + $0x4df0] sm:$0xff]
        %v2912 = vld [vmem:[%s292 + $0x4df8] sm:$0xff]
        %v2913 = vld [vmem:[%s292 + $0x4e00] sm:$0xff]
        %v2914 = vld [vmem:[%s292 + $0x4e08] sm:$0xff]
        %v2915 = vld [vmem:[%s292 + $0x4e10] sm:$0xff]
        %v2916 = vld [vmem:[%s292 + $0x4e18] sm:$0xff]
        %v2917 = vld [vmem:[%s292 + $0x4e20] sm:$0xff]
        %v2918 = vld [vmem:[%s292 + $0x4e28] sm:$0xff]
        %v2919 = vld [vmem:[%s292 + $0x4e30] sm:$0xff]
        %v2920 = vld [vmem:[%s292 + $0x4e38] sm:$0xff]
        %v2921 = vld [vmem:[%s292 + $0x4e40] sm:$0xff]
        %v2922 = vld [vmem:[%s292 + $0x4e48] sm:$0xff]
        %v2923 = vld [vmem:[%s292 + $0x4e50] sm:$0xff]
        %v2924 = vld [vmem:[%s292 + $0x4e58] sm:$0xff]
        %v2925 = vld [vmem:[%s292 + $0x4e60] sm:$0xff]
        %v2926 = vld [vmem:[%s292 + $0x4e68] sm:$0xff]
        %v2927 = vld [vmem:[%s292 + $0x4e70] sm:$0xff]
        %v2928 = vld [vmem:[%s292 + $0x4e78] sm:$0xff]
        %v2929 = vld [vmem:[%s292 + $0x4e80] sm:$0xff]
        %v2930 = vld [vmem:[%s292 + $0x4e88] sm:$0xff]
        %v2931 = vld [vmem:[%s292 + $0x4e90] sm:$0xff]
        %v2932 = vld [vmem:[%s292 + $0x4e98] sm:$0xff]
        %v2933 = vld [vmem:[%s292 + $0x4ea0] sm:$0xff]
        %v2934 = vld [vmem:[%s292 + $0x4ea8] sm:$0xff]
        %v2935 = vld [vmem:[%s292 + $0x4eb0] sm:$0xff]
        %v2936 = vld [vmem:[%s292 + $0x4eb8] sm:$0xff]
        %v2937 = vld [vmem:[%s292 + $0x4ec0] sm:$0xff]
        %v2938 = vld [vmem:[%s292 + $0x4ec8] sm:$0xff]
        %v2939 = vld [vmem:[%s292 + $0x4ed0] sm:$0xff]
        %v2940 = vld [vmem:[%s292 + $0x4ed8] sm:$0xff]
        %v2941 = vld [vmem:[%s292 + $0x4ee0] sm:$0xff]
        %v2942 = vld [vmem:[%s292 + $0x4ee8] sm:$0xff]
        %v2943 = vld [vmem:[%s292 + $0x4ef0] sm:$0xff]
        %v2944 = vld [vmem:[%s292 + $0x4ef8] sm:$0xff]
        %v2945 = vld [vmem:[%s292 + $0x4f00] sm:$0xff]
        %v2946 = vld [vmem:[%s292 + $0x4f08] sm:$0xff]
        %v2947 = vld [vmem:[%s292 + $0x4f10] sm:$0xff]
        %v2948 = vld [vmem:[%s292 + $0x4f18] sm:$0xff]
        %v2949 = vld [vmem:[%s292 + $0x4f20] sm:$0xff]
        %v2950 = vld [vmem:[%s292 + $0x4f28] sm:$0xff]
        %v2951 = vld [vmem:[%s292 + $0x4f30] sm:$0xff]
        %v2952 = vld [vmem:[%s292 + $0x4f38] sm:$0xff]
        %v2953 = vld [vmem:[%s292 + $0x4f40] sm:$0xff]
        %v2954 = vld [vmem:[%s292 + $0x4f48] sm:$0xff]
        %v2955 = vld [vmem:[%s292 + $0x4f50] sm:$0xff]
        %v2956 = vld [vmem:[%s292 + $0x4f58] sm:$0xff]
        %v2957 = vld [vmem:[%s292 + $0x4f60] sm:$0xff]
        %v2958 = vld [vmem:[%s292 + $0x4f68] sm:$0xff]
        %v2959 = vld [vmem:[%s292 + $0x4f70] sm:$0xff]
        %v2960 = vld [vmem:[%s292 + $0x4f78] sm:$0xff]
        %v2961 = vld [vmem:[%s292 + $0x4f80] sm:$0xff]
        %v2962 = vld [vmem:[%s292 + $0x4f88] sm:$0xff]
        %v2963 = vld [vmem:[%s292 + $0x4f90] sm:$0xff]
        %v2964 = vld [vmem:[%s292 + $0x4f98] sm:$0xff]
        %v2965 = vld [vmem:[%s292 + $0x4fa0] sm:$0xff]
        %v2966 = vld [vmem:[%s292 + $0x4fa8] sm:$0xff]
        %v2967 = vld [vmem:[%s292 + $0x4fb0] sm:$0xff]
        %v2968 = vld [vmem:[%s292 + $0x4fb8] sm:$0xff]
        %v2969 = vld [vmem:[%s292 + $0x4fc0] sm:$0xff]
        %v2970 = vld [vmem:[%s292 + $0x4fc8] sm:$0xff]
        %v2971 = vld [vmem:[%s292 + $0x4fd0] sm:$0xff]
        %v2972 = vld [vmem:[%s292 + $0x4fd8] sm:$0xff]
        %v2973 = vld [vmem:[%s292 + $0x4fe0] sm:$0xff]
        %v2974 = vld [vmem:[%s292 + $0x4fe8] sm:$0xff]
        %v2975 = vld [vmem:[%s292 + $0x4ff0] sm:$0xff]
        %v2976 = vld [vmem:[%s292 + $0x4ff8] sm:$0xff]
        %v2977 = vld [vmem:[%s292 + $0x5000] sm:$0xff]
        %v2978 = vld [vmem:[%s292 + $0x5008] sm:$0xff]
        %v2979 = vld [vmem:[%s292 + $0x5010] sm:$0xff]
        %v2980 = vld [vmem:[%s292 + $0x5018] sm:$0xff]
        %v2981 = vld [vmem:[%s292 + $0x5020] sm:$0xff]
        %v2982 = vld [vmem:[%s292 + $0x5028] sm:$0xff]
        %v2983 = vld [vmem:[%s292 + $0x5030] sm:$0xff]
        %v2984 = vld [vmem:[%s292 + $0x5038] sm:$0xff]
        %v2985 = vld [vmem:[%s292 + $0x5040] sm:$0xff]
        %v2986 = vld [vmem:[%s292 + $0x5048] sm:$0xff]
        %v2987 = vld [vmem:[%s292 + $0x5050] sm:$0xff]
        %v2988 = vld [vmem:[%s292 + $0x5058] sm:$0xff]
        %v2989 = vld [vmem:[%s292 + $0x5060] sm:$0xff]
        %v2990 = vld [vmem:[%s292 + $0x5068] sm:$0xff]
        %v2991 = vld [vmem:[%s292 + $0x5070] sm:$0xff]
        %v2992 = vld [vmem:[%s292 + $0x5078] sm:$0xff]
        %v2993 = vld [vmem:[%s292 + $0x5080] sm:$0xff]
        %v2994 = vld [vmem:[%s292 + $0x5088] sm:$0xff]
        %v2995 = vld [vmem:[%s292 + $0x5090] sm:$0xff]
        %v2996 = vld [vmem:[%s292 + $0x5098] sm:$0xff]
        %v2997 = vld [vmem:[%s292 + $0x50a0] sm:$0xff]
        %v2998 = vld [vmem:[%s292 + $0x50a8] sm:$0xff]
        %v2999 = vld [vmem:[%s292 + $0x50b0] sm:$0xff]
        %v3000 = vld [vmem:[%s292 + $0x50b8] sm:$0xff]
        %v3001 = vld [vmem:[%s292 + $0x50c0] sm:$0xff]
        %v3002 = vld [vmem:[%s292 + $0x50c8] sm:$0xff]
        %v3003 = vld [vmem:[%s292 + $0x50d0] sm:$0xff]
        %v3004 = vld [vmem:[%s292 + $0x50d8] sm:$0xff]
        %v3005 = vld [vmem:[%s292 + $0x50e0] sm:$0xff]
        %v3006 = vld [vmem:[%s292 + $0x50e8] sm:$0xff]
        %v3007 = vld [vmem:[%s292 + $0x50f0] sm:$0xff]
        %v3008 = vld [vmem:[%s292 + $0x50f8] sm:$0xff]
        %v3009 = vld [vmem:[%s292 + $0x5100] sm:$0xff]
        %v3010 = vld [vmem:[%s292 + $0x5108] sm:$0xff]
        %v3011 = vld [vmem:[%s292 + $0x5110] sm:$0xff]
        %v3012 = vld [vmem:[%s292 + $0x5118] sm:$0xff]
        %v3013 = vld [vmem:[%s292 + $0x5120] sm:$0xff]
        %v3014 = vld [vmem:[%s292 + $0x5128] sm:$0xff]
        %v3015 = vld [vmem:[%s292 + $0x5130] sm:$0xff]
        %v3016 = vld [vmem:[%s292 + $0x5138] sm:$0xff]
        %v3017 = vld [vmem:[%s292 + $0x5140] sm:$0xff]
        %v3018 = vld [vmem:[%s292 + $0x5148] sm:$0xff]
        %v3019 = vld [vmem:[%s292 + $0x5150] sm:$0xff]
        %v3020 = vld [vmem:[%s292 + $0x5158] sm:$0xff]
        %v3021 = vld [vmem:[%s292 + $0x5160] sm:$0xff]
        %v3022 = vld [vmem:[%s292 + $0x5168] sm:$0xff]
        %v3023 = vld [vmem:[%s292 + $0x5170] sm:$0xff]
        %v3024 = vld [vmem:[%s292 + $0x5178] sm:$0xff]
        %v3025 = vld [vmem:[%s292 + $0x5180] sm:$0xff]
        %v3026 = vld [vmem:[%s292 + $0x5188] sm:$0xff]
        %v3027 = vld [vmem:[%s292 + $0x5190] sm:$0xff]
        %v3028 = vld [vmem:[%s292 + $0x5198] sm:$0xff]
        %v3029 = vld [vmem:[%s292 + $0x51a0] sm:$0xff]
        %v3030 = vld [vmem:[%s292 + $0x51a8] sm:$0xff]
        %v3031 = vld [vmem:[%s292 + $0x51b0] sm:$0xff]
        %v3032 = vld [vmem:[%s292 + $0x51b8] sm:$0xff]
        %v3033 = vld [vmem:[%s292 + $0x51c0] sm:$0xff]
        %v3034 = vld [vmem:[%s292 + $0x51c8] sm:$0xff]
        %v3035 = vld [vmem:[%s292 + $0x51d0] sm:$0xff]
        %v3036 = vld [vmem:[%s292 + $0x51d8] sm:$0xff]
        %v3037 = vld [vmem:[%s292 + $0x51e0] sm:$0xff]
        %v3038 = vld [vmem:[%s292 + $0x51e8] sm:$0xff]
        %v3039 = vld [vmem:[%s292 + $0x51f0] sm:$0xff]
        %v3040 = vld [vmem:[%s292 + $0x51f8] sm:$0xff]
        %v3041 = vld [vmem:[%s292 + $0x5200] sm:$0xff]
        %v3042 = vld [vmem:[%s292 + $0x5208] sm:$0xff]
        %v3043 = vld [vmem:[%s292 + $0x5210] sm:$0xff]
        %v3044 = vld [vmem:[%s292 + $0x5218] sm:$0xff]
        %v3045 = vld [vmem:[%s292 + $0x5220] sm:$0xff]
        %v3046 = vld [vmem:[%s292 + $0x5228] sm:$0xff]
        %v3047 = vld [vmem:[%s292 + $0x5230] sm:$0xff]
        %v3048 = vld [vmem:[%s292 + $0x5238] sm:$0xff]
        %v3049 = vld [vmem:[%s292 + $0x5240] sm:$0xff]
        %v3050 = vld [vmem:[%s292 + $0x5248] sm:$0xff]
        %v3051 = vld [vmem:[%s292 + $0x5250] sm:$0xff]
        %v3052 = vld [vmem:[%s292 + $0x5258] sm:$0xff]
        %v3053 = vld [vmem:[%s292 + $0x5260] sm:$0xff]
        %v3054 = vld [vmem:[%s292 + $0x5268] sm:$0xff]
        %v3055 = vld [vmem:[%s292 + $0x5270] sm:$0xff]
        %v3056 = vld [vmem:[%s292 + $0x5278] sm:$0xff]
        %v3057 = vld [vmem:[%s292 + $0x5280] sm:$0xff]
        %v3058 = vld [vmem:[%s292 + $0x5288] sm:$0xff]
        %v3059 = vld [vmem:[%s292 + $0x5290] sm:$0xff]
        %v3060 = vld [vmem:[%s292 + $0x5298] sm:$0xff]
        %v3061 = vld [vmem:[%s292 + $0x52a0] sm:$0xff]
        %v3062 = vld [vmem:[%s292 + $0x52a8] sm:$0xff]
        %v3063 = vld [vmem:[%s292 + $0x52b0] sm:$0xff]
        %v3064 = vld [vmem:[%s292 + $0x52b8] sm:$0xff]
        %v3065 = vld [vmem:[%s292 + $0x52c0] sm:$0xff]
        %v3066 = vld [vmem:[%s292 + $0x52c8] sm:$0xff]
        %v3067 = vld [vmem:[%s292 + $0x52d0] sm:$0xff]
        %v3068 = vld [vmem:[%s292 + $0x52d8] sm:$0xff]
        %v3069 = vld [vmem:[%s292 + $0x52e0] sm:$0xff]
        %v3070 = vld [vmem:[%s292 + $0x52e8] sm:$0xff]
        %v3071 = vld [vmem:[%s292 + $0x52f0] sm:$0xff]
        %v3072 = vld [vmem:[%s292 + $0x52f8] sm:$0xff]
        %v3073 = vld [vmem:[%s292 + $0x5300] sm:$0xff]
        %v3074 = vld [vmem:[%s292 + $0x5308] sm:$0xff]
        %v3075 = vld [vmem:[%s292 + $0x5310] sm:$0xff]
        %v3076 = vld [vmem:[%s292 + $0x5318] sm:$0xff]
        %v3077 = vld [vmem:[%s292 + $0x5320] sm:$0xff]
        %v3078 = vld [vmem:[%s292 + $0x5328] sm:$0xff]
        %v3079 = vld [vmem:[%s292 + $0x5330] sm:$0xff]
        %v3080 = vld [vmem:[%s292 + $0x5338] sm:$0xff]
        %v3081 = vld [vmem:[%s292 + $0x5340] sm:$0xff]
        %v3082 = vld [vmem:[%s292 + $0x5348] sm:$0xff]
        %v3083 = vld [vmem:[%s292 + $0x5350] sm:$0xff]
        %v3084 = vld [vmem:[%s292 + $0x5358] sm:$0xff]
        %v3085 = vld [vmem:[%s292 + $0x5360] sm:$0xff]
        %v3086 = vld [vmem:[%s292 + $0x5368] sm:$0xff]
        %v3087 = vld [vmem:[%s292 + $0x5370] sm:$0xff]
        %v3088 = vld [vmem:[%s292 + $0x5378] sm:$0xff]
        %v3089 = vld [vmem:[%s292 + $0x5380] sm:$0xff]
        %v3090 = vld [vmem:[%s292 + $0x5388] sm:$0xff]
        %v3091 = vld [vmem:[%s292 + $0x5390] sm:$0xff]
        %v3092 = vld [vmem:[%s292 + $0x5398] sm:$0xff]
        %v3093 = vld [vmem:[%s292 + $0x53a0] sm:$0xff]
        %v3094 = vld [vmem:[%s292 + $0x53a8] sm:$0xff]
        %v3095 = vld [vmem:[%s292 + $0x53b0] sm:$0xff]
        %v3096 = vld [vmem:[%s292 + $0x53b8] sm:$0xff]
        %v3097 = vld [vmem:[%s292 + $0x53c0] sm:$0xff]
        %v3098 = vld [vmem:[%s292 + $0x53c8] sm:$0xff]
        %v3099 = vld [vmem:[%s292 + $0x53d0] sm:$0xff]
        %v3100 = vld [vmem:[%s292 + $0x53d8] sm:$0xff]
        %v3101 = vld [vmem:[%s292 + $0x53e0] sm:$0xff]
        %v3102 = vld [vmem:[%s292 + $0x53e8] sm:$0xff]
        %v3103 = vld [vmem:[%s292 + $0x53f0] sm:$0xff]
        %v3104 = vld [vmem:[%s292 + $0x53f8] sm:$0xff]
        %v3105 = vld [vmem:[%s292 + $0x5400] sm:$0xff]
        %v3106 = vld [vmem:[%s292 + $0x5408] sm:$0xff]
        %v3107 = vld [vmem:[%s292 + $0x5410] sm:$0xff]
        %v3108 = vld [vmem:[%s292 + $0x5418] sm:$0xff]
        %v3109 = vld [vmem:[%s292 + $0x5420] sm:$0xff]
        %v3110 = vld [vmem:[%s292 + $0x5428] sm:$0xff]
        %v3111 = vld [vmem:[%s292 + $0x5430] sm:$0xff]
        %v3112 = vld [vmem:[%s292 + $0x5438] sm:$0xff]
        %v3113 = vld [vmem:[%s292 + $0x5440] sm:$0xff]
        %v3114 = vld [vmem:[%s292 + $0x5448] sm:$0xff]
        %v3115 = vld [vmem:[%s292 + $0x5450] sm:$0xff]
        %v3116 = vld [vmem:[%s292 + $0x5458] sm:$0xff]
        %v3117 = vld [vmem:[%s292 + $0x5460] sm:$0xff]
        %v3118 = vld [vmem:[%s292 + $0x5468] sm:$0xff]
        %v3119 = vld [vmem:[%s292 + $0x5470] sm:$0xff]
        %v3120 = vld [vmem:[%s292 + $0x5478] sm:$0xff]
        %v3121 = vld [vmem:[%s292 + $0x5480] sm:$0xff]
        %v3122 = vld [vmem:[%s292 + $0x5488] sm:$0xff]
        %v3123 = vld [vmem:[%s292 + $0x5490] sm:$0xff]
        %v3124 = vld [vmem:[%s292 + $0x5498] sm:$0xff]
        %v3125 = vld [vmem:[%s292 + $0x54a0] sm:$0xff]
        %v3126 = vld [vmem:[%s292 + $0x54a8] sm:$0xff]
        %v3127 = vld [vmem:[%s292 + $0x54b0] sm:$0xff]
        %v3128 = vld [vmem:[%s292 + $0x54b8] sm:$0xff]
        %v3129 = vld [vmem:[%s292 + $0x54c0] sm:$0xff]
        %v3130 = vld [vmem:[%s292 + $0x54c8] sm:$0xff]
        %v3131 = vld [vmem:[%s292 + $0x54d0] sm:$0xff]
        %v3132 = vld [vmem:[%s292 + $0x54d8] sm:$0xff]
        %v3133 = vld [vmem:[%s292 + $0x54e0] sm:$0xff]
        %v3134 = vld [vmem:[%s292 + $0x54e8] sm:$0xff]
        %v3135 = vld [vmem:[%s292 + $0x54f0] sm:$0xff]
        %v3136 = vld [vmem:[%s292 + $0x54f8] sm:$0xff]
        %v3137 = vld [vmem:[%s292 + $0x5500] sm:$0xff]
        %v3138 = vld [vmem:[%s292 + $0x5508] sm:$0xff]
        %v3139 = vld [vmem:[%s292 + $0x5510] sm:$0xff]
        %v3140 = vld [vmem:[%s292 + $0x5518] sm:$0xff]
        %v3141 = vld [vmem:[%s292 + $0x5520] sm:$0xff]
        %v3142 = vld [vmem:[%s292 + $0x5528] sm:$0xff]
        %v3143 = vld [vmem:[%s292 + $0x5530] sm:$0xff]
        %v3144 = vld [vmem:[%s292 + $0x5538] sm:$0xff]
        %v3145 = vld [vmem:[%s292 + $0x5540] sm:$0xff]
        %v3146 = vld [vmem:[%s292 + $0x5548] sm:$0xff]
        %v3147 = vld [vmem:[%s292 + $0x5550] sm:$0xff]
        %v3148 = vld [vmem:[%s292 + $0x5558] sm:$0xff]
        %v3149 = vld [vmem:[%s292 + $0x5560] sm:$0xff]
        %v3150 = vld [vmem:[%s292 + $0x5568] sm:$0xff]
        %v3151 = vld [vmem:[%s292 + $0x5570] sm:$0xff]
        %v3152 = vld [vmem:[%s292 + $0x5578] sm:$0xff]
        %v3153 = vld [vmem:[%s292 + $0x5580] sm:$0xff]
        %v3154 = vld [vmem:[%s292 + $0x5588] sm:$0xff]
        %v3155 = vld [vmem:[%s292 + $0x5590] sm:$0xff]
        %v3156 = vld [vmem:[%s292 + $0x5598] sm:$0xff]
        %v3157 = vld [vmem:[%s292 + $0x55a0] sm:$0xff]
        %v3158 = vld [vmem:[%s292 + $0x55a8] sm:$0xff]
        %v3159 = vld [vmem:[%s292 + $0x55b0] sm:$0xff]
        %v3160 = vld [vmem:[%s292 + $0x55b8] sm:$0xff]
        %v3161 = vld [vmem:[%s292 + $0x55c0] sm:$0xff]
        %v3162 = vld [vmem:[%s292 + $0x55c8] sm:$0xff]
        %v3163 = vld [vmem:[%s292 + $0x55d0] sm:$0xff]
        %v3164 = vld [vmem:[%s292 + $0x55d8] sm:$0xff]
        %v3165 = vld [vmem:[%s292 + $0x55e0] sm:$0xff]
        %v3166 = vld [vmem:[%s292 + $0x55e8] sm:$0xff]
        %v3167 = vld [vmem:[%s292 + $0x55f0] sm:$0xff]
        %v3168 = vld [vmem:[%s292 + $0x55f8] sm:$0xff]
        %v3169 = vld [vmem:[%s292 + $0x5600] sm:$0xff]
        %v3170 = vld [vmem:[%s292 + $0x5608] sm:$0xff]
        %v3171 = vld [vmem:[%s292 + $0x5610] sm:$0xff]
        %v3172 = vld [vmem:[%s292 + $0x5618] sm:$0xff]
        %v3173 = vld [vmem:[%s292 + $0x5620] sm:$0xff]
        %v3174 = vld [vmem:[%s292 + $0x5628] sm:$0xff]
        %v3175 = vld [vmem:[%s292 + $0x5630] sm:$0xff]
        %v3176 = vld [vmem:[%s292 + $0x5638] sm:$0xff]
        %v3177 = vld [vmem:[%s292 + $0x5640] sm:$0xff]
        %v3178 = vld [vmem:[%s292 + $0x5648] sm:$0xff]
        %v3179 = vld [vmem:[%s292 + $0x5650] sm:$0xff]
        %v3180 = vld [vmem:[%s292 + $0x5658] sm:$0xff]
        %v3181 = vld [vmem:[%s292 + $0x5660] sm:$0xff]
        %v3182 = vld [vmem:[%s292 + $0x5668] sm:$0xff]
        %v3183 = vld [vmem:[%s292 + $0x5670] sm:$0xff]
        %v3184 = vld [vmem:[%s292 + $0x5678] sm:$0xff]
        %v3185 = vld [vmem:[%s292 + $0x5680] sm:$0xff]
        %v3186 = vld [vmem:[%s292 + $0x5688] sm:$0xff]
        %v3187 = vld [vmem:[%s292 + $0x5690] sm:$0xff]
        %v3188 = vld [vmem:[%s292 + $0x5698] sm:$0xff]
        %v3189 = vld [vmem:[%s292 + $0x56a0] sm:$0xff]
        %v3190 = vld [vmem:[%s292 + $0x56a8] sm:$0xff]
        %v3191 = vld [vmem:[%s292 + $0x56b0] sm:$0xff]
        %v3192 = vld [vmem:[%s292 + $0x56b8] sm:$0xff]
        %v3193 = vld [vmem:[%s292 + $0x56c0] sm:$0xff]
        %v3194 = vld [vmem:[%s292 + $0x56c8] sm:$0xff]
        %v3195 = vld [vmem:[%s292 + $0x56d0] sm:$0xff]
        %v3196 = vld [vmem:[%s292 + $0x56d8] sm:$0xff]
        %v3197 = vld [vmem:[%s292 + $0x56e0] sm:$0xff]
        %v3198 = vld [vmem:[%s292 + $0x56e8] sm:$0xff]
        %v3199 = vld [vmem:[%s292 + $0x56f0] sm:$0xff]
        %v3200 = vld [vmem:[%s292 + $0x56f8] sm:$0xff]
        %v3201 = vld [vmem:[%s292 + $0x5700] sm:$0xff]
        %v3202 = vld [vmem:[%s292 + $0x5708] sm:$0xff]
        %v3203 = vld [vmem:[%s292 + $0x5710] sm:$0xff]
        %v3204 = vld [vmem:[%s292 + $0x5718] sm:$0xff]
        %v3205 = vld [vmem:[%s292 + $0x5720] sm:$0xff]
        %v3206 = vld [vmem:[%s292 + $0x5728] sm:$0xff]
        %v3207 = vld [vmem:[%s292 + $0x5730] sm:$0xff]
        %v3208 = vld [vmem:[%s292 + $0x5738] sm:$0xff]
        %v3209 = vld [vmem:[%s292 + $0x5740] sm:$0xff]
        %v3210 = vld [vmem:[%s292 + $0x5748] sm:$0xff]
        %v3211 = vld [vmem:[%s292 + $0x5750] sm:$0xff]
        %v3212 = vld [vmem:[%s292 + $0x5758] sm:$0xff]
        %v3213 = vld [vmem:[%s292 + $0x5760] sm:$0xff]
        %v3214 = vld [vmem:[%s292 + $0x5768] sm:$0xff]
        %v3215 = vld [vmem:[%s292 + $0x5770] sm:$0xff]
        %v3216 = vld [vmem:[%s292 + $0x5778] sm:$0xff]
        %v3217 = vld [vmem:[%s292 + $0x5780] sm:$0xff]
        %v3218 = vld [vmem:[%s292 + $0x5788] sm:$0xff]
        %v3219 = vld [vmem:[%s292 + $0x5790] sm:$0xff]
        %v3220 = vld [vmem:[%s292 + $0x5798] sm:$0xff]
        %v3221 = vld [vmem:[%s292 + $0x57a0] sm:$0xff]
        %v3222 = vld [vmem:[%s292 + $0x57a8] sm:$0xff]
        %v3223 = vld [vmem:[%s292 + $0x57b0] sm:$0xff]
        %v3224 = vld [vmem:[%s292 + $0x57b8] sm:$0xff]
        %v3225 = vld [vmem:[%s292 + $0x57c0] sm:$0xff]
        %v3226 = vld [vmem:[%s292 + $0x57c8] sm:$0xff]
        %v3227 = vld [vmem:[%s292 + $0x57d0] sm:$0xff]
        %v3228 = vld [vmem:[%s292 + $0x57d8] sm:$0xff]
        %v3229 = vld [vmem:[%s292 + $0x57e0] sm:$0xff]
        %v3230 = vld [vmem:[%s292 + $0x57e8] sm:$0xff]
        %v3231 = vld [vmem:[%s292 + $0x57f0] sm:$0xff]
        %v3232 = vld [vmem:[%s292 + $0x57f8] sm:$0xff]
        %v3233 = vld [vmem:[%s292 + $0x5800] sm:$0xff]
        %v3234 = vld [vmem:[%s292 + $0x5808] sm:$0xff]
        %v3235 = vld [vmem:[%s292 + $0x5810] sm:$0xff]
        %v3236 = vld [vmem:[%s292 + $0x5818] sm:$0xff]
        %v3237 = vld [vmem:[%s292 + $0x5820] sm:$0xff]
        %v3238 = vld [vmem:[%s292 + $0x5828] sm:$0xff]
        %v3239 = vld [vmem:[%s292 + $0x5830] sm:$0xff]
        %v3240 = vld [vmem:[%s292 + $0x5838] sm:$0xff]
        %v3241 = vld [vmem:[%s292 + $0x5840] sm:$0xff]
        %v3242 = vld [vmem:[%s292 + $0x5848] sm:$0xff]
        %v3243 = vld [vmem:[%s292 + $0x5850] sm:$0xff]
        %v3244 = vld [vmem:[%s292 + $0x5858] sm:$0xff]
        %v3245 = vld [vmem:[%s292 + $0x5860] sm:$0xff]
        %v3246 = vld [vmem:[%s292 + $0x5868] sm:$0xff]
        %v3247 = vld [vmem:[%s292 + $0x5870] sm:$0xff]
        %v3248 = vld [vmem:[%s292 + $0x5878] sm:$0xff]
        %v3249 = vld [vmem:[%s292 + $0x5880] sm:$0xff]
        %v3250 = vld [vmem:[%s292 + $0x5888] sm:$0xff]
        %v3251 = vld [vmem:[%s292 + $0x5890] sm:$0xff]
        %v3252 = vld [vmem:[%s292 + $0x5898] sm:$0xff]
        %v3253 = vld [vmem:[%s292 + $0x58a0] sm:$0xff]
        %v3254 = vld [vmem:[%s292 + $0x58a8] sm:$0xff]
        %v3255 = vld [vmem:[%s292 + $0x58b0] sm:$0xff]
        %v3256 = vld [vmem:[%s292 + $0x58b8] sm:$0xff]
        %v3257 = vld [vmem:[%s292 + $0x58c0] sm:$0xff]
        %v3258 = vld [vmem:[%s292 + $0x58c8] sm:$0xff]
        %v3259 = vld [vmem:[%s292 + $0x58d0] sm:$0xff]
        %v3260 = vld [vmem:[%s292 + $0x58d8] sm:$0xff]
        %v3261 = vld [vmem:[%s292 + $0x58e0] sm:$0xff]
        %v3262 = vld [vmem:[%s292 + $0x58e8] sm:$0xff]
        %v3263 = vld [vmem:[%s292 + $0x58f0] sm:$0xff]
        %v3264 = vld [vmem:[%s292 + $0x58f8] sm:$0xff]
        %v3265 = vld [vmem:[%s292 + $0x5900] sm:$0xff]
        %v3266 = vld [vmem:[%s292 + $0x5908] sm:$0xff]
        %v3267 = vld [vmem:[%s292 + $0x5910] sm:$0xff]
        %v3268 = vld [vmem:[%s292 + $0x5918] sm:$0xff]
        %v3269 = vld [vmem:[%s292 + $0x5920] sm:$0xff]
        %v3270 = vld [vmem:[%s292 + $0x5928] sm:$0xff]
        %v3271 = vld [vmem:[%s292 + $0x5930] sm:$0xff]
        %v3272 = vld [vmem:[%s292 + $0x5938] sm:$0xff]
        %v3273 = vld [vmem:[%s292 + $0x5940] sm:$0xff]
        %v3274 = vld [vmem:[%s292 + $0x5948] sm:$0xff]
        %v3275 = vld [vmem:[%s292 + $0x5950] sm:$0xff]
        %v3276 = vld [vmem:[%s292 + $0x5958] sm:$0xff]
        %v3277 = vld [vmem:[%s292 + $0x5960] sm:$0xff]
        %v3278 = vld [vmem:[%s292 + $0x5968] sm:$0xff]
        %v3279 = vld [vmem:[%s292 + $0x5970] sm:$0xff]
        %v3280 = vld [vmem:[%s292 + $0x5978] sm:$0xff]
        %v3281 = vld [vmem:[%s292 + $0x5980] sm:$0xff]
        %v3282 = vld [vmem:[%s292 + $0x5988] sm:$0xff]
        %v3283 = vld [vmem:[%s292 + $0x5990] sm:$0xff]
        %v3284 = vld [vmem:[%s292 + $0x5998] sm:$0xff]
        %v3285 = vld [vmem:[%s292 + $0x59a0] sm:$0xff]
        %v3286 = vld [vmem:[%s292 + $0x59a8] sm:$0xff]
        %v3287 = vld [vmem:[%s292 + $0x59b0] sm:$0xff]
        %v3288 = vld [vmem:[%s292 + $0x59b8] sm:$0xff]
        %v3289 = vld [vmem:[%s292 + $0x59c0] sm:$0xff]
        %v3290 = vld [vmem:[%s292 + $0x59c8] sm:$0xff]
        %v3291 = vld [vmem:[%s292 + $0x59d0] sm:$0xff]
        %v3292 = vld [vmem:[%s292 + $0x59d8] sm:$0xff]
        %v3293 = vld [vmem:[%s292 + $0x59e0] sm:$0xff]
        %v3294 = vld [vmem:[%s292 + $0x59e8] sm:$0xff]
        %v3295 = vld [vmem:[%s292 + $0x59f0] sm:$0xff]
        %v3296 = vld [vmem:[%s292 + $0x59f8] sm:$0xff]
        %v3297 = vld [vmem:[%s292 + $0x5a00] sm:$0xff]
        %v3298 = vld [vmem:[%s292 + $0x5a08] sm:$0xff]
        %v3299 = vld [vmem:[%s292 + $0x5a10] sm:$0xff]
        %v3300 = vld [vmem:[%s292 + $0x5a18] sm:$0xff]
        %v3301 = vld [vmem:[%s292 + $0x5a20] sm:$0xff]
        %v3302 = vld [vmem:[%s292 + $0x5a28] sm:$0xff]
        %v3303 = vld [vmem:[%s292 + $0x5a30] sm:$0xff]
        %v3304 = vld [vmem:[%s292 + $0x5a38] sm:$0xff]
        %v3305 = vld [vmem:[%s292 + $0x5a40] sm:$0xff]
        %v3306 = vld [vmem:[%s292 + $0x5a48] sm:$0xff]
        %v3307 = vld [vmem:[%s292 + $0x5a50] sm:$0xff]
        %v3308 = vld [vmem:[%s292 + $0x5a58] sm:$0xff]
        %v3309 = vld [vmem:[%s292 + $0x5a60] sm:$0xff]
        %v3310 = vld [vmem:[%s292 + $0x5a68] sm:$0xff]
        %v3311 = vld [vmem:[%s292 + $0x5a70] sm:$0xff]
        %v3312 = vld [vmem:[%s292 + $0x5a78] sm:$0xff]
        %v3313 = vld [vmem:[%s292 + $0x5a80] sm:$0xff]
        %v3314 = vld [vmem:[%s292 + $0x5a88] sm:$0xff]
        %v3315 = vld [vmem:[%s292 + $0x5a90] sm:$0xff]
        %v3316 = vld [vmem:[%s292 + $0x5a98] sm:$0xff]
        %v3317 = vld [vmem:[%s292 + $0x5aa0] sm:$0xff]
        %v3318 = vld [vmem:[%s292 + $0x5aa8] sm:$0xff]
        %v3319 = vld [vmem:[%s292 + $0x5ab0] sm:$0xff]
        %v3320 = vld [vmem:[%s292 + $0x5ab8] sm:$0xff]
        %v3321 = vld [vmem:[%s292 + $0x5ac0] sm:$0xff]
        %v3322 = vld [vmem:[%s292 + $0x5ac8] sm:$0xff]
        %v3323 = vld [vmem:[%s292 + $0x5ad0] sm:$0xff]
        %v3324 = vld [vmem:[%s292 + $0x5ad8] sm:$0xff]
        %v3325 = vld [vmem:[%s292 + $0x5ae0] sm:$0xff]
        %v3326 = vld [vmem:[%s292 + $0x5ae8] sm:$0xff]
        %v3327 = vld [vmem:[%s292 + $0x5af0] sm:$0xff]
        %v3328 = vld [vmem:[%s292 + $0x5af8] sm:$0xff]
        %v3329 = vld [vmem:[%s292 + $0x5b00] sm:$0xff]
        %v3330 = vld [vmem:[%s292 + $0x5b08] sm:$0xff]
        %v3331 = vld [vmem:[%s292 + $0x5b10] sm:$0xff]
        %v3332 = vld [vmem:[%s292 + $0x5b18] sm:$0xff]
        %v3333 = vld [vmem:[%s292 + $0x5b20] sm:$0xff]
        %v3334 = vld [vmem:[%s292 + $0x5b28] sm:$0xff]
        %v3335 = vld [vmem:[%s292 + $0x5b30] sm:$0xff]
        %v3336 = vld [vmem:[%s292 + $0x5b38] sm:$0xff]
        %v3337 = vld [vmem:[%s292 + $0x5b40] sm:$0xff]
        %v3338 = vld [vmem:[%s292 + $0x5b48] sm:$0xff]
        %v3339 = vld [vmem:[%s292 + $0x5b50] sm:$0xff]
        %v3340 = vld [vmem:[%s292 + $0x5b58] sm:$0xff]
        %v3341 = vld [vmem:[%s292 + $0x5b60] sm:$0xff]
        %v3342 = vld [vmem:[%s292 + $0x5b68] sm:$0xff]
        %v3343 = vld [vmem:[%s292 + $0x5b70] sm:$0xff]
        %v3344 = vld [vmem:[%s292 + $0x5b78] sm:$0xff]
        %v3345 = vld [vmem:[%s292 + $0x5b80] sm:$0xff]
        %v3346 = vld [vmem:[%s292 + $0x5b88] sm:$0xff]
        %v3347 = vld [vmem:[%s292 + $0x5b90] sm:$0xff]
        %v3348 = vld [vmem:[%s292 + $0x5b98] sm:$0xff]
        %v3349 = vld [vmem:[%s292 + $0x5ba0] sm:$0xff]
        %v3350 = vld [vmem:[%s292 + $0x5ba8] sm:$0xff]
        %v3351 = vld [vmem:[%s292 + $0x5bb0] sm:$0xff]
        %v3352 = vld [vmem:[%s292 + $0x5bb8] sm:$0xff]
        %v3353 = vld [vmem:[%s292 + $0x5bc0] sm:$0xff]
        %v3354 = vld [vmem:[%s292 + $0x5bc8] sm:$0xff]
        %v3355 = vld [vmem:[%s292 + $0x5bd0] sm:$0xff]
        %v3356 = vld [vmem:[%s292 + $0x5bd8] sm:$0xff]
        %v3357 = vld [vmem:[%s292 + $0x5be0] sm:$0xff]
        %v3358 = vld [vmem:[%s292 + $0x5be8] sm:$0xff]
        %v3359 = vld [vmem:[%s292 + $0x5bf0] sm:$0xff]
        %v3360 = vld [vmem:[%s292 + $0x5bf8] sm:$0xff]
        %v3361 = vld [vmem:[%s301] sm:$0xf]
        %v3363 = vlaneseq
        %v3364 = vshrl.u32 %v3363, 7
        %v3365 = vsub.s32 0, %v3364
        %v3366 = vrot.slane %v3361, %v3365
        %v3367 = vlaneseq
        %v3368 = vshrl.u32 %v3367, 7
        %v3369 = vsub.s32 1, %v3368
        %v3370 = vrot.slane %v3361, %v3369
        %v3371 = vlaneseq
        %v3372 = vshrl.u32 %v3371, 7
        %v3373 = vsub.s32 2, %v3372
        %v3374 = vrot.slane %v3361, %v3373
        %v3375 = vlaneseq
        %v3376 = vshrl.u32 %v3375, 7
        %v3377 = vsub.s32 3, %v3376
        %v3378 = vrot.slane %v3361, %v3377
        %3383 = vmatprep.subr.mxu0 %v418
        %3384 = vmatpush1.msra.mxu0 %v417
        %3385 = vmatprep.subr.mxu0 %v422
        %3386 = vmatpush1.msra.mxu0 %v421
        %3387 = vmatprep.subr.mxu0 %v426
        %3388 = vmatpush1.msra.mxu0 %v425
        %3389 = vmatprep.subr.mxu0 %v430
        %3390 = vmatpush1.msra.mxu0 %v429
        %3391 = vmatprep.subr.mxu0 %v434
        %3392 = vmatpush1.msra.mxu0 %v433
        %3393 = vmatprep.subr.mxu0 %v438
        %3394 = vmatpush1.msra.mxu0 %v437
        %3395 = vmatprep.subr.mxu0 %v442
        %3396 = vmatpush1.msra.mxu0 %v441
        %3397 = vmatprep.subr.mxu0 %v446
        %3398 = vmatpush1.msra.mxu0 %v445
        %3399 = vmatprep.subr.mxu0 %v450
        %3400 = vmatpush1.msra.mxu0 %v449
        %3401 = vmatprep.subr.mxu0 %v454
        %3402 = vmatpush1.msra.mxu0 %v453
        %3403 = vmatprep.subr.mxu0 %v458
        %3404 = vmatpush1.msra.mxu0 %v457
        %3405 = vmatprep.subr.mxu0 %v462
        %3406 = vmatpush1.msra.mxu0 %v461
        %3407 = vmatprep.subr.mxu0 %v466
        %3408 = vmatpush1.msra.mxu0 %v465
        %3409 = vmatprep.subr.mxu0 %v470
        %3410 = vmatpush1.msra.mxu0 %v469
        %3411 = vmatprep.subr.mxu0 %v474
        %3412 = vmatpush1.msra.mxu0 %v473
        %3413 = vmatprep.subr.mxu0 %v478
        %3414 = vmatpush1.msra.mxu0 %v477
        %3415 = vmatprep.subr.mxu0 %v482
        %3416 = vmatpush1.msra.mxu0 %v481
        %3417 = vmatprep.subr.mxu0 %v486
        %3418 = vmatpush1.msra.mxu0 %v485
        %3419 = vmatprep.subr.mxu0 %v490
        %3420 = vmatpush1.msra.mxu0 %v489
        %3421 = vmatprep.subr.mxu0 %v494
        %3422 = vmatpush1.msra.mxu0 %v493
        %3423 = vmatprep.subr.mxu0 %v498
        %3424 = vmatpush1.msra.mxu0 %v497
        %3425 = vmatprep.subr.mxu0 %v502
        %3426 = vmatpush1.msra.mxu0 %v501
        %3427 = vmatprep.subr.mxu0 %v506
        %3428 = vmatpush1.msra.mxu0 %v505
        %3429 = vmatprep.subr.mxu0 %v510
        %3430 = vmatpush1.msra.mxu0 %v509
        %3431 = vmatprep.subr.mxu0 %v514
        %3432 = vmatpush1.msra.mxu0 %v513
        %3433 = vmatprep.subr.mxu0 %v518
        %3434 = vmatpush1.msra.mxu0 %v517
        %3435 = vmatprep.subr.mxu0 %v522
        %3436 = vmatpush1.msra.mxu0 %v521
        %3437 = vmatprep.subr.mxu0 %v526
        %3438 = vmatpush1.msra.mxu0 %v525
        %3439 = vmatprep.subr.mxu0 %v530
        %3440 = vmatpush1.msra.mxu0 %v529
        %3441 = vmatprep.subr.mxu0 %v534
        %3442 = vmatpush1.msra.mxu0 %v533
        %3443 = vmatprep.subr.mxu0 %v538
        %3444 = vmatpush1.msra.mxu0 %v537
        %3445 = vmatprep.subr.mxu0 %v542
        %3446 = vmatpush1.msra.mxu0 %v541
        %3447 = vmatprep.mubr.f32.mxu0 %v372
        %3448 = vmatmul.mubr.f32.gmra.mrb[0].mxu0 %v371
        %v3449 = vpop.f32.mrb[0].mxu0
        %v3450 = vadd.f32 %v3366, %v3449
        %v3451 = vpop.f32.mrb[0].mxu0
        %v3452 = vadd.f32 %v3370, %v3451
        %3453 = vdwg.mxu0
        %3454 = vmatprep.subr.mxu0 %v546
        %3455 = vmatpush1.msra.mxu0 %v545
        %3456 = vmatprep.subr.mxu0 %v550
        %3457 = vmatpush1.msra.mxu0 %v549
        %3458 = vmatprep.subr.mxu0 %v554
        %3459 = vmatpush1.msra.mxu0 %v553
        %3460 = vmatprep.subr.mxu0 %v558
        %3461 = vmatpush1.msra.mxu0 %v557
        %3462 = vmatprep.subr.mxu0 %v562
        %3463 = vmatpush1.msra.mxu0 %v561
        %3464 = vmatprep.subr.mxu0 %v566
        %3465 = vmatpush1.msra.mxu0 %v565
        %3466 = vmatprep.subr.mxu0 %v570
        %3467 = vmatpush1.msra.mxu0 %v569
        %3468 = vmatprep.subr.mxu0 %v574
        %3469 = vmatpush1.msra.mxu0 %v573
        %3470 = vmatprep.subr.mxu0 %v578
        %3471 = vmatpush1.msra.mxu0 %v577
        %3472 = vmatprep.subr.mxu0 %v582
        %3473 = vmatpush1.msra.mxu0 %v581
        %3474 = vmatprep.subr.mxu0 %v586
        %3475 = vmatpush1.msra.mxu0 %v585
        %3476 = vmatprep.subr.mxu0 %v590
        %3477 = vmatpush1.msra.mxu0 %v589
        %3478 = vmatprep.subr.mxu0 %v594
        %3479 = vmatpush1.msra.mxu0 %v593
        %3480 = vmatprep.subr.mxu0 %v598
        %3481 = vmatpush1.msra.mxu0 %v597
        %3482 = vmatprep.subr.mxu0 %v602
        %3483 = vmatpush1.msra.mxu0 %v601
        %3484 = vmatprep.subr.mxu0 %v606
        %3485 = vmatpush1.msra.mxu0 %v605
        %3486 = vmatprep.subr.mxu0 %v610
        %3487 = vmatpush1.msra.mxu0 %v609
        %3488 = vmatprep.subr.mxu0 %v614
        %3489 = vmatpush1.msra.mxu0 %v613
        %3490 = vmatprep.subr.mxu0 %v618
        %3491 = vmatpush1.msra.mxu0 %v617
        %3492 = vmatprep.subr.mxu0 %v622
        %3493 = vmatpush1.msra.mxu0 %v621
        %3494 = vmatprep.subr.mxu0 %v626
        %3495 = vmatpush1.msra.mxu0 %v625
        %3496 = vmatprep.subr.mxu0 %v630
        %3497 = vmatpush1.msra.mxu0 %v629
        %3498 = vmatprep.subr.mxu0 %v634
        %3499 = vmatpush1.msra.mxu0 %v633
        %3500 = vmatprep.subr.mxu0 %v638
        %3501 = vmatpush1.msra.mxu0 %v637
        %3502 = vmatprep.subr.mxu0 %v642
        %3503 = vmatpush1.msra.mxu0 %v641
        %3504 = vmatprep.subr.mxu0 %v646
        %3505 = vmatpush1.msra.mxu0 %v645
        %3506 = vmatprep.subr.mxu0 %v650
        %3507 = vmatpush1.msra.mxu0 %v649
        %3508 = vmatprep.subr.mxu0 %v654
        %3509 = vmatpush1.msra.mxu0 %v653
        %3510 = vmatprep.subr.mxu0 %v658
        %3511 = vmatpush1.msra.mxu0 %v657
        %3512 = vmatprep.subr.mxu0 %v662
        %3513 = vmatpush1.msra.mxu0 %v661
        %3514 = vmatprep.subr.mxu0 %v666
        %3515 = vmatpush1.msra.mxu0 %v665
        %3516 = vmatprep.subr.mxu0 %v670
        %3517 = vmatpush1.msra.mxu0 %v669
        %3518 = vmatprep.mubr.f32.mxu0 %v374
        %3519 = vmatmul.mubr.f32.gmra.mrb[0].mxu0 %v373
        %v3520 = vpop.f32.mrb[0].mxu0
        %v3521 = vadd.f32 %v3450, %v3520
        %v3522 = vpop.f32.mrb[0].mxu0
        %v3523 = vadd.f32 %v3452, %v3522
        %3524 = vdwg.mxu0
        %3525 = vmatprep.subr.mxu0 %v674
        %3526 = vmatpush1.msra.mxu0 %v673
        %3527 = vmatprep.subr.mxu0 %v678
        %3528 = vmatpush1.msra.mxu0 %v677
        %3529 = vmatprep.subr.mxu0 %v682
        %3530 = vmatpush1.msra.mxu0 %v681
        %3531 = vmatprep.subr.mxu0 %v686
        %3532 = vmatpush1.msra.mxu0 %v685
        %3533 = vmatprep.subr.mxu0 %v690
        %3534 = vmatpush1.msra.mxu0 %v689
        %3535 = vmatprep.subr.mxu0 %v694
        %3536 = vmatpush1.msra.mxu0 %v693
        %3537 = vmatprep.subr.mxu0 %v698
        %3538 = vmatpush1.msra.mxu0 %v697
        %3539 = vmatprep.subr.mxu0 %v702
        %3540 = vmatpush1.msra.mxu0 %v701
        %3541 = vmatprep.subr.mxu0 %v706
        %3542 = vmatpush1.msra.mxu0 %v705
        %3543 = vmatprep.subr.mxu0 %v710
        %3544 = vmatpush1.msra.mxu0 %v709
        %3545 = vmatprep.subr.mxu0 %v714
        %3546 = vmatpush1.msra.mxu0 %v713
        %3547 = vmatprep.subr.mxu0 %v718
        %3548 = vmatpush1.msra.mxu0 %v717
        %3549 = vmatprep.subr.mxu0 %v722
        %3550 = vmatpush1.msra.mxu0 %v721
        %3551 = vmatprep.subr.mxu0 %v726
        %3552 = vmatpush1.msra.mxu0 %v725
        %3553 = vmatprep.subr.mxu0 %v730
        %3554 = vmatpush1.msra.mxu0 %v729
        %3555 = vmatprep.subr.mxu0 %v734
        %3556 = vmatpush1.msra.mxu0 %v733
        %3557 = vmatprep.subr.mxu0 %v738
        %3558 = vmatpush1.msra.mxu0 %v737
        %3559 = vmatprep.subr.mxu0 %v742
        %3560 = vmatpush1.msra.mxu0 %v741
        %3561 = vmatprep.subr.mxu0 %v746
        %3562 = vmatpush1.msra.mxu0 %v745
        %3563 = vmatprep.subr.mxu0 %v750
        %3564 = vmatpush1.msra.mxu0 %v749
        %3565 = vmatprep.subr.mxu0 %v754
        %3566 = vmatpush1.msra.mxu0 %v753
        %3567 = vmatprep.subr.mxu0 %v758
        %3568 = vmatpush1.msra.mxu0 %v757
        %3569 = vmatprep.subr.mxu0 %v762
        %3570 = vmatpush1.msra.mxu0 %v761
        %3571 = vmatprep.subr.mxu0 %v766
        %3572 = vmatpush1.msra.mxu0 %v765
        %3573 = vmatprep.subr.mxu0 %v770
        %3574 = vmatpush1.msra.mxu0 %v769
        %3575 = vmatprep.subr.mxu0 %v774
        %3576 = vmatpush1.msra.mxu0 %v773
        %3577 = vmatprep.subr.mxu0 %v778
        %3578 = vmatpush1.msra.mxu0 %v777
        %3579 = vmatprep.subr.mxu0 %v782
        %3580 = vmatpush1.msra.mxu0 %v781
        %3581 = vmatprep.subr.mxu0 %v786
        %3582 = vmatpush1.msra.mxu0 %v785
        %3583 = vmatprep.subr.mxu0 %v790
        %3584 = vmatpush1.msra.mxu0 %v789
        %3585 = vmatprep.subr.mxu0 %v794
        %3586 = vmatpush1.msra.mxu0 %v793
        %3587 = vmatprep.subr.mxu0 %v798
        %3588 = vmatpush1.msra.mxu0 %v797
        %3589 = vmatprep.mubr.f32.mxu0 %v376
        %3590 = vmatmul.mubr.f32.gmra.mrb[0].mxu0 %v375
        %v3591 = vpop.f32.mrb[0].mxu0
        %v3592 = vadd.f32 %v3521, %v3591
        %v3593 = vpop.f32.mrb[0].mxu0
        %v3594 = vadd.f32 %v3523, %v3593
        %3595 = vdwg.mxu0
        %3596 = vmatprep.subr.mxu0 %v802
        %3597 = vmatpush1.msra.mxu0 %v801
        %3598 = vmatprep.subr.mxu0 %v806
        %3599 = vmatpush1.msra.mxu0 %v805
        %3600 = vmatprep.subr.mxu0 %v810
        %3601 = vmatpush1.msra.mxu0 %v809
        %3602 = vmatprep.subr.mxu0 %v814
        %3603 = vmatpush1.msra.mxu0 %v813
        %3604 = vmatprep.subr.mxu0 %v818
        %3605 = vmatpush1.msra.mxu0 %v817
        %3606 = vmatprep.subr.mxu0 %v822
        %3607 = vmatpush1.msra.mxu0 %v821
        %3608 = vmatprep.subr.mxu0 %v826
        %3609 = vmatpush1.msra.mxu0 %v825
        %3610 = vmatprep.subr.mxu0 %v830
        %3611 = vmatpush1.msra.mxu0 %v829
        %3612 = vmatprep.subr.mxu0 %v834
        %3613 = vmatpush1.msra.mxu0 %v833
        %3614 = vmatprep.subr.mxu0 %v838
        %3615 = vmatpush1.msra.mxu0 %v837
        %3616 = vmatprep.subr.mxu0 %v842
        %3617 = vmatpush1.msra.mxu0 %v841
        %3618 = vmatprep.subr.mxu0 %v846
        %3619 = vmatpush1.msra.mxu0 %v845
        %3620 = vmatprep.subr.mxu0 %v850
        %3621 = vmatpush1.msra.mxu0 %v849
        %3622 = vmatprep.subr.mxu0 %v854
        %3623 = vmatpush1.msra.mxu0 %v853
        %3624 = vmatprep.subr.mxu0 %v858
        %3625 = vmatpush1.msra.mxu0 %v857
        %3626 = vmatprep.subr.mxu0 %v862
        %3627 = vmatpush1.msra.mxu0 %v861
        %3628 = vmatprep.subr.mxu0 %v866
        %3629 = vmatpush1.msra.mxu0 %v865
        %3630 = vmatprep.subr.mxu0 %v870
        %3631 = vmatpush1.msra.mxu0 %v869
        %3632 = vmatprep.subr.mxu0 %v874
        %3633 = vmatpush1.msra.mxu0 %v873
        %3634 = vmatprep.subr.mxu0 %v878
        %3635 = vmatpush1.msra.mxu0 %v877
        %3636 = vmatprep.subr.mxu0 %v882
        %3637 = vmatpush1.msra.mxu0 %v881
        %3638 = vmatprep.subr.mxu0 %v886
        %3639 = vmatpush1.msra.mxu0 %v885
        %3640 = vmatprep.subr.mxu0 %v890
        %3641 = vmatpush1.msra.mxu0 %v889
        %3642 = vmatprep.subr.mxu0 %v894
        %3643 = vmatpush1.msra.mxu0 %v893
        %3644 = vmatprep.subr.mxu0 %v898
        %3645 = vmatpush1.msra.mxu0 %v897
        %3646 = vmatprep.subr.mxu0 %v902
        %3647 = vmatpush1.msra.mxu0 %v901
        %3648 = vmatprep.subr.mxu0 %v906
        %3649 = vmatpush1.msra.mxu0 %v905
        %3650 = vmatprep.subr.mxu0 %v910
        %3651 = vmatpush1.msra.mxu0 %v909
        %3652 = vmatprep.subr.mxu0 %v914
        %3653 = vmatpush1.msra.mxu0 %v913
        %3654 = vmatprep.subr.mxu0 %v918
        %3655 = vmatpush1.msra.mxu0 %v917
        %3656 = vmatprep.subr.mxu0 %v922
        %3657 = vmatpush1.msra.mxu0 %v921
        %3658 = vmatprep.subr.mxu0 %v926
        %3659 = vmatpush1.msra.mxu0 %v925
        %3660 = vmatprep.mubr.f32.mxu0 %v378
        %3661 = vmatmul.mubr.f32.gmra.mrb[0].mxu0 %v377
        %v3662 = vpop.f32.mrb[0].mxu0
        %v3663 = vadd.f32 %v3592, %v3662
        %v3664 = vpop.f32.mrb[0].mxu0
        %v3665 = vadd.f32 %v3594, %v3664
        %3666 = vdwg.mxu0
        %3667 = vmatprep.subr.mxu0 %v930
        %3668 = vmatpush1.msra.mxu0 %v929
        %3669 = vmatprep.subr.mxu0 %v934
        %3670 = vmatpush1.msra.mxu0 %v933
        %3671 = vmatprep.subr.mxu0 %v938
        %3672 = vmatpush1.msra.mxu0 %v937
        %3673 = vmatprep.subr.mxu0 %v942
        %3674 = vmatpush1.msra.mxu0 %v941
        %3675 = vmatprep.subr.mxu0 %v946
        %3676 = vmatpush1.msra.mxu0 %v945
        %3677 = vmatprep.subr.mxu0 %v950
        %3678 = vmatpush1.msra.mxu0 %v949
        %3679 = vmatprep.subr.mxu0 %v954
        %3680 = vmatpush1.msra.mxu0 %v953
        %3681 = vmatprep.subr.mxu0 %v958
        %3682 = vmatpush1.msra.mxu0 %v957
        %3683 = vmatprep.subr.mxu0 %v962
        %3684 = vmatpush1.msra.mxu0 %v961
        %3685 = vmatprep.subr.mxu0 %v966
        %3686 = vmatpush1.msra.mxu0 %v965
        %3687 = vmatprep.subr.mxu0 %v970
        %3688 = vmatpush1.msra.mxu0 %v969
        %3689 = vmatprep.subr.mxu0 %v974
        %3690 = vmatpush1.msra.mxu0 %v973
        %3691 = vmatprep.subr.mxu0 %v978
        %3692 = vmatpush1.msra.mxu0 %v977
        %3693 = vmatprep.subr.mxu0 %v982
        %3694 = vmatpush1.msra.mxu0 %v981
        %3695 = vmatprep.subr.mxu0 %v986
        %3696 = vmatpush1.msra.mxu0 %v985
        %3697 = vmatprep.subr.mxu0 %v990
        %3698 = vmatpush1.msra.mxu0 %v989
        %3699 = vmatprep.subr.mxu0 %v994
        %3700 = vmatpush1.msra.mxu0 %v993
        %3701 = vmatprep.subr.mxu0 %v998
        %3702 = vmatpush1.msra.mxu0 %v997
        %3703 = vmatprep.subr.mxu0 %v1002
        %3704 = vmatpush1.msra.mxu0 %v1001
        %3705 = vmatprep.subr.mxu0 %v1006
        %3706 = vmatpush1.msra.mxu0 %v1005
        %3707 = vmatprep.subr.mxu0 %v1010
        %3708 = vmatpush1.msra.mxu0 %v1009
        %3709 = vmatprep.subr.mxu0 %v1014
        %3710 = vmatpush1.msra.mxu0 %v1013
        %3711 = vmatprep.subr.mxu0 %v1018
        %3712 = vmatpush1.msra.mxu0 %v1017
        %3713 = vmatprep.subr.mxu0 %v1022
        %3714 = vmatpush1.msra.mxu0 %v1021
        %3715 = vmatprep.subr.mxu0 %v1026
        %3716 = vmatpush1.msra.mxu0 %v1025
        %3717 = vmatprep.subr.mxu0 %v1030
        %3718 = vmatpush1.msra.mxu0 %v1029
        %3719 = vmatprep.subr.mxu0 %v1034
        %3720 = vmatpush1.msra.mxu0 %v1033
        %3721 = vmatprep.subr.mxu0 %v1038
        %3722 = vmatpush1.msra.mxu0 %v1037
        %3723 = vmatprep.subr.mxu0 %v1042
        %3724 = vmatpush1.msra.mxu0 %v1041
        %3725 = vmatprep.subr.mxu0 %v1046
        %3726 = vmatpush1.msra.mxu0 %v1045
        %3727 = vmatprep.subr.mxu0 %v1050
        %3728 = vmatpush1.msra.mxu0 %v1049
        %3729 = vmatprep.subr.mxu0 %v1054
        %3730 = vmatpush1.msra.mxu0 %v1053
        %3731 = vmatprep.mubr.f32.mxu0 %v380
        %3732 = vmatmul.mubr.f32.gmra.mrb[0].mxu0 %v379
        %v3733 = vpop.f32.mrb[0].mxu0
        %v3734 = vadd.f32 %v3663, %v3733
        %v3735 = vpop.f32.mrb[0].mxu0
        %v3736 = vadd.f32 %v3665, %v3735
        %3737 = vdwg.mxu0
        %3738 = vmatprep.subr.mxu0 %v1058
        %3739 = vmatpush1.msra.mxu0 %v1057
        %3740 = vmatprep.subr.mxu0 %v1062
        %3741 = vmatpush1.msra.mxu0 %v1061
        %3742 = vmatprep.subr.mxu0 %v1066
        %3743 = vmatpush1.msra.mxu0 %v1065
        %3744 = vmatprep.subr.mxu0 %v1070
        %3745 = vmatpush1.msra.mxu0 %v1069
        %3746 = vmatprep.subr.mxu0 %v1074
        %3747 = vmatpush1.msra.mxu0 %v1073
        %3748 = vmatprep.subr.mxu0 %v1078
        %3749 = vmatpush1.msra.mxu0 %v1077
        %3750 = vmatprep.subr.mxu0 %v1082
        %3751 = vmatpush1.msra.mxu0 %v1081
        %3752 = vmatprep.subr.mxu0 %v1086
        %3753 = vmatpush1.msra.mxu0 %v1085
        %3754 = vmatprep.subr.mxu0 %v1090
        %3755 = vmatpush1.msra.mxu0 %v1089
        %3756 = vmatprep.subr.mxu0 %v1094
        %3757 = vmatpush1.msra.mxu0 %v1093
        %3758 = vmatprep.subr.mxu0 %v1098
        %3759 = vmatpush1.msra.mxu0 %v1097
        %3760 = vmatprep.subr.mxu0 %v1102
        %3761 = vmatpush1.msra.mxu0 %v1101
        %3762 = vmatprep.subr.mxu0 %v1106
        %3763 = vmatpush1.msra.mxu0 %v1105
        %3764 = vmatprep.subr.mxu0 %v1110
        %3765 = vmatpush1.msra.mxu0 %v1109
        %3766 = vmatprep.subr.mxu0 %v1114
        %3767 = vmatpush1.msra.mxu0 %v1113
        %3768 = vmatprep.subr.mxu0 %v1118
        %3769 = vmatpush1.msra.mxu0 %v1117
        %3770 = vmatprep.subr.mxu0 %v1122
        %3771 = vmatpush1.msra.mxu0 %v1121
        %3772 = vmatprep.subr.mxu0 %v1126
        %3773 = vmatpush1.msra.mxu0 %v1125
        %3774 = vmatprep.subr.mxu0 %v1130
        %3775 = vmatpush1.msra.mxu0 %v1129
        %3776 = vmatprep.subr.mxu0 %v1134
        %3777 = vmatpush1.msra.mxu0 %v1133
        %3778 = vmatprep.subr.mxu0 %v1138
        %3779 = vmatpush1.msra.mxu0 %v1137
        %3780 = vmatprep.subr.mxu0 %v1142
        %3781 = vmatpush1.msra.mxu0 %v1141
        %3782 = vmatprep.subr.mxu0 %v1146
        %3783 = vmatpush1.msra.mxu0 %v1145
        %3784 = vmatprep.subr.mxu0 %v1150
        %3785 = vmatpush1.msra.mxu0 %v1149
        %3786 = vmatprep.subr.mxu0 %v1154
        %3787 = vmatpush1.msra.mxu0 %v1153
        %3788 = vmatprep.subr.mxu0 %v1158
        %3789 = vmatpush1.msra.mxu0 %v1157
        %3790 = vmatprep.subr.mxu0 %v1162
        %3791 = vmatpush1.msra.mxu0 %v1161
        %3792 = vmatprep.subr.mxu0 %v1166
        %3793 = vmatpush1.msra.mxu0 %v1165
        %3794 = vmatprep.subr.mxu0 %v1170
        %3795 = vmatpush1.msra.mxu0 %v1169
        %3796 = vmatprep.subr.mxu0 %v1174
        %3797 = vmatpush1.msra.mxu0 %v1173
        %3798 = vmatprep.subr.mxu0 %v1178
        %3799 = vmatpush1.msra.mxu0 %v1177
        %3800 = vmatprep.subr.mxu0 %v1182
        %3801 = vmatpush1.msra.mxu0 %v1181
        %3802 = vmatprep.mubr.f32.mxu0 %v382
        %3803 = vmatmul.mubr.f32.gmra.mrb[0].mxu0 %v381
        %v3804 = vpop.f32.mrb[0].mxu0
        %v3805 = vadd.f32 %v3734, %v3804
        %v3806 = vpop.f32.mrb[0].mxu0
        %v3807 = vadd.f32 %v3736, %v3806
        %3808 = vdwg.mxu0
        %3809 = vmatprep.subr.mxu0 %v1186
        %3810 = vmatpush1.msra.mxu0 %v1185
        %3811 = vmatprep.subr.mxu0 %v1190
        %3812 = vmatpush1.msra.mxu0 %v1189
        %3813 = vmatprep.subr.mxu0 %v1194
        %3814 = vmatpush1.msra.mxu0 %v1193
        %3815 = vmatprep.subr.mxu0 %v1198
        %3816 = vmatpush1.msra.mxu0 %v1197
        %3817 = vmatprep.subr.mxu0 %v1202
        %3818 = vmatpush1.msra.mxu0 %v1201
        %3819 = vmatprep.subr.mxu0 %v1206
        %3820 = vmatpush1.msra.mxu0 %v1205
        %3821 = vmatprep.subr.mxu0 %v1210
        %3822 = vmatpush1.msra.mxu0 %v1209
        %3823 = vmatprep.subr.mxu0 %v1214
        %3824 = vmatpush1.msra.mxu0 %v1213
        %3825 = vmatprep.subr.mxu0 %v1218
        %3826 = vmatpush1.msra.mxu0 %v1217
        %3827 = vmatprep.subr.mxu0 %v1222
        %3828 = vmatpush1.msra.mxu0 %v1221
        %3829 = vmatprep.subr.mxu0 %v1226
        %3830 = vmatpush1.msra.mxu0 %v1225
        %3831 = vmatprep.subr.mxu0 %v1230
        %3832 = vmatpush1.msra.mxu0 %v1229
        %3833 = vmatprep.subr.mxu0 %v1234
        %3834 = vmatpush1.msra.mxu0 %v1233
        %3835 = vmatprep.subr.mxu0 %v1238
        %3836 = vmatpush1.msra.mxu0 %v1237
        %3837 = vmatprep.subr.mxu0 %v1242
        %3838 = vmatpush1.msra.mxu0 %v1241
        %3839 = vmatprep.subr.mxu0 %v1246
        %3840 = vmatpush1.msra.mxu0 %v1245
        %3841 = vmatprep.subr.mxu0 %v1250
        %3842 = vmatpush1.msra.mxu0 %v1249
        %3843 = vmatprep.subr.mxu0 %v1254
        %3844 = vmatpush1.msra.mxu0 %v1253
        %3845 = vmatprep.subr.mxu0 %v1258
        %3846 = vmatpush1.msra.mxu0 %v1257
        %3847 = vmatprep.subr.mxu0 %v1262
        %3848 = vmatpush1.msra.mxu0 %v1261
        %3849 = vmatprep.subr.mxu0 %v1266
        %3850 = vmatpush1.msra.mxu0 %v1265
        %3851 = vmatprep.subr.mxu0 %v1270
        %3852 = vmatpush1.msra.mxu0 %v1269
        %3853 = vmatprep.subr.mxu0 %v1274
        %3854 = vmatpush1.msra.mxu0 %v1273
        %3855 = vmatprep.subr.mxu0 %v1278
        %3856 = vmatpush1.msra.mxu0 %v1277
        %3857 = vmatprep.subr.mxu0 %v1282
        %3858 = vmatpush1.msra.mxu0 %v1281
        %3859 = vmatprep.subr.mxu0 %v1286
        %3860 = vmatpush1.msra.mxu0 %v1285
        %3861 = vmatprep.subr.mxu0 %v1290
        %3862 = vmatpush1.msra.mxu0 %v1289
        %3863 = vmatprep.subr.mxu0 %v1294
        %3864 = vmatpush1.msra.mxu0 %v1293
        %3865 = vmatprep.subr.mxu0 %v1298
        %3866 = vmatpush1.msra.mxu0 %v1297
        %3867 = vmatprep.subr.mxu0 %v1302
        %3868 = vmatpush1.msra.mxu0 %v1301
        %3869 = vmatprep.subr.mxu0 %v1306
        %3870 = vmatpush1.msra.mxu0 %v1305
        %3871 = vmatprep.subr.mxu0 %v1310
        %3872 = vmatpush1.msra.mxu0 %v1309
        %3873 = vmatprep.mubr.f32.mxu0 %v384
        %3874 = vmatmul.mubr.f32.gmra.mrb[0].mxu0 %v383
        %v3875 = vpop.f32.mrb[0].mxu0
        %v3876 = vadd.f32 %v3805, %v3875
        %v3877 = vpop.f32.mrb[0].mxu0
        %v3878 = vadd.f32 %v3807, %v3877
        %3879 = vdwg.mxu0
        %3880 = vmatprep.subr.mxu0 %v1314
        %3881 = vmatpush1.msra.mxu0 %v1313
        %3882 = vmatprep.subr.mxu0 %v1318
        %3883 = vmatpush1.msra.mxu0 %v1317
        %3884 = vmatprep.subr.mxu0 %v1322
        %3885 = vmatpush1.msra.mxu0 %v1321
        %3886 = vmatprep.subr.mxu0 %v1326
        %3887 = vmatpush1.msra.mxu0 %v1325
        %3888 = vmatprep.subr.mxu0 %v1330
        %3889 = vmatpush1.msra.mxu0 %v1329
        %3890 = vmatprep.subr.mxu0 %v1334
        %3891 = vmatpush1.msra.mxu0 %v1333
        %3892 = vmatprep.subr.mxu0 %v1338
        %3893 = vmatpush1.msra.mxu0 %v1337
        %3894 = vmatprep.subr.mxu0 %v1342
        %3895 = vmatpush1.msra.mxu0 %v1341
        %3896 = vmatprep.subr.mxu0 %v1346
        %3897 = vmatpush1.msra.mxu0 %v1345
        %3898 = vmatprep.subr.mxu0 %v1350
        %3899 = vmatpush1.msra.mxu0 %v1349
        %3900 = vmatprep.subr.mxu0 %v1354
        %3901 = vmatpush1.msra.mxu0 %v1353
        %3902 = vmatprep.subr.mxu0 %v1358
        %3903 = vmatpush1.msra.mxu0 %v1357
        %3904 = vmatprep.subr.mxu0 %v1362
        %3905 = vmatpush1.msra.mxu0 %v1361
        %3906 = vmatprep.subr.mxu0 %v1366
        %3907 = vmatpush1.msra.mxu0 %v1365
        %3908 = vmatprep.subr.mxu0 %v1370
        %3909 = vmatpush1.msra.mxu0 %v1369
        %3910 = vmatprep.subr.mxu0 %v1374
        %3911 = vmatpush1.msra.mxu0 %v1373
        %3912 = vmatprep.subr.mxu0 %v1378
        %3913 = vmatpush1.msra.mxu0 %v1377
        %3914 = vmatprep.subr.mxu0 %v1382
        %3915 = vmatpush1.msra.mxu0 %v1381
        %3916 = vmatprep.subr.mxu0 %v1386
        %3917 = vmatpush1.msra.mxu0 %v1385
        %3918 = vmatprep.subr.mxu0 %v1390
        %3919 = vmatpush1.msra.mxu0 %v1389
        %3920 = vmatprep.subr.mxu0 %v1394
        %3921 = vmatpush1.msra.mxu0 %v1393
        %3922 = vmatprep.subr.mxu0 %v1398
        %3923 = vmatpush1.msra.mxu0 %v1397
        %3924 = vmatprep.subr.mxu0 %v1402
        %3925 = vmatpush1.msra.mxu0 %v1401
        %3926 = vmatprep.subr.mxu0 %v1406
        %3927 = vmatpush1.msra.mxu0 %v1405
        %3928 = vmatprep.subr.mxu0 %v1410
        %3929 = vmatpush1.msra.mxu0 %v1409
        %3930 = vmatprep.subr.mxu0 %v1414
        %3931 = vmatpush1.msra.mxu0 %v1413
        %3932 = vmatprep.subr.mxu0 %v1418
        %3933 = vmatpush1.msra.mxu0 %v1417
        %3934 = vmatprep.subr.mxu0 %v1422
        %3935 = vmatpush1.msra.mxu0 %v1421
        %3936 = vmatprep.subr.mxu0 %v1426
        %3937 = vmatpush1.msra.mxu0 %v1425
        %3938 = vmatprep.subr.mxu0 %v1430
        %3939 = vmatpush1.msra.mxu0 %v1429
        %3940 = vmatprep.subr.mxu0 %v1434
        %3941 = vmatpush1.msra.mxu0 %v1433
        %3942 = vmatprep.subr.mxu0 %v1438
        %3943 = vmatpush1.msra.mxu0 %v1437
        %3944 = vmatprep.mubr.f32.mxu0 %v386
        %3945 = vmatmul.mubr.f32.gmra.mrb[0].mxu0 %v385
        %v3946 = vpop.f32.mrb[0].mxu0
        %v3947 = vadd.f32 %v3876, %v3946
        %v3948 = vpop.f32.mrb[0].mxu0
        %v3949 = vadd.f32 %v3878, %v3948
        %3950 = vdwg.mxu0
        %3951 = vmatprep.subr.mxu0 %v1442
        %3952 = vmatpush1.msra.mxu0 %v1441
        %3953 = vmatprep.subr.mxu0 %v1446
        %3954 = vmatpush1.msra.mxu0 %v1445
        %3955 = vmatprep.subr.mxu0 %v1450
        %3956 = vmatpush1.msra.mxu0 %v1449
        %3957 = vmatprep.subr.mxu0 %v1454
        %3958 = vmatpush1.msra.mxu0 %v1453
        %3959 = vmatprep.subr.mxu0 %v1458
        %3960 = vmatpush1.msra.mxu0 %v1457
        %3961 = vmatprep.subr.mxu0 %v1462
        %3962 = vmatpush1.msra.mxu0 %v1461
        %3963 = vmatprep.subr.mxu0 %v1466
        %3964 = vmatpush1.msra.mxu0 %v1465
        %3965 = vmatprep.subr.mxu0 %v1470
        %3966 = vmatpush1.msra.mxu0 %v1469
        %3967 = vmatprep.subr.mxu0 %v1474
        %3968 = vmatpush1.msra.mxu0 %v1473
        %3969 = vmatprep.subr.mxu0 %v1478
        %3970 = vmatpush1.msra.mxu0 %v1477
        %3971 = vmatprep.subr.mxu0 %v1482
        %3972 = vmatpush1.msra.mxu0 %v1481
        %3973 = vmatprep.subr.mxu0 %v1486
        %3974 = vmatpush1.msra.mxu0 %v1485
        %3975 = vmatprep.subr.mxu0 %v1490
        %3976 = vmatpush1.msra.mxu0 %v1489
        %3977 = vmatprep.subr.mxu0 %v1494
        %3978 = vmatpush1.msra.mxu0 %v1493
        %3979 = vmatprep.subr.mxu0 %v1498
        %3980 = vmatpush1.msra.mxu0 %v1497
        %3981 = vmatprep.subr.mxu0 %v1502
        %3982 = vmatpush1.msra.mxu0 %v1501
        %3983 = vmatprep.subr.mxu0 %v1506
        %3984 = vmatpush1.msra.mxu0 %v1505
        %3985 = vmatprep.subr.mxu0 %v1510
        %3986 = vmatpush1.msra.mxu0 %v1509
        %3987 = vmatprep.subr.mxu0 %v1514
        %3988 = vmatpush1.msra.mxu0 %v1513
        %3989 = vmatprep.subr.mxu0 %v1518
        %3990 = vmatpush1.msra.mxu0 %v1517
        %3991 = vmatprep.subr.mxu0 %v1522
        %3992 = vmatpush1.msra.mxu0 %v1521
        %3993 = vmatprep.subr.mxu0 %v1526
        %3994 = vmatpush1.msra.mxu0 %v1525
        %3995 = vmatprep.subr.mxu0 %v1530
        %3996 = vmatpush1.msra.mxu0 %v1529
        %3997 = vmatprep.subr.mxu0 %v1534
        %3998 = vmatpush1.msra.mxu0 %v1533
        %3999 = vmatprep.subr.mxu0 %v1538
        %4000 = vmatpush1.msra.mxu0 %v1537
        %4001 = vmatprep.subr.mxu0 %v1542
        %4002 = vmatpush1.msra.mxu0 %v1541
        %4003 = vmatprep.subr.mxu0 %v1546
        %4004 = vmatpush1.msra.mxu0 %v1545
        %4005 = vmatprep.subr.mxu0 %v1550
        %4006 = vmatpush1.msra.mxu0 %v1549
        %4007 = vmatprep.subr.mxu0 %v1554
        %4008 = vmatpush1.msra.mxu0 %v1553
        %4009 = vmatprep.subr.mxu0 %v1558
        %4010 = vmatpush1.msra.mxu0 %v1557
        %4011 = vmatprep.subr.mxu0 %v1562
        %4012 = vmatpush1.msra.mxu0 %v1561
        %4013 = vmatprep.subr.mxu0 %v1566
        %4014 = vmatpush1.msra.mxu0 %v1565
        %4015 = vmatprep.mubr.f32.mxu0 %v388
        %4016 = vmatmul.mubr.f32.gmra.mrb[0].mxu0 %v387
        %v4017 = vpop.f32.mrb[0].mxu0
        %v4018 = vadd.f32 %v3947, %v4017
        %v4019 = vpop.f32.mrb[0].mxu0
        %v4020 = vadd.f32 %v3949, %v4019
        %4021 = vdwg.mxu0
        %4022 = vmatprep.subr.mxu0 %v1570
        %4023 = vmatpush1.msra.mxu0 %v1569
        %4024 = vmatprep.subr.mxu0 %v1574
        %4025 = vmatpush1.msra.mxu0 %v1573
        %4026 = vmatprep.subr.mxu0 %v1578
        %4027 = vmatpush1.msra.mxu0 %v1577
        %4028 = vmatprep.subr.mxu0 %v1582
        %4029 = vmatpush1.msra.mxu0 %v1581
        %4030 = vmatprep.subr.mxu0 %v1586
        %4031 = vmatpush1.msra.mxu0 %v1585
        %4032 = vmatprep.subr.mxu0 %v1590
        %4033 = vmatpush1.msra.mxu0 %v1589
        %4034 = vmatprep.subr.mxu0 %v1594
        %4035 = vmatpush1.msra.mxu0 %v1593
        %4036 = vmatprep.subr.mxu0 %v1598
        %4037 = vmatpush1.msra.mxu0 %v1597
        %4038 = vmatprep.subr.mxu0 %v1602
        %4039 = vmatpush1.msra.mxu0 %v1601
        %4040 = vmatprep.subr.mxu0 %v1606
        %4041 = vmatpush1.msra.mxu0 %v1605
        %4042 = vmatprep.subr.mxu0 %v1610
        %4043 = vmatpush1.msra.mxu0 %v1609
        %4044 = vmatprep.subr.mxu0 %v1614
        %4045 = vmatpush1.msra.mxu0 %v1613
        %4046 = vmatprep.subr.mxu0 %v1618
        %4047 = vmatpush1.msra.mxu0 %v1617
        %4048 = vmatprep.subr.mxu0 %v1622
        %4049 = vmatpush1.msra.mxu0 %v1621
        %4050 = vmatprep.subr.mxu0 %v1626
        %4051 = vmatpush1.msra.mxu0 %v1625
        %4052 = vmatprep.subr.mxu0 %v1630
        %4053 = vmatpush1.msra.mxu0 %v1629
        %4054 = vmatprep.subr.mxu0 %v1634
        %4055 = vmatpush1.msra.mxu0 %v1633
        %4056 = vmatprep.subr.mxu0 %v1638
        %4057 = vmatpush1.msra.mxu0 %v1637
        %4058 = vmatprep.subr.mxu0 %v1642
        %4059 = vmatpush1.msra.mxu0 %v1641
        %4060 = vmatprep.subr.mxu0 %v1646
        %4061 = vmatpush1.msra.mxu0 %v1645
        %4062 = vmatprep.subr.mxu0 %v1650
        %4063 = vmatpush1.msra.mxu0 %v1649
        %4064 = vmatprep.subr.mxu0 %v1654
        %4065 = vmatpush1.msra.mxu0 %v1653
        %4066 = vmatprep.subr.mxu0 %v1658
        %4067 = vmatpush1.msra.mxu0 %v1657
        %4068 = vmatprep.subr.mxu0 %v1662
        %4069 = vmatpush1.msra.mxu0 %v1661
        %4070 = vmatprep.subr.mxu0 %v1666
        %4071 = vmatpush1.msra.mxu0 %v1665
        %4072 = vmatprep.subr.mxu0 %v1670
        %4073 = vmatpush1.msra.mxu0 %v1669
        %4074 = vmatprep.subr.mxu0 %v1674
        %4075 = vmatpush1.msra.mxu0 %v1673
        %4076 = vmatprep.subr.mxu0 %v1678
        %4077 = vmatpush1.msra.mxu0 %v1677
        %4078 = vmatprep.subr.mxu0 %v1682
        %4079 = vmatpush1.msra.mxu0 %v1681
        %4080 = vmatprep.subr.mxu0 %v1686
        %4081 = vmatpush1.msra.mxu0 %v1685
        %4082 = vmatprep.subr.mxu0 %v1690
        %4083 = vmatpush1.msra.mxu0 %v1689
        %4084 = vmatprep.subr.mxu0 %v1694
        %4085 = vmatpush1.msra.mxu0 %v1693
        %4086 = vmatprep.mubr.f32.mxu0 %v390
        %4087 = vmatmul.mubr.f32.gmra.mrb[0].mxu0 %v389
        %v4088 = vpop.f32.mrb[0].mxu0
        %v4089 = vadd.f32 %v4018, %v4088
        %v4090 = vpop.f32.mrb[0].mxu0
        %v4091 = vadd.f32 %v4020, %v4090
        %4092 = vdwg.mxu0
        %4093 = vmatprep.subr.mxu0 %v1698
        %4094 = vmatpush1.msra.mxu0 %v1697
        %4095 = vmatprep.subr.mxu0 %v1702
        %4096 = vmatpush1.msra.mxu0 %v1701
        %4097 = vmatprep.subr.mxu0 %v1706
        %4098 = vmatpush1.msra.mxu0 %v1705
        %4099 = vmatprep.subr.mxu0 %v1710
        %4100 = vmatpush1.msra.mxu0 %v1709
        %4101 = vmatprep.subr.mxu0 %v1714
        %4102 = vmatpush1.msra.mxu0 %v1713
        %4103 = vmatprep.subr.mxu0 %v1718
        %4104 = vmatpush1.msra.mxu0 %v1717
        %4105 = vmatprep.subr.mxu0 %v1722
        %4106 = vmatpush1.msra.mxu0 %v1721
        %4107 = vmatprep.subr.mxu0 %v1726
        %4108 = vmatpush1.msra.mxu0 %v1725
        %4109 = vmatprep.subr.mxu0 %v1730
        %4110 = vmatpush1.msra.mxu0 %v1729
        %4111 = vmatprep.subr.mxu0 %v1734
        %4112 = vmatpush1.msra.mxu0 %v1733
        %4113 = vmatprep.subr.mxu0 %v1738
        %4114 = vmatpush1.msra.mxu0 %v1737
        %4115 = vmatprep.subr.mxu0 %v1742
        %4116 = vmatpush1.msra.mxu0 %v1741
        %4117 = vmatprep.subr.mxu0 %v1746
        %4118 = vmatpush1.msra.mxu0 %v1745
        %4119 = vmatprep.subr.mxu0 %v1750
        %4120 = vmatpush1.msra.mxu0 %v1749
        %4121 = vmatprep.subr.mxu0 %v1754
        %4122 = vmatpush1.msra.mxu0 %v1753
        %4123 = vmatprep.subr.mxu0 %v1758
        %4124 = vmatpush1.msra.mxu0 %v1757
        %4125 = vmatprep.subr.mxu0 %v1762
        %4126 = vmatpush1.msra.mxu0 %v1761
        %4127 = vmatprep.subr.mxu0 %v1766
        %4128 = vmatpush1.msra.mxu0 %v1765
        %4129 = vmatprep.subr.mxu0 %v1770
        %4130 = vmatpush1.msra.mxu0 %v1769
        %4131 = vmatprep.subr.mxu0 %v1774
        %4132 = vmatpush1.msra.mxu0 %v1773
        %4133 = vmatprep.subr.mxu0 %v1778
        %4134 = vmatpush1.msra.mxu0 %v1777
        %4135 = vmatprep.subr.mxu0 %v1782
        %4136 = vmatpush1.msra.mxu0 %v1781
        %4137 = vmatprep.subr.mxu0 %v1786
        %4138 = vmatpush1.msra.mxu0 %v1785
        %4139 = vmatprep.subr.mxu0 %v1790
        %4140 = vmatpush1.msra.mxu0 %v1789
        %4141 = vmatprep.subr.mxu0 %v1794
        %4142 = vmatpush1.msra.mxu0 %v1793
        %4143 = vmatprep.subr.mxu0 %v1798
        %4144 = vmatpush1.msra.mxu0 %v1797
        %4145 = vmatprep.subr.mxu0 %v1802
        %4146 = vmatpush1.msra.mxu0 %v1801
        %4147 = vmatprep.subr.mxu0 %v1806
        %4148 = vmatpush1.msra.mxu0 %v1805
        %4149 = vmatprep.subr.mxu0 %v1810
        %4150 = vmatpush1.msra.mxu0 %v1809
        %4151 = vmatprep.subr.mxu0 %v1814
        %4152 = vmatpush1.msra.mxu0 %v1813
        %4153 = vmatprep.subr.mxu0 %v1818
        %4154 = vmatpush1.msra.mxu0 %v1817
        %4155 = vmatprep.subr.mxu0 %v1822
        %4156 = vmatpush1.msra.mxu0 %v1821
        %4157 = vmatprep.mubr.f32.mxu0 %v392
        %4158 = vmatmul.mubr.f32.gmra.mrb[0].mxu0 %v391
        %v4159 = vpop.f32.mrb[0].mxu0
        %v4160 = vadd.f32 %v4089, %v4159
        %v4161 = vpop.f32.mrb[0].mxu0
        %v4162 = vadd.f32 %v4091, %v4161
        %4163 = vdwg.mxu0
        %4164 = vmatprep.subr.mxu0 %v1826
        %4165 = vmatpush1.msra.mxu0 %v1825
        %4166 = vmatprep.subr.mxu0 %v1830
        %4167 = vmatpush1.msra.mxu0 %v1829
        %4168 = vmatprep.subr.mxu0 %v1834
        %4169 = vmatpush1.msra.mxu0 %v1833
        %4170 = vmatprep.subr.mxu0 %v1838
        %4171 = vmatpush1.msra.mxu0 %v1837
        %4172 = vmatprep.subr.mxu0 %v1842
        %4173 = vmatpush1.msra.mxu0 %v1841
        %4174 = vmatprep.subr.mxu0 %v1846
        %4175 = vmatpush1.msra.mxu0 %v1845
        %4176 = vmatprep.subr.mxu0 %v1850
        %4177 = vmatpush1.msra.mxu0 %v1849
        %4178 = vmatprep.subr.mxu0 %v1854
        %4179 = vmatpush1.msra.mxu0 %v1853
        %4180 = vmatprep.subr.mxu0 %v1858
        %4181 = vmatpush1.msra.mxu0 %v1857
        %4182 = vmatprep.subr.mxu0 %v1862
        %4183 = vmatpush1.msra.mxu0 %v1861
        %4184 = vmatprep.subr.mxu0 %v1866
        %4185 = vmatpush1.msra.mxu0 %v1865
        %4186 = vmatprep.subr.mxu0 %v1870
        %4187 = vmatpush1.msra.mxu0 %v1869
        %4188 = vmatprep.subr.mxu0 %v1874
        %4189 = vmatpush1.msra.mxu0 %v1873
        %4190 = vmatprep.subr.mxu0 %v1878
        %4191 = vmatpush1.msra.mxu0 %v1877
        %4192 = vmatprep.subr.mxu0 %v1882
        %4193 = vmatpush1.msra.mxu0 %v1881
        %4194 = vmatprep.subr.mxu0 %v1886
        %4195 = vmatpush1.msra.mxu0 %v1885
        %4196 = vmatprep.subr.mxu0 %v1890
        %4197 = vmatpush1.msra.mxu0 %v1889
        %4198 = vmatprep.subr.mxu0 %v1894
        %4199 = vmatpush1.msra.mxu0 %v1893
        %4200 = vmatprep.subr.mxu0 %v1898
        %4201 = vmatpush1.msra.mxu0 %v1897
        %4202 = vmatprep.subr.mxu0 %v1902
        %4203 = vmatpush1.msra.mxu0 %v1901
        %4204 = vmatprep.subr.mxu0 %v1906
        %4205 = vmatpush1.msra.mxu0 %v1905
        %4206 = vmatprep.subr.mxu0 %v1910
        %4207 = vmatpush1.msra.mxu0 %v1909
        %4208 = vmatprep.subr.mxu0 %v1914
        %4209 = vmatpush1.msra.mxu0 %v1913
        %4210 = vmatprep.subr.mxu0 %v1918
        %4211 = vmatpush1.msra.mxu0 %v1917
        %4212 = vmatprep.subr.mxu0 %v1922
        %4213 = vmatpush1.msra.mxu0 %v1921
        %4214 = vmatprep.subr.mxu0 %v1926
        %4215 = vmatpush1.msra.mxu0 %v1925
        %4216 = vmatprep.subr.mxu0 %v1930
        %4217 = vmatpush1.msra.mxu0 %v1929
        %4218 = vmatprep.subr.mxu0 %v1934
        %4219 = vmatpush1.msra.mxu0 %v1933
        %4220 = vmatprep.subr.mxu0 %v1938
        %4221 = vmatpush1.msra.mxu0 %v1937
        %4222 = vmatprep.subr.mxu0 %v1942
        %4223 = vmatpush1.msra.mxu0 %v1941
        %4224 = vmatprep.subr.mxu0 %v1946
        %4225 = vmatpush1.msra.mxu0 %v1945
        %4226 = vmatprep.subr.mxu0 %v1950
        %4227 = vmatpush1.msra.mxu0 %v1949
        %4228 = vmatprep.mubr.f32.mxu0 %v394
        %4229 = vmatmul.mubr.f32.gmra.mrb[0].mxu0 %v393
        %v4230 = vpop.f32.mrb[0].mxu0
        %v4231 = vadd.f32 %v4160, %v4230
        %v4232 = vpop.f32.mrb[0].mxu0
        %v4233 = vadd.f32 %v4162, %v4232
        %4234 = vdwg.mxu0
        %4235 = vmatprep.subr.mxu0 %v1954
        %4236 = vmatpush1.msra.mxu0 %v1953
        %4237 = vmatprep.subr.mxu0 %v1958
        %4238 = vmatpush1.msra.mxu0 %v1957
        %4239 = vmatprep.subr.mxu0 %v1962
        %4240 = vmatpush1.msra.mxu0 %v1961
        %4241 = vmatprep.subr.mxu0 %v1966
        %4242 = vmatpush1.msra.mxu0 %v1965
        %4243 = vmatprep.subr.mxu0 %v1970
        %4244 = vmatpush1.msra.mxu0 %v1969
        %4245 = vmatprep.subr.mxu0 %v1974
        %4246 = vmatpush1.msra.mxu0 %v1973
        %4247 = vmatprep.subr.mxu0 %v1978
        %4248 = vmatpush1.msra.mxu0 %v1977
        %4249 = vmatprep.subr.mxu0 %v1982
        %4250 = vmatpush1.msra.mxu0 %v1981
        %4251 = vmatprep.subr.mxu0 %v1986
        %4252 = vmatpush1.msra.mxu0 %v1985
        %4253 = vmatprep.subr.mxu0 %v1990
        %4254 = vmatpush1.msra.mxu0 %v1989
        %4255 = vmatprep.subr.mxu0 %v1994
        %4256 = vmatpush1.msra.mxu0 %v1993
        %4257 = vmatprep.subr.mxu0 %v1998
        %4258 = vmatpush1.msra.mxu0 %v1997
        %4259 = vmatprep.subr.mxu0 %v2002
        %4260 = vmatpush1.msra.mxu0 %v2001
        %4261 = vmatprep.subr.mxu0 %v2006
        %4262 = vmatpush1.msra.mxu0 %v2005
        %4263 = vmatprep.subr.mxu0 %v2010
        %4264 = vmatpush1.msra.mxu0 %v2009
        %4265 = vmatprep.subr.mxu0 %v2014
        %4266 = vmatpush1.msra.mxu0 %v2013
        %4267 = vmatprep.subr.mxu0 %v2018
        %4268 = vmatpush1.msra.mxu0 %v2017
        %4269 = vmatprep.subr.mxu0 %v2022
        %4270 = vmatpush1.msra.mxu0 %v2021
        %4271 = vmatprep.subr.mxu0 %v2026
        %4272 = vmatpush1.msra.mxu0 %v2025
        %4273 = vmatprep.subr.mxu0 %v2030
        %4274 = vmatpush1.msra.mxu0 %v2029
        %4275 = vmatprep.subr.mxu0 %v2034
        %4276 = vmatpush1.msra.mxu0 %v2033
        %4277 = vmatprep.subr.mxu0 %v2038
        %4278 = vmatpush1.msra.mxu0 %v2037
        %4279 = vmatprep.subr.mxu0 %v2042
        %4280 = vmatpush1.msra.mxu0 %v2041
        %4281 = vmatprep.subr.mxu0 %v2046
        %4282 = vmatpush1.msra.mxu0 %v2045
        %4283 = vmatprep.subr.mxu0 %v2050
        %4284 = vmatpush1.msra.mxu0 %v2049
        %4285 = vmatprep.subr.mxu0 %v2054
        %4286 = vmatpush1.msra.mxu0 %v2053
        %4287 = vmatprep.subr.mxu0 %v2058
        %4288 = vmatpush1.msra.mxu0 %v2057
        %4289 = vmatprep.subr.mxu0 %v2062
        %4290 = vmatpush1.msra.mxu0 %v2061
        %4291 = vmatprep.subr.mxu0 %v2066
        %4292 = vmatpush1.msra.mxu0 %v2065
        %4293 = vmatprep.subr.mxu0 %v2070
        %4294 = vmatpush1.msra.mxu0 %v2069
        %4295 = vmatprep.subr.mxu0 %v2074
        %4296 = vmatpush1.msra.mxu0 %v2073
        %4297 = vmatprep.subr.mxu0 %v2078
        %4298 = vmatpush1.msra.mxu0 %v2077
        %4299 = vmatprep.mubr.f32.mxu0 %v396
        %4300 = vmatmul.mubr.f32.gmra.mrb[0].mxu0 %v395
        %v4301 = vpop.f32.mrb[0].mxu0
        %v4302 = vadd.f32 %v4231, %v4301
        %v4303 = vpop.f32.mrb[0].mxu0
        %v4304 = vadd.f32 %v4233, %v4303
        %4305 = vdwg.mxu0
        %4306 = vmatprep.subr.mxu0 %v2082
        %4307 = vmatpush1.msra.mxu0 %v2081
        %4308 = vmatprep.subr.mxu0 %v2086
        %4309 = vmatpush1.msra.mxu0 %v2085
        %4310 = vmatprep.subr.mxu0 %v2090
        %4311 = vmatpush1.msra.mxu0 %v2089
        %4312 = vmatprep.subr.mxu0 %v2094
        %4313 = vmatpush1.msra.mxu0 %v2093
        %4314 = vmatprep.subr.mxu0 %v2098
        %4315 = vmatpush1.msra.mxu0 %v2097
        %4316 = vmatprep.subr.mxu0 %v2102
        %4317 = vmatpush1.msra.mxu0 %v2101
        %4318 = vmatprep.subr.mxu0 %v2106
        %4319 = vmatpush1.msra.mxu0 %v2105
        %4320 = vmatprep.subr.mxu0 %v2110
        %4321 = vmatpush1.msra.mxu0 %v2109
        %4322 = vmatprep.subr.mxu0 %v2114
        %4323 = vmatpush1.msra.mxu0 %v2113
        %4324 = vmatprep.subr.mxu0 %v2118
        %4325 = vmatpush1.msra.mxu0 %v2117
        %4326 = vmatprep.subr.mxu0 %v2122
        %4327 = vmatpush1.msra.mxu0 %v2121
        %4328 = vmatprep.subr.mxu0 %v2126
        %4329 = vmatpush1.msra.mxu0 %v2125
        %4330 = vmatprep.subr.mxu0 %v2130
        %4331 = vmatpush1.msra.mxu0 %v2129
        %4332 = vmatprep.subr.mxu0 %v2134
        %4333 = vmatpush1.msra.mxu0 %v2133
        %4334 = vmatprep.subr.mxu0 %v2138
        %4335 = vmatpush1.msra.mxu0 %v2137
        %4336 = vmatprep.subr.mxu0 %v2142
        %4337 = vmatpush1.msra.mxu0 %v2141
        %4338 = vmatprep.subr.mxu0 %v2146
        %4339 = vmatpush1.msra.mxu0 %v2145
        %4340 = vmatprep.subr.mxu0 %v2150
        %4341 = vmatpush1.msra.mxu0 %v2149
        %4342 = vmatprep.subr.mxu0 %v2154
        %4343 = vmatpush1.msra.mxu0 %v2153
        %4344 = vmatprep.subr.mxu0 %v2158
        %4345 = vmatpush1.msra.mxu0 %v2157
        %4346 = vmatprep.subr.mxu0 %v2162
        %4347 = vmatpush1.msra.mxu0 %v2161
        %4348 = vmatprep.subr.mxu0 %v2166
        %4349 = vmatpush1.msra.mxu0 %v2165
        %4350 = vmatprep.subr.mxu0 %v2170
        %4351 = vmatpush1.msra.mxu0 %v2169
        %4352 = vmatprep.subr.mxu0 %v2174
        %4353 = vmatpush1.msra.mxu0 %v2173
        %4354 = vmatprep.subr.mxu0 %v2178
        %4355 = vmatpush1.msra.mxu0 %v2177
        %4356 = vmatprep.subr.mxu0 %v2182
        %4357 = vmatpush1.msra.mxu0 %v2181
        %4358 = vmatprep.subr.mxu0 %v2186
        %4359 = vmatpush1.msra.mxu0 %v2185
        %4360 = vmatprep.subr.mxu0 %v2190
        %4361 = vmatpush1.msra.mxu0 %v2189
        %4362 = vmatprep.subr.mxu0 %v2194
        %4363 = vmatpush1.msra.mxu0 %v2193
        %4364 = vmatprep.subr.mxu0 %v2198
        %4365 = vmatpush1.msra.mxu0 %v2197
        %4366 = vmatprep.subr.mxu0 %v2202
        %4367 = vmatpush1.msra.mxu0 %v2201
        %4368 = vmatprep.subr.mxu0 %v2206
        %4369 = vmatpush1.msra.mxu0 %v2205
        %4370 = vmatprep.mubr.f32.mxu0 %v398
        %4371 = vmatmul.mubr.f32.gmra.mrb[0].mxu0 %v397
        %v4372 = vpop.f32.mrb[0].mxu0
        %v4373 = vadd.f32 %v4302, %v4372
        %v4374 = vpop.f32.mrb[0].mxu0
        %v4375 = vadd.f32 %v4304, %v4374
        %4376 = vdwg.mxu0
        %4377 = vmatprep.subr.mxu0 %v2210
        %4378 = vmatpush1.msra.mxu0 %v2209
        %4379 = vmatprep.subr.mxu0 %v2214
        %4380 = vmatpush1.msra.mxu0 %v2213
        %4381 = vmatprep.subr.mxu0 %v2218
        %4382 = vmatpush1.msra.mxu0 %v2217
        %4383 = vmatprep.subr.mxu0 %v2222
        %4384 = vmatpush1.msra.mxu0 %v2221
        %4385 = vmatprep.subr.mxu0 %v2226
        %4386 = vmatpush1.msra.mxu0 %v2225
        %4387 = vmatprep.subr.mxu0 %v2230
        %4388 = vmatpush1.msra.mxu0 %v2229
        %4389 = vmatprep.subr.mxu0 %v2234
        %4390 = vmatpush1.msra.mxu0 %v2233
        %4391 = vmatprep.subr.mxu0 %v2238
        %4392 = vmatpush1.msra.mxu0 %v2237
        %4393 = vmatprep.subr.mxu0 %v2242
        %4394 = vmatpush1.msra.mxu0 %v2241
        %4395 = vmatprep.subr.mxu0 %v2246
        %4396 = vmatpush1.msra.mxu0 %v2245
        %4397 = vmatprep.subr.mxu0 %v2250
        %4398 = vmatpush1.msra.mxu0 %v2249
        %4399 = vmatprep.subr.mxu0 %v2254
        %4400 = vmatpush1.msra.mxu0 %v2253
        %4401 = vmatprep.subr.mxu0 %v2258
        %4402 = vmatpush1.msra.mxu0 %v2257
        %4403 = vmatprep.subr.mxu0 %v2262
        %4404 = vmatpush1.msra.mxu0 %v2261
        %4405 = vmatprep.subr.mxu0 %v2266
        %4406 = vmatpush1.msra.mxu0 %v2265
        %4407 = vmatprep.subr.mxu0 %v2270
        %4408 = vmatpush1.msra.mxu0 %v2269
        %4409 = vmatprep.subr.mxu0 %v2274
        %4410 = vmatpush1.msra.mxu0 %v2273
        %4411 = vmatprep.subr.mxu0 %v2278
        %4412 = vmatpush1.msra.mxu0 %v2277
        %4413 = vmatprep.subr.mxu0 %v2282
        %4414 = vmatpush1.msra.mxu0 %v2281
        %4415 = vmatprep.subr.mxu0 %v2286
        %4416 = vmatpush1.msra.mxu0 %v2285
        %4417 = vmatprep.subr.mxu0 %v2290
        %4418 = vmatpush1.msra.mxu0 %v2289
        %4419 = vmatprep.subr.mxu0 %v2294
        %4420 = vmatpush1.msra.mxu0 %v2293
        %4421 = vmatprep.subr.mxu0 %v2298
        %4422 = vmatpush1.msra.mxu0 %v2297
        %4423 = vmatprep.subr.mxu0 %v2302
        %4424 = vmatpush1.msra.mxu0 %v2301
        %4425 = vmatprep.subr.mxu0 %v2306
        %4426 = vmatpush1.msra.mxu0 %v2305
        %4427 = vmatprep.subr.mxu0 %v2310
        %4428 = vmatpush1.msra.mxu0 %v2309
        %4429 = vmatprep.subr.mxu0 %v2314
        %4430 = vmatpush1.msra.mxu0 %v2313
        %4431 = vmatprep.subr.mxu0 %v2318
        %4432 = vmatpush1.msra.mxu0 %v2317
        %4433 = vmatprep.subr.mxu0 %v2322
        %4434 = vmatpush1.msra.mxu0 %v2321
        %4435 = vmatprep.subr.mxu0 %v2326
        %4436 = vmatpush1.msra.mxu0 %v2325
        %4437 = vmatprep.subr.mxu0 %v2330
        %4438 = vmatpush1.msra.mxu0 %v2329
        %4439 = vmatprep.subr.mxu0 %v2334
        %4440 = vmatpush1.msra.mxu0 %v2333
        %4441 = vmatprep.mubr.f32.mxu0 %v400
        %4442 = vmatmul.mubr.f32.gmra.mrb[0].mxu0 %v399
        %v4443 = vpop.f32.mrb[0].mxu0
        %v4444 = vadd.f32 %v4373, %v4443
        %v4445 = vpop.f32.mrb[0].mxu0
        %v4446 = vadd.f32 %v4375, %v4445
        %4447 = vdwg.mxu0
        %4448 = vmatprep.subr.mxu0 %v2338
        %4449 = vmatpush1.msra.mxu0 %v2337
        %4450 = vmatprep.subr.mxu0 %v2342
        %4451 = vmatpush1.msra.mxu0 %v2341
        %4452 = vmatprep.subr.mxu0 %v2346
        %4453 = vmatpush1.msra.mxu0 %v2345
        %4454 = vmatprep.subr.mxu0 %v2350
        %4455 = vmatpush1.msra.mxu0 %v2349
        %4456 = vmatprep.subr.mxu0 %v2354
        %4457 = vmatpush1.msra.mxu0 %v2353
        %4458 = vmatprep.subr.mxu0 %v2358
        %4459 = vmatpush1.msra.mxu0 %v2357
        %4460 = vmatprep.subr.mxu0 %v2362
        %4461 = vmatpush1.msra.mxu0 %v2361
        %4462 = vmatprep.subr.mxu0 %v2366
        %4463 = vmatpush1.msra.mxu0 %v2365
        %4464 = vmatprep.subr.mxu0 %v2370
        %4465 = vmatpush1.msra.mxu0 %v2369
        %4466 = vmatprep.subr.mxu0 %v2374
        %4467 = vmatpush1.msra.mxu0 %v2373
        %4468 = vmatprep.subr.mxu0 %v2378
        %4469 = vmatpush1.msra.mxu0 %v2377
        %4470 = vmatprep.subr.mxu0 %v2382
        %4471 = vmatpush1.msra.mxu0 %v2381
        %4472 = vmatprep.subr.mxu0 %v2386
        %4473 = vmatpush1.msra.mxu0 %v2385
        %4474 = vmatprep.subr.mxu0 %v2390
        %4475 = vmatpush1.msra.mxu0 %v2389
        %4476 = vmatprep.subr.mxu0 %v2394
        %4477 = vmatpush1.msra.mxu0 %v2393
        %4478 = vmatprep.subr.mxu0 %v2398
        %4479 = vmatpush1.msra.mxu0 %v2397
        %4480 = vmatprep.subr.mxu0 %v2402
        %4481 = vmatpush1.msra.mxu0 %v2401
        %4482 = vmatprep.subr.mxu0 %v2406
        %4483 = vmatpush1.msra.mxu0 %v2405
        %4484 = vmatprep.subr.mxu0 %v2410
        %4485 = vmatpush1.msra.mxu0 %v2409
        %4486 = vmatprep.subr.mxu0 %v2414
        %4487 = vmatpush1.msra.mxu0 %v2413
        %4488 = vmatprep.subr.mxu0 %v2418
        %4489 = vmatpush1.msra.mxu0 %v2417
        %4490 = vmatprep.subr.mxu0 %v2422
        %4491 = vmatpush1.msra.mxu0 %v2421
        %4492 = vmatprep.subr.mxu0 %v2426
        %4493 = vmatpush1.msra.mxu0 %v2425
        %4494 = vmatprep.subr.mxu0 %v2430
        %4495 = vmatpush1.msra.mxu0 %v2429
        %4496 = vmatprep.subr.mxu0 %v2434
        %4497 = vmatpush1.msra.mxu0 %v2433
        %4498 = vmatprep.subr.mxu0 %v2438
        %4499 = vmatpush1.msra.mxu0 %v2437
        %4500 = vmatprep.subr.mxu0 %v2442
        %4501 = vmatpush1.msra.mxu0 %v2441
        %4502 = vmatprep.subr.mxu0 %v2446
        %4503 = vmatpush1.msra.mxu0 %v2445
        %4504 = vmatprep.subr.mxu0 %v2450
        %4505 = vmatpush1.msra.mxu0 %v2449
        %4506 = vmatprep.subr.mxu0 %v2454
        %4507 = vmatpush1.msra.mxu0 %v2453
        %4508 = vmatprep.subr.mxu0 %v2458
        %4509 = vmatpush1.msra.mxu0 %v2457
        %4510 = vmatprep.subr.mxu0 %v2462
        %4511 = vmatpush1.msra.mxu0 %v2461
        %4512 = vmatprep.mubr.f32.mxu0 %v402
        %4513 = vmatmul.mubr.f32.gmra.mrb[0].mxu0 %v401
        %v4514 = vpop.f32.mrb[0].mxu0
        %v4515 = vadd.f32 %v4444, %v4514
        %v4516 = vpop.f32.mrb[0].mxu0
        %v4517 = vadd.f32 %v4446, %v4516
        %4518 = vdwg.mxu0
        %4519 = vmatprep.subr.mxu0 %v2466
        %4520 = vmatpush1.msra.mxu0 %v2465
        %4521 = vmatprep.subr.mxu0 %v2470
        %4522 = vmatpush1.msra.mxu0 %v2469
        %4523 = vmatprep.subr.mxu0 %v2474
        %4524 = vmatpush1.msra.mxu0 %v2473
        %4525 = vmatprep.subr.mxu0 %v2478
        %4526 = vmatpush1.msra.mxu0 %v2477
        %4527 = vmatprep.subr.mxu0 %v2482
        %4528 = vmatpush1.msra.mxu0 %v2481
        %4529 = vmatprep.subr.mxu0 %v2486
        %4530 = vmatpush1.msra.mxu0 %v2485
        %4531 = vmatprep.subr.mxu0 %v2490
        %4532 = vmatpush1.msra.mxu0 %v2489
        %4533 = vmatprep.subr.mxu0 %v2494
        %4534 = vmatpush1.msra.mxu0 %v2493
        %4535 = vmatprep.subr.mxu0 %v2498
        %4536 = vmatpush1.msra.mxu0 %v2497
        %4537 = vmatprep.subr.mxu0 %v2502
        %4538 = vmatpush1.msra.mxu0 %v2501
        %4539 = vmatprep.subr.mxu0 %v2506
        %4540 = vmatpush1.msra.mxu0 %v2505
        %4541 = vmatprep.subr.mxu0 %v2510
        %4542 = vmatpush1.msra.mxu0 %v2509
        %4543 = vmatprep.subr.mxu0 %v2514
        %4544 = vmatpush1.msra.mxu0 %v2513
        %4545 = vmatprep.subr.mxu0 %v2518
        %4546 = vmatpush1.msra.mxu0 %v2517
        %4547 = vmatprep.subr.mxu0 %v2522
        %4548 = vmatpush1.msra.mxu0 %v2521
        %4549 = vmatprep.subr.mxu0 %v2526
        %4550 = vmatpush1.msra.mxu0 %v2525
        %4551 = vmatprep.subr.mxu0 %v2530
        %4552 = vmatpush1.msra.mxu0 %v2529
        %4553 = vmatprep.subr.mxu0 %v2534
        %4554 = vmatpush1.msra.mxu0 %v2533
        %4555 = vmatprep.subr.mxu0 %v2538
        %4556 = vmatpush1.msra.mxu0 %v2537
        %4557 = vmatprep.subr.mxu0 %v2542
        %4558 = vmatpush1.msra.mxu0 %v2541
        %4559 = vmatprep.subr.mxu0 %v2546
        %4560 = vmatpush1.msra.mxu0 %v2545
        %4561 = vmatprep.subr.mxu0 %v2550
        %4562 = vmatpush1.msra.mxu0 %v2549
        %4563 = vmatprep.subr.mxu0 %v2554
        %4564 = vmatpush1.msra.mxu0 %v2553
        %4565 = vmatprep.subr.mxu0 %v2558
        %4566 = vmatpush1.msra.mxu0 %v2557
        %4567 = vmatprep.subr.mxu0 %v2562
        %4568 = vmatpush1.msra.mxu0 %v2561
        %4569 = vmatprep.subr.mxu0 %v2566
        %4570 = vmatpush1.msra.mxu0 %v2565
        %4571 = vmatprep.subr.mxu0 %v2570
        %4572 = vmatpush1.msra.mxu0 %v2569
        %4573 = vmatprep.subr.mxu0 %v2574
        %4574 = vmatpush1.msra.mxu0 %v2573
        %4575 = vmatprep.subr.mxu0 %v2578
        %4576 = vmatpush1.msra.mxu0 %v2577
        %4577 = vmatprep.subr.mxu0 %v2582
        %4578 = vmatpush1.msra.mxu0 %v2581
        %4579 = vmatprep.subr.mxu0 %v2586
        %4580 = vmatpush1.msra.mxu0 %v2585
        %4581 = vmatprep.subr.mxu0 %v2590
        %4582 = vmatpush1.msra.mxu0 %v2589
        %4583 = vmatprep.mubr.f32.mxu0 %v404
        %4584 = vmatmul.mubr.f32.gmra.mrb[0].mxu0 %v403
        %v4585 = vpop.f32.mrb[0].mxu0
        %v4586 = vadd.f32 %v4515, %v4585
        %v4587 = vpop.f32.mrb[0].mxu0
        %v4588 = vadd.f32 %v4517, %v4587
        %4589 = vdwg.mxu0
        %4590 = vmatprep.subr.mxu0 %v2594
        %4591 = vmatpush1.msra.mxu0 %v2593
        %4592 = vmatprep.subr.mxu0 %v2598
        %4593 = vmatpush1.msra.mxu0 %v2597
        %4594 = vmatprep.subr.mxu0 %v2602
        %4595 = vmatpush1.msra.mxu0 %v2601
        %4596 = vmatprep.subr.mxu0 %v2606
        %4597 = vmatpush1.msra.mxu0 %v2605
        %4598 = vmatprep.subr.mxu0 %v2610
        %4599 = vmatpush1.msra.mxu0 %v2609
        %4600 = vmatprep.subr.mxu0 %v2614
        %4601 = vmatpush1.msra.mxu0 %v2613
        %4602 = vmatprep.subr.mxu0 %v2618
        %4603 = vmatpush1.msra.mxu0 %v2617
        %4604 = vmatprep.subr.mxu0 %v2622
        %4605 = vmatpush1.msra.mxu0 %v2621
        %4606 = vmatprep.subr.mxu0 %v2626
        %4607 = vmatpush1.msra.mxu0 %v2625
        %4608 = vmatprep.subr.mxu0 %v2630
        %4609 = vmatpush1.msra.mxu0 %v2629
        %4610 = vmatprep.subr.mxu0 %v2634
        %4611 = vmatpush1.msra.mxu0 %v2633
        %4612 = vmatprep.subr.mxu0 %v2638
        %4613 = vmatpush1.msra.mxu0 %v2637
        %4614 = vmatprep.subr.mxu0 %v2642
        %4615 = vmatpush1.msra.mxu0 %v2641
        %4616 = vmatprep.subr.mxu0 %v2646
        %4617 = vmatpush1.msra.mxu0 %v2645
        %4618 = vmatprep.subr.mxu0 %v2650
        %4619 = vmatpush1.msra.mxu0 %v2649
        %4620 = vmatprep.subr.mxu0 %v2654
        %4621 = vmatpush1.msra.mxu0 %v2653
        %4622 = vmatprep.subr.mxu0 %v2658
        %4623 = vmatpush1.msra.mxu0 %v2657
        %4624 = vmatprep.subr.mxu0 %v2662
        %4625 = vmatpush1.msra.mxu0 %v2661
        %4626 = vmatprep.subr.mxu0 %v2666
        %4627 = vmatpush1.msra.mxu0 %v2665
        %4628 = vmatprep.subr.mxu0 %v2670
        %4629 = vmatpush1.msra.mxu0 %v2669
        %4630 = vmatprep.subr.mxu0 %v2674
        %4631 = vmatpush1.msra.mxu0 %v2673
        %4632 = vmatprep.subr.mxu0 %v2678
        %4633 = vmatpush1.msra.mxu0 %v2677
        %4634 = vmatprep.subr.mxu0 %v2682
        %4635 = vmatpush1.msra.mxu0 %v2681
        %4636 = vmatprep.subr.mxu0 %v2686
        %4637 = vmatpush1.msra.mxu0 %v2685
        %4638 = vmatprep.subr.mxu0 %v2690
        %4639 = vmatpush1.msra.mxu0 %v2689
        %4640 = vmatprep.subr.mxu0 %v2694
        %4641 = vmatpush1.msra.mxu0 %v2693
        %4642 = vmatprep.subr.mxu0 %v2698
        %4643 = vmatpush1.msra.mxu0 %v2697
        %4644 = vmatprep.subr.mxu0 %v2702
        %4645 = vmatpush1.msra.mxu0 %v2701
        %4646 = vmatprep.subr.mxu0 %v2706
        %4647 = vmatpush1.msra.mxu0 %v2705
        %4648 = vmatprep.subr.mxu0 %v2710
        %4649 = vmatpush1.msra.mxu0 %v2709
        %4650 = vmatprep.subr.mxu0 %v2714
        %4651 = vmatpush1.msra.mxu0 %v2713
        %4652 = vmatprep.subr.mxu0 %v2718
        %4653 = vmatpush1.msra.mxu0 %v2717
        %4654 = vmatprep.mubr.f32.mxu0 %v406
        %4655 = vmatmul.mubr.f32.gmra.mrb[0].mxu0 %v405
        %v4656 = vpop.f32.mrb[0].mxu0
        %v4657 = vadd.f32 %v4586, %v4656
        %v4658 = vpop.f32.mrb[0].mxu0
        %v4659 = vadd.f32 %v4588, %v4658
        %4660 = vdwg.mxu0
        %4661 = vmatprep.subr.mxu0 %v2722
        %4662 = vmatpush1.msra.mxu0 %v2721
        %4663 = vmatprep.subr.mxu0 %v2726
        %4664 = vmatpush1.msra.mxu0 %v2725
        %4665 = vmatprep.subr.mxu0 %v2730
        %4666 = vmatpush1.msra.mxu0 %v2729
        %4667 = vmatprep.subr.mxu0 %v2734
        %4668 = vmatpush1.msra.mxu0 %v2733
        %4669 = vmatprep.subr.mxu0 %v2738
        %4670 = vmatpush1.msra.mxu0 %v2737
        %4671 = vmatprep.subr.mxu0 %v2742
        %4672 = vmatpush1.msra.mxu0 %v2741
        %4673 = vmatprep.subr.mxu0 %v2746
        %4674 = vmatpush1.msra.mxu0 %v2745
        %4675 = vmatprep.subr.mxu0 %v2750
        %4676 = vmatpush1.msra.mxu0 %v2749
        %4677 = vmatprep.subr.mxu0 %v2754
        %4678 = vmatpush1.msra.mxu0 %v2753
        %4679 = vmatprep.subr.mxu0 %v2758
        %4680 = vmatpush1.msra.mxu0 %v2757
        %4681 = vmatprep.subr.mxu0 %v2762
        %4682 = vmatpush1.msra.mxu0 %v2761
        %4683 = vmatprep.subr.mxu0 %v2766
        %4684 = vmatpush1.msra.mxu0 %v2765
        %4685 = vmatprep.subr.mxu0 %v2770
        %4686 = vmatpush1.msra.mxu0 %v2769
        %4687 = vmatprep.subr.mxu0 %v2774
        %4688 = vmatpush1.msra.mxu0 %v2773
        %4689 = vmatprep.subr.mxu0 %v2778
        %4690 = vmatpush1.msra.mxu0 %v2777
        %4691 = vmatprep.subr.mxu0 %v2782
        %4692 = vmatpush1.msra.mxu0 %v2781
        %4693 = vmatprep.subr.mxu0 %v2786
        %4694 = vmatpush1.msra.mxu0 %v2785
        %4695 = vmatprep.subr.mxu0 %v2790
        %4696 = vmatpush1.msra.mxu0 %v2789
        %4697 = vmatprep.subr.mxu0 %v2794
        %4698 = vmatpush1.msra.mxu0 %v2793
        %4699 = vmatprep.subr.mxu0 %v2798
        %4700 = vmatpush1.msra.mxu0 %v2797
        %4701 = vmatprep.subr.mxu0 %v2802
        %4702 = vmatpush1.msra.mxu0 %v2801
        %4703 = vmatprep.subr.mxu0 %v2806
        %4704 = vmatpush1.msra.mxu0 %v2805
        %4705 = vmatprep.subr.mxu0 %v2810
        %4706 = vmatpush1.msra.mxu0 %v2809
        %4707 = vmatprep.subr.mxu0 %v2814
        %4708 = vmatpush1.msra.mxu0 %v2813
        %4709 = vmatprep.subr.mxu0 %v2818
        %4710 = vmatpush1.msra.mxu0 %v2817
        %4711 = vmatprep.subr.mxu0 %v2822
        %4712 = vmatpush1.msra.mxu0 %v2821
        %4713 = vmatprep.subr.mxu0 %v2826
        %4714 = vmatpush1.msra.mxu0 %v2825
        %4715 = vmatprep.subr.mxu0 %v2830
        %4716 = vmatpush1.msra.mxu0 %v2829
        %4717 = vmatprep.subr.mxu0 %v2834
        %4718 = vmatpush1.msra.mxu0 %v2833
        %4719 = vmatprep.subr.mxu0 %v2838
        %4720 = vmatpush1.msra.mxu0 %v2837
        %4721 = vmatprep.subr.mxu0 %v2842
        %4722 = vmatpush1.msra.mxu0 %v2841
        %4723 = vmatprep.subr.mxu0 %v2846
        %4724 = vmatpush1.msra.mxu0 %v2845
        %4725 = vmatprep.mubr.f32.mxu0 %v408
        %4726 = vmatmul.mubr.f32.gmra.mrb[0].mxu0 %v407
        %v4727 = vpop.f32.mrb[0].mxu0
        %v4728 = vadd.f32 %v4657, %v4727
        %v4729 = vpop.f32.mrb[0].mxu0
        %v4730 = vadd.f32 %v4659, %v4729
        %4731 = vdwg.mxu0
        %4732 = vmatprep.subr.mxu0 %v2850
        %4733 = vmatpush1.msra.mxu0 %v2849
        %4734 = vmatprep.subr.mxu0 %v2854
        %4735 = vmatpush1.msra.mxu0 %v2853
        %4736 = vmatprep.subr.mxu0 %v2858
        %4737 = vmatpush1.msra.mxu0 %v2857
        %4738 = vmatprep.subr.mxu0 %v2862
        %4739 = vmatpush1.msra.mxu0 %v2861
        %4740 = vmatprep.subr.mxu0 %v2866
        %4741 = vmatpush1.msra.mxu0 %v2865
        %4742 = vmatprep.subr.mxu0 %v2870
        %4743 = vmatpush1.msra.mxu0 %v2869
        %4744 = vmatprep.subr.mxu0 %v2874
        %4745 = vmatpush1.msra.mxu0 %v2873
        %4746 = vmatprep.subr.mxu0 %v2878
        %4747 = vmatpush1.msra.mxu0 %v2877
        %4748 = vmatprep.subr.mxu0 %v2882
        %4749 = vmatpush1.msra.mxu0 %v2881
        %4750 = vmatprep.subr.mxu0 %v2886
        %4751 = vmatpush1.msra.mxu0 %v2885
        %4752 = vmatprep.subr.mxu0 %v2890
        %4753 = vmatpush1.msra.mxu0 %v2889
        %4754 = vmatprep.subr.mxu0 %v2894
        %4755 = vmatpush1.msra.mxu0 %v2893
        %4756 = vmatprep.subr.mxu0 %v2898
        %4757 = vmatpush1.msra.mxu0 %v2897
        %4758 = vmatprep.subr.mxu0 %v2902
        %4759 = vmatpush1.msra.mxu0 %v2901
        %4760 = vmatprep.subr.mxu0 %v2906
        %4761 = vmatpush1.msra.mxu0 %v2905
        %4762 = vmatprep.subr.mxu0 %v2910
        %4763 = vmatpush1.msra.mxu0 %v2909
        %4764 = vmatprep.subr.mxu0 %v2914
        %4765 = vmatpush1.msra.mxu0 %v2913
        %4766 = vmatprep.subr.mxu0 %v2918
        %4767 = vmatpush1.msra.mxu0 %v2917
        %4768 = vmatprep.subr.mxu0 %v2922
        %4769 = vmatpush1.msra.mxu0 %v2921
        %4770 = vmatprep.subr.mxu0 %v2926
        %4771 = vmatpush1.msra.mxu0 %v2925
        %4772 = vmatprep.subr.mxu0 %v2930
        %4773 = vmatpush1.msra.mxu0 %v2929
        %4774 = vmatprep.subr.mxu0 %v2934
        %4775 = vmatpush1.msra.mxu0 %v2933
        %4776 = vmatprep.subr.mxu0 %v2938
        %4777 = vmatpush1.msra.mxu0 %v2937
        %4778 = vmatprep.subr.mxu0 %v2942
        %4779 = vmatpush1.msra.mxu0 %v2941
        %4780 = vmatprep.subr.mxu0 %v2946
        %4781 = vmatpush1.msra.mxu0 %v2945
        %4782 = vmatprep.subr.mxu0 %v2950
        %4783 = vmatpush1.msra.mxu0 %v2949
        %4784 = vmatprep.subr.mxu0 %v2954
        %4785 = vmatpush1.msra.mxu0 %v2953
        %4786 = vmatprep.subr.mxu0 %v2958
        %4787 = vmatpush1.msra.mxu0 %v2957
        %4788 = vmatprep.subr.mxu0 %v2962
        %4789 = vmatpush1.msra.mxu0 %v2961
        %4790 = vmatprep.subr.mxu0 %v2966
        %4791 = vmatpush1.msra.mxu0 %v2965
        %4792 = vmatprep.subr.mxu0 %v2970
        %4793 = vmatpush1.msra.mxu0 %v2969
        %4794 = vmatprep.subr.mxu0 %v2974
        %4795 = vmatpush1.msra.mxu0 %v2973
        %4796 = vmatprep.mubr.f32.mxu0 %v410
        %4797 = vmatmul.mubr.f32.gmra.mrb[0].mxu0 %v409
        %v4798 = vpop.f32.mrb[0].mxu0
        %v4799 = vadd.f32 %v4728, %v4798
        %v4800 = vpop.f32.mrb[0].mxu0
        %v4801 = vadd.f32 %v4730, %v4800
        %4802 = vdwg.mxu0
        %4803 = vmatprep.subr.mxu0 %v2978
        %4804 = vmatpush1.msra.mxu0 %v2977
        %4805 = vmatprep.subr.mxu0 %v2982
        %4806 = vmatpush1.msra.mxu0 %v2981
        %4807 = vmatprep.subr.mxu0 %v2986
        %4808 = vmatpush1.msra.mxu0 %v2985
        %4809 = vmatprep.subr.mxu0 %v2990
        %4810 = vmatpush1.msra.mxu0 %v2989
        %4811 = vmatprep.subr.mxu0 %v2994
        %4812 = vmatpush1.msra.mxu0 %v2993
        %4813 = vmatprep.subr.mxu0 %v2998
        %4814 = vmatpush1.msra.mxu0 %v2997
        %4815 = vmatprep.subr.mxu0 %v3002
        %4816 = vmatpush1.msra.mxu0 %v3001
        %4817 = vmatprep.subr.mxu0 %v3006
        %4818 = vmatpush1.msra.mxu0 %v3005
        %4819 = vmatprep.subr.mxu0 %v3010
        %4820 = vmatpush1.msra.mxu0 %v3009
        %4821 = vmatprep.subr.mxu0 %v3014
        %4822 = vmatpush1.msra.mxu0 %v3013
        %4823 = vmatprep.subr.mxu0 %v3018
        %4824 = vmatpush1.msra.mxu0 %v3017
        %4825 = vmatprep.subr.mxu0 %v3022
        %4826 = vmatpush1.msra.mxu0 %v3021
        %4827 = vmatprep.subr.mxu0 %v3026
        %4828 = vmatpush1.msra.mxu0 %v3025
        %4829 = vmatprep.subr.mxu0 %v3030
        %4830 = vmatpush1.msra.mxu0 %v3029
        %4831 = vmatprep.subr.mxu0 %v3034
        %4832 = vmatpush1.msra.mxu0 %v3033
        %4833 = vmatprep.subr.mxu0 %v3038
        %4834 = vmatpush1.msra.mxu0 %v3037
        %4835 = vmatprep.subr.mxu0 %v3042
        %4836 = vmatpush1.msra.mxu0 %v3041
        %4837 = vmatprep.subr.mxu0 %v3046
        %4838 = vmatpush1.msra.mxu0 %v3045
        %4839 = vmatprep.subr.mxu0 %v3050
        %4840 = vmatpush1.msra.mxu0 %v3049
        %4841 = vmatprep.subr.mxu0 %v3054
        %4842 = vmatpush1.msra.mxu0 %v3053
        %4843 = vmatprep.subr.mxu0 %v3058
        %4844 = vmatpush1.msra.mxu0 %v3057
        %4845 = vmatprep.subr.mxu0 %v3062
        %4846 = vmatpush1.msra.mxu0 %v3061
        %4847 = vmatprep.subr.mxu0 %v3066
        %4848 = vmatpush1.msra.mxu0 %v3065
        %4849 = vmatprep.subr.mxu0 %v3070
        %4850 = vmatpush1.msra.mxu0 %v3069
        %4851 = vmatprep.subr.mxu0 %v3074
        %4852 = vmatpush1.msra.mxu0 %v3073
        %4853 = vmatprep.subr.mxu0 %v3078
        %4854 = vmatpush1.msra.mxu0 %v3077
        %4855 = vmatprep.subr.mxu0 %v3082
        %4856 = vmatpush1.msra.mxu0 %v3081
        %4857 = vmatprep.subr.mxu0 %v3086
        %4858 = vmatpush1.msra.mxu0 %v3085
        %4859 = vmatprep.subr.mxu0 %v3090
        %4860 = vmatpush1.msra.mxu0 %v3089
        %4861 = vmatprep.subr.mxu0 %v3094
        %4862 = vmatpush1.msra.mxu0 %v3093
        %4863 = vmatprep.subr.mxu0 %v3098
        %4864 = vmatpush1.msra.mxu0 %v3097
        %4865 = vmatprep.subr.mxu0 %v3102
        %4866 = vmatpush1.msra.mxu0 %v3101
        %4867 = vmatprep.mubr.f32.mxu0 %v412
        %4868 = vmatmul.mubr.f32.gmra.mrb[0].mxu0 %v411
        %v4869 = vpop.f32.mrb[0].mxu0
        %v4870 = vadd.f32 %v4799, %v4869
        %v4871 = vpop.f32.mrb[0].mxu0
        %v4872 = vadd.f32 %v4801, %v4871
        %4873 = vdwg.mxu0
        %4874 = vmatprep.subr.mxu0 %v3106
        %4875 = vmatpush1.msra.mxu0 %v3105
        %4876 = vmatprep.subr.mxu0 %v3110
        %4877 = vmatpush1.msra.mxu0 %v3109
        %4878 = vmatprep.subr.mxu0 %v3114
        %4879 = vmatpush1.msra.mxu0 %v3113
        %4880 = vmatprep.subr.mxu0 %v3118
        %4881 = vmatpush1.msra.mxu0 %v3117
        %4882 = vmatprep.subr.mxu0 %v3122
        %4883 = vmatpush1.msra.mxu0 %v3121
        %4884 = vmatprep.subr.mxu0 %v3126
        %4885 = vmatpush1.msra.mxu0 %v3125
        %4886 = vmatprep.subr.mxu0 %v3130
        %4887 = vmatpush1.msra.mxu0 %v3129
        %4888 = vmatprep.subr.mxu0 %v3134
        %4889 = vmatpush1.msra.mxu0 %v3133
        %4890 = vmatprep.subr.mxu0 %v3138
        %4891 = vmatpush1.msra.mxu0 %v3137
        %4892 = vmatprep.subr.mxu0 %v3142
        %4893 = vmatpush1.msra.mxu0 %v3141
        %4894 = vmatprep.subr.mxu0 %v3146
        %4895 = vmatpush1.msra.mxu0 %v3145
        %4896 = vmatprep.subr.mxu0 %v3150
        %4897 = vmatpush1.msra.mxu0 %v3149
        %4898 = vmatprep.subr.mxu0 %v3154
        %4899 = vmatpush1.msra.mxu0 %v3153
        %4900 = vmatprep.subr.mxu0 %v3158
        %4901 = vmatpush1.msra.mxu0 %v3157
        %4902 = vmatprep.subr.mxu0 %v3162
        %4903 = vmatpush1.msra.mxu0 %v3161
        %4904 = vmatprep.subr.mxu0 %v3166
        %4905 = vmatpush1.msra.mxu0 %v3165
        %4906 = vmatprep.subr.mxu0 %v3170
        %4907 = vmatpush1.msra.mxu0 %v3169
        %4908 = vmatprep.subr.mxu0 %v3174
        %4909 = vmatpush1.msra.mxu0 %v3173
        %4910 = vmatprep.subr.mxu0 %v3178
        %4911 = vmatpush1.msra.mxu0 %v3177
        %4912 = vmatprep.subr.mxu0 %v3182
        %4913 = vmatpush1.msra.mxu0 %v3181
        %4914 = vmatprep.subr.mxu0 %v3186
        %4915 = vmatpush1.msra.mxu0 %v3185
        %4916 = vmatprep.subr.mxu0 %v3190
        %4917 = vmatpush1.msra.mxu0 %v3189
        %4918 = vmatprep.subr.mxu0 %v3194
        %4919 = vmatpush1.msra.mxu0 %v3193
        %4920 = vmatprep.subr.mxu0 %v3198
        %4921 = vmatpush1.msra.mxu0 %v3197
        %4922 = vmatprep.subr.mxu0 %v3202
        %4923 = vmatpush1.msra.mxu0 %v3201
        %4924 = vmatprep.subr.mxu0 %v3206
        %4925 = vmatpush1.msra.mxu0 %v3205
        %4926 = vmatprep.subr.mxu0 %v3210
        %4927 = vmatpush1.msra.mxu0 %v3209
        %4928 = vmatprep.subr.mxu0 %v3214
        %4929 = vmatpush1.msra.mxu0 %v3213
        %4930 = vmatprep.subr.mxu0 %v3218
        %4931 = vmatpush1.msra.mxu0 %v3217
        %4932 = vmatprep.subr.mxu0 %v3222
        %4933 = vmatpush1.msra.mxu0 %v3221
        %4934 = vmatprep.subr.mxu0 %v3226
        %4935 = vmatpush1.msra.mxu0 %v3225
        %4936 = vmatprep.subr.mxu0 %v3230
        %4937 = vmatpush1.msra.mxu0 %v3229
        %4938 = vmatprep.mubr.f32.mxu0 %v414
        %4939 = vmatmul.mubr.f32.gmra.mrb[0].mxu0 %v413
        %v4940 = vpop.f32.mrb[0].mxu0
        %v4941 = vadd.f32 %v4870, %v4940
        %v4942 = vpop.f32.mrb[0].mxu0
        %v4943 = vadd.f32 %v4872, %v4942
        %4944 = vdwg.mxu0
        %4945 = vmatprep.subr.mxu0 %v3234
        %4946 = vmatpush1.msra.mxu0 %v3233
        %4947 = vmatprep.subr.mxu0 %v3238
        %4948 = vmatpush1.msra.mxu0 %v3237
        %4949 = vmatprep.subr.mxu0 %v3242
        %4950 = vmatpush1.msra.mxu0 %v3241
        %4951 = vmatprep.subr.mxu0 %v3246
        %4952 = vmatpush1.msra.mxu0 %v3245
        %4953 = vmatprep.subr.mxu0 %v3250
        %4954 = vmatpush1.msra.mxu0 %v3249
        %4955 = vmatprep.subr.mxu0 %v3254
        %4956 = vmatpush1.msra.mxu0 %v3253
        %4957 = vmatprep.subr.mxu0 %v3258
        %4958 = vmatpush1.msra.mxu0 %v3257
        %4959 = vmatprep.subr.mxu0 %v3262
        %4960 = vmatpush1.msra.mxu0 %v3261
        %4961 = vmatprep.subr.mxu0 %v3266
        %4962 = vmatpush1.msra.mxu0 %v3265
        %4963 = vmatprep.subr.mxu0 %v3270
        %4964 = vmatpush1.msra.mxu0 %v3269
        %4965 = vmatprep.subr.mxu0 %v3274
        %4966 = vmatpush1.msra.mxu0 %v3273
        %4967 = vmatprep.subr.mxu0 %v3278
        %4968 = vmatpush1.msra.mxu0 %v3277
        %4969 = vmatprep.subr.mxu0 %v3282
        %4970 = vmatpush1.msra.mxu0 %v3281
        %4971 = vmatprep.subr.mxu0 %v3286
        %4972 = vmatpush1.msra.mxu0 %v3285
        %4973 = vmatprep.subr.mxu0 %v3290
        %4974 = vmatpush1.msra.mxu0 %v3289
        %4975 = vmatprep.subr.mxu0 %v3294
        %4976 = vmatpush1.msra.mxu0 %v3293
        %4977 = vmatprep.subr.mxu0 %v3298
        %4978 = vmatpush1.msra.mxu0 %v3297
        %4979 = vmatprep.subr.mxu0 %v3302
        %4980 = vmatpush1.msra.mxu0 %v3301
        %4981 = vmatprep.subr.mxu0 %v3306
        %4982 = vmatpush1.msra.mxu0 %v3305
        %4983 = vmatprep.subr.mxu0 %v3310
        %4984 = vmatpush1.msra.mxu0 %v3309
        %4985 = vmatprep.subr.mxu0 %v3314
        %4986 = vmatpush1.msra.mxu0 %v3313
        %4987 = vmatprep.subr.mxu0 %v3318
        %4988 = vmatpush1.msra.mxu0 %v3317
        %4989 = vmatprep.subr.mxu0 %v3322
        %4990 = vmatpush1.msra.mxu0 %v3321
        %4991 = vmatprep.subr.mxu0 %v3326
        %4992 = vmatpush1.msra.mxu0 %v3325
        %4993 = vmatprep.subr.mxu0 %v3330
        %4994 = vmatpush1.msra.mxu0 %v3329
        %4995 = vmatprep.subr.mxu0 %v3334
        %4996 = vmatpush1.msra.mxu0 %v3333
        %4997 = vmatprep.subr.mxu0 %v3338
        %4998 = vmatpush1.msra.mxu0 %v3337
        %4999 = vmatprep.subr.mxu0 %v3342
        %5000 = vmatpush1.msra.mxu0 %v3341
        %5001 = vmatprep.subr.mxu0 %v3346
        %5002 = vmatpush1.msra.mxu0 %v3345
        %5003 = vmatprep.subr.mxu0 %v3350
        %5004 = vmatpush1.msra.mxu0 %v3349
        %5005 = vmatprep.subr.mxu0 %v3354
        %5006 = vmatpush1.msra.mxu0 %v3353
        %5007 = vmatprep.subr.mxu0 %v3358
        %5008 = vmatpush1.msra.mxu0 %v3357
        %5009 = vmatprep.mubr.f32.mxu0 %v416
        %5010 = vmatmul.mubr.f32.gmra.mrb[0].mxu0 %v415
        %v5011 = vpop.f32.mrb[0].mxu0
        %v5012 = vadd.f32 %v4941, %v5011
        %v5013 = vpop.f32.mrb[0].mxu0
        %v5014 = vadd.f32 %v4943, %v5013
        %5015 = vdwg.mxu0
        %5016 = vmatprep.subr.mxu0 %v420
        %5017 = vmatpush1.msra.mxu0 %v419
        %5018 = vmatprep.subr.mxu0 %v424
        %5019 = vmatpush1.msra.mxu0 %v423
        %5020 = vmatprep.subr.mxu0 %v428
        %5021 = vmatpush1.msra.mxu0 %v427
        %5022 = vmatprep.subr.mxu0 %v432
        %5023 = vmatpush1.msra.mxu0 %v431
        %5024 = vmatprep.subr.mxu0 %v436
        %5025 = vmatpush1.msra.mxu0 %v435
        %5026 = vmatprep.subr.mxu0 %v440
        %5027 = vmatpush1.msra.mxu0 %v439
        %5028 = vmatprep.subr.mxu0 %v444
        %5029 = vmatpush1.msra.mxu0 %v443
        %5030 = vmatprep.subr.mxu0 %v448
        %5031 = vmatpush1.msra.mxu0 %v447
        %5032 = vmatprep.subr.mxu0 %v452
        %5033 = vmatpush1.msra.mxu0 %v451
        %5034 = vmatprep.subr.mxu0 %v456
        %5035 = vmatpush1.msra.mxu0 %v455
        %5036 = vmatprep.subr.mxu0 %v460
        %5037 = vmatpush1.msra.mxu0 %v459
        %5038 = vmatprep.subr.mxu0 %v464
        %5039 = vmatpush1.msra.mxu0 %v463
        %5040 = vmatprep.subr.mxu0 %v468
        %5041 = vmatpush1.msra.mxu0 %v467
        %5042 = vmatprep.subr.mxu0 %v472
        %5043 = vmatpush1.msra.mxu0 %v471
        %5044 = vmatprep.subr.mxu0 %v476
        %5045 = vmatpush1.msra.mxu0 %v475
        %5046 = vmatprep.subr.mxu0 %v480
        %5047 = vmatpush1.msra.mxu0 %v479
        %5048 = vmatprep.subr.mxu0 %v484
        %5049 = vmatpush1.msra.mxu0 %v483
        %5050 = vmatprep.subr.mxu0 %v488
        %5051 = vmatpush1.msra.mxu0 %v487
        %5052 = vmatprep.subr.mxu0 %v492
        %5053 = vmatpush1.msra.mxu0 %v491
        %5054 = vmatprep.subr.mxu0 %v496
        %5055 = vmatpush1.msra.mxu0 %v495
        %5056 = vmatprep.subr.mxu0 %v500
        %5057 = vmatpush1.msra.mxu0 %v499
        %5058 = vmatprep.subr.mxu0 %v504
        %5059 = vmatpush1.msra.mxu0 %v503
        %5060 = vmatprep.subr.mxu0 %v508
        %5061 = vmatpush1.msra.mxu0 %v507
        %5062 = vmatprep.subr.mxu0 %v512
        %5063 = vmatpush1.msra.mxu0 %v511
        %5064 = vmatprep.subr.mxu0 %v516
        %5065 = vmatpush1.msra.mxu0 %v515
        %5066 = vmatprep.subr.mxu0 %v520
        %5067 = vmatpush1.msra.mxu0 %v519
        %5068 = vmatprep.subr.mxu0 %v524
        %5069 = vmatpush1.msra.mxu0 %v523
        %5070 = vmatprep.subr.mxu0 %v528
        %5071 = vmatpush1.msra.mxu0 %v527
        %5072 = vmatprep.subr.mxu0 %v532
        %5073 = vmatpush1.msra.mxu0 %v531
        %5074 = vmatprep.subr.mxu0 %v536
        %5075 = vmatpush1.msra.mxu0 %v535
        %5076 = vmatprep.subr.mxu0 %v540
        %5077 = vmatpush1.msra.mxu0 %v539
        %5078 = vmatprep.subr.mxu0 %v544
        %5079 = vmatpush1.msra.mxu0 %v543
        %5080 = vmatprep.mubr.f32.mxu0 %v372
        %5081 = vmatmul.mubr.f32.gmra.mrb[0].mxu0 %v371
        %v5082 = vpop.f32.mrb[0].mxu0
        %v5083 = vadd.f32 %v3374, %v5082
        %v5084 = vpop.f32.mrb[0].mxu0
        %v5085 = vadd.f32 %v3378, %v5084
        %5086 = vdwg.mxu0
        %5087 = vmatprep.subr.mxu0 %v548
        %5088 = vmatpush1.msra.mxu0 %v547
        %5089 = vmatprep.subr.mxu0 %v552
        %5090 = vmatpush1.msra.mxu0 %v551
        %5091 = vmatprep.subr.mxu0 %v556
        %5092 = vmatpush1.msra.mxu0 %v555
        %5093 = vmatprep.subr.mxu0 %v560
        %5094 = vmatpush1.msra.mxu0 %v559
        %5095 = vmatprep.subr.mxu0 %v564
        %5096 = vmatpush1.msra.mxu0 %v563
        %5097 = vmatprep.subr.mxu0 %v568
        %5098 = vmatpush1.msra.mxu0 %v567
        %5099 = vmatprep.subr.mxu0 %v572
        %5100 = vmatpush1.msra.mxu0 %v571
        %5101 = vmatprep.subr.mxu0 %v576
        %5102 = vmatpush1.msra.mxu0 %v575
        %5103 = vmatprep.subr.mxu0 %v580
        %5104 = vmatpush1.msra.mxu0 %v579
        %5105 = vmatprep.subr.mxu0 %v584
        %5106 = vmatpush1.msra.mxu0 %v583
        %5107 = vmatprep.subr.mxu0 %v588
        %5108 = vmatpush1.msra.mxu0 %v587
        %5109 = vmatprep.subr.mxu0 %v592
        %5110 = vmatpush1.msra.mxu0 %v591
        %5111 = vmatprep.subr.mxu0 %v596
        %5112 = vmatpush1.msra.mxu0 %v595
        %5113 = vmatprep.subr.mxu0 %v600
        %5114 = vmatpush1.msra.mxu0 %v599
        %5115 = vmatprep.subr.mxu0 %v604
        %5116 = vmatpush1.msra.mxu0 %v603
        %5117 = vmatprep.subr.mxu0 %v608
        %5118 = vmatpush1.msra.mxu0 %v607
        %5119 = vmatprep.subr.mxu0 %v612
        %5120 = vmatpush1.msra.mxu0 %v611
        %5121 = vmatprep.subr.mxu0 %v616
        %5122 = vmatpush1.msra.mxu0 %v615
        %5123 = vmatprep.subr.mxu0 %v620
        %5124 = vmatpush1.msra.mxu0 %v619
        %5125 = vmatprep.subr.mxu0 %v624
        %5126 = vmatpush1.msra.mxu0 %v623
        %5127 = vmatprep.subr.mxu0 %v628
        %5128 = vmatpush1.msra.mxu0 %v627
        %5129 = vmatprep.subr.mxu0 %v632
        %5130 = vmatpush1.msra.mxu0 %v631
        %5131 = vmatprep.subr.mxu0 %v636
        %5132 = vmatpush1.msra.mxu0 %v635
        %5133 = vmatprep.subr.mxu0 %v640
        %5134 = vmatpush1.msra.mxu0 %v639
        %5135 = vmatprep.subr.mxu0 %v644
        %5136 = vmatpush1.msra.mxu0 %v643
        %5137 = vmatprep.subr.mxu0 %v648
        %5138 = vmatpush1.msra.mxu0 %v647
        %5139 = vmatprep.subr.mxu0 %v652
        %5140 = vmatpush1.msra.mxu0 %v651
        %5141 = vmatprep.subr.mxu0 %v656
        %5142 = vmatpush1.msra.mxu0 %v655
        %5143 = vmatprep.subr.mxu0 %v660
        %5144 = vmatpush1.msra.mxu0 %v659
        %5145 = vmatprep.subr.mxu0 %v664
        %5146 = vmatpush1.msra.mxu0 %v663
        %5147 = vmatprep.subr.mxu0 %v668
        %5148 = vmatpush1.msra.mxu0 %v667
        %5149 = vmatprep.subr.mxu0 %v672
        %5150 = vmatpush1.msra.mxu0 %v671
        %5151 = vmatprep.mubr.f32.mxu0 %v374
        %5152 = vmatmul.mubr.f32.gmra.mrb[0].mxu0 %v373
        %v5153 = vpop.f32.mrb[0].mxu0
        %v5154 = vadd.f32 %v5083, %v5153
        %v5155 = vpop.f32.mrb[0].mxu0
        %v5156 = vadd.f32 %v5085, %v5155
        %5157 = vdwg.mxu0
        %5158 = vmatprep.subr.mxu0 %v676
        %5159 = vmatpush1.msra.mxu0 %v675
        %5160 = vmatprep.subr.mxu0 %v680
        %5161 = vmatpush1.msra.mxu0 %v679
        %5162 = vmatprep.subr.mxu0 %v684
        %5163 = vmatpush1.msra.mxu0 %v683
        %5164 = vmatprep.subr.mxu0 %v688
        %5165 = vmatpush1.msra.mxu0 %v687
        %5166 = vmatprep.subr.mxu0 %v692
        %5167 = vmatpush1.msra.mxu0 %v691
        %5168 = vmatprep.subr.mxu0 %v696
        %5169 = vmatpush1.msra.mxu0 %v695
        %5170 = vmatprep.subr.mxu0 %v700
        %5171 = vmatpush1.msra.mxu0 %v699
        %5172 = vmatprep.subr.mxu0 %v704
        %5173 = vmatpush1.msra.mxu0 %v703
        %5174 = vmatprep.subr.mxu0 %v708
        %5175 = vmatpush1.msra.mxu0 %v707
        %5176 = vmatprep.subr.mxu0 %v712
        %5177 = vmatpush1.msra.mxu0 %v711
        %5178 = vmatprep.subr.mxu0 %v716
        %5179 = vmatpush1.msra.mxu0 %v715
        %5180 = vmatprep.subr.mxu0 %v720
        %5181 = vmatpush1.msra.mxu0 %v719
        %5182 = vmatprep.subr.mxu0 %v724
        %5183 = vmatpush1.msra.mxu0 %v723
        %5184 = vmatprep.subr.mxu0 %v728
        %5185 = vmatpush1.msra.mxu0 %v727
        %5186 = vmatprep.subr.mxu0 %v732
        %5187 = vmatpush1.msra.mxu0 %v731
        %5188 = vmatprep.subr.mxu0 %v736
        %5189 = vmatpush1.msra.mxu0 %v735
        %5190 = vmatprep.subr.mxu0 %v740
        %5191 = vmatpush1.msra.mxu0 %v739
        %5192 = vmatprep.subr.mxu0 %v744
        %5193 = vmatpush1.msra.mxu0 %v743
        %5194 = vmatprep.subr.mxu0 %v748
        %5195 = vmatpush1.msra.mxu0 %v747
        %5196 = vmatprep.subr.mxu0 %v752
        %5197 = vmatpush1.msra.mxu0 %v751
        %5198 = vmatprep.subr.mxu0 %v756
        %5199 = vmatpush1.msra.mxu0 %v755
        %5200 = vmatprep.subr.mxu0 %v760
        %5201 = vmatpush1.msra.mxu0 %v759
        %5202 = vmatprep.subr.mxu0 %v764
        %5203 = vmatpush1.msra.mxu0 %v763
        %5204 = vmatprep.subr.mxu0 %v768
        %5205 = vmatpush1.msra.mxu0 %v767
        %5206 = vmatprep.subr.mxu0 %v772
        %5207 = vmatpush1.msra.mxu0 %v771
        %5208 = vmatprep.subr.mxu0 %v776
        %5209 = vmatpush1.msra.mxu0 %v775
        %5210 = vmatprep.subr.mxu0 %v780
        %5211 = vmatpush1.msra.mxu0 %v779
        %5212 = vmatprep.subr.mxu0 %v784
        %5213 = vmatpush1.msra.mxu0 %v783
        %5214 = vmatprep.subr.mxu0 %v788
        %5215 = vmatpush1.msra.mxu0 %v787
        %5216 = vmatprep.subr.mxu0 %v792
        %5217 = vmatpush1.msra.mxu0 %v791
        %5218 = vmatprep.subr.mxu0 %v796
        %5219 = vmatpush1.msra.mxu0 %v795
        %5220 = vmatprep.subr.mxu0 %v800
        %5221 = vmatpush1.msra.mxu0 %v799
        %5222 = vmatprep.mubr.f32.mxu0 %v376
        %5223 = vmatmul.mubr.f32.gmra.mrb[0].mxu0 %v375
        %v5224 = vpop.f32.mrb[0].mxu0
        %v5225 = vadd.f32 %v5154, %v5224
        %v5226 = vpop.f32.mrb[0].mxu0
        %v5227 = vadd.f32 %v5156, %v5226
        %5228 = vdwg.mxu0
        %5229 = vmatprep.subr.mxu0 %v804
        %5230 = vmatpush1.msra.mxu0 %v803
        %5231 = vmatprep.subr.mxu0 %v808
        %5232 = vmatpush1.msra.mxu0 %v807
        %5233 = vmatprep.subr.mxu0 %v812
        %5234 = vmatpush1.msra.mxu0 %v811
        %5235 = vmatprep.subr.mxu0 %v816
        %5236 = vmatpush1.msra.mxu0 %v815
        %5237 = vmatprep.subr.mxu0 %v820
        %5238 = vmatpush1.msra.mxu0 %v819
        %5239 = vmatprep.subr.mxu0 %v824
        %5240 = vmatpush1.msra.mxu0 %v823
        %5241 = vmatprep.subr.mxu0 %v828
        %5242 = vmatpush1.msra.mxu0 %v827
        %5243 = vmatprep.subr.mxu0 %v832
        %5244 = vmatpush1.msra.mxu0 %v831
        %5245 = vmatprep.subr.mxu0 %v836
        %5246 = vmatpush1.msra.mxu0 %v835
        %5247 = vmatprep.subr.mxu0 %v840
        %5248 = vmatpush1.msra.mxu0 %v839
        %5249 = vmatprep.subr.mxu0 %v844
        %5250 = vmatpush1.msra.mxu0 %v843
        %5251 = vmatprep.subr.mxu0 %v848
        %5252 = vmatpush1.msra.mxu0 %v847
        %5253 = vmatprep.subr.mxu0 %v852
        %5254 = vmatpush1.msra.mxu0 %v851
        %5255 = vmatprep.subr.mxu0 %v856
        %5256 = vmatpush1.msra.mxu0 %v855
        %5257 = vmatprep.subr.mxu0 %v860
        %5258 = vmatpush1.msra.mxu0 %v859
        %5259 = vmatprep.subr.mxu0 %v864
        %5260 = vmatpush1.msra.mxu0 %v863
        %5261 = vmatprep.subr.mxu0 %v868
        %5262 = vmatpush1.msra.mxu0 %v867
        %5263 = vmatprep.subr.mxu0 %v872
        %5264 = vmatpush1.msra.mxu0 %v871
        %5265 = vmatprep.subr.mxu0 %v876
        %5266 = vmatpush1.msra.mxu0 %v875
        %5267 = vmatprep.subr.mxu0 %v880
        %5268 = vmatpush1.msra.mxu0 %v879
        %5269 = vmatprep.subr.mxu0 %v884
        %5270 = vmatpush1.msra.mxu0 %v883
        %5271 = vmatprep.subr.mxu0 %v888
        %5272 = vmatpush1.msra.mxu0 %v887
        %5273 = vmatprep.subr.mxu0 %v892
        %5274 = vmatpush1.msra.mxu0 %v891
        %5275 = vmatprep.subr.mxu0 %v896
        %5276 = vmatpush1.msra.mxu0 %v895
        %5277 = vmatprep.subr.mxu0 %v900
        %5278 = vmatpush1.msra.mxu0 %v899
        %5279 = vmatprep.subr.mxu0 %v904
        %5280 = vmatpush1.msra.mxu0 %v903
        %5281 = vmatprep.subr.mxu0 %v908
        %5282 = vmatpush1.msra.mxu0 %v907
        %5283 = vmatprep.subr.mxu0 %v912
        %5284 = vmatpush1.msra.mxu0 %v911
        %5285 = vmatprep.subr.mxu0 %v916
        %5286 = vmatpush1.msra.mxu0 %v915
        %5287 = vmatprep.subr.mxu0 %v920
        %5288 = vmatpush1.msra.mxu0 %v919
        %5289 = vmatprep.subr.mxu0 %v924
        %5290 = vmatpush1.msra.mxu0 %v923
        %5291 = vmatprep.subr.mxu0 %v928
        %5292 = vmatpush1.msra.mxu0 %v927
        %5293 = vmatprep.mubr.f32.mxu0 %v378
        %5294 = vmatmul.mubr.f32.gmra.mrb[0].mxu0 %v377
        %v5295 = vpop.f32.mrb[0].mxu0
        %v5296 = vadd.f32 %v5225, %v5295
        %v5297 = vpop.f32.mrb[0].mxu0
        %v5298 = vadd.f32 %v5227, %v5297
        %5299 = vdwg.mxu0
        %5300 = vmatprep.subr.mxu0 %v932
        %5301 = vmatpush1.msra.mxu0 %v931
        %5302 = vmatprep.subr.mxu0 %v936
        %5303 = vmatpush1.msra.mxu0 %v935
        %5304 = vmatprep.subr.mxu0 %v940
        %5305 = vmatpush1.msra.mxu0 %v939
        %5306 = vmatprep.subr.mxu0 %v944
        %5307 = vmatpush1.msra.mxu0 %v943
        %5308 = vmatprep.subr.mxu0 %v948
        %5309 = vmatpush1.msra.mxu0 %v947
        %5310 = vmatprep.subr.mxu0 %v952
        %5311 = vmatpush1.msra.mxu0 %v951
        %5312 = vmatprep.subr.mxu0 %v956
        %5313 = vmatpush1.msra.mxu0 %v955
        %5314 = vmatprep.subr.mxu0 %v960
        %5315 = vmatpush1.msra.mxu0 %v959
        %5316 = vmatprep.subr.mxu0 %v964
        %5317 = vmatpush1.msra.mxu0 %v963
        %5318 = vmatprep.subr.mxu0 %v968
        %5319 = vmatpush1.msra.mxu0 %v967
        %5320 = vmatprep.subr.mxu0 %v972
        %5321 = vmatpush1.msra.mxu0 %v971
        %5322 = vmatprep.subr.mxu0 %v976
        %5323 = vmatpush1.msra.mxu0 %v975
        %5324 = vmatprep.subr.mxu0 %v980
        %5325 = vmatpush1.msra.mxu0 %v979
        %5326 = vmatprep.subr.mxu0 %v984
        %5327 = vmatpush1.msra.mxu0 %v983
        %5328 = vmatprep.subr.mxu0 %v988
        %5329 = vmatpush1.msra.mxu0 %v987
        %5330 = vmatprep.subr.mxu0 %v992
        %5331 = vmatpush1.msra.mxu0 %v991
        %5332 = vmatprep.subr.mxu0 %v996
        %5333 = vmatpush1.msra.mxu0 %v995
        %5334 = vmatprep.subr.mxu0 %v1000
        %5335 = vmatpush1.msra.mxu0 %v999
        %5336 = vmatprep.subr.mxu0 %v1004
        %5337 = vmatpush1.msra.mxu0 %v1003
        %5338 = vmatprep.subr.mxu0 %v1008
        %5339 = vmatpush1.msra.mxu0 %v1007
        %5340 = vmatprep.subr.mxu0 %v1012
        %5341 = vmatpush1.msra.mxu0 %v1011
        %5342 = vmatprep.subr.mxu0 %v1016
        %5343 = vmatpush1.msra.mxu0 %v1015
        %5344 = vmatprep.subr.mxu0 %v1020
        %5345 = vmatpush1.msra.mxu0 %v1019
        %5346 = vmatprep.subr.mxu0 %v1024
        %5347 = vmatpush1.msra.mxu0 %v1023
        %5348 = vmatprep.subr.mxu0 %v1028
        %5349 = vmatpush1.msra.mxu0 %v1027
        %5350 = vmatprep.subr.mxu0 %v1032
        %5351 = vmatpush1.msra.mxu0 %v1031
        %5352 = vmatprep.subr.mxu0 %v1036
        %5353 = vmatpush1.msra.mxu0 %v1035
        %5354 = vmatprep.subr.mxu0 %v1040
        %5355 = vmatpush1.msra.mxu0 %v1039
        %5356 = vmatprep.subr.mxu0 %v1044
        %5357 = vmatpush1.msra.mxu0 %v1043
        %5358 = vmatprep.subr.mxu0 %v1048
        %5359 = vmatpush1.msra.mxu0 %v1047
        %5360 = vmatprep.subr.mxu0 %v1052
        %5361 = vmatpush1.msra.mxu0 %v1051
        %5362 = vmatprep.subr.mxu0 %v1056
        %5363 = vmatpush1.msra.mxu0 %v1055
        %5364 = vmatprep.mubr.f32.mxu0 %v380
        %5365 = vmatmul.mubr.f32.gmra.mrb[0].mxu0 %v379
        %v5366 = vpop.f32.mrb[0].mxu0
        %v5367 = vadd.f32 %v5296, %v5366
        %v5368 = vpop.f32.mrb[0].mxu0
        %v5369 = vadd.f32 %v5298, %v5368
        %5370 = vdwg.mxu0
        %5371 = vmatprep.subr.mxu0 %v1060
        %5372 = vmatpush1.msra.mxu0 %v1059
        %5373 = vmatprep.subr.mxu0 %v1064
        %5374 = vmatpush1.msra.mxu0 %v1063
        %5375 = vmatprep.subr.mxu0 %v1068
        %5376 = vmatpush1.msra.mxu0 %v1067
        %5377 = vmatprep.subr.mxu0 %v1072
        %5378 = vmatpush1.msra.mxu0 %v1071
        %5379 = vmatprep.subr.mxu0 %v1076
        %5380 = vmatpush1.msra.mxu0 %v1075
        %5381 = vmatprep.subr.mxu0 %v1080
        %5382 = vmatpush1.msra.mxu0 %v1079
        %5383 = vmatprep.subr.mxu0 %v1084
        %5384 = vmatpush1.msra.mxu0 %v1083
        %5385 = vmatprep.subr.mxu0 %v1088
        %5386 = vmatpush1.msra.mxu0 %v1087
        %5387 = vmatprep.subr.mxu0 %v1092
        %5388 = vmatpush1.msra.mxu0 %v1091
        %5389 = vmatprep.subr.mxu0 %v1096
        %5390 = vmatpush1.msra.mxu0 %v1095
        %5391 = vmatprep.subr.mxu0 %v1100
        %5392 = vmatpush1.msra.mxu0 %v1099
        %5393 = vmatprep.subr.mxu0 %v1104
        %5394 = vmatpush1.msra.mxu0 %v1103
        %5395 = vmatprep.subr.mxu0 %v1108
        %5396 = vmatpush1.msra.mxu0 %v1107
        %5397 = vmatprep.subr.mxu0 %v1112
        %5398 = vmatpush1.msra.mxu0 %v1111
        %5399 = vmatprep.subr.mxu0 %v1116
        %5400 = vmatpush1.msra.mxu0 %v1115
        %5401 = vmatprep.subr.mxu0 %v1120
        %5402 = vmatpush1.msra.mxu0 %v1119
        %5403 = vmatprep.subr.mxu0 %v1124
        %5404 = vmatpush1.msra.mxu0 %v1123
        %5405 = vmatprep.subr.mxu0 %v1128
        %5406 = vmatpush1.msra.mxu0 %v1127
        %5407 = vmatprep.subr.mxu0 %v1132
        %5408 = vmatpush1.msra.mxu0 %v1131
        %5409 = vmatprep.subr.mxu0 %v1136
        %5410 = vmatpush1.msra.mxu0 %v1135
        %5411 = vmatprep.subr.mxu0 %v1140
        %5412 = vmatpush1.msra.mxu0 %v1139
        %5413 = vmatprep.subr.mxu0 %v1144
        %5414 = vmatpush1.msra.mxu0 %v1143
        %5415 = vmatprep.subr.mxu0 %v1148
        %5416 = vmatpush1.msra.mxu0 %v1147
        %5417 = vmatprep.subr.mxu0 %v1152
        %5418 = vmatpush1.msra.mxu0 %v1151
        %5419 = vmatprep.subr.mxu0 %v1156
        %5420 = vmatpush1.msra.mxu0 %v1155
        %5421 = vmatprep.subr.mxu0 %v1160
        %5422 = vmatpush1.msra.mxu0 %v1159
        %5423 = vmatprep.subr.mxu0 %v1164
        %5424 = vmatpush1.msra.mxu0 %v1163
        %5425 = vmatprep.subr.mxu0 %v1168
        %5426 = vmatpush1.msra.mxu0 %v1167
        %5427 = vmatprep.subr.mxu0 %v1172
        %5428 = vmatpush1.msra.mxu0 %v1171
        %5429 = vmatprep.subr.mxu0 %v1176
        %5430 = vmatpush1.msra.mxu0 %v1175
        %5431 = vmatprep.subr.mxu0 %v1180
        %5432 = vmatpush1.msra.mxu0 %v1179
        %5433 = vmatprep.subr.mxu0 %v1184
        %5434 = vmatpush1.msra.mxu0 %v1183
        %5435 = vmatprep.mubr.f32.mxu0 %v382
        %5436 = vmatmul.mubr.f32.gmra.mrb[0].mxu0 %v381
        %v5437 = vpop.f32.mrb[0].mxu0
        %v5438 = vadd.f32 %v5367, %v5437
        %v5439 = vpop.f32.mrb[0].mxu0
        %v5440 = vadd.f32 %v5369, %v5439
        %5441 = vdwg.mxu0
        %5442 = vmatprep.subr.mxu0 %v1188
        %5443 = vmatpush1.msra.mxu0 %v1187
        %5444 = vmatprep.subr.mxu0 %v1192
        %5445 = vmatpush1.msra.mxu0 %v1191
        %5446 = vmatprep.subr.mxu0 %v1196
        %5447 = vmatpush1.msra.mxu0 %v1195
        %5448 = vmatprep.subr.mxu0 %v1200
        %5449 = vmatpush1.msra.mxu0 %v1199
        %5450 = vmatprep.subr.mxu0 %v1204
        %5451 = vmatpush1.msra.mxu0 %v1203
        %5452 = vmatprep.subr.mxu0 %v1208
        %5453 = vmatpush1.msra.mxu0 %v1207
        %5454 = vmatprep.subr.mxu0 %v1212
        %5455 = vmatpush1.msra.mxu0 %v1211
        %5456 = vmatprep.subr.mxu0 %v1216
        %5457 = vmatpush1.msra.mxu0 %v1215
        %5458 = vmatprep.subr.mxu0 %v1220
        %5459 = vmatpush1.msra.mxu0 %v1219
        %5460 = vmatprep.subr.mxu0 %v1224
        %5461 = vmatpush1.msra.mxu0 %v1223
        %5462 = vmatprep.subr.mxu0 %v1228
        %5463 = vmatpush1.msra.mxu0 %v1227
        %5464 = vmatprep.subr.mxu0 %v1232
        %5465 = vmatpush1.msra.mxu0 %v1231
        %5466 = vmatprep.subr.mxu0 %v1236
        %5467 = vmatpush1.msra.mxu0 %v1235
        %5468 = vmatprep.subr.mxu0 %v1240
        %5469 = vmatpush1.msra.mxu0 %v1239
        %5470 = vmatprep.subr.mxu0 %v1244
        %5471 = vmatpush1.msra.mxu0 %v1243
        %5472 = vmatprep.subr.mxu0 %v1248
        %5473 = vmatpush1.msra.mxu0 %v1247
        %5474 = vmatprep.subr.mxu0 %v1252
        %5475 = vmatpush1.msra.mxu0 %v1251
        %5476 = vmatprep.subr.mxu0 %v1256
        %5477 = vmatpush1.msra.mxu0 %v1255
        %5478 = vmatprep.subr.mxu0 %v1260
        %5479 = vmatpush1.msra.mxu0 %v1259
        %5480 = vmatprep.subr.mxu0 %v1264
        %5481 = vmatpush1.msra.mxu0 %v1263
        %5482 = vmatprep.subr.mxu0 %v1268
        %5483 = vmatpush1.msra.mxu0 %v1267
        %5484 = vmatprep.subr.mxu0 %v1272
        %5485 = vmatpush1.msra.mxu0 %v1271
        %5486 = vmatprep.subr.mxu0 %v1276
        %5487 = vmatpush1.msra.mxu0 %v1275
        %5488 = vmatprep.subr.mxu0 %v1280
        %5489 = vmatpush1.msra.mxu0 %v1279
        %5490 = vmatprep.subr.mxu0 %v1284
        %5491 = vmatpush1.msra.mxu0 %v1283
        %5492 = vmatprep.subr.mxu0 %v1288
        %5493 = vmatpush1.msra.mxu0 %v1287
        %5494 = vmatprep.subr.mxu0 %v1292
        %5495 = vmatpush1.msra.mxu0 %v1291
        %5496 = vmatprep.subr.mxu0 %v1296
        %5497 = vmatpush1.msra.mxu0 %v1295
        %5498 = vmatprep.subr.mxu0 %v1300
        %5499 = vmatpush1.msra.mxu0 %v1299
        %5500 = vmatprep.subr.mxu0 %v1304
        %5501 = vmatpush1.msra.mxu0 %v1303
        %5502 = vmatprep.subr.mxu0 %v1308
        %5503 = vmatpush1.msra.mxu0 %v1307
        %5504 = vmatprep.subr.mxu0 %v1312
        %5505 = vmatpush1.msra.mxu0 %v1311
        %5506 = vmatprep.mubr.f32.mxu0 %v384
        %5507 = vmatmul.mubr.f32.gmra.mrb[0].mxu0 %v383
        %v5508 = vpop.f32.mrb[0].mxu0
        %v5509 = vadd.f32 %v5438, %v5508
        %v5510 = vpop.f32.mrb[0].mxu0
        %v5511 = vadd.f32 %v5440, %v5510
        %5512 = vdwg.mxu0
        %5513 = vmatprep.subr.mxu0 %v1316
        %5514 = vmatpush1.msra.mxu0 %v1315
        %5515 = vmatprep.subr.mxu0 %v1320
        %5516 = vmatpush1.msra.mxu0 %v1319
        %5517 = vmatprep.subr.mxu0 %v1324
        %5518 = vmatpush1.msra.mxu0 %v1323
        %5519 = vmatprep.subr.mxu0 %v1328
        %5520 = vmatpush1.msra.mxu0 %v1327
        %5521 = vmatprep.subr.mxu0 %v1332
        %5522 = vmatpush1.msra.mxu0 %v1331
        %5523 = vmatprep.subr.mxu0 %v1336
        %5524 = vmatpush1.msra.mxu0 %v1335
        %5525 = vmatprep.subr.mxu0 %v1340
        %5526 = vmatpush1.msra.mxu0 %v1339
        %5527 = vmatprep.subr.mxu0 %v1344
        %5528 = vmatpush1.msra.mxu0 %v1343
        %5529 = vmatprep.subr.mxu0 %v1348
        %5530 = vmatpush1.msra.mxu0 %v1347
        %5531 = vmatprep.subr.mxu0 %v1352
        %5532 = vmatpush1.msra.mxu0 %v1351
        %5533 = vmatprep.subr.mxu0 %v1356
        %5534 = vmatpush1.msra.mxu0 %v1355
        %5535 = vmatprep.subr.mxu0 %v1360
        %5536 = vmatpush1.msra.mxu0 %v1359
        %5537 = vmatprep.subr.mxu0 %v1364
        %5538 = vmatpush1.msra.mxu0 %v1363
        %5539 = vmatprep.subr.mxu0 %v1368
        %5540 = vmatpush1.msra.mxu0 %v1367
        %5541 = vmatprep.subr.mxu0 %v1372
        %5542 = vmatpush1.msra.mxu0 %v1371
        %5543 = vmatprep.subr.mxu0 %v1376
        %5544 = vmatpush1.msra.mxu0 %v1375
        %5545 = vmatprep.subr.mxu0 %v1380
        %5546 = vmatpush1.msra.mxu0 %v1379
        %5547 = vmatprep.subr.mxu0 %v1384
        %5548 = vmatpush1.msra.mxu0 %v1383
        %5549 = vmatprep.subr.mxu0 %v1388
        %5550 = vmatpush1.msra.mxu0 %v1387
        %5551 = vmatprep.subr.mxu0 %v1392
        %5552 = vmatpush1.msra.mxu0 %v1391
        %5553 = vmatprep.subr.mxu0 %v1396
        %5554 = vmatpush1.msra.mxu0 %v1395
        %5555 = vmatprep.subr.mxu0 %v1400
        %5556 = vmatpush1.msra.mxu0 %v1399
        %5557 = vmatprep.subr.mxu0 %v1404
        %5558 = vmatpush1.msra.mxu0 %v1403
        %5559 = vmatprep.subr.mxu0 %v1408
        %5560 = vmatpush1.msra.mxu0 %v1407
        %5561 = vmatprep.subr.mxu0 %v1412
        %5562 = vmatpush1.msra.mxu0 %v1411
        %5563 = vmatprep.subr.mxu0 %v1416
        %5564 = vmatpush1.msra.mxu0 %v1415
        %5565 = vmatprep.subr.mxu0 %v1420
        %5566 = vmatpush1.msra.mxu0 %v1419
        %5567 = vmatprep.subr.mxu0 %v1424
        %5568 = vmatpush1.msra.mxu0 %v1423
        %5569 = vmatprep.subr.mxu0 %v1428
        %5570 = vmatpush1.msra.mxu0 %v1427
        %5571 = vmatprep.subr.mxu0 %v1432
        %5572 = vmatpush1.msra.mxu0 %v1431
        %5573 = vmatprep.subr.mxu0 %v1436
        %5574 = vmatpush1.msra.mxu0 %v1435
        %5575 = vmatprep.subr.mxu0 %v1440
        %5576 = vmatpush1.msra.mxu0 %v1439
        %5577 = vmatprep.mubr.f32.mxu0 %v386
        %5578 = vmatmul.mubr.f32.gmra.mrb[0].mxu0 %v385
        %v5579 = vpop.f32.mrb[0].mxu0
        %v5580 = vadd.f32 %v5509, %v5579
        %v5581 = vpop.f32.mrb[0].mxu0
        %v5582 = vadd.f32 %v5511, %v5581
        %5583 = vdwg.mxu0
        %5584 = vmatprep.subr.mxu0 %v1444
        %5585 = vmatpush1.msra.mxu0 %v1443
        %5586 = vmatprep.subr.mxu0 %v1448
        %5587 = vmatpush1.msra.mxu0 %v1447
        %5588 = vmatprep.subr.mxu0 %v1452
        %5589 = vmatpush1.msra.mxu0 %v1451
        %5590 = vmatprep.subr.mxu0 %v1456
        %5591 = vmatpush1.msra.mxu0 %v1455
        %5592 = vmatprep.subr.mxu0 %v1460
        %5593 = vmatpush1.msra.mxu0 %v1459
        %5594 = vmatprep.subr.mxu0 %v1464
        %5595 = vmatpush1.msra.mxu0 %v1463
        %5596 = vmatprep.subr.mxu0 %v1468
        %5597 = vmatpush1.msra.mxu0 %v1467
        %5598 = vmatprep.subr.mxu0 %v1472
        %5599 = vmatpush1.msra.mxu0 %v1471
        %5600 = vmatprep.subr.mxu0 %v1476
        %5601 = vmatpush1.msra.mxu0 %v1475
        %5602 = vmatprep.subr.mxu0 %v1480
        %5603 = vmatpush1.msra.mxu0 %v1479
        %5604 = vmatprep.subr.mxu0 %v1484
        %5605 = vmatpush1.msra.mxu0 %v1483
        %5606 = vmatprep.subr.mxu0 %v1488
        %5607 = vmatpush1.msra.mxu0 %v1487
        %5608 = vmatprep.subr.mxu0 %v1492
        %5609 = vmatpush1.msra.mxu0 %v1491
        %5610 = vmatprep.subr.mxu0 %v1496
        %5611 = vmatpush1.msra.mxu0 %v1495
        %5612 = vmatprep.subr.mxu0 %v1500
        %5613 = vmatpush1.msra.mxu0 %v1499
        %5614 = vmatprep.subr.mxu0 %v1504
        %5615 = vmatpush1.msra.mxu0 %v1503
        %5616 = vmatprep.subr.mxu0 %v1508
        %5617 = vmatpush1.msra.mxu0 %v1507
        %5618 = vmatprep.subr.mxu0 %v1512
        %5619 = vmatpush1.msra.mxu0 %v1511
        %5620 = vmatprep.subr.mxu0 %v1516
        %5621 = vmatpush1.msra.mxu0 %v1515
        %5622 = vmatprep.subr.mxu0 %v1520
        %5623 = vmatpush1.msra.mxu0 %v1519
        %5624 = vmatprep.subr.mxu0 %v1524
        %5625 = vmatpush1.msra.mxu0 %v1523
        %5626 = vmatprep.subr.mxu0 %v1528
        %5627 = vmatpush1.msra.mxu0 %v1527
        %5628 = vmatprep.subr.mxu0 %v1532
        %5629 = vmatpush1.msra.mxu0 %v1531
        %5630 = vmatprep.subr.mxu0 %v1536
        %5631 = vmatpush1.msra.mxu0 %v1535
        %5632 = vmatprep.subr.mxu0 %v1540
        %5633 = vmatpush1.msra.mxu0 %v1539
        %5634 = vmatprep.subr.mxu0 %v1544
        %5635 = vmatpush1.msra.mxu0 %v1543
        %5636 = vmatprep.subr.mxu0 %v1548
        %5637 = vmatpush1.msra.mxu0 %v1547
        %5638 = vmatprep.subr.mxu0 %v1552
        %5639 = vmatpush1.msra.mxu0 %v1551
        %5640 = vmatprep.subr.mxu0 %v1556
        %5641 = vmatpush1.msra.mxu0 %v1555
        %5642 = vmatprep.subr.mxu0 %v1560
        %5643 = vmatpush1.msra.mxu0 %v1559
        %5644 = vmatprep.subr.mxu0 %v1564
        %5645 = vmatpush1.msra.mxu0 %v1563
        %5646 = vmatprep.subr.mxu0 %v1568
        %5647 = vmatpush1.msra.mxu0 %v1567
        %5648 = vmatprep.mubr.f32.mxu0 %v388
        %5649 = vmatmul.mubr.f32.gmra.mrb[0].mxu0 %v387
        %v5650 = vpop.f32.mrb[0].mxu0
        %v5651 = vadd.f32 %v5580, %v5650
        %v5652 = vpop.f32.mrb[0].mxu0
        %v5653 = vadd.f32 %v5582, %v5652
        %5654 = vdwg.mxu0
        %5655 = vmatprep.subr.mxu0 %v1572
        %5656 = vmatpush1.msra.mxu0 %v1571
        %5657 = vmatprep.subr.mxu0 %v1576
        %5658 = vmatpush1.msra.mxu0 %v1575
        %5659 = vmatprep.subr.mxu0 %v1580
        %5660 = vmatpush1.msra.mxu0 %v1579
        %5661 = vmatprep.subr.mxu0 %v1584
        %5662 = vmatpush1.msra.mxu0 %v1583
        %5663 = vmatprep.subr.mxu0 %v1588
        %5664 = vmatpush1.msra.mxu0 %v1587
        %5665 = vmatprep.subr.mxu0 %v1592
        %5666 = vmatpush1.msra.mxu0 %v1591
        %5667 = vmatprep.subr.mxu0 %v1596
        %5668 = vmatpush1.msra.mxu0 %v1595
        %5669 = vmatprep.subr.mxu0 %v1600
        %5670 = vmatpush1.msra.mxu0 %v1599
        %5671 = vmatprep.subr.mxu0 %v1604
        %5672 = vmatpush1.msra.mxu0 %v1603
        %5673 = vmatprep.subr.mxu0 %v1608
        %5674 = vmatpush1.msra.mxu0 %v1607
        %5675 = vmatprep.subr.mxu0 %v1612
        %5676 = vmatpush1.msra.mxu0 %v1611
        %5677 = vmatprep.subr.mxu0 %v1616
        %5678 = vmatpush1.msra.mxu0 %v1615
        %5679 = vmatprep.subr.mxu0 %v1620
        %5680 = vmatpush1.msra.mxu0 %v1619
        %5681 = vmatprep.subr.mxu0 %v1624
        %5682 = vmatpush1.msra.mxu0 %v1623
        %5683 = vmatprep.subr.mxu0 %v1628
        %5684 = vmatpush1.msra.mxu0 %v1627
        %5685 = vmatprep.subr.mxu0 %v1632
        %5686 = vmatpush1.msra.mxu0 %v1631
        %5687 = vmatprep.subr.mxu0 %v1636
        %5688 = vmatpush1.msra.mxu0 %v1635
        %5689 = vmatprep.subr.mxu0 %v1640
        %5690 = vmatpush1.msra.mxu0 %v1639
        %5691 = vmatprep.subr.mxu0 %v1644
        %5692 = vmatpush1.msra.mxu0 %v1643
        %5693 = vmatprep.subr.mxu0 %v1648
        %5694 = vmatpush1.msra.mxu0 %v1647
        %5695 = vmatprep.subr.mxu0 %v1652
        %5696 = vmatpush1.msra.mxu0 %v1651
        %5697 = vmatprep.subr.mxu0 %v1656
        %5698 = vmatpush1.msra.mxu0 %v1655
        %5699 = vmatprep.subr.mxu0 %v1660
        %5700 = vmatpush1.msra.mxu0 %v1659
        %5701 = vmatprep.subr.mxu0 %v1664
        %5702 = vmatpush1.msra.mxu0 %v1663
        %5703 = vmatprep.subr.mxu0 %v1668
        %5704 = vmatpush1.msra.mxu0 %v1667
        %5705 = vmatprep.subr.mxu0 %v1672
        %5706 = vmatpush1.msra.mxu0 %v1671
        %5707 = vmatprep.subr.mxu0 %v1676
        %5708 = vmatpush1.msra.mxu0 %v1675
        %5709 = vmatprep.subr.mxu0 %v1680
        %5710 = vmatpush1.msra.mxu0 %v1679
        %5711 = vmatprep.subr.mxu0 %v1684
        %5712 = vmatpush1.msra.mxu0 %v1683
        %5713 = vmatprep.subr.mxu0 %v1688
        %5714 = vmatpush1.msra.mxu0 %v1687
        %5715 = vmatprep.subr.mxu0 %v1692
        %5716 = vmatpush1.msra.mxu0 %v1691
        %5717 = vmatprep.subr.mxu0 %v1696
        %5718 = vmatpush1.msra.mxu0 %v1695
        %5719 = vmatprep.mubr.f32.mxu0 %v390
        %5720 = vmatmul.mubr.f32.gmra.mrb[0].mxu0 %v389
        %v5721 = vpop.f32.mrb[0].mxu0
        %v5722 = vadd.f32 %v5651, %v5721
        %v5723 = vpop.f32.mrb[0].mxu0
        %v5724 = vadd.f32 %v5653, %v5723
        %5725 = vdwg.mxu0
        %5726 = vmatprep.subr.mxu0 %v1700
        %5727 = vmatpush1.msra.mxu0 %v1699
        %5728 = vmatprep.subr.mxu0 %v1704
        %5729 = vmatpush1.msra.mxu0 %v1703
        %5730 = vmatprep.subr.mxu0 %v1708
        %5731 = vmatpush1.msra.mxu0 %v1707
        %5732 = vmatprep.subr.mxu0 %v1712
        %5733 = vmatpush1.msra.mxu0 %v1711
        %5734 = vmatprep.subr.mxu0 %v1716
        %5735 = vmatpush1.msra.mxu0 %v1715
        %5736 = vmatprep.subr.mxu0 %v1720
        %5737 = vmatpush1.msra.mxu0 %v1719
        %5738 = vmatprep.subr.mxu0 %v1724
        %5739 = vmatpush1.msra.mxu0 %v1723
        %5740 = vmatprep.subr.mxu0 %v1728
        %5741 = vmatpush1.msra.mxu0 %v1727
        %5742 = vmatprep.subr.mxu0 %v1732
        %5743 = vmatpush1.msra.mxu0 %v1731
        %5744 = vmatprep.subr.mxu0 %v1736
        %5745 = vmatpush1.msra.mxu0 %v1735
        %5746 = vmatprep.subr.mxu0 %v1740
        %5747 = vmatpush1.msra.mxu0 %v1739
        %5748 = vmatprep.subr.mxu0 %v1744
        %5749 = vmatpush1.msra.mxu0 %v1743
        %5750 = vmatprep.subr.mxu0 %v1748
        %5751 = vmatpush1.msra.mxu0 %v1747
        %5752 = vmatprep.subr.mxu0 %v1752
        %5753 = vmatpush1.msra.mxu0 %v1751
        %5754 = vmatprep.subr.mxu0 %v1756
        %5755 = vmatpush1.msra.mxu0 %v1755
        %5756 = vmatprep.subr.mxu0 %v1760
        %5757 = vmatpush1.msra.mxu0 %v1759
        %5758 = vmatprep.subr.mxu0 %v1764
        %5759 = vmatpush1.msra.mxu0 %v1763
        %5760 = vmatprep.subr.mxu0 %v1768
        %5761 = vmatpush1.msra.mxu0 %v1767
        %5762 = vmatprep.subr.mxu0 %v1772
        %5763 = vmatpush1.msra.mxu0 %v1771
        %5764 = vmatprep.subr.mxu0 %v1776
        %5765 = vmatpush1.msra.mxu0 %v1775
        %5766 = vmatprep.subr.mxu0 %v1780
        %5767 = vmatpush1.msra.mxu0 %v1779
        %5768 = vmatprep.subr.mxu0 %v1784
        %5769 = vmatpush1.msra.mxu0 %v1783
        %5770 = vmatprep.subr.mxu0 %v1788
        %5771 = vmatpush1.msra.mxu0 %v1787
        %5772 = vmatprep.subr.mxu0 %v1792
        %5773 = vmatpush1.msra.mxu0 %v1791
        %5774 = vmatprep.subr.mxu0 %v1796
        %5775 = vmatpush1.msra.mxu0 %v1795
        %5776 = vmatprep.subr.mxu0 %v1800
        %5777 = vmatpush1.msra.mxu0 %v1799
        %5778 = vmatprep.subr.mxu0 %v1804
        %5779 = vmatpush1.msra.mxu0 %v1803
        %5780 = vmatprep.subr.mxu0 %v1808
        %5781 = vmatpush1.msra.mxu0 %v1807
        %5782 = vmatprep.subr.mxu0 %v1812
        %5783 = vmatpush1.msra.mxu0 %v1811
        %5784 = vmatprep.subr.mxu0 %v1816
        %5785 = vmatpush1.msra.mxu0 %v1815
        %5786 = vmatprep.subr.mxu0 %v1820
        %5787 = vmatpush1.msra.mxu0 %v1819
        %5788 = vmatprep.subr.mxu0 %v1824
        %5789 = vmatpush1.msra.mxu0 %v1823
        %5790 = vmatprep.mubr.f32.mxu0 %v392
        %5791 = vmatmul.mubr.f32.gmra.mrb[0].mxu0 %v391
        %v5792 = vpop.f32.mrb[0].mxu0
        %v5793 = vadd.f32 %v5722, %v5792
        %v5794 = vpop.f32.mrb[0].mxu0
        %v5795 = vadd.f32 %v5724, %v5794
        %5796 = vdwg.mxu0
        %5797 = vmatprep.subr.mxu0 %v1828
        %5798 = vmatpush1.msra.mxu0 %v1827
        %5799 = vmatprep.subr.mxu0 %v1832
        %5800 = vmatpush1.msra.mxu0 %v1831
        %5801 = vmatprep.subr.mxu0 %v1836
        %5802 = vmatpush1.msra.mxu0 %v1835
        %5803 = vmatprep.subr.mxu0 %v1840
        %5804 = vmatpush1.msra.mxu0 %v1839
        %5805 = vmatprep.subr.mxu0 %v1844
        %5806 = vmatpush1.msra.mxu0 %v1843
        %5807 = vmatprep.subr.mxu0 %v1848
        %5808 = vmatpush1.msra.mxu0 %v1847
        %5809 = vmatprep.subr.mxu0 %v1852
        %5810 = vmatpush1.msra.mxu0 %v1851
        %5811 = vmatprep.subr.mxu0 %v1856
        %5812 = vmatpush1.msra.mxu0 %v1855
        %5813 = vmatprep.subr.mxu0 %v1860
        %5814 = vmatpush1.msra.mxu0 %v1859
        %5815 = vmatprep.subr.mxu0 %v1864
        %5816 = vmatpush1.msra.mxu0 %v1863
        %5817 = vmatprep.subr.mxu0 %v1868
        %5818 = vmatpush1.msra.mxu0 %v1867
        %5819 = vmatprep.subr.mxu0 %v1872
        %5820 = vmatpush1.msra.mxu0 %v1871
        %5821 = vmatprep.subr.mxu0 %v1876
        %5822 = vmatpush1.msra.mxu0 %v1875
        %5823 = vmatprep.subr.mxu0 %v1880
        %5824 = vmatpush1.msra.mxu0 %v1879
        %5825 = vmatprep.subr.mxu0 %v1884
        %5826 = vmatpush1.msra.mxu0 %v1883
        %5827 = vmatprep.subr.mxu0 %v1888
        %5828 = vmatpush1.msra.mxu0 %v1887
        %5829 = vmatprep.subr.mxu0 %v1892
        %5830 = vmatpush1.msra.mxu0 %v1891
        %5831 = vmatprep.subr.mxu0 %v1896
        %5832 = vmatpush1.msra.mxu0 %v1895
        %5833 = vmatprep.subr.mxu0 %v1900
        %5834 = vmatpush1.msra.mxu0 %v1899
        %5835 = vmatprep.subr.mxu0 %v1904
        %5836 = vmatpush1.msra.mxu0 %v1903
        %5837 = vmatprep.subr.mxu0 %v1908
        %5838 = vmatpush1.msra.mxu0 %v1907
        %5839 = vmatprep.subr.mxu0 %v1912
        %5840 = vmatpush1.msra.mxu0 %v1911
        %5841 = vmatprep.subr.mxu0 %v1916
        %5842 = vmatpush1.msra.mxu0 %v1915
        %5843 = vmatprep.subr.mxu0 %v1920
        %5844 = vmatpush1.msra.mxu0 %v1919
        %5845 = vmatprep.subr.mxu0 %v1924
        %5846 = vmatpush1.msra.mxu0 %v1923
        %5847 = vmatprep.subr.mxu0 %v1928
        %5848 = vmatpush1.msra.mxu0 %v1927
        %5849 = vmatprep.subr.mxu0 %v1932
        %5850 = vmatpush1.msra.mxu0 %v1931
        %5851 = vmatprep.subr.mxu0 %v1936
        %5852 = vmatpush1.msra.mxu0 %v1935
        %5853 = vmatprep.subr.mxu0 %v1940
        %5854 = vmatpush1.msra.mxu0 %v1939
        %5855 = vmatprep.subr.mxu0 %v1944
        %5856 = vmatpush1.msra.mxu0 %v1943
        %5857 = vmatprep.subr.mxu0 %v1948
        %5858 = vmatpush1.msra.mxu0 %v1947
        %5859 = vmatprep.subr.mxu0 %v1952
        %5860 = vmatpush1.msra.mxu0 %v1951
        %5861 = vmatprep.mubr.f32.mxu0 %v394
        %5862 = vmatmul.mubr.f32.gmra.mrb[0].mxu0 %v393
        %v5863 = vpop.f32.mrb[0].mxu0
        %v5864 = vadd.f32 %v5793, %v5863
        %v5865 = vpop.f32.mrb[0].mxu0
        %v5866 = vadd.f32 %v5795, %v5865
        %5867 = vdwg.mxu0
        %5868 = vmatprep.subr.mxu0 %v1956
        %5869 = vmatpush1.msra.mxu0 %v1955
        %5870 = vmatprep.subr.mxu0 %v1960
        %5871 = vmatpush1.msra.mxu0 %v1959
        %5872 = vmatprep.subr.mxu0 %v1964
        %5873 = vmatpush1.msra.mxu0 %v1963
        %5874 = vmatprep.subr.mxu0 %v1968
        %5875 = vmatpush1.msra.mxu0 %v1967
        %5876 = vmatprep.subr.mxu0 %v1972
        %5877 = vmatpush1.msra.mxu0 %v1971
        %5878 = vmatprep.subr.mxu0 %v1976
        %5879 = vmatpush1.msra.mxu0 %v1975
        %5880 = vmatprep.subr.mxu0 %v1980
        %5881 = vmatpush1.msra.mxu0 %v1979
        %5882 = vmatprep.subr.mxu0 %v1984
        %5883 = vmatpush1.msra.mxu0 %v1983
        %5884 = vmatprep.subr.mxu0 %v1988
        %5885 = vmatpush1.msra.mxu0 %v1987
        %5886 = vmatprep.subr.mxu0 %v1992
        %5887 = vmatpush1.msra.mxu0 %v1991
        %5888 = vmatprep.subr.mxu0 %v1996
        %5889 = vmatpush1.msra.mxu0 %v1995
        %5890 = vmatprep.subr.mxu0 %v2000
        %5891 = vmatpush1.msra.mxu0 %v1999
        %5892 = vmatprep.subr.mxu0 %v2004
        %5893 = vmatpush1.msra.mxu0 %v2003
        %5894 = vmatprep.subr.mxu0 %v2008
        %5895 = vmatpush1.msra.mxu0 %v2007
        %5896 = vmatprep.subr.mxu0 %v2012
        %5897 = vmatpush1.msra.mxu0 %v2011
        %5898 = vmatprep.subr.mxu0 %v2016
        %5899 = vmatpush1.msra.mxu0 %v2015
        %5900 = vmatprep.subr.mxu0 %v2020
        %5901 = vmatpush1.msra.mxu0 %v2019
        %5902 = vmatprep.subr.mxu0 %v2024
        %5903 = vmatpush1.msra.mxu0 %v2023
        %5904 = vmatprep.subr.mxu0 %v2028
        %5905 = vmatpush1.msra.mxu0 %v2027
        %5906 = vmatprep.subr.mxu0 %v2032
        %5907 = vmatpush1.msra.mxu0 %v2031
        %5908 = vmatprep.subr.mxu0 %v2036
        %5909 = vmatpush1.msra.mxu0 %v2035
        %5910 = vmatprep.subr.mxu0 %v2040
        %5911 = vmatpush1.msra.mxu0 %v2039
        %5912 = vmatprep.subr.mxu0 %v2044
        %5913 = vmatpush1.msra.mxu0 %v2043
        %5914 = vmatprep.subr.mxu0 %v2048
        %5915 = vmatpush1.msra.mxu0 %v2047
        %5916 = vmatprep.subr.mxu0 %v2052
        %5917 = vmatpush1.msra.mxu0 %v2051
        %5918 = vmatprep.subr.mxu0 %v2056
        %5919 = vmatpush1.msra.mxu0 %v2055
        %5920 = vmatprep.subr.mxu0 %v2060
        %5921 = vmatpush1.msra.mxu0 %v2059
        %5922 = vmatprep.subr.mxu0 %v2064
        %5923 = vmatpush1.msra.mxu0 %v2063
        %5924 = vmatprep.subr.mxu0 %v2068
        %5925 = vmatpush1.msra.mxu0 %v2067
        %5926 = vmatprep.subr.mxu0 %v2072
        %5927 = vmatpush1.msra.mxu0 %v2071
        %5928 = vmatprep.subr.mxu0 %v2076
        %5929 = vmatpush1.msra.mxu0 %v2075
        %5930 = vmatprep.subr.mxu0 %v2080
        %5931 = vmatpush1.msra.mxu0 %v2079
        %5932 = vmatprep.mubr.f32.mxu0 %v396
        %5933 = vmatmul.mubr.f32.gmra.mrb[0].mxu0 %v395
        %v5934 = vpop.f32.mrb[0].mxu0
        %v5935 = vadd.f32 %v5864, %v5934
        %v5936 = vpop.f32.mrb[0].mxu0
        %v5937 = vadd.f32 %v5866, %v5936
        %5938 = vdwg.mxu0
        %5939 = vmatprep.subr.mxu0 %v2084
        %5940 = vmatpush1.msra.mxu0 %v2083
        %5941 = vmatprep.subr.mxu0 %v2088
        %5942 = vmatpush1.msra.mxu0 %v2087
        %5943 = vmatprep.subr.mxu0 %v2092
        %5944 = vmatpush1.msra.mxu0 %v2091
        %5945 = vmatprep.subr.mxu0 %v2096
        %5946 = vmatpush1.msra.mxu0 %v2095
        %5947 = vmatprep.subr.mxu0 %v2100
        %5948 = vmatpush1.msra.mxu0 %v2099
        %5949 = vmatprep.subr.mxu0 %v2104
        %5950 = vmatpush1.msra.mxu0 %v2103
        %5951 = vmatprep.subr.mxu0 %v2108
        %5952 = vmatpush1.msra.mxu0 %v2107
        %5953 = vmatprep.subr.mxu0 %v2112
        %5954 = vmatpush1.msra.mxu0 %v2111
        %5955 = vmatprep.subr.mxu0 %v2116
        %5956 = vmatpush1.msra.mxu0 %v2115
        %5957 = vmatprep.subr.mxu0 %v2120
        %5958 = vmatpush1.msra.mxu0 %v2119
        %5959 = vmatprep.subr.mxu0 %v2124
        %5960 = vmatpush1.msra.mxu0 %v2123
        %5961 = vmatprep.subr.mxu0 %v2128
        %5962 = vmatpush1.msra.mxu0 %v2127
        %5963 = vmatprep.subr.mxu0 %v2132
        %5964 = vmatpush1.msra.mxu0 %v2131
        %5965 = vmatprep.subr.mxu0 %v2136
        %5966 = vmatpush1.msra.mxu0 %v2135
        %5967 = vmatprep.subr.mxu0 %v2140
        %5968 = vmatpush1.msra.mxu0 %v2139
        %5969 = vmatprep.subr.mxu0 %v2144
        %5970 = vmatpush1.msra.mxu0 %v2143
        %5971 = vmatprep.subr.mxu0 %v2148
        %5972 = vmatpush1.msra.mxu0 %v2147
        %5973 = vmatprep.subr.mxu0 %v2152
        %5974 = vmatpush1.msra.mxu0 %v2151
        %5975 = vmatprep.subr.mxu0 %v2156
        %5976 = vmatpush1.msra.mxu0 %v2155
        %5977 = vmatprep.subr.mxu0 %v2160
        %5978 = vmatpush1.msra.mxu0 %v2159
        %5979 = vmatprep.subr.mxu0 %v2164
        %5980 = vmatpush1.msra.mxu0 %v2163
        %5981 = vmatprep.subr.mxu0 %v2168
        %5982 = vmatpush1.msra.mxu0 %v2167
        %5983 = vmatprep.subr.mxu0 %v2172
        %5984 = vmatpush1.msra.mxu0 %v2171
        %5985 = vmatprep.subr.mxu0 %v2176
        %5986 = vmatpush1.msra.mxu0 %v2175
        %5987 = vmatprep.subr.mxu0 %v2180
        %5988 = vmatpush1.msra.mxu0 %v2179
        %5989 = vmatprep.subr.mxu0 %v2184
        %5990 = vmatpush1.msra.mxu0 %v2183
        %5991 = vmatprep.subr.mxu0 %v2188
        %5992 = vmatpush1.msra.mxu0 %v2187
        %5993 = vmatprep.subr.mxu0 %v2192
        %5994 = vmatpush1.msra.mxu0 %v2191
        %5995 = vmatprep.subr.mxu0 %v2196
        %5996 = vmatpush1.msra.mxu0 %v2195
        %5997 = vmatprep.subr.mxu0 %v2200
        %5998 = vmatpush1.msra.mxu0 %v2199
        %5999 = vmatprep.subr.mxu0 %v2204
        %6000 = vmatpush1.msra.mxu0 %v2203
        %6001 = vmatprep.subr.mxu0 %v2208
        %6002 = vmatpush1.msra.mxu0 %v2207
        %6003 = vmatprep.mubr.f32.mxu0 %v398
        %6004 = vmatmul.mubr.f32.gmra.mrb[0].mxu0 %v397
        %v6005 = vpop.f32.mrb[0].mxu0
        %v6006 = vadd.f32 %v5935, %v6005
        %v6007 = vpop.f32.mrb[0].mxu0
        %v6008 = vadd.f32 %v5937, %v6007
        %6009 = vdwg.mxu0
        %6010 = vmatprep.subr.mxu0 %v2212
        %6011 = vmatpush1.msra.mxu0 %v2211
        %6012 = vmatprep.subr.mxu0 %v2216
        %6013 = vmatpush1.msra.mxu0 %v2215
        %6014 = vmatprep.subr.mxu0 %v2220
        %6015 = vmatpush1.msra.mxu0 %v2219
        %6016 = vmatprep.subr.mxu0 %v2224
        %6017 = vmatpush1.msra.mxu0 %v2223
        %6018 = vmatprep.subr.mxu0 %v2228
        %6019 = vmatpush1.msra.mxu0 %v2227
        %6020 = vmatprep.subr.mxu0 %v2232
        %6021 = vmatpush1.msra.mxu0 %v2231
        %6022 = vmatprep.subr.mxu0 %v2236
        %6023 = vmatpush1.msra.mxu0 %v2235
        %6024 = vmatprep.subr.mxu0 %v2240
        %6025 = vmatpush1.msra.mxu0 %v2239
        %6026 = vmatprep.subr.mxu0 %v2244
        %6027 = vmatpush1.msra.mxu0 %v2243
        %6028 = vmatprep.subr.mxu0 %v2248
        %6029 = vmatpush1.msra.mxu0 %v2247
        %6030 = vmatprep.subr.mxu0 %v2252
        %6031 = vmatpush1.msra.mxu0 %v2251
        %6032 = vmatprep.subr.mxu0 %v2256
        %6033 = vmatpush1.msra.mxu0 %v2255
        %6034 = vmatprep.subr.mxu0 %v2260
        %6035 = vmatpush1.msra.mxu0 %v2259
        %6036 = vmatprep.subr.mxu0 %v2264
        %6037 = vmatpush1.msra.mxu0 %v2263
        %6038 = vmatprep.subr.mxu0 %v2268
        %6039 = vmatpush1.msra.mxu0 %v2267
        %6040 = vmatprep.subr.mxu0 %v2272
        %6041 = vmatpush1.msra.mxu0 %v2271
        %6042 = vmatprep.subr.mxu0 %v2276
        %6043 = vmatpush1.msra.mxu0 %v2275
        %6044 = vmatprep.subr.mxu0 %v2280
        %6045 = vmatpush1.msra.mxu0 %v2279
        %6046 = vmatprep.subr.mxu0 %v2284
        %6047 = vmatpush1.msra.mxu0 %v2283
        %6048 = vmatprep.subr.mxu0 %v2288
        %6049 = vmatpush1.msra.mxu0 %v2287
        %6050 = vmatprep.subr.mxu0 %v2292
        %6051 = vmatpush1.msra.mxu0 %v2291
        %6052 = vmatprep.subr.mxu0 %v2296
        %6053 = vmatpush1.msra.mxu0 %v2295
        %6054 = vmatprep.subr.mxu0 %v2300
        %6055 = vmatpush1.msra.mxu0 %v2299
        %6056 = vmatprep.subr.mxu0 %v2304
        %6057 = vmatpush1.msra.mxu0 %v2303
        %6058 = vmatprep.subr.mxu0 %v2308
        %6059 = vmatpush1.msra.mxu0 %v2307
        %6060 = vmatprep.subr.mxu0 %v2312
        %6061 = vmatpush1.msra.mxu0 %v2311
        %6062 = vmatprep.subr.mxu0 %v2316
        %6063 = vmatpush1.msra.mxu0 %v2315
        %6064 = vmatprep.subr.mxu0 %v2320
        %6065 = vmatpush1.msra.mxu0 %v2319
        %6066 = vmatprep.subr.mxu0 %v2324
        %6067 = vmatpush1.msra.mxu0 %v2323
        %6068 = vmatprep.subr.mxu0 %v2328
        %6069 = vmatpush1.msra.mxu0 %v2327
        %6070 = vmatprep.subr.mxu0 %v2332
        %6071 = vmatpush1.msra.mxu0 %v2331
        %6072 = vmatprep.subr.mxu0 %v2336
        %6073 = vmatpush1.msra.mxu0 %v2335
        %6074 = vmatprep.mubr.f32.mxu0 %v400
        %6075 = vmatmul.mubr.f32.gmra.mrb[0].mxu0 %v399
        %v6076 = vpop.f32.mrb[0].mxu0
        %v6077 = vadd.f32 %v6006, %v6076
        %v6078 = vpop.f32.mrb[0].mxu0
        %v6079 = vadd.f32 %v6008, %v6078
        %6080 = vdwg.mxu0
        %6081 = vmatprep.subr.mxu0 %v2340
        %6082 = vmatpush1.msra.mxu0 %v2339
        %6083 = vmatprep.subr.mxu0 %v2344
        %6084 = vmatpush1.msra.mxu0 %v2343
        %6085 = vmatprep.subr.mxu0 %v2348
        %6086 = vmatpush1.msra.mxu0 %v2347
        %6087 = vmatprep.subr.mxu0 %v2352
        %6088 = vmatpush1.msra.mxu0 %v2351
        %6089 = vmatprep.subr.mxu0 %v2356
        %6090 = vmatpush1.msra.mxu0 %v2355
        %6091 = vmatprep.subr.mxu0 %v2360
        %6092 = vmatpush1.msra.mxu0 %v2359
        %6093 = vmatprep.subr.mxu0 %v2364
        %6094 = vmatpush1.msra.mxu0 %v2363
        %6095 = vmatprep.subr.mxu0 %v2368
        %6096 = vmatpush1.msra.mxu0 %v2367
        %6097 = vmatprep.subr.mxu0 %v2372
        %6098 = vmatpush1.msra.mxu0 %v2371
        %6099 = vmatprep.subr.mxu0 %v2376
        %6100 = vmatpush1.msra.mxu0 %v2375
        %6101 = vmatprep.subr.mxu0 %v2380
        %6102 = vmatpush1.msra.mxu0 %v2379
        %6103 = vmatprep.subr.mxu0 %v2384
        %6104 = vmatpush1.msra.mxu0 %v2383
        %6105 = vmatprep.subr.mxu0 %v2388
        %6106 = vmatpush1.msra.mxu0 %v2387
        %6107 = vmatprep.subr.mxu0 %v2392
        %6108 = vmatpush1.msra.mxu0 %v2391
        %6109 = vmatprep.subr.mxu0 %v2396
        %6110 = vmatpush1.msra.mxu0 %v2395
        %6111 = vmatprep.subr.mxu0 %v2400
        %6112 = vmatpush1.msra.mxu0 %v2399
        %6113 = vmatprep.subr.mxu0 %v2404
        %6114 = vmatpush1.msra.mxu0 %v2403
        %6115 = vmatprep.subr.mxu0 %v2408
        %6116 = vmatpush1.msra.mxu0 %v2407
        %6117 = vmatprep.subr.mxu0 %v2412
        %6118 = vmatpush1.msra.mxu0 %v2411
        %6119 = vmatprep.subr.mxu0 %v2416
        %6120 = vmatpush1.msra.mxu0 %v2415
        %6121 = vmatprep.subr.mxu0 %v2420
        %6122 = vmatpush1.msra.mxu0 %v2419
        %6123 = vmatprep.subr.mxu0 %v2424
        %6124 = vmatpush1.msra.mxu0 %v2423
        %6125 = vmatprep.subr.mxu0 %v2428
        %6126 = vmatpush1.msra.mxu0 %v2427
        %6127 = vmatprep.subr.mxu0 %v2432
        %6128 = vmatpush1.msra.mxu0 %v2431
        %6129 = vmatprep.subr.mxu0 %v2436
        %6130 = vmatpush1.msra.mxu0 %v2435
        %6131 = vmatprep.subr.mxu0 %v2440
        %6132 = vmatpush1.msra.mxu0 %v2439
        %6133 = vmatprep.subr.mxu0 %v2444
        %6134 = vmatpush1.msra.mxu0 %v2443
        %6135 = vmatprep.subr.mxu0 %v2448
        %6136 = vmatpush1.msra.mxu0 %v2447
        %6137 = vmatprep.subr.mxu0 %v2452
        %6138 = vmatpush1.msra.mxu0 %v2451
        %6139 = vmatprep.subr.mxu0 %v2456
        %6140 = vmatpush1.msra.mxu0 %v2455
        %6141 = vmatprep.subr.mxu0 %v2460
        %6142 = vmatpush1.msra.mxu0 %v2459
        %6143 = vmatprep.subr.mxu0 %v2464
        %6144 = vmatpush1.msra.mxu0 %v2463
        %6145 = vmatprep.mubr.f32.mxu0 %v402
        %6146 = vmatmul.mubr.f32.gmra.mrb[0].mxu0 %v401
        %v6147 = vpop.f32.mrb[0].mxu0
        %v6148 = vadd.f32 %v6077, %v6147
        %v6149 = vpop.f32.mrb[0].mxu0
        %v6150 = vadd.f32 %v6079, %v6149
        %6151 = vdwg.mxu0
        %6152 = vmatprep.subr.mxu0 %v2468
        %6153 = vmatpush1.msra.mxu0 %v2467
        %6154 = vmatprep.subr.mxu0 %v2472
        %6155 = vmatpush1.msra.mxu0 %v2471
        %6156 = vmatprep.subr.mxu0 %v2476
        %6157 = vmatpush1.msra.mxu0 %v2475
        %6158 = vmatprep.subr.mxu0 %v2480
        %6159 = vmatpush1.msra.mxu0 %v2479
        %6160 = vmatprep.subr.mxu0 %v2484
        %6161 = vmatpush1.msra.mxu0 %v2483
        %6162 = vmatprep.subr.mxu0 %v2488
        %6163 = vmatpush1.msra.mxu0 %v2487
        %6164 = vmatprep.subr.mxu0 %v2492
        %6165 = vmatpush1.msra.mxu0 %v2491
        %6166 = vmatprep.subr.mxu0 %v2496
        %6167 = vmatpush1.msra.mxu0 %v2495
        %6168 = vmatprep.subr.mxu0 %v2500
        %6169 = vmatpush1.msra.mxu0 %v2499
        %6170 = vmatprep.subr.mxu0 %v2504
        %6171 = vmatpush1.msra.mxu0 %v2503
        %6172 = vmatprep.subr.mxu0 %v2508
        %6173 = vmatpush1.msra.mxu0 %v2507
        %6174 = vmatprep.subr.mxu0 %v2512
        %6175 = vmatpush1.msra.mxu0 %v2511
        %6176 = vmatprep.subr.mxu0 %v2516
        %6177 = vmatpush1.msra.mxu0 %v2515
        %6178 = vmatprep.subr.mxu0 %v2520
        %6179 = vmatpush1.msra.mxu0 %v2519
        %6180 = vmatprep.subr.mxu0 %v2524
        %6181 = vmatpush1.msra.mxu0 %v2523
        %6182 = vmatprep.subr.mxu0 %v2528
        %6183 = vmatpush1.msra.mxu0 %v2527
        %6184 = vmatprep.subr.mxu0 %v2532
        %6185 = vmatpush1.msra.mxu0 %v2531
        %6186 = vmatprep.subr.mxu0 %v2536
        %6187 = vmatpush1.msra.mxu0 %v2535
        %6188 = vmatprep.subr.mxu0 %v2540
        %6189 = vmatpush1.msra.mxu0 %v2539
        %6190 = vmatprep.subr.mxu0 %v2544
        %6191 = vmatpush1.msra.mxu0 %v2543
        %6192 = vmatprep.subr.mxu0 %v2548
        %6193 = vmatpush1.msra.mxu0 %v2547
        %6194 = vmatprep.subr.mxu0 %v2552
        %6195 = vmatpush1.msra.mxu0 %v2551
        %6196 = vmatprep.subr.mxu0 %v2556
        %6197 = vmatpush1.msra.mxu0 %v2555
        %6198 = vmatprep.subr.mxu0 %v2560
        %6199 = vmatpush1.msra.mxu0 %v2559
        %6200 = vmatprep.subr.mxu0 %v2564
        %6201 = vmatpush1.msra.mxu0 %v2563
        %6202 = vmatprep.subr.mxu0 %v2568
        %6203 = vmatpush1.msra.mxu0 %v2567
        %6204 = vmatprep.subr.mxu0 %v2572
        %6205 = vmatpush1.msra.mxu0 %v2571
        %6206 = vmatprep.subr.mxu0 %v2576
        %6207 = vmatpush1.msra.mxu0 %v2575
        %6208 = vmatprep.subr.mxu0 %v2580
        %6209 = vmatpush1.msra.mxu0 %v2579
        %6210 = vmatprep.subr.mxu0 %v2584
        %6211 = vmatpush1.msra.mxu0 %v2583
        %6212 = vmatprep.subr.mxu0 %v2588
        %6213 = vmatpush1.msra.mxu0 %v2587
        %6214 = vmatprep.subr.mxu0 %v2592
        %6215 = vmatpush1.msra.mxu0 %v2591
        %6216 = vmatprep.mubr.f32.mxu0 %v404
        %6217 = vmatmul.mubr.f32.gmra.mrb[0].mxu0 %v403
        %v6218 = vpop.f32.mrb[0].mxu0
        %v6219 = vadd.f32 %v6148, %v6218
        %v6220 = vpop.f32.mrb[0].mxu0
        %v6221 = vadd.f32 %v6150, %v6220
        %6222 = vdwg.mxu0
        %6223 = vmatprep.subr.mxu0 %v2596
        %6224 = vmatpush1.msra.mxu0 %v2595
        %6225 = vmatprep.subr.mxu0 %v2600
        %6226 = vmatpush1.msra.mxu0 %v2599
        %6227 = vmatprep.subr.mxu0 %v2604
        %6228 = vmatpush1.msra.mxu0 %v2603
        %6229 = vmatprep.subr.mxu0 %v2608
        %6230 = vmatpush1.msra.mxu0 %v2607
        %6231 = vmatprep.subr.mxu0 %v2612
        %6232 = vmatpush1.msra.mxu0 %v2611
        %6233 = vmatprep.subr.mxu0 %v2616
        %6234 = vmatpush1.msra.mxu0 %v2615
        %6235 = vmatprep.subr.mxu0 %v2620
        %6236 = vmatpush1.msra.mxu0 %v2619
        %6237 = vmatprep.subr.mxu0 %v2624
        %6238 = vmatpush1.msra.mxu0 %v2623
        %6239 = vmatprep.subr.mxu0 %v2628
        %6240 = vmatpush1.msra.mxu0 %v2627
        %6241 = vmatprep.subr.mxu0 %v2632
        %6242 = vmatpush1.msra.mxu0 %v2631
        %6243 = vmatprep.subr.mxu0 %v2636
        %6244 = vmatpush1.msra.mxu0 %v2635
        %6245 = vmatprep.subr.mxu0 %v2640
        %6246 = vmatpush1.msra.mxu0 %v2639
        %6247 = vmatprep.subr.mxu0 %v2644
        %6248 = vmatpush1.msra.mxu0 %v2643
        %6249 = vmatprep.subr.mxu0 %v2648
        %6250 = vmatpush1.msra.mxu0 %v2647
        %6251 = vmatprep.subr.mxu0 %v2652
        %6252 = vmatpush1.msra.mxu0 %v2651
        %6253 = vmatprep.subr.mxu0 %v2656
        %6254 = vmatpush1.msra.mxu0 %v2655
        %6255 = vmatprep.subr.mxu0 %v2660
        %6256 = vmatpush1.msra.mxu0 %v2659
        %6257 = vmatprep.subr.mxu0 %v2664
        %6258 = vmatpush1.msra.mxu0 %v2663
        %6259 = vmatprep.subr.mxu0 %v2668
        %6260 = vmatpush1.msra.mxu0 %v2667
        %6261 = vmatprep.subr.mxu0 %v2672
        %6262 = vmatpush1.msra.mxu0 %v2671
        %6263 = vmatprep.subr.mxu0 %v2676
        %6264 = vmatpush1.msra.mxu0 %v2675
        %6265 = vmatprep.subr.mxu0 %v2680
        %6266 = vmatpush1.msra.mxu0 %v2679
        %6267 = vmatprep.subr.mxu0 %v2684
        %6268 = vmatpush1.msra.mxu0 %v2683
        %6269 = vmatprep.subr.mxu0 %v2688
        %6270 = vmatpush1.msra.mxu0 %v2687
        %6271 = vmatprep.subr.mxu0 %v2692
        %6272 = vmatpush1.msra.mxu0 %v2691
        %6273 = vmatprep.subr.mxu0 %v2696
        %6274 = vmatpush1.msra.mxu0 %v2695
        %6275 = vmatprep.subr.mxu0 %v2700
        %6276 = vmatpush1.msra.mxu0 %v2699
        %6277 = vmatprep.subr.mxu0 %v2704
        %6278 = vmatpush1.msra.mxu0 %v2703
        %6279 = vmatprep.subr.mxu0 %v2708
        %6280 = vmatpush1.msra.mxu0 %v2707
        %6281 = vmatprep.subr.mxu0 %v2712
        %6282 = vmatpush1.msra.mxu0 %v2711
        %6283 = vmatprep.subr.mxu0 %v2716
        %6284 = vmatpush1.msra.mxu0 %v2715
        %6285 = vmatprep.subr.mxu0 %v2720
        %6286 = vmatpush1.msra.mxu0 %v2719
        %6287 = vmatprep.mubr.f32.mxu0 %v406
        %6288 = vmatmul.mubr.f32.gmra.mrb[0].mxu0 %v405
        %v6289 = vpop.f32.mrb[0].mxu0
        %v6290 = vadd.f32 %v6219, %v6289
        %v6291 = vpop.f32.mrb[0].mxu0
        %v6292 = vadd.f32 %v6221, %v6291
        %6293 = vdwg.mxu0
        %6294 = vmatprep.subr.mxu0 %v2724
        %6295 = vmatpush1.msra.mxu0 %v2723
        %6296 = vmatprep.subr.mxu0 %v2728
        %6297 = vmatpush1.msra.mxu0 %v2727
        %6298 = vmatprep.subr.mxu0 %v2732
        %6299 = vmatpush1.msra.mxu0 %v2731
        %6300 = vmatprep.subr.mxu0 %v2736
        %6301 = vmatpush1.msra.mxu0 %v2735
        %6302 = vmatprep.subr.mxu0 %v2740
        %6303 = vmatpush1.msra.mxu0 %v2739
        %6304 = vmatprep.subr.mxu0 %v2744
        %6305 = vmatpush1.msra.mxu0 %v2743
        %6306 = vmatprep.subr.mxu0 %v2748
        %6307 = vmatpush1.msra.mxu0 %v2747
        %6308 = vmatprep.subr.mxu0 %v2752
        %6309 = vmatpush1.msra.mxu0 %v2751
        %6310 = vmatprep.subr.mxu0 %v2756
        %6311 = vmatpush1.msra.mxu0 %v2755
        %6312 = vmatprep.subr.mxu0 %v2760
        %6313 = vmatpush1.msra.mxu0 %v2759
        %6314 = vmatprep.subr.mxu0 %v2764
        %6315 = vmatpush1.msra.mxu0 %v2763
        %6316 = vmatprep.subr.mxu0 %v2768
        %6317 = vmatpush1.msra.mxu0 %v2767
        %6318 = vmatprep.subr.mxu0 %v2772
        %6319 = vmatpush1.msra.mxu0 %v2771
        %6320 = vmatprep.subr.mxu0 %v2776
        %6321 = vmatpush1.msra.mxu0 %v2775
        %6322 = vmatprep.subr.mxu0 %v2780
        %6323 = vmatpush1.msra.mxu0 %v2779
        %6324 = vmatprep.subr.mxu0 %v2784
        %6325 = vmatpush1.msra.mxu0 %v2783
        %6326 = vmatprep.subr.mxu0 %v2788
        %6327 = vmatpush1.msra.mxu0 %v2787
        %6328 = vmatprep.subr.mxu0 %v2792
        %6329 = vmatpush1.msra.mxu0 %v2791
        %6330 = vmatprep.subr.mxu0 %v2796
        %6331 = vmatpush1.msra.mxu0 %v2795
        %6332 = vmatprep.subr.mxu0 %v2800
        %6333 = vmatpush1.msra.mxu0 %v2799
        %6334 = vmatprep.subr.mxu0 %v2804
        %6335 = vmatpush1.msra.mxu0 %v2803
        %6336 = vmatprep.subr.mxu0 %v2808
        %6337 = vmatpush1.msra.mxu0 %v2807
        %6338 = vmatprep.subr.mxu0 %v2812
        %6339 = vmatpush1.msra.mxu0 %v2811
        %6340 = vmatprep.subr.mxu0 %v2816
        %6341 = vmatpush1.msra.mxu0 %v2815
        %6342 = vmatprep.subr.mxu0 %v2820
        %6343 = vmatpush1.msra.mxu0 %v2819
        %6344 = vmatprep.subr.mxu0 %v2824
        %6345 = vmatpush1.msra.mxu0 %v2823
        %6346 = vmatprep.subr.mxu0 %v2828
        %6347 = vmatpush1.msra.mxu0 %v2827
        %6348 = vmatprep.subr.mxu0 %v2832
        %6349 = vmatpush1.msra.mxu0 %v2831
        %6350 = vmatprep.subr.mxu0 %v2836
        %6351 = vmatpush1.msra.mxu0 %v2835
        %6352 = vmatprep.subr.mxu0 %v2840
        %6353 = vmatpush1.msra.mxu0 %v2839
        %6354 = vmatprep.subr.mxu0 %v2844
        %6355 = vmatpush1.msra.mxu0 %v2843
        %6356 = vmatprep.subr.mxu0 %v2848
        %6357 = vmatpush1.msra.mxu0 %v2847
        %6358 = vmatprep.mubr.f32.mxu0 %v408
        %6359 = vmatmul.mubr.f32.gmra.mrb[0].mxu0 %v407
        %v6360 = vpop.f32.mrb[0].mxu0
        %v6361 = vadd.f32 %v6290, %v6360
        %v6362 = vpop.f32.mrb[0].mxu0
        %v6363 = vadd.f32 %v6292, %v6362
        %6364 = vdwg.mxu0
        %6365 = vmatprep.subr.mxu0 %v2852
        %6366 = vmatpush1.msra.mxu0 %v2851
        %6367 = vmatprep.subr.mxu0 %v2856
        %6368 = vmatpush1.msra.mxu0 %v2855
        %6369 = vmatprep.subr.mxu0 %v2860
        %6370 = vmatpush1.msra.mxu0 %v2859
        %6371 = vmatprep.subr.mxu0 %v2864
        %6372 = vmatpush1.msra.mxu0 %v2863
        %6373 = vmatprep.subr.mxu0 %v2868
        %6374 = vmatpush1.msra.mxu0 %v2867
        %6375 = vmatprep.subr.mxu0 %v2872
        %6376 = vmatpush1.msra.mxu0 %v2871
        %6377 = vmatprep.subr.mxu0 %v2876
        %6378 = vmatpush1.msra.mxu0 %v2875
        %6379 = vmatprep.subr.mxu0 %v2880
        %6380 = vmatpush1.msra.mxu0 %v2879
        %6381 = vmatprep.subr.mxu0 %v2884
        %6382 = vmatpush1.msra.mxu0 %v2883
        %6383 = vmatprep.subr.mxu0 %v2888
        %6384 = vmatpush1.msra.mxu0 %v2887
        %6385 = vmatprep.subr.mxu0 %v2892
        %6386 = vmatpush1.msra.mxu0 %v2891
        %6387 = vmatprep.subr.mxu0 %v2896
        %6388 = vmatpush1.msra.mxu0 %v2895
        %6389 = vmatprep.subr.mxu0 %v2900
        %6390 = vmatpush1.msra.mxu0 %v2899
        %6391 = vmatprep.subr.mxu0 %v2904
        %6392 = vmatpush1.msra.mxu0 %v2903
        %6393 = vmatprep.subr.mxu0 %v2908
        %6394 = vmatpush1.msra.mxu0 %v2907
        %6395 = vmatprep.subr.mxu0 %v2912
        %6396 = vmatpush1.msra.mxu0 %v2911
        %6397 = vmatprep.subr.mxu0 %v2916
        %6398 = vmatpush1.msra.mxu0 %v2915
        %6399 = vmatprep.subr.mxu0 %v2920
        %6400 = vmatpush1.msra.mxu0 %v2919
        %6401 = vmatprep.subr.mxu0 %v2924
        %6402 = vmatpush1.msra.mxu0 %v2923
        %6403 = vmatprep.subr.mxu0 %v2928
        %6404 = vmatpush1.msra.mxu0 %v2927
        %6405 = vmatprep.subr.mxu0 %v2932
        %6406 = vmatpush1.msra.mxu0 %v2931
        %6407 = vmatprep.subr.mxu0 %v2936
        %6408 = vmatpush1.msra.mxu0 %v2935
        %6409 = vmatprep.subr.mxu0 %v2940
        %6410 = vmatpush1.msra.mxu0 %v2939
        %6411 = vmatprep.subr.mxu0 %v2944
        %6412 = vmatpush1.msra.mxu0 %v2943
        %6413 = vmatprep.subr.mxu0 %v2948
        %6414 = vmatpush1.msra.mxu0 %v2947
        %6415 = vmatprep.subr.mxu0 %v2952
        %6416 = vmatpush1.msra.mxu0 %v2951
        %6417 = vmatprep.subr.mxu0 %v2956
        %6418 = vmatpush1.msra.mxu0 %v2955
        %6419 = vmatprep.subr.mxu0 %v2960
        %6420 = vmatpush1.msra.mxu0 %v2959
        %6421 = vmatprep.subr.mxu0 %v2964
        %6422 = vmatpush1.msra.mxu0 %v2963
        %6423 = vmatprep.subr.mxu0 %v2968
        %6424 = vmatpush1.msra.mxu0 %v2967
        %6425 = vmatprep.subr.mxu0 %v2972
        %6426 = vmatpush1.msra.mxu0 %v2971
        %6427 = vmatprep.subr.mxu0 %v2976
        %6428 = vmatpush1.msra.mxu0 %v2975
        %6429 = vmatprep.mubr.f32.mxu0 %v410
        %6430 = vmatmul.mubr.f32.gmra.mrb[0].mxu0 %v409
        %v6431 = vpop.f32.mrb[0].mxu0
        %v6432 = vadd.f32 %v6361, %v6431
        %v6433 = vpop.f32.mrb[0].mxu0
        %v6434 = vadd.f32 %v6363, %v6433
        %6435 = vdwg.mxu0
        %6436 = vmatprep.subr.mxu0 %v2980
        %6437 = vmatpush1.msra.mxu0 %v2979
        %6438 = vmatprep.subr.mxu0 %v2984
        %6439 = vmatpush1.msra.mxu0 %v2983
        %6440 = vmatprep.subr.mxu0 %v2988
        %6441 = vmatpush1.msra.mxu0 %v2987
        %6442 = vmatprep.subr.mxu0 %v2992
        %6443 = vmatpush1.msra.mxu0 %v2991
        %6444 = vmatprep.subr.mxu0 %v2996
        %6445 = vmatpush1.msra.mxu0 %v2995
        %6446 = vmatprep.subr.mxu0 %v3000
        %6447 = vmatpush1.msra.mxu0 %v2999
        %6448 = vmatprep.subr.mxu0 %v3004
        %6449 = vmatpush1.msra.mxu0 %v3003
        %6450 = vmatprep.subr.mxu0 %v3008
        %6451 = vmatpush1.msra.mxu0 %v3007
        %6452 = vmatprep.subr.mxu0 %v3012
        %6453 = vmatpush1.msra.mxu0 %v3011
        %6454 = vmatprep.subr.mxu0 %v3016
        %6455 = vmatpush1.msra.mxu0 %v3015
        %6456 = vmatprep.subr.mxu0 %v3020
        %6457 = vmatpush1.msra.mxu0 %v3019
        %6458 = vmatprep.subr.mxu0 %v3024
        %6459 = vmatpush1.msra.mxu0 %v3023
        %6460 = vmatprep.subr.mxu0 %v3028
        %6461 = vmatpush1.msra.mxu0 %v3027
        %6462 = vmatprep.subr.mxu0 %v3032
        %6463 = vmatpush1.msra.mxu0 %v3031
        %6464 = vmatprep.subr.mxu0 %v3036
        %6465 = vmatpush1.msra.mxu0 %v3035
        %6466 = vmatprep.subr.mxu0 %v3040
        %6467 = vmatpush1.msra.mxu0 %v3039
        %6468 = vmatprep.subr.mxu0 %v3044
        %6469 = vmatpush1.msra.mxu0 %v3043
        %6470 = vmatprep.subr.mxu0 %v3048
        %6471 = vmatpush1.msra.mxu0 %v3047
        %6472 = vmatprep.subr.mxu0 %v3052
        %6473 = vmatpush1.msra.mxu0 %v3051
        %6474 = vmatprep.subr.mxu0 %v3056
        %6475 = vmatpush1.msra.mxu0 %v3055
        %6476 = vmatprep.subr.mxu0 %v3060
        %6477 = vmatpush1.msra.mxu0 %v3059
        %6478 = vmatprep.subr.mxu0 %v3064
        %6479 = vmatpush1.msra.mxu0 %v3063
        %6480 = vmatprep.subr.mxu0 %v3068
        %6481 = vmatpush1.msra.mxu0 %v3067
        %6482 = vmatprep.subr.mxu0 %v3072
        %6483 = vmatpush1.msra.mxu0 %v3071
        %6484 = vmatprep.subr.mxu0 %v3076
        %6485 = vmatpush1.msra.mxu0 %v3075
        %6486 = vmatprep.subr.mxu0 %v3080
        %6487 = vmatpush1.msra.mxu0 %v3079
        %6488 = vmatprep.subr.mxu0 %v3084
        %6489 = vmatpush1.msra.mxu0 %v3083
        %6490 = vmatprep.subr.mxu0 %v3088
        %6491 = vmatpush1.msra.mxu0 %v3087
        %6492 = vmatprep.subr.mxu0 %v3092
        %6493 = vmatpush1.msra.mxu0 %v3091
        %6494 = vmatprep.subr.mxu0 %v3096
        %6495 = vmatpush1.msra.mxu0 %v3095
        %6496 = vmatprep.subr.mxu0 %v3100
        %6497 = vmatpush1.msra.mxu0 %v3099
        %6498 = vmatprep.subr.mxu0 %v3104
        %6499 = vmatpush1.msra.mxu0 %v3103
        %6500 = vmatprep.mubr.f32.mxu0 %v412
        %6501 = vmatmul.mubr.f32.gmra.mrb[0].mxu0 %v411
        %v6502 = vpop.f32.mrb[0].mxu0
        %v6503 = vadd.f32 %v6432, %v6502
        %v6504 = vpop.f32.mrb[0].mxu0
        %v6505 = vadd.f32 %v6434, %v6504
        %6506 = vdwg.mxu0
        %6507 = vmatprep.subr.mxu0 %v3108
        %6508 = vmatpush1.msra.mxu0 %v3107
        %6509 = vmatprep.subr.mxu0 %v3112
        %6510 = vmatpush1.msra.mxu0 %v3111
        %6511 = vmatprep.subr.mxu0 %v3116
        %6512 = vmatpush1.msra.mxu0 %v3115
        %6513 = vmatprep.subr.mxu0 %v3120
        %6514 = vmatpush1.msra.mxu0 %v3119
        %6515 = vmatprep.subr.mxu0 %v3124
        %6516 = vmatpush1.msra.mxu0 %v3123
        %6517 = vmatprep.subr.mxu0 %v3128
        %6518 = vmatpush1.msra.mxu0 %v3127
        %6519 = vmatprep.subr.mxu0 %v3132
        %6520 = vmatpush1.msra.mxu0 %v3131
        %6521 = vmatprep.subr.mxu0 %v3136
        %6522 = vmatpush1.msra.mxu0 %v3135
        %6523 = vmatprep.subr.mxu0 %v3140
        %6524 = vmatpush1.msra.mxu0 %v3139
        %6525 = vmatprep.subr.mxu0 %v3144
        %6526 = vmatpush1.msra.mxu0 %v3143
        %6527 = vmatprep.subr.mxu0 %v3148
        %6528 = vmatpush1.msra.mxu0 %v3147
        %6529 = vmatprep.subr.mxu0 %v3152
        %6530 = vmatpush1.msra.mxu0 %v3151
        %6531 = vmatprep.subr.mxu0 %v3156
        %6532 = vmatpush1.msra.mxu0 %v3155
        %6533 = vmatprep.subr.mxu0 %v3160
        %6534 = vmatpush1.msra.mxu0 %v3159
        %6535 = vmatprep.subr.mxu0 %v3164
        %6536 = vmatpush1.msra.mxu0 %v3163
        %6537 = vmatprep.subr.mxu0 %v3168
        %6538 = vmatpush1.msra.mxu0 %v3167
        %6539 = vmatprep.subr.mxu0 %v3172
        %6540 = vmatpush1.msra.mxu0 %v3171
        %6541 = vmatprep.subr.mxu0 %v3176
        %6542 = vmatpush1.msra.mxu0 %v3175
        %6543 = vmatprep.subr.mxu0 %v3180
        %6544 = vmatpush1.msra.mxu0 %v3179
        %6545 = vmatprep.subr.mxu0 %v3184
        %6546 = vmatpush1.msra.mxu0 %v3183
        %6547 = vmatprep.subr.mxu0 %v3188
        %6548 = vmatpush1.msra.mxu0 %v3187
        %6549 = vmatprep.subr.mxu0 %v3192
        %6550 = vmatpush1.msra.mxu0 %v3191
        %6551 = vmatprep.subr.mxu0 %v3196
        %6552 = vmatpush1.msra.mxu0 %v3195
        %6553 = vmatprep.subr.mxu0 %v3200
        %6554 = vmatpush1.msra.mxu0 %v3199
        %6555 = vmatprep.subr.mxu0 %v3204
        %6556 = vmatpush1.msra.mxu0 %v3203
        %6557 = vmatprep.subr.mxu0 %v3208
        %6558 = vmatpush1.msra.mxu0 %v3207
        %6559 = vmatprep.subr.mxu0 %v3212
        %6560 = vmatpush1.msra.mxu0 %v3211
        %6561 = vmatprep.subr.mxu0 %v3216
        %6562 = vmatpush1.msra.mxu0 %v3215
        %6563 = vmatprep.subr.mxu0 %v3220
        %6564 = vmatpush1.msra.mxu0 %v3219
        %6565 = vmatprep.subr.mxu0 %v3224
        %6566 = vmatpush1.msra.mxu0 %v3223
        %6567 = vmatprep.subr.mxu0 %v3228
        %6568 = vmatpush1.msra.mxu0 %v3227
        %6569 = vmatprep.subr.mxu0 %v3232
        %6570 = vmatpush1.msra.mxu0 %v3231
        %6571 = vmatprep.mubr.f32.mxu0 %v414
        %6572 = vmatmul.mubr.f32.gmra.mrb[0].mxu0 %v413
        %v6573 = vpop.f32.mrb[0].mxu0
        %v6574 = vadd.f32 %v6503, %v6573
        %v6575 = vpop.f32.mrb[0].mxu0
        %v6576 = vadd.f32 %v6505, %v6575
        %6577 = vdwg.mxu0
        %6578 = vmatprep.subr.mxu0 %v3236
        %6579 = vmatpush1.msra.mxu0 %v3235
        %6580 = vmatprep.subr.mxu0 %v3240
        %6581 = vmatpush1.msra.mxu0 %v3239
        %6582 = vmatprep.subr.mxu0 %v3244
        %6583 = vmatpush1.msra.mxu0 %v3243
        %6584 = vmatprep.subr.mxu0 %v3248
        %6585 = vmatpush1.msra.mxu0 %v3247
        %6586 = vmatprep.subr.mxu0 %v3252
        %6587 = vmatpush1.msra.mxu0 %v3251
        %6588 = vmatprep.subr.mxu0 %v3256
        %6589 = vmatpush1.msra.mxu0 %v3255
        %6590 = vmatprep.subr.mxu0 %v3260
        %6591 = vmatpush1.msra.mxu0 %v3259
        %6592 = vmatprep.subr.mxu0 %v3264
        %6593 = vmatpush1.msra.mxu0 %v3263
        %6594 = vmatprep.subr.mxu0 %v3268
        %6595 = vmatpush1.msra.mxu0 %v3267
        %6596 = vmatprep.subr.mxu0 %v3272
        %6597 = vmatpush1.msra.mxu0 %v3271
        %6598 = vmatprep.subr.mxu0 %v3276
        %6599 = vmatpush1.msra.mxu0 %v3275
        %6600 = vmatprep.subr.mxu0 %v3280
        %6601 = vmatpush1.msra.mxu0 %v3279
        %6602 = vmatprep.subr.mxu0 %v3284
        %6603 = vmatpush1.msra.mxu0 %v3283
        %6604 = vmatprep.subr.mxu0 %v3288
        %6605 = vmatpush1.msra.mxu0 %v3287
        %6606 = vmatprep.subr.mxu0 %v3292
        %6607 = vmatpush1.msra.mxu0 %v3291
        %6608 = vmatprep.subr.mxu0 %v3296
        %6609 = vmatpush1.msra.mxu0 %v3295
        %6610 = vmatprep.subr.mxu0 %v3300
        %6611 = vmatpush1.msra.mxu0 %v3299
        %6612 = vmatprep.subr.mxu0 %v3304
        %6613 = vmatpush1.msra.mxu0 %v3303
        %6614 = vmatprep.subr.mxu0 %v3308
        %6615 = vmatpush1.msra.mxu0 %v3307
        %6616 = vmatprep.subr.mxu0 %v3312
        %6617 = vmatpush1.msra.mxu0 %v3311
        %6618 = vmatprep.subr.mxu0 %v3316
        %6619 = vmatpush1.msra.mxu0 %v3315
        %6620 = vmatprep.subr.mxu0 %v3320
        %6621 = vmatpush1.msra.mxu0 %v3319
        %6622 = vmatprep.subr.mxu0 %v3324
        %6623 = vmatpush1.msra.mxu0 %v3323
        %6624 = vmatprep.subr.mxu0 %v3328
        %6625 = vmatpush1.msra.mxu0 %v3327
        %6626 = vmatprep.subr.mxu0 %v3332
        %6627 = vmatpush1.msra.mxu0 %v3331
        %6628 = vmatprep.subr.mxu0 %v3336
        %6629 = vmatpush1.msra.mxu0 %v3335
        %6630 = vmatprep.subr.mxu0 %v3340
        %6631 = vmatpush1.msra.mxu0 %v3339
        %6632 = vmatprep.subr.mxu0 %v3344
        %6633 = vmatpush1.msra.mxu0 %v3343
        %6634 = vmatprep.subr.mxu0 %v3348
        %6635 = vmatpush1.msra.mxu0 %v3347
        %6636 = vmatprep.subr.mxu0 %v3352
        %6637 = vmatpush1.msra.mxu0 %v3351
        %6638 = vmatprep.subr.mxu0 %v3356
        %6639 = vmatpush1.msra.mxu0 %v3355
        %6640 = vmatprep.subr.mxu0 %v3360
        %6641 = vmatpush1.msra.mxu0 %v3359
        %6642 = vmatprep.mubr.f32.mxu0 %v416
        %6643 = vmatmul.mubr.f32.gmra.mrb[0].mxu0 %v415
        %v6644 = vpop.f32.mrb[0].mxu0
        %v6645 = vadd.f32 %v6574, %v6644
        %v6646 = vpop.f32.mrb[0].mxu0
        %v6647 = vadd.f32 %v6576, %v6646
        %6648 = vdwg.mxu0
        %v6649 = vld [vmem:[%s310] sm:$0xf]
        %v6651 = vlaneseq
        %v6652 = vshrl.u32 %v6651, 7
        %v6653 = vsub.s32 0, %v6652
        %v6654 = vrot.slane %v6649, %v6653
        %v6655 = vlaneseq
        %v6656 = vshrl.u32 %v6655, 7
        %v6657 = vsub.s32 1, %v6656
        %v6658 = vrot.slane %v6649, %v6657
        %v6659 = vlaneseq
        %v6660 = vshrl.u32 %v6659, 7
        %v6661 = vsub.s32 2, %v6660
        %v6662 = vrot.slane %v6649, %v6661
        %v6663 = vlaneseq
        %v6664 = vshrl.u32 %v6663, 7
        %v6665 = vsub.s32 3, %v6664
        %v6666 = vrot.slane %v6649, %v6665
        %v6671 = vmul.f32 %v5012, %v6654
        %v6672 = vmul.f32 %v5014, %v6658
        %v6673 = vmul.f32 %v6645, %v6662
        %v6674 = vmul.f32 %v6647, %v6666
        %v6675 = vld [vmem:[%s319] sm:$0xf]
        %v6677 = vlaneseq
        %v6678 = vshrl.u32 %v6677, 7
        %v6679 = vsub.s32 0, %v6678
        %v6680 = vrot.slane %v6675, %v6679
        %v6681 = vlaneseq
        %v6682 = vshrl.u32 %v6681, 7
        %v6683 = vsub.s32 1, %v6682
        %v6684 = vrot.slane %v6675, %v6683
        %v6685 = vlaneseq
        %v6686 = vshrl.u32 %v6685, 7
        %v6687 = vsub.s32 2, %v6686
        %v6688 = vrot.slane %v6675, %v6687
        %v6689 = vlaneseq
        %v6690 = vshrl.u32 %v6689, 7
        %v6691 = vsub.s32 3, %v6690
        %v6692 = vrot.slane %v6675, %v6691
        %v6697 = vadd.f32 %v6671, %v6680
        %v6698 = vadd.f32 %v6672, %v6684
        %v6699 = vadd.f32 %v6673, %v6688
        %v6700 = vadd.f32 %v6674, %v6692
        %v6701 = vmax.f32 %v6697, 0.0
        %v6702 = vmax.f32 %v6698, 0.0
        %v6703 = vmax.f32 %v6699, 0.0
        %v6704 = vmax.f32 %v6700, 0.0
        %6705 = vst [vmem:[%s369] sm:$0xff] %v6701
        %6706 = vst [vmem:[%s369 + $0x8] sm:$0xff] %v6702
        %6707 = vst [vmem:[%s369 + $0x10] sm:$0xff] %v6703
        %6708 = vst [vmem:[%s369 + $0x18] sm:$0xff] %v6704
        %s6709 = smul.u32 4, %s23
        %p6710 = scmp.lt.s32.totalorder %s6709, 7
        %s6711 = scalar_select %p6710, %s6709, 7
        %s6712 = smul.addr %s6711, 8
        %s6713 = scalar_lea.vmem %s5, %s6712
        // Predicated region
        $region61: #{coattention_net_forward.2} parent=39 // pred_check
          %p6714 = pneg %p166
        $region62: #{coattention_net_forward.2} parent=39 // pred_check_branch
          %6716 = sbr.rel (%p6714) target = $region64
        $region63: #{coattention_net_forward.2} parent=39 // pred_region
          %s6717 = smul.u32 4, %s23
        $region64: #{coattention_net_forward.2} parent=39 // pred_fallthru
          _
      $region40: #{coattention_net_forward.2} parent=5 // pred_fallthru
        _
      %p6718 = scmp.le.s32.totalorder 2, %s18
      // Predicated region
      $region65: #{coattention_net_forward.2} parent=5 // pred_check
        %p6719 = pneg %p6718
      $region66: #{coattention_net_forward.2} parent=5 // pred_check_branch
        %6721 = sbr.rel (%p6719) target = $region68
      $region67: #{coattention_net_forward.2} parent=5 // pred_region
        %s6722 = ssub.s32 %s18, 2
        // Predicated region
        $region69: #{coattention_net_forward.2} parent=67 // pred_check
          %p6723 = pneg %p172
        $region70: #{coattention_net_forward.2} parent=67 // pred_check_branch
          %6725 = sbr.rel (%p6723) target = $region72
        $region71: #{coattention_net_forward.2} parent=67 // pred_region
          %s6726 = smul.u32 4, %s24
          %p6727 = scmp.lt.s32.totalorder %s6726, 7
          %s6728 = scalar_select %p6727, %s6726, 7
          %s6729 = smul.addr %s6728, 8
          %s6730 = scalar_lea.vmem %s5, %s6729
        $region72: #{coattention_net_forward.2} parent=67 // pred_fallthru
          _
      $region68: #{coattention_net_forward.2} parent=5 // pred_fallthru
        _
    $region6: #{coattention_net_forward.2} parent=1 // loop_footer
      %s22 = sadd.s32 1, %s18
    $region7: #{coattention_net_forward.2} parent=1 // loop_footer_branch
      %17 = sbr.rel target = $region3
    $region8: #{coattention_net_forward.2} parent=1 // loop_exit
      _
    %6731 = vsyncpa [#allocation3], 1
    %s6732 = scalar_lea.sflag [#allocation3], 1
    %6733 = vsyncpa %s6732, 1
    %6734 = vsyncpa [#allocation5], 1
    %s6735 = scalar_lea.sflag [#allocation5], 1
    %6736 = vsyncpa %s6735, 1
    %6737 = vsyncpa [#allocation8], 1
    %s6738 = scalar_lea.sflag [#allocation8], 1
    %6739 = vsyncpa %s6738, 1

</llo_original>
